<compile_context>
chip_gen: v7x
topology: tpu7x:2x2x1
jax: 0.10.0
libtpu: 0.0.40
codegen_flags: <defaults>
</compile_context>

<pallas_src>
import jax
import jax.numpy as jnp
from jax import lax
from jax.experimental import pallas as pl
from jax.experimental.pallas import tpu as pltpu


def _round_up(x, m):
    return (x + m - 1) // m * m


def _cdiv(a, b):
    return -(-a // b)


def _pick_tile(M, target, *, mult=1, min_steps=2):
    """Largest tile <= target that is a multiple of `mult`, divides M and gives
    >= min_steps grid steps; otherwise fall back to padding M."""
    best = None
    t = mult
    lim = min(target, M)
    while t <= lim:
        if M % t == 0 and M // t >= min_steps:
            best = t
        t += mult
    if best is not None:
        return best, M
    t = max(mult, min(target, _round_up(_cdiv(M, min_steps), mult)))
    return t, _round_up(M, t)


# ----------------------------- Pallas kernels ------------------------------

def _conv1_kernel(p_ref, w_ref, b_ref, o_ref):
    """conv1 (im2col matmul) + 2x2 maxpool + bias + ReLU, lane-dense output.

    p_ref: (4, MT, 25) bf16  -- 4 pool-window members for MT pooled positions
    w_ref: (25, 16)   bf16
    b_ref: (1, 16)    f32
    o_ref: (MT, 16)   bf16
    """
    four, mt, k = p_ref.shape
    cout = w_ref.shape[1]
    p = p_ref[...].reshape(four * mt, k)        # layout-free (mt % 8 == 0)
    y = jnp.dot(p, w_ref[...], preferred_element_type=jnp.float32)
    y = jnp.max(y.reshape(four, mt, cout), axis=0)      # 2x2 max-pool (VPU)
    # relu(max(x)+b) == max(relu(x+b)): b per-channel constant, relu monotone.
    y = jnp.maximum(y + b_ref[...], 0.0)
    o_ref[...] = y.astype(o_ref.dtype)


def _conv2_kernel(par_ref, w_ref, b_ref, o_ref):
    """Fused conv2 (5x5, 16->32, SAME) + 2x2 maxpool + bias + ReLU.

    Patches are built in-kernel from a parity-split zero-padded activation,
    so no 25x im2col tensor ever touches HBM.

    par_ref: (bt, 4, 9, 10, 16) bf16  -- par[b, 2*pr+pc, r, c, ci] =
                                          padded_x1[b, 2r+pr, 2c+pc, ci]
    w_ref:   (5, 5, 16, 32) bf16
    b_ref:   (1, 32)        f32
    o_ref:   (bt, 7, 7, 32) bf16
    """
    bt = par_ref.shape[0]
    cin = par_ref.shape[4]
    cout = w_ref.shape[3]
    par = par_ref[...]
    w = w_ref[...]
    rows = bt * 7 * 8            # 7 output rows x (7 valid + 1 discarded) cols
    acc = jnp.zeros((4 * rows, cout), jnp.float32)
    for kh in range(5):
        for kw in range(5):
            pieces = []
            for dy in range(2):          # pool-member row offset
                for dx in range(2):      # pool-member col offset
                    pr, qr = (dy + kh) & 1, (dy + kh) >> 1
                    pc, qc = (dx + kw) & 1, (dx + kw) >> 1
                    patch = par[:, pr * 2 + pc, qr:qr + 7, qc:qc + 8, :]
                    pieces.append(patch.reshape(rows, cin))   # (bt*56, 16)
            lhs = jnp.concatenate(pieces, axis=0)             # (4*bt*56, 16)
            acc = acc + jnp.dot(lhs, w[kh, kw],
                                preferred_element_type=jnp.float32)
    y = jnp.max(acc.reshape(4, rows, cout), axis=0)           # 2x2 max-pool
    y = jnp.maximum(y + b_ref[...], 0.0)                      # bias + ReLU
    y = y.reshape(bt, 7, 8, cout)[:, :, :7, :]                # drop pad column
    o_ref[...] = y.astype(o_ref.dtype)


def _linear_kernel(x_ref, w_ref, b_ref, o_ref):
    """o = x @ w + b.  x:(bt,F) bf16  w:(F,128) bf16  b:(1,128) f32."""
    o_ref[...] = (jnp.dot(x_ref[...], w_ref[...],
                          preferred_element_type=jnp.float32) + b_ref[...])


# ------------------------------ wrappers ------------------------------------

def conv1_pool(g, w, b, *, target_rows=2048):
    """g:(4,M,25) bf16, w:(25,16) bf16, b:(1,16) f32 -> (M,16) bf16."""
    four, M, K = g.shape
    cout = w.shape[1]
    mt, Mp = _pick_tile(M, target_rows, mult=8, min_steps=2)
    if Mp != M:
        g = jnp.pad(g, ((0, 0), (0, Mp - M), (0, 0)))
    out = pl.pallas_call(
        _conv1_kernel,
        out_shape=jax.ShapeDtypeStruct((Mp, cout), jnp.bfloat16),
        grid=(Mp // mt,),
        in_specs=[
            pl.BlockSpec((four, mt, K), lambda i: (0, i, 0)),
            pl.BlockSpec((K, cout), lambda i: (0, 0)),
            pl.BlockSpec((1, cout), lambda i: (0, 0)),
        ],
        out_specs=pl.BlockSpec((mt, cout), lambda i: (i, 0)),
        compiler_params=pltpu.CompilerParams(
            dimension_semantics=("parallel",)),
    )(g, w, b)
    return out[:M]


def conv2_pool(par, w2, b2, *, target_batch=32):
    """par:(B,4,9,10,16) bf16, w2:(5,5,16,32) bf16, b2:(1,32) f32 -> (B,7,7,32)."""
    B = par.shape[0]
    bt, Bp = _pick_tile(B, target_batch, mult=1, min_steps=2)
    if Bp != B:
        par = jnp.pad(par, ((0, Bp - B),) + ((0, 0),) * 4)
    out = pl.pallas_call(
        _conv2_kernel,
        out_shape=jax.ShapeDtypeStruct((Bp, 7, 7, 32), jnp.bfloat16),
        grid=(Bp // bt,),
        in_specs=[
            pl.BlockSpec((bt, 4, 9, 10, 16), lambda i: (i, 0, 0, 0, 0)),
            pl.BlockSpec((5, 5, 16, 32), lambda i: (0, 0, 0, 0)),
            pl.BlockSpec((1, 32), lambda i: (0, 0)),
        ],
        out_specs=pl.BlockSpec((bt, 7, 7, 32), lambda i: (i, 0, 0, 0)),
        compiler_params=pltpu.CompilerParams(
            dimension_semantics=("parallel",)),
    )(par, w2, b2)
    return out[:B]


def linear(x, w, b, *, target_rows=256):
    """x:(B,F) bf16, w:(F,128) bf16, b:(1,128) f32 -> (B,128) f32 (row-tiled)."""
    B, F = x.shape
    N = w.shape[1]
    Bp = _round_up(B, 8)
    bt, Bpp = _pick_tile(Bp, target_rows, mult=8, min_steps=2)
    if Bpp != B:
        x = jnp.pad(x, ((0, Bpp - B), (0, 0)))
    out = pl.pallas_call(
        _linear_kernel,
        out_shape=jax.ShapeDtypeStruct((Bpp, N), jnp.float32),
        grid=(Bpp // bt,),
        in_specs=[
            pl.BlockSpec((bt, F), lambda i: (i, 0)),
            pl.BlockSpec((F, N), lambda i: (0, 0)),
            pl.BlockSpec((1, N), lambda i: (0, 0)),
        ],
        out_specs=pl.BlockSpec((bt, N), lambda i: (i, 0)),
        compiler_params=pltpu.CompilerParams(
            dimension_semantics=("parallel",)),
    )(x, w, b)
    return out[:B]


# --------------------------- JAX glue (layout) -------------------------------

def im2col_1ch(x, ksize=5, pad=2):
    """(B,H,W) 1-channel -> (B,H,W,ksize*ksize) SAME patches, k = kh*ksize+kw."""
    B, H, W = x.shape
    xp = jnp.pad(x, ((0, 0), (pad, pad), (pad, pad)))
    cols = [xp[:, kh:kh + H, kw:kw + W]
            for kh in range(ksize) for kw in range(ksize)]
    return jnp.stack(cols, axis=-1)


def pool_group(p):
    """(B,H,W,K) -> (4, B*(H//2)*(W//2), K): the 4 members of each 2x2 window."""
    B, H, W, K = p.shape
    g = jnp.stack([p[:, 0::2, 0::2, :], p[:, 0::2, 1::2, :],
                   p[:, 1::2, 0::2, :], p[:, 1::2, 1::2, :]], axis=0)
    return g.reshape(4, B * (H // 2) * (W // 2), K)


def _prep_params(params):
    """PyTorch-layout params -> kernel-layout bf16/f32 operands."""
    w1, b1, w2, b2, wl, bl = params
    w1m = jnp.transpose(w1, (2, 3, 1, 0)).reshape(25, 16).astype(jnp.bfloat16)
    b1m = b1.reshape(1, 16).astype(jnp.float32)
    w2m = jnp.transpose(w2, (2, 3, 1, 0)).astype(jnp.bfloat16)     # (5,5,16,32)
    b2m = b2.reshape(1, 32).astype(jnp.float32)
    # Linear weight permuted to the (h,w,c) activation-flatten order, N pad->128.
    wlm = wl.reshape(10, 32, 7, 7).transpose(2, 3, 1, 0).reshape(32 * 7 * 7, 10)
    wlm = jnp.pad(wlm, ((0, 0), (0, 118))).astype(jnp.bfloat16)
    blm = jnp.pad(bl, (0, 118)).reshape(1, 128).astype(jnp.float32)
    return w1m, b1m, w2m, b2m, wlm, blm


def cnn_forward(x_nchw, prepped):
    w1m, b1m, w2m, b2m, wlm, blm = prepped
    B = x_nchw.shape[0]
    x = x_nchw[:, 0, :, :].astype(jnp.bfloat16)               # (B,28,28), Cin=1

    # ---- conv1 + ReLU + maxpool2 (patches of the tiny 1-channel input) -----
    g1 = pool_group(im2col_1ch(x, 5, 2))                      # (4, B*196, 25)
    y1 = conv1_pool(g1, w1m, b1m).reshape(B, 14, 14, 16)      # free reshape

    # ---- parity-split zero-padded conv2 input (no 25x patch blow-up) -------
    x1p = jnp.pad(y1, ((0, 0), (2, 2), (2, 4), (0, 0)))       # (B,18,20,16)
    par = jnp.stack([x1p[:, pr::2, pc::2, :]
                     for pr in (0, 1) for pc in (0, 1)], axis=1)  # (B,4,9,10,16)

    # ---- conv2 + ReLU + maxpool2 (patches built in-kernel) ------------------
    y2 = conv2_pool(par, w2m, b2m)                            # (B,7,7,32) bf16

    # ---- flatten in (h,w,c) order; linear weight was permuted to match -----
    flat = y2.reshape(B, 32 * 7 * 7)                          # free reshape
    return linear(flat, wlm, blm)[:, :10]                     # (B,10) f32


# ------------------------------ reference ------------------------------------

def ref_forward(x_nchw, params):
    w1, b1, w2, b2, wl, bl = params

    def block(x, w, b):
        y = lax.conv_general_dilated(
            x, w, window_strides=(1, 1), padding=((2, 2), (2, 2)),
            dimension_numbers=('NCHW', 'OIHW', 'NCHW'))
        y = jax.nn.relu(y + b[None, :, None, None])
        return lax.reduce_window(y, -jnp.inf, lax.max,
                                 (1, 1, 2, 2), (1, 1, 2, 2), 'VALID')

    y = block(x_nchw, w1, b1)
    y = block(y, w2, b2)
    flat = y.reshape(y.shape[0], -1)
    return flat @ wl.T + bl


# -------------------------------- main ---------------------------------------

if __name__ == "__main__":
    key = jax.random.PRNGKey(0)
    k1, k2, k3, k4, k5, k6, kx = jax.random.split(key, 7)

    # deterministic parameter init (PyTorch layout shapes)
    w1 = jax.random.normal(k1, (16, 1, 5, 5), jnp.float32) * 0.1     # Conv2d(1,16,5)
    b1 = jax.random.normal(k2, (16,), jnp.float32) * 0.1
    w2 = jax.random.normal(k3, (32, 16, 5, 5), jnp.float32) * 0.05   # Conv2d(16,32,5)
    b2 = jax.random.normal(k4, (32,), jnp.float32) * 0.05
    wl = jax.random.normal(k5, (10, 32 * 7 * 7), jnp.float32) * 0.02  # Linear(1568,10)
    bl = jax.random.normal(k6, (10,), jnp.float32) * 0.02
    params = (w1, b1, w2, b2, wl, bl)

    # input: batch=2, NCHW, 28x28 (required so the 32*7*7 flatten matches)
    x = jax.random.normal(kx, (2, 1, 28, 28), jnp.float32)

    fwd = jax.jit(lambda xx, pp: cnn_forward(xx, _prep_params(pp)))
    out = jax.block_until_ready(fwd(x, params))

    ref = jax.block_until_ready(ref_forward(x, params))
    assert out.shape == (2, 10)
    # bf16 matmul operands / bf16 inter-layer activations with f32 accumulation.
    assert jnp.max(jnp.abs(out - ref)) < 5e-2, "mismatch vs reference"

    print("KERNEL_OK")
</pallas_src>

<mosaic_0001>
module attributes {stable_mosaic.version = 11 : i64} {
  func.func @_conv1_kernel(%arg0: i32, %arg1: memref<4x56x25xbf16, #tpu.memory_space<vmem>>, %arg2: memref<25x16xbf16, #tpu.memory_space<vmem>>, %arg3: memref<1x16xf32, #tpu.memory_space<vmem>>, %arg4: memref<56x16xbf16, #tpu.memory_space<vmem>>) attributes {dimension_semantics = [#tpu.dimension_semantics<parallel>], iteration_bounds = array<i64: 7>, scalar_prefetch = 0 : i64, scratch_operands = 0 : i64, tpu.core_type = #tpu.core_type<tc>, window_params = [{transform_indices = @transform_0, window_bounds = array<i64: 4, 56, 25>}, {pipeline_mode = #tpu.pipeline_mode<synchronous>, transform_indices = @transform_1, window_bounds = array<i64: 25, 16>}, {pipeline_mode = #tpu.pipeline_mode<synchronous>, transform_indices = @transform_2, window_bounds = array<i64: 1, 16>}, {transform_indices = @transform_3, window_bounds = array<i64: 56, 16>}]} {
    %c0 = arith.constant 0 : index
    %c0_0 = arith.constant 0 : index
    %c0_1 = arith.constant 0 : index
    %0 = vector.load %arg1[%c0, %c0_0, %c0_1] : memref<4x56x25xbf16, #tpu.memory_space<vmem>>, vector<4x56x25xbf16>
    %1 = vector.shape_cast %0 : vector<4x56x25xbf16> to vector<224x25xbf16>
    %c0_2 = arith.constant 0 : index
    %c0_3 = arith.constant 0 : index
    %2 = vector.load %arg2[%c0_2, %c0_3] : memref<25x16xbf16, #tpu.memory_space<vmem>>, vector<25x16xbf16>
    %cst = arith.constant dense<0.000000e+00> : vector<224x16xf32>
    %3 = tpu.matmul %1, %2, %cst {dimension_numbers = #tpu.dot_dimension_numbers<[1], [0], [0], [1], [0, 0, 1, 1], [], []>} : vector<224x25xbf16>, vector<25x16xbf16>, vector<224x16xf32> -> vector<224x16xf32>
    %4 = vector.shape_cast %3 : vector<224x16xf32> to vector<4x56x16xf32>
    %cst_4 = arith.constant dense<0xFF800000> : vector<56x16xf32>
    %5 = vector.multi_reduction <maximumf>, %4, %cst_4 [0] : vector<4x56x16xf32> to vector<56x16xf32>
    %c0_5 = arith.constant 0 : index
    %c0_6 = arith.constant 0 : index
    %6 = vector.load %arg3[%c0_5, %c0_6] : memref<1x16xf32, #tpu.memory_space<vmem>>, vector<1x16xf32>
    %7 = vector.broadcast %6 : vector<1x16xf32> to vector<56x16xf32>
    %8 = arith.addf %5, %7 : vector<56x16xf32>
    %cst_7 = arith.constant 0.000000e+00 : f32
    %9 = vector.broadcast %cst_7 : f32 to vector<56x16xf32>
    %10 = arith.maximumf %8, %9 : vector<56x16xf32>
    %11 = arith.truncf %10 : vector<56x16xf32> to vector<56x16xbf16>
    %c0_8 = arith.constant 0 : index
    %c0_9 = arith.constant 0 : index
    %12 = vector.load %arg4[%c0_8, %c0_9] : memref<56x16xbf16, #tpu.memory_space<vmem>>, vector<56x16xbf16>
    tpu.vector_store %arg4[%c0_8, %c0_9], %11 {strides = array<i32>} : memref<56x16xbf16, #tpu.memory_space<vmem>>, vector<56x16xbf16>,
    return
  }
  func.func @transform_0(%arg0: i32) -> (i32, i32, i32) {
    %c0_i32 = arith.constant 0 : i32
    %c0_i32_0 = arith.constant 0 : i32
    %c0_i32_1 = arith.constant 0 : i32
    return %c0_i32, %arg0, %c0_i32_0 : i32, i32, i32
  }
  func.func @transform_1(%arg0: i32) -> (i32, i32) {
    %c0_i32 = arith.constant 0 : i32
    %c0_i32_0 = arith.constant 0 : i32
    %c0_i32_1 = arith.constant 0 : i32
    return %c0_i32, %c0_i32_0 : i32, i32
  }
  func.func @transform_2(%arg0: i32) -> (i32, i32) {
    %c0_i32 = arith.constant 0 : i32
    %c0_i32_0 = arith.constant 0 : i32
    %c0_i32_1 = arith.constant 0 : i32
    return %c0_i32, %c0_i32_0 : i32, i32
  }
  func.func @transform_3(%arg0: i32) -> (i32, i32) {
    %c0_i32 = arith.constant 0 : i32
    %c0_i32_0 = arith.constant 0 : i32
    return %arg0, %c0_i32 : i32, i32
  }
}

module attributes {stable_mosaic.version = 11 : i64} {
  func.func @_conv2_kernel(%arg0: i32, %arg1: memref<1x4x9x10x16xbf16, #tpu.memory_space<vmem>>, %arg2: memref<5x5x16x32xbf16, #tpu.memory_space<vmem>>, %arg3: memref<1x32xf32, #tpu.memory_space<vmem>>, %arg4: memref<1x7x7x32xbf16, #tpu.memory_space<vmem>>) attributes {dimension_semantics = [#tpu.dimension_semantics<parallel>], iteration_bounds = array<i64: 2>, scalar_prefetch = 0 : i64, scratch_operands = 0 : i64, tpu.core_type = #tpu.core_type<tc>, window_params = [{transform_indices = @transform_0, window_bounds = array<i64: 1, 4, 9, 10, 16>}, {pipeline_mode = #tpu.pipeline_mode<synchronous>, transform_indices = @transform_1, window_bounds = array<i64: 5, 5, 16, 32>}, {pipeline_mode = #tpu.pipeline_mode<synchronous>, transform_indices = @transform_2, window_bounds = array<i64: 1, 32>}, {transform_indices = @transform_3, window_bounds = array<i64: 1, 7, 7, 32>}]} {
    %c0 = arith.constant 0 : index
    %c0_0 = arith.constant 0 : index
    %c0_1 = arith.constant 0 : index
    %c0_2 = arith.constant 0 : index
    %c0_3 = arith.constant 0 : index
    %0 = vector.load %arg1[%c0, %c0_0, %c0_1, %c0_2, %c0_3] : memref<1x4x9x10x16xbf16, #tpu.memory_space<vmem>>, vector<1x4x9x10x16xbf16>
    %c0_4 = arith.constant 0 : index
    %c0_5 = arith.constant 0 : index
    %c0_6 = arith.constant 0 : index
    %c0_7 = arith.constant 0 : index
    %1 = vector.load %arg2[%c0_4, %c0_5, %c0_6, %c0_7] : memref<5x5x16x32xbf16, #tpu.memory_space<vmem>>, vector<5x5x16x32xbf16>
    %cst = arith.constant 0.000000e+00 : f32
    %2 = vector.broadcast %cst : f32 to vector<224x32xf32>
    %3 = vector.extract_strided_slice %0 {offsets = [0, 0, 0, 0, 0], sizes = [1, 1, 7, 8, 16], strides = [1, 1, 1, 1, 1]} : vector<1x4x9x10x16xbf16> to vector<1x1x7x8x16xbf16>
    %4 = vector.shape_cast %3 : vector<1x1x7x8x16xbf16> to vector<1x7x8x16xbf16>
    %5 = vector.shape_cast %4 : vector<1x7x8x16xbf16> to vector<56x16xbf16>
    %6 = vector.extract_strided_slice %0 {offsets = [0, 1, 0, 0, 0], sizes = [1, 1, 7, 8, 16], strides = [1, 1, 1, 1, 1]} : vector<1x4x9x10x16xbf16> to vector<1x1x7x8x16xbf16>
    %7 = vector.shape_cast %6 : vector<1x1x7x8x16xbf16> to vector<1x7x8x16xbf16>
    %8 = vector.shape_cast %7 : vector<1x7x8x16xbf16> to vector<56x16xbf16>
    %9 = vector.extract_strided_slice %0 {offsets = [0, 2, 0, 0, 0], sizes = [1, 1, 7, 8, 16], strides = [1, 1, 1, 1, 1]} : vector<1x4x9x10x16xbf16> to vector<1x1x7x8x16xbf16>
    %10 = vector.shape_cast %9 : vector<1x1x7x8x16xbf16> to vector<1x7x8x16xbf16>
    %11 = vector.shape_cast %10 : vector<1x7x8x16xbf16> to vector<56x16xbf16>
    %12 = vector.extract_strided_slice %0 {offsets = [0, 3, 0, 0, 0], sizes = [1, 1, 7, 8, 16], strides = [1, 1, 1, 1, 1]} : vector<1x4x9x10x16xbf16> to vector<1x1x7x8x16xbf16>
    %13 = vector.shape_cast %12 : vector<1x1x7x8x16xbf16> to vector<1x7x8x16xbf16>
    %14 = vector.shape_cast %13 : vector<1x7x8x16xbf16> to vector<56x16xbf16>
    %15 = tpu.concatenate %5, %8, %11, %14 in 0 : vector<56x16xbf16>, vector<56x16xbf16>, vector<56x16xbf16>, vector<56x16xbf16> -> vector<224x16xbf16>
    %16 = vector.extract_strided_slice %1 {offsets = [0, 0, 0, 0], sizes = [1, 1, 16, 32], strides = [1, 1, 1, 1]} : vector<5x5x16x32xbf16> to vector<1x1x16x32xbf16>
    %17 = vector.shape_cast %16 : vector<1x1x16x32xbf16> to vector<16x32xbf16>
    %cst_8 = arith.constant dense<0.000000e+00> : vector<224x32xf32>
    %18 = tpu.matmul %15, %17, %cst_8 {dimension_numbers = #tpu.dot_dimension_numbers<[1], [0], [0], [1], [0, 0, 1, 1], [], []>} : vector<224x16xbf16>, vector<16x32xbf16>, vector<224x32xf32> -> vector<224x32xf32>
    %19 = arith.addf %2, %18 : vector<224x32xf32>
    %20 = vector.extract_strided_slice %0 {offsets = [0, 1, 0, 0, 0], sizes = [1, 1, 7, 8, 16], strides = [1, 1, 1, 1, 1]} : vector<1x4x9x10x16xbf16> to vector<1x1x7x8x16xbf16>
    %21 = vector.shape_cast %20 : vector<1x1x7x8x16xbf16> to vector<1x7x8x16xbf16>
    %22 = vector.shape_cast %21 : vector<1x7x8x16xbf16> to vector<56x16xbf16>
    %23 = vector.extract_strided_slice %0 {offsets = [0, 0, 0, 1, 0], sizes = [1, 1, 7, 8, 16], strides = [1, 1, 1, 1, 1]} : vector<1x4x9x10x16xbf16> to vector<1x1x7x8x16xbf16>
    %24 = vector.shape_cast %23 : vector<1x1x7x8x16xbf16> to vector<1x7x8x16xbf16>
    %25 = vector.shape_cast %24 : vector<1x7x8x16xbf16> to vector<56x16xbf16>
    %26 = vector.extract_strided_slice %0 {offsets = [0, 3, 0, 0, 0], sizes = [1, 1, 7, 8, 16], strides = [1, 1, 1, 1, 1]} : vector<1x4x9x10x16xbf16> to vector<1x1x7x8x16xbf16>
    %27 = vector.shape_cast %26 : vector<1x1x7x8x16xbf16> to vector<1x7x8x16xbf16>
    %28 = vector.shape_cast %27 : vector<1x7x8x16xbf16> to vector<56x16xbf16>
    %29 = vector.extract_strided_slice %0 {offsets = [0, 2, 0, 1, 0], sizes = [1, 1, 7, 8, 16], strides = [1, 1, 1, 1, 1]} : vector<1x4x9x10x16xbf16> to vector<1x1x7x8x16xbf16>
    %30 = vector.shape_cast %29 : vector<1x1x7x8x16xbf16> to vector<1x7x8x16xbf16>
    %31 = vector.shape_cast %30 : vector<1x7x8x16xbf16> to vector<56x16xbf16>
    %32 = tpu.concatenate %22, %25, %28, %31 in 0 : vector<56x16xbf16>, vector<56x16xbf16>, vector<56x16xbf16>, vector<56x16xbf16> -> vector<224x16xbf16>
    %33 = vector.extract_strided_slice %1 {offsets = [0, 1, 0, 0], sizes = [1, 1, 16, 32], strides = [1, 1, 1, 1]} : vector<5x5x16x32xbf16> to vector<1x1x16x32xbf16>
    %34 = vector.shape_cast %33 : vector<1x1x16x32xbf16> to vector<16x32xbf16>
    %cst_9 = arith.constant dense<0.000000e+00> : vector<224x32xf32>
    %35 = tpu.matmul %32, %34, %cst_9 {dimension_numbers = #tpu.dot_dimension_numbers<[1], [0], [0], [1], [0, 0, 1, 1], [], []>} : vector<224x16xbf16>, vector<16x32xbf16>, vector<224x32xf32> -> vector<224x32xf32>
    %36 = arith.addf %19, %35 : vector<224x32xf32>
    %37 = vector.extract_strided_slice %0 {offsets = [0, 0, 0, 1, 0], sizes = [1, 1, 7, 8, 16], strides = [1, 1, 1, 1, 1]} : vector<1x4x9x10x16xbf16> to vector<1x1x7x8x16xbf16>
    %38 = vector.shape_cast %37 : vector<1x1x7x8x16xbf16> to vector<1x7x8x16xbf16>
    %39 = vector.shape_cast %38 : vector<1x7x8x16xbf16> to vector<56x16xbf16>
    %40 = vector.extract_strided_slice %0 {offsets = [0, 1, 0, 1, 0], sizes = [1, 1, 7, 8, 16], strides = [1, 1, 1, 1, 1]} : vector<1x4x9x10x16xbf16> to vector<1x1x7x8x16xbf16>
    %41 = vector.shape_cast %40 : vector<1x1x7x8x16xbf16> to vector<1x7x8x16xbf16>
    %42 = vector.shape_cast %41 : vector<1x7x8x16xbf16> to vector<56x16xbf16>
    %43 = vector.extract_strided_slice %0 {offsets = [0, 2, 0, 1, 0], sizes = [1, 1, 7, 8, 16], strides = [1, 1, 1, 1, 1]} : vector<1x4x9x10x16xbf16> to vector<1x1x7x8x16xbf16>
    %44 = vector.shape_cast %43 : vector<1x1x7x8x16xbf16> to vector<1x7x8x16xbf16>
    %45 = vector.shape_cast %44 : vector<1x7x8x16xbf16> to vector<56x16xbf16>
    %46 = vector.extract_strided_slice %0 {offsets = [0, 3, 0, 1, 0], sizes = [1, 1, 7, 8, 16], strides = [1, 1, 1, 1, 1]} : vector<1x4x9x10x16xbf16> to vector<1x1x7x8x16xbf16>
    %47 = vector.shape_cast %46 : vector<1x1x7x8x16xbf16> to vector<1x7x8x16xbf16>
    %48 = vector.shape_cast %47 : vector<1x7x8x16xbf16> to vector<56x16xbf16>
    %49 = tpu.concatenate %39, %42, %45, %48 in 0 : vector<56x16xbf16>, vector<56x16xbf16>, vector<56x16xbf16>, vector<56x16xbf16> -> vector<224x16xbf16>
    %50 = vector.extract_strided_slice %1 {offsets = [0, 2, 0, 0], sizes = [1, 1, 16, 32], strides = [1, 1, 1, 1]} : vector<5x5x16x32xbf16> to vector<1x1x16x32xbf16>
    %51 = vector.shape_cast %50 : vector<1x1x16x32xbf16> to vector<16x32xbf16>
    %cst_10 = arith.constant dense<0.000000e+00> : vector<224x32xf32>
    %52 = tpu.matmul %49, %51, %cst_10 {dimension_numbers = #tpu.dot_dimension_numbers<[1], [0], [0], [1], [0, 0, 1, 1], [], []>} : vector<224x16xbf16>, vector<16x32xbf16>, vector<224x32xf32> -> vector<224x32xf32>
    %53 = arith.addf %36, %52 : vector<224x32xf32>
    %54 = vector.extract_strided_slice %0 {offsets = [0, 1, 0, 1, 0], sizes = [1, 1, 7, 8, 16], strides = [1, 1, 1, 1, 1]} : vector<1x4x9x10x16xbf16> to vector<1x1x7x8x16xbf16>
    %55 = vector.shape_cast %54 : vector<1x1x7x8x16xbf16> to vector<1x7x8x16xbf16>
    %56 = vector.shape_cast %55 : vector<1x7x8x16xbf16> to vector<56x16xbf16>
    %57 = vector.extract_strided_slice %0 {offsets = [0, 0, 0, 2, 0], sizes = [1, 1, 7, 8, 16], strides = [1, 1, 1, 1, 1]} : vector<1x4x9x10x16xbf16> to vector<1x1x7x8x16xbf16>
    %58 = vector.shape_cast %57 : vector<1x1x7x8x16xbf16> to vector<1x7x8x16xbf16>
    %59 = vector.shape_cast %58 : vector<1x7x8x16xbf16> to vector<56x16xbf16>
    %60 = vector.extract_strided_slice %0 {offsets = [0, 3, 0, 1, 0], sizes = [1, 1, 7, 8, 16], strides = [1, 1, 1, 1, 1]} : vector<1x4x9x10x16xbf16> to vector<1x1x7x8x16xbf16>
    %61 = vector.shape_cast %60 : vector<1x1x7x8x16xbf16> to vector<1x7x8x16xbf16>
    %62 = vector.shape_cast %61 : vector<1x7x8x16xbf16> to vector<56x16xbf16>
    %63 = vector.extract_strided_slice %0 {offsets = [0, 2, 0, 2, 0], sizes = [1, 1, 7, 8, 16], strides = [1, 1, 1, 1, 1]} : vector<1x4x9x10x16xbf16> to vector<1x1x7x8x16xbf16>
    %64 = vector.shape_cast %63 : vector<1x1x7x8x16xbf16> to vector<1x7x8x16xbf16>
    %65 = vector.shape_cast %64 : vector<1x7x8x16xbf16> to vector<56x16xbf16>
    %66 = tpu.concatenate %56, %59, %62, %65 in 0 : vector<56x16xbf16>, vector<56x16xbf16>, vector<56x16xbf16>, vector<56x16xbf16> -> vector<224x16xbf16>
    %67 = vector.extract_strided_slice %1 {offsets = [0, 3, 0, 0], sizes = [1, 1, 16, 32], strides = [1, 1, 1, 1]} : vector<5x5x16x32xbf16> to vector<1x1x16x32xbf16>
    %68 = vector.shape_cast %67 : vector<1x1x16x32xbf16> to vector<16x32xbf16>
    %cst_11 = arith.constant dense<0.000000e+00> : vector<224x32xf32>
    %69 = tpu.matmul %66, %68, %cst_11 {dimension_numbers = #tpu.dot_dimension_numbers<[1], [0], [0], [1], [0, 0, 1, 1], [], []>} : vector<224x16xbf16>, vector<16x32xbf16>, vector<224x32xf32> -> vector<224x32xf32>
    %70 = arith.addf %53, %69 : vector<224x32xf32>
    %71 = vector.extract_strided_slice %0 {offsets = [0, 0, 0, 2, 0], sizes = [1, 1, 7, 8, 16], strides = [1, 1, 1, 1, 1]} : vector<1x4x9x10x16xbf16> to vector<1x1x7x8x16xbf16>
    %72 = vector.shape_cast %71 : vector<1x1x7x8x16xbf16> to vector<1x7x8x16xbf16>
    %73 = vector.shape_cast %72 : vector<1x7x8x16xbf16> to vector<56x16xbf16>
    %74 = vector.extract_strided_slice %0 {offsets = [0, 1, 0, 2, 0], sizes = [1, 1, 7, 8, 16], strides = [1, 1, 1, 1, 1]} : vector<1x4x9x10x16xbf16> to vector<1x1x7x8x16xbf16>
    %75 = vector.shape_cast %74 : vector<1x1x7x8x16xbf16> to vector<1x7x8x16xbf16>
    %76 = vector.shape_cast %75 : vector<1x7x8x16xbf16> to vector<56x16xbf16>
    %77 = vector.extract_strided_slice %0 {offsets = [0, 2, 0, 2, 0], sizes = [1, 1, 7, 8, 16], strides = [1, 1, 1, 1, 1]} : vector<1x4x9x10x16xbf16> to vector<1x1x7x8x16xbf16>
    %78 = vector.shape_cast %77 : vector<1x1x7x8x16xbf16> to vector<1x7x8x16xbf16>
    %79 = vector.shape_cast %78 : vector<1x7x8x16xbf16> to vector<56x16xbf16>
    %80 = vector.extract_strided_slice %0 {offsets = [0, 3, 0, 2, 0], sizes = [1, 1, 7, 8, 16], strides = [1, 1, 1, 1, 1]} : vector<1x4x9x10x16xbf16> to vector<1x1x7x8x16xbf16>
    %81 = vector.shape_cast %80 : vector<1x1x7x8x16xbf16> to vector<1x7x8x16xbf16>
    %82 = vector.shape_cast %81 : vector<1x7x8x16xbf16> to vector<56x16xbf16>
    %83 = tpu.concatenate %73, %76, %79, %82 in 0 : vector<56x16xbf16>, vector<56x16xbf16>, vector<56x16xbf16>, vector<56x16xbf16> -> vector<224x16xbf16>
    %84 = vector.extract_strided_slice %1 {offsets = [0, 4, 0, 0], sizes = [1, 1, 16, 32], strides = [1, 1, 1, 1]} : vector<5x5x16x32xbf16> to vector<1x1x16x32xbf16>
    %85 = vector.shape_cast %84 : vector<1x1x16x32xbf16> to vector<16x32xbf16>
    %cst_12 = arith.constant dense<0.000000e+00> : vector<224x32xf32>
    %86 = tpu.matmul %83, %85, %cst_12 {dimension_numbers = #tpu.dot_dimension_numbers<[1], [0], [0], [1], [0, 0, 1, 1], [], []>} : vector<224x16xbf16>, vector<16x32xbf16>, vector<224x32xf32> -> vector<224x32xf32>
    %87 = arith.addf %70, %86 : vector<224x32xf32>
    %88 = vector.extract_strided_slice %0 {offsets = [0, 2, 0, 0, 0], sizes = [1, 1, 7, 8, 16], strides = [1, 1, 1, 1, 1]} : vector<1x4x9x10x16xbf16> to vector<1x1x7x8x16xbf16>
    %89 = vector.shape_cast %88 : vector<1x1x7x8x16xbf16> to vector<1x7x8x16xbf16>
    %90 = vector.shape_cast %89 : vector<1x7x8x16xbf16> to vector<56x16xbf16>
    %91 = vector.extract_strided_slice %0 {offsets = [0, 3, 0, 0, 0], sizes = [1, 1, 7, 8, 16], strides = [1, 1, 1, 1, 1]} : vector<1x4x9x10x16xbf16> to vector<1x1x7x8x16xbf16>
    %92 = vector.shape_cast %91 : vector<1x1x7x8x16xbf16> to vector<1x7x8x16xbf16>
    %93 = vector.shape_cast %92 : vector<1x7x8x16xbf16> to vector<56x16xbf16>
    %94 = vector.extract_strided_slice %0 {offsets = [0, 0, 1, 0, 0], sizes = [1, 1, 7, 8, 16], strides = [1, 1, 1, 1, 1]} : vector<1x4x9x10x16xbf16> to vector<1x1x7x8x16xbf16>
    %95 = vector.shape_cast %94 : vector<1x1x7x8x16xbf16> to vector<1x7x8x16xbf16>
    %96 = vector.shape_cast %95 : vector<1x7x8x16xbf16> to vector<56x16xbf16>
    %97 = vector.extract_strided_slice %0 {offsets = [0, 1, 1, 0, 0], sizes = [1, 1, 7, 8, 16], strides = [1, 1, 1, 1, 1]} : vector<1x4x9x10x16xbf16> to vector<1x1x7x8x16xbf16>
    %98 = vector.shape_cast %97 : vector<1x1x7x8x16xbf16> to vector<1x7x8x16xbf16>
    %99 = vector.shape_cast %98 : vector<1x7x8x16xbf16> to vector<56x16xbf16>
    %100 = tpu.concatenate %90, %93, %96, %99 in 0 : vector<56x16xbf16>, vector<56x16xbf16>, vector<56x16xbf16>, vector<56x16xbf16> -> vector<224x16xbf16>
    %101 = vector.extract_strided_slice %1 {offsets = [1, 0, 0, 0], sizes = [1, 1, 16, 32], strides = [1, 1, 1, 1]} : vector<5x5x16x32xbf16> to vector<1x1x16x32xbf16>
    %102 = vector.shape_cast %101 : vector<1x1x16x32xbf16> to vector<16x32xbf16>
    %cst_13 = arith.constant dense<0.000000e+00> : vector<224x32xf32>
    %103 = tpu.matmul %100, %102, %cst_13 {dimension_numbers = #tpu.dot_dimension_numbers<[1], [0], [0], [1], [0, 0, 1, 1], [], []>} : vector<224x16xbf16>, vector<16x32xbf16>, vector<224x32xf32> -> vector<224x32xf32>
    %104 = arith.addf %87, %103 : vector<224x32xf32>
    %105 = vector.extract_strided_slice %0 {offsets = [0, 3, 0, 0, 0], sizes = [1, 1, 7, 8, 16], strides = [1, 1, 1, 1, 1]} : vector<1x4x9x10x16xbf16> to vector<1x1x7x8x16xbf16>
    %106 = vector.shape_cast %105 : vector<1x1x7x8x16xbf16> to vector<1x7x8x16xbf16>
    %107 = vector.shape_cast %106 : vector<1x7x8x16xbf16> to vector<56x16xbf16>
    %108 = vector.extract_strided_slice %0 {offsets = [0, 2, 0, 1, 0], sizes = [1, 1, 7, 8, 16], strides = [1, 1, 1, 1, 1]} : vector<1x4x9x10x16xbf16> to vector<1x1x7x8x16xbf16>
    %109 = vector.shape_cast %108 : vector<1x1x7x8x16xbf16> to vector<1x7x8x16xbf16>
    %110 = vector.shape_cast %109 : vector<1x7x8x16xbf16> to vector<56x16xbf16>
    %111 = vector.extract_strided_slice %0 {offsets = [0, 1, 1, 0, 0], sizes = [1, 1, 7, 8, 16], strides = [1, 1, 1, 1, 1]} : vector<1x4x9x10x16xbf16> to vector<1x1x7x8x16xbf16>
    %112 = vector.shape_cast %111 : vector<1x1x7x8x16xbf16> to vector<1x7x8x16xbf16>
    %113 = vector.shape_cast %112 : vector<1x7x8x16xbf16> to vector<56x16xbf16>
    %114 = vector.extract_strided_slice %0 {offsets = [0, 0, 1, 1, 0], sizes = [1, 1, 7, 8, 16], strides = [1, 1, 1, 1, 1]} : vector<1x4x9x10x16xbf16> to vector<1x1x7x8x16xbf16>
    %115 = vector.shape_cast %114 : vector<1x1x7x8x16xbf16> to vector<1x7x8x16xbf16>
    %116 = vector.shape_cast %115 : vector<1x7x8x16xbf16> to vector<56x16xbf16>
    %117 = tpu.concatenate %107, %110, %113, %116 in 0 : vector<56x16xbf16>, vector<56x16xbf16>, vector<56x16xbf16>, vector<56x16xbf16> -> vector<224x16xbf16>
    %118 = vector.extract_strided_slice %1 {offsets = [1, 1, 0, 0], sizes = [1, 1, 16, 32], strides = [1, 1, 1, 1]} : vector<5x5x16x32xbf16> to vector<1x1x16x32xbf16>
    %119 = vector.shape_cast %118 : vector<1x1x16x32xbf16> to vector<16x32xbf16>
    %cst_14 = arith.constant dense<0.000000e+00> : vector<224x32xf32>
    %120 = tpu.matmul %117, %119, %cst_14 {dimension_numbers = #tpu.dot_dimension_numbers<[1], [0], [0], [1], [0, 0, 1, 1], [], []>} : vector<224x16xbf16>, vector<16x32xbf16>, vector<224x32xf32> -> vector<224x32xf32>
    %121 = arith.addf %104, %120 : vector<224x32xf32>
    %122 = vector.extract_strided_slice %0 {offsets = [0, 2, 0, 1, 0], sizes = [1, 1, 7, 8, 16], strides = [1, 1, 1, 1, 1]} : vector<1x4x9x10x16xbf16> to vector<1x1x7x8x16xbf16>
    %123 = vector.shape_cast %122 : vector<1x1x7x8x16xbf16> to vector<1x7x8x16xbf16>
    %124 = vector.shape_cast %123 : vector<1x7x8x16xbf16> to vector<56x16xbf16>
    %125 = vector.extract_strided_slice %0 {offsets = [0, 3, 0, 1, 0], sizes = [1, 1, 7, 8, 16], strides = [1, 1, 1, 1, 1]} : vector<1x4x9x10x16xbf16> to vector<1x1x7x8x16xbf16>
    %126 = vector.shape_cast %125 : vector<1x1x7x8x16xbf16> to vector<1x7x8x16xbf16>
    %127 = vector.shape_cast %126 : vector<1x7x8x16xbf16> to vector<56x16xbf16>
    %128 = vector.extract_strided_slice %0 {offsets = [0, 0, 1, 1, 0], sizes = [1, 1, 7, 8, 16], strides = [1, 1, 1, 1, 1]} : vector<1x4x9x10x16xbf16> to vector<1x1x7x8x16xbf16>
    %129 = vector.shape_cast %128 : vector<1x1x7x8x16xbf16> to vector<1x7x8x16xbf16>
    %130 = vector.shape_cast %129 : vector<1x7x8x16xbf16> to vector<56x16xbf16>
    %131 = vector.extract_strided_slice %0 {offsets = [0, 1, 1, 1, 0], sizes = [1, 1, 7, 8, 16], strides = [1, 1, 1, 1, 1]} : vector<1x4x9x10x16xbf16> to vector<1x1x7x8x16xbf16>
    %132 = vector.shape_cast %131 : vector<1x1x7x8x16xbf16> to vector<1x7x8x16xbf16>
    %133 = vector.shape_cast %132 : vector<1x7x8x16xbf16> to vector<56x16xbf16>
    %134 = tpu.concatenate %124, %127, %130, %133 in 0 : vector<56x16xbf16>, vector<56x16xbf16>, vector<56x16xbf16>, vector<56x16xbf16> -> vector<224x16xbf16>
    %135 = vector.extract_strided_slice %1 {offsets = [1, 2, 0, 0], sizes = [1, 1, 16, 32], strides = [1, 1, 1, 1]} : vector<5x5x16x32xbf16> to vector<1x1x16x32xbf16>
    %136 = vector.shape_cast %135 : vector<1x1x16x32xbf16> to vector<16x32xbf16>
    %cst_15 = arith.constant dense<0.000000e+00> : vector<224x32xf32>
    %137 = tpu.matmul %134, %136, %cst_15 {dimension_numbers = #tpu.dot_dimension_numbers<[1], [0], [0], [1], [0, 0, 1, 1], [], []>} : vector<224x16xbf16>, vector<16x32xbf16>, vector<224x32xf32> -> vector<224x32xf32>
    %138 = arith.addf %121, %137 : vector<224x32xf32>
    %139 = vector.extract_strided_slice %0 {offsets = [0, 3, 0, 1, 0], sizes = [1, 1, 7, 8, 16], strides = [1, 1, 1, 1, 1]} : vector<1x4x9x10x16xbf16> to vector<1x1x7x8x16xbf16>
    %140 = vector.shape_cast %139 : vector<1x1x7x8x16xbf16> to vector<1x7x8x16xbf16>
    %141 = vector.shape_cast %140 : vector<1x7x8x16xbf16> to vector<56x16xbf16>
    %142 = vector.extract_strided_slice %0 {offsets = [0, 2, 0, 2, 0], sizes = [1, 1, 7, 8, 16], strides = [1, 1, 1, 1, 1]} : vector<1x4x9x10x16xbf16> to vector<1x1x7x8x16xbf16>
    %143 = vector.shape_cast %142 : vector<1x1x7x8x16xbf16> to vector<1x7x8x16xbf16>
    %144 = vector.shape_cast %143 : vector<1x7x8x16xbf16> to vector<56x16xbf16>
    %145 = vector.extract_strided_slice %0 {offsets = [0, 1, 1, 1, 0], sizes = [1, 1, 7, 8, 16], strides = [1, 1, 1, 1, 1]} : vector<1x4x9x10x16xbf16> to vector<1x1x7x8x16xbf16>
    %146 = vector.shape_cast %145 : vector<1x1x7x8x16xbf16> to vector<1x7x8x16xbf16>
    %147 = vector.shape_cast %146 : vector<1x7x8x16xbf16> to vector<56x16xbf16>
    %148 = vector.extract_strided_slice %0 {offsets = [0, 0, 1, 2, 0], sizes = [1, 1, 7, 8, 16], strides = [1, 1, 1, 1, 1]} : vector<1x4x9x10x16xbf16> to vector<1x1x7x8x16xbf16>
    %149 = vector.shape_cast %148 : vector<1x1x7x8x16xbf16> to vector<1x7x8x16xbf16>
    %150 = vector.shape_cast %149 : vector<1x7x8x16xbf16> to vector<56x16xbf16>
    %151 = tpu.concatenate %141, %144, %147, %150 in 0 : vector<56x16xbf16>, vector<56x16xbf16>, vector<56x16xbf16>, vector<56x16xbf16> -> vector<224x16xbf16>
    %152 = vector.extract_strided_slice %1 {offsets = [1, 3, 0, 0], sizes = [1, 1, 16, 32], strides = [1, 1, 1, 1]} : vector<5x5x16x32xbf16> to vector<1x1x16x32xbf16>
    %153 = vector.shape_cast %152 : vector<1x1x16x32xbf16> to vector<16x32xbf16>
    %cst_16 = arith.constant dense<0.000000e+00> : vector<224x32xf32>
    %154 = tpu.matmul %151, %153, %cst_16 {dimension_numbers = #tpu.dot_dimension_numbers<[1], [0], [0], [1], [0, 0, 1, 1], [], []>} : vector<224x16xbf16>, vector<16x32xbf16>, vector<224x32xf32> -> vector<224x32xf32>
    %155 = arith.addf %138, %154 : vector<224x32xf32>
    %156 = vector.extract_strided_slice %0 {offsets = [0, 2, 0, 2, 0], sizes = [1, 1, 7, 8, 16], strides = [1, 1, 1, 1, 1]} : vector<1x4x9x10x16xbf16> to vector<1x1x7x8x16xbf16>
    %157 = vector.shape_cast %156 : vector<1x1x7x8x16xbf16> to vector<1x7x8x16xbf16>
    %158 = vector.shape_cast %157 : vector<1x7x8x16xbf16> to vector<56x16xbf16>
    %159 = vector.extract_strided_slice %0 {offsets = [0, 3, 0, 2, 0], sizes = [1, 1, 7, 8, 16], strides = [1, 1, 1, 1, 1]} : vector<1x4x9x10x16xbf16> to vector<1x1x7x8x16xbf16>
    %160 = vector.shape_cast %159 : vector<1x1x7x8x16xbf16> to vector<1x7x8x16xbf16>
    %161 = vector.shape_cast %160 : vector<1x7x8x16xbf16> to vector<56x16xbf16>
    %162 = vector.extract_strided_slice %0 {offsets = [0, 0, 1, 2, 0], sizes = [1, 1, 7, 8, 16], strides = [1, 1, 1, 1, 1]} : vector<1x4x9x10x16xbf16> to vector<1x1x7x8x16xbf16>
    %163 = vector.shape_cast %162 : vector<1x1x7x8x16xbf16> to vector<1x7x8x16xbf16>
    %164 = vector.shape_cast %163 : vector<1x7x8x16xbf16> to vector<56x16xbf16>
    %165 = vector.extract_strided_slice %0 {offsets = [0, 1, 1, 2, 0], sizes = [1, 1, 7, 8, 16], strides = [1, 1, 1, 1, 1]} : vector<1x4x9x10x16xbf16> to vector<1x1x7x8x16xbf16>
    %166 = vector.shape_cast %165 : vector<1x1x7x8x16xbf16> to vector<1x7x8x16xbf16>
    %167 = vector.shape_cast %166 : vector<1x7x8x16xbf16> to vector<56x16xbf16>
    %168 = tpu.concatenate %158, %161, %164, %167 in 0 : vector<56x16xbf16>, vector<56x16xbf16>, vector<56x16xbf16>, vector<56x16xbf16> -> vector<224x16xbf16>
    %169 = vector.extract_strided_slice %1 {offsets = [1, 4, 0, 0], sizes = [1, 1, 16, 32], strides = [1, 1, 1, 1]} : vector<5x5x16x32xbf16> to vector<1x1x16x32xbf16>
    %170 = vector.shape_cast %169 : vector<1x1x16x32xbf16> to vector<16x32xbf16>
    %cst_17 = arith.constant dense<0.000000e+00> : vector<224x32xf32>
    %171 = tpu.matmul %168, %170, %cst_17 {dimension_numbers = #tpu.dot_dimension_numbers<[1], [0], [0], [1], [0, 0, 1, 1], [], []>} : vector<224x16xbf16>, vector<16x32xbf16>, vector<224x32xf32> -> vector<224x32xf32>
    %172 = arith.addf %155, %171 : vector<224x32xf32>
    %173 = vector.extract_strided_slice %0 {offsets = [0, 0, 1, 0, 0], sizes = [1, 1, 7, 8, 16], strides = [1, 1, 1, 1, 1]} : vector<1x4x9x10x16xbf16> to vector<1x1x7x8x16xbf16>
    %174 = vector.shape_cast %173 : vector<1x1x7x8x16xbf16> to vector<1x7x8x16xbf16>
    %175 = vector.shape_cast %174 : vector<1x7x8x16xbf16> to vector<56x16xbf16>
    %176 = vector.extract_strided_slice %0 {offsets = [0, 1, 1, 0, 0], sizes = [1, 1, 7, 8, 16], strides = [1, 1, 1, 1, 1]} : vector<1x4x9x10x16xbf16> to vector<1x1x7x8x16xbf16>
    %177 = vector.shape_cast %176 : vector<1x1x7x8x16xbf16> to vector<1x7x8x16xbf16>
    %178 = vector.shape_cast %177 : vector<1x7x8x16xbf16> to vector<56x16xbf16>
    %179 = vector.extract_strided_slice %0 {offsets = [0, 2, 1, 0, 0], sizes = [1, 1, 7, 8, 16], strides = [1, 1, 1, 1, 1]} : vector<1x4x9x10x16xbf16> to vector<1x1x7x8x16xbf16>
    %180 = vector.shape_cast %179 : vector<1x1x7x8x16xbf16> to vector<1x7x8x16xbf16>
    %181 = vector.shape_cast %180 : vector<1x7x8x16xbf16> to vector<56x16xbf16>
    %182 = vector.extract_strided_slice %0 {offsets = [0, 3, 1, 0, 0], sizes = [1, 1, 7, 8, 16], strides = [1, 1, 1, 1, 1]} : vector<1x4x9x10x16xbf16> to vector<1x1x7x8x16xbf16>
    %183 = vector.shape_cast %182 : vector<1x1x7x8x16xbf16> to vector<1x7x8x16xbf16>
    %184 = vector.shape_cast %183 : vector<1x7x8x16xbf16> to vector<56x16xbf16>
    %185 = tpu.concatenate %175, %178, %181, %184 in 0 : vector<56x16xbf16>, vector<56x16xbf16>, vector<56x16xbf16>, vector<56x16xbf16> -> vector<224x16xbf16>
    %186 = vector.extract_strided_slice %1 {offsets = [2, 0, 0, 0], sizes = [1, 1, 16, 32], strides = [1, 1, 1, 1]} : vector<5x5x16x32xbf16> to vector<1x1x16x32xbf16>
    %187 = vector.shape_cast %186 : vector<1x1x16x32xbf16> to vector<16x32xbf16>
    %cst_18 = arith.constant dense<0.000000e+00> : vector<224x32xf32>
    %188 = tpu.matmul %185, %187, %cst_18 {dimension_numbers = #tpu.dot_dimension_numbers<[1], [0], [0], [1], [0, 0, 1, 1], [], []>} : vector<224x16xbf16>, vector<16x32xbf16>, vector<224x32xf32> -> vector<224x32xf32>
    %189 = arith.addf %172, %188 : vector<224x32xf32>
    %190 = vector.extract_strided_slice %0 {offsets = [0, 1, 1, 0, 0], sizes = [1, 1, 7, 8, 16], strides = [1, 1, 1, 1, 1]} : vector<1x4x9x10x16xbf16> to vector<1x1x7x8x16xbf16>
    %191 = vector.shape_cast %190 : vector<1x1x7x8x16xbf16> to vector<1x7x8x16xbf16>
    %192 = vector.shape_cast %191 : vector<1x7x8x16xbf16> to vector<56x16xbf16>
    %193 = vector.extract_strided_slice %0 {offsets = [0, 0, 1, 1, 0], sizes = [1, 1, 7, 8, 16], strides = [1, 1, 1, 1, 1]} : vector<1x4x9x10x16xbf16> to vector<1x1x7x8x16xbf16>
    %194 = vector.shape_cast %193 : vector<1x1x7x8x16xbf16> to vector<1x7x8x16xbf16>
    %195 = vector.shape_cast %194 : vector<1x7x8x16xbf16> to vector<56x16xbf16>
    %196 = vector.extract_strided_slice %0 {offsets = [0, 3, 1, 0, 0], sizes = [1, 1, 7, 8, 16], strides = [1, 1, 1, 1, 1]} : vector<1x4x9x10x16xbf16> to vector<1x1x7x8x16xbf16>
    %197 = vector.shape_cast %196 : vector<1x1x7x8x16xbf16> to vector<1x7x8x16xbf16>
    %198 = vector.shape_cast %197 : vector<1x7x8x16xbf16> to vector<56x16xbf16>
    %199 = vector.extract_strided_slice %0 {offsets = [0, 2, 1, 1, 0], sizes = [1, 1, 7, 8, 16], strides = [1, 1, 1, 1, 1]} : vector<1x4x9x10x16xbf16> to vector<1x1x7x8x16xbf16>
    %200 = vector.shape_cast %199 : vector<1x1x7x8x16xbf16> to vector<1x7x8x16xbf16>
    %201 = vector.shape_cast %200 : vector<1x7x8x16xbf16> to vector<56x16xbf16>
    %202 = tpu.concatenate %192, %195, %198, %201 in 0 : vector<56x16xbf16>, vector<56x16xbf16>, vector<56x16xbf16>, vector<56x16xbf16> -> vector<224x16xbf16>
    %203 = vector.extract_strided_slice %1 {offsets = [2, 1, 0, 0], sizes = [1, 1, 16, 32], strides = [1, 1, 1, 1]} : vector<5x5x16x32xbf16> to vector<1x1x16x32xbf16>
    %204 = vector.shape_cast %203 : vector<1x1x16x32xbf16> to vector<16x32xbf16>
    %cst_19 = arith.constant dense<0.000000e+00> : vector<224x32xf32>
    %205 = tpu.matmul %202, %204, %cst_19 {dimension_numbers = #tpu.dot_dimension_numbers<[1], [0], [0], [1], [0, 0, 1, 1], [], []>} : vector<224x16xbf16>, vector<16x32xbf16>, vector<224x32xf32> -> vector<224x32xf32>
    %206 = arith.addf %189, %205 : vector<224x32xf32>
    %207 = vector.extract_strided_slice %0 {offsets = [0, 0, 1, 1, 0], sizes = [1, 1, 7, 8, 16], strides = [1, 1, 1, 1, 1]} : vector<1x4x9x10x16xbf16> to vector<1x1x7x8x16xbf16>
    %208 = vector.shape_cast %207 : vector<1x1x7x8x16xbf16> to vector<1x7x8x16xbf16>
    %209 = vector.shape_cast %208 : vector<1x7x8x16xbf16> to vector<56x16xbf16>
    %210 = vector.extract_strided_slice %0 {offsets = [0, 1, 1, 1, 0], sizes = [1, 1, 7, 8, 16], strides = [1, 1, 1, 1, 1]} : vector<1x4x9x10x16xbf16> to vector<1x1x7x8x16xbf16>
    %211 = vector.shape_cast %210 : vector<1x1x7x8x16xbf16> to vector<1x7x8x16xbf16>
    %212 = vector.shape_cast %211 : vector<1x7x8x16xbf16> to vector<56x16xbf16>
    %213 = vector.extract_strided_slice %0 {offsets = [0, 2, 1, 1, 0], sizes = [1, 1, 7, 8, 16], strides = [1, 1, 1, 1, 1]} : vector<1x4x9x10x16xbf16> to vector<1x1x7x8x16xbf16>
    %214 = vector.shape_cast %213 : vector<1x1x7x8x16xbf16> to vector<1x7x8x16xbf16>
    %215 = vector.shape_cast %214 : vector<1x7x8x16xbf16> to vector<56x16xbf16>
    %216 = vector.extract_strided_slice %0 {offsets = [0, 3, 1, 1, 0], sizes = [1, 1, 7, 8, 16], strides = [1, 1, 1, 1, 1]} : vector<1x4x9x10x16xbf16> to vector<1x1x7x8x16xbf16>
    %217 = vector.shape_cast %216 : vector<1x1x7x8x16xbf16> to vector<1x7x8x16xbf16>
    %218 = vector.shape_cast %217 : vector<1x7x8x16xbf16> to vector<56x16xbf16>
    %219 = tpu.concatenate %209, %212, %215, %218 in 0 : vector<56x16xbf16>, vector<56x16xbf16>, vector<56x16xbf16>, vector<56x16xbf16> -> vector<224x16xbf16>
    %220 = vector.extract_strided_slice %1 {offsets = [2, 2, 0, 0], sizes = [1, 1, 16, 32], strides = [1, 1, 1, 1]} : vector<5x5x16x32xbf16> to vector<1x1x16x32xbf16>
    %221 = vector.shape_cast %220 : vector<1x1x16x32xbf16> to vector<16x32xbf16>
    %cst_20 = arith.constant dense<0.000000e+00> : vector<224x32xf32>
    %222 = tpu.matmul %219, %221, %cst_20 {dimension_numbers = #tpu.dot_dimension_numbers<[1], [0], [0], [1], [0, 0, 1, 1], [], []>} : vector<224x16xbf16>, vector<16x32xbf16>, vector<224x32xf32> -> vector<224x32xf32>
    %223 = arith.addf %206, %222 : vector<224x32xf32>
    %224 = vector.extract_strided_slice %0 {offsets = [0, 1, 1, 1, 0], sizes = [1, 1, 7, 8, 16], strides = [1, 1, 1, 1, 1]} : vector<1x4x9x10x16xbf16> to vector<1x1x7x8x16xbf16>
    %225 = vector.shape_cast %224 : vector<1x1x7x8x16xbf16> to vector<1x7x8x16xbf16>
    %226 = vector.shape_cast %225 : vector<1x7x8x16xbf16> to vector<56x16xbf16>
    %227 = vector.extract_strided_slice %0 {offsets = [0, 0, 1, 2, 0], sizes = [1, 1, 7, 8, 16], strides = [1, 1, 1, 1, 1]} : vector<1x4x9x10x16xbf16> to vector<1x1x7x8x16xbf16>
    %228 = vector.shape_cast %227 : vector<1x1x7x8x16xbf16> to vector<1x7x8x16xbf16>
    %229 = vector.shape_cast %228 : vector<1x7x8x16xbf16> to vector<56x16xbf16>
    %230 = vector.extract_strided_slice %0 {offsets = [0, 3, 1, 1, 0], sizes = [1, 1, 7, 8, 16], strides = [1, 1, 1, 1, 1]} : vector<1x4x9x10x16xbf16> to vector<1x1x7x8x16xbf16>
    %231 = vector.shape_cast %230 : vector<1x1x7x8x16xbf16> to vector<1x7x8x16xbf16>
    %232 = vector.shape_cast %231 : vector<1x7x8x16xbf16> to vector<56x16xbf16>
    %233 = vector.extract_strided_slice %0 {offsets = [0, 2, 1, 2, 0], sizes = [1, 1, 7, 8, 16], strides = [1, 1, 1, 1, 1]} : vector<1x4x9x10x16xbf16> to vector<1x1x7x8x16xbf16>
    %234 = vector.shape_cast %233 : vector<1x1x7x8x16xbf16> to vector<1x7x8x16xbf16>
    %235 = vector.shape_cast %234 : vector<1x7x8x16xbf16> to vector<56x16xbf16>
    %236 = tpu.concatenate %226, %229, %232, %235 in 0 : vector<56x16xbf16>, vector<56x16xbf16>, vector<56x16xbf16>, vector<56x16xbf16> -> vector<224x16xbf16>
    %237 = vector.extract_strided_slice %1 {offsets = [2, 3, 0, 0], sizes = [1, 1, 16, 32], strides = [1, 1, 1, 1]} : vector<5x5x16x32xbf16> to vector<1x1x16x32xbf16>
    %238 = vector.shape_cast %237 : vector<1x1x16x32xbf16> to vector<16x32xbf16>
    %cst_21 = arith.constant dense<0.000000e+00> : vector<224x32xf32>
    %239 = tpu.matmul %236, %238, %cst_21 {dimension_numbers = #tpu.dot_dimension_numbers<[1], [0], [0], [1], [0, 0, 1, 1], [], []>} : vector<224x16xbf16>, vector<16x32xbf16>, vector<224x32xf32> -> vector<224x32xf32>
    %240 = arith.addf %223, %239 : vector<224x32xf32>
    %241 = vector.extract_strided_slice %0 {offsets = [0, 0, 1, 2, 0], sizes = [1, 1, 7, 8, 16], strides = [1, 1, 1, 1, 1]} : vector<1x4x9x10x16xbf16> to vector<1x1x7x8x16xbf16>
    %242 = vector.shape_cast %241 : vector<1x1x7x8x16xbf16> to vector<1x7x8x16xbf16>
    %243 = vector.shape_cast %242 : vector<1x7x8x16xbf16> to vector<56x16xbf16>
    %244 = vector.extract_strided_slice %0 {offsets = [0, 1, 1, 2, 0], sizes = [1, 1, 7, 8, 16], strides = [1, 1, 1, 1, 1]} : vector<1x4x9x10x16xbf16> to vector<1x1x7x8x16xbf16>
    %245 = vector.shape_cast %244 : vector<1x1x7x8x16xbf16> to vector<1x7x8x16xbf16>
    %246 = vector.shape_cast %245 : vector<1x7x8x16xbf16> to vector<56x16xbf16>
    %247 = vector.extract_strided_slice %0 {offsets = [0, 2, 1, 2, 0], sizes = [1, 1, 7, 8, 16], strides = [1, 1, 1, 1, 1]} : vector<1x4x9x10x16xbf16> to vector<1x1x7x8x16xbf16>
    %248 = vector.shape_cast %247 : vector<1x1x7x8x16xbf16> to vector<1x7x8x16xbf16>
    %249 = vector.shape_cast %248 : vector<1x7x8x16xbf16> to vector<56x16xbf16>
    %250 = vector.extract_strided_slice %0 {offsets = [0, 3, 1, 2, 0], sizes = [1, 1, 7, 8, 16], strides = [1, 1, 1, 1, 1]} : vector<1x4x9x10x16xbf16> to vector<1x1x7x8x16xbf16>
    %251 = vector.shape_cast %250 : vector<1x1x7x8x16xbf16> to vector<1x7x8x16xbf16>
    %252 = vector.shape_cast %251 : vector<1x7x8x16xbf16> to vector<56x16xbf16>
    %253 = tpu.concatenate %243, %246, %249, %252 in 0 : vector<56x16xbf16>, vector<56x16xbf16>, vector<56x16xbf16>, vector<56x16xbf16> -> vector<224x16xbf16>
    %254 = vector.extract_strided_slice %1 {offsets = [2, 4, 0, 0], sizes = [1, 1, 16, 32], strides = [1, 1, 1, 1]} : vector<5x5x16x32xbf16> to vector<1x1x16x32xbf16>
    %255 = vector.shape_cast %254 : vector<1x1x16x32xbf16> to vector<16x32xbf16>
    %cst_22 = arith.constant dense<0.000000e+00> : vector<224x32xf32>
    %256 = tpu.matmul %253, %255, %cst_22 {dimension_numbers = #tpu.dot_dimension_numbers<[1], [0], [0], [1], [0, 0, 1, 1], [], []>} : vector<224x16xbf16>, vector<16x32xbf16>, vector<224x32xf32> -> vector<224x32xf32>
    %257 = arith.addf %240, %256 : vector<224x32xf32>
    %258 = vector.extract_strided_slice %0 {offsets = [0, 2, 1, 0, 0], sizes = [1, 1, 7, 8, 16], strides = [1, 1, 1, 1, 1]} : vector<1x4x9x10x16xbf16> to vector<1x1x7x8x16xbf16>
    %259 = vector.shape_cast %258 : vector<1x1x7x8x16xbf16> to vector<1x7x8x16xbf16>
    %260 = vector.shape_cast %259 : vector<1x7x8x16xbf16> to vector<56x16xbf16>
    %261 = vector.extract_strided_slice %0 {offsets = [0, 3, 1, 0, 0], sizes = [1, 1, 7, 8, 16], strides = [1, 1, 1, 1, 1]} : vector<1x4x9x10x16xbf16> to vector<1x1x7x8x16xbf16>
    %262 = vector.shape_cast %261 : vector<1x1x7x8x16xbf16> to vector<1x7x8x16xbf16>
    %263 = vector.shape_cast %262 : vector<1x7x8x16xbf16> to vector<56x16xbf16>
    %264 = vector.extract_strided_slice %0 {offsets = [0, 0, 2, 0, 0], sizes = [1, 1, 7, 8, 16], strides = [1, 1, 1, 1, 1]} : vector<1x4x9x10x16xbf16> to vector<1x1x7x8x16xbf16>
    %265 = vector.shape_cast %264 : vector<1x1x7x8x16xbf16> to vector<1x7x8x16xbf16>
    %266 = vector.shape_cast %265 : vector<1x7x8x16xbf16> to vector<56x16xbf16>
    %267 = vector.extract_strided_slice %0 {offsets = [0, 1, 2, 0, 0], sizes = [1, 1, 7, 8, 16], strides = [1, 1, 1, 1, 1]} : vector<1x4x9x10x16xbf16> to vector<1x1x7x8x16xbf16>
    %268 = vector.shape_cast %267 : vector<1x1x7x8x16xbf16> to vector<1x7x8x16xbf16>
    %269 = vector.shape_cast %268 : vector<1x7x8x16xbf16> to vector<56x16xbf16>
    %270 = tpu.concatenate %260, %263, %266, %269 in 0 : vector<56x16xbf16>, vector<56x16xbf16>, vector<56x16xbf16>, vector<56x16xbf16> -> vector<224x16xbf16>
    %271 = vector.extract_strided_slice %1 {offsets = [3, 0, 0, 0], sizes = [1, 1, 16, 32], strides = [1, 1, 1, 1]} : vector<5x5x16x32xbf16> to vector<1x1x16x32xbf16>
    %272 = vector.shape_cast %271 : vector<1x1x16x32xbf16> to vector<16x32xbf16>
    %cst_23 = arith.constant dense<0.000000e+00> : vector<224x32xf32>
    %273 = tpu.matmul %270, %272, %cst_23 {dimension_numbers = #tpu.dot_dimension_numbers<[1], [0], [0], [1], [0, 0, 1, 1], [], []>} : vector<224x16xbf16>, vector<16x32xbf16>, vector<224x32xf32> -> vector<224x32xf32>
    %274 = arith.addf %257, %273 : vector<224x32xf32>
    %275 = vector.extract_strided_slice %0 {offsets = [0, 3, 1, 0, 0], sizes = [1, 1, 7, 8, 16], strides = [1, 1, 1, 1, 1]} : vector<1x4x9x10x16xbf16> to vector<1x1x7x8x16xbf16>
    %276 = vector.shape_cast %275 : vector<1x1x7x8x16xbf16> to vector<1x7x8x16xbf16>
    %277 = vector.shape_cast %276 : vector<1x7x8x16xbf16> to vector<56x16xbf16>
    %278 = vector.extract_strided_slice %0 {offsets = [0, 2, 1, 1, 0], sizes = [1, 1, 7, 8, 16], strides = [1, 1, 1, 1, 1]} : vector<1x4x9x10x16xbf16> to vector<1x1x7x8x16xbf16>
    %279 = vector.shape_cast %278 : vector<1x1x7x8x16xbf16> to vector<1x7x8x16xbf16>
    %280 = vector.shape_cast %279 : vector<1x7x8x16xbf16> to vector<56x16xbf16>
    %281 = vector.extract_strided_slice %0 {offsets = [0, 1, 2, 0, 0], sizes = [1, 1, 7, 8, 16], strides = [1, 1, 1, 1, 1]} : vector<1x4x9x10x16xbf16> to vector<1x1x7x8x16xbf16>
    %282 = vector.shape_cast %281 : vector<1x1x7x8x16xbf16> to vector<1x7x8x16xbf16>
    %283 = vector.shape_cast %282 : vector<1x7x8x16xbf16> to vector<56x16xbf16>
    %284 = vector.extract_strided_slice %0 {offsets = [0, 0, 2, 1, 0], sizes = [1, 1, 7, 8, 16], strides = [1, 1, 1, 1, 1]} : vector<1x4x9x10x16xbf16> to vector<1x1x7x8x16xbf16>
    %285 = vector.shape_cast %284 : vector<1x1x7x8x16xbf16> to vector<1x7x8x16xbf16>
    %286 = vector.shape_cast %285 : vector<1x7x8x16xbf16> to vector<56x16xbf16>
    %287 = tpu.concatenate %277, %280, %283, %286 in 0 : vector<56x16xbf16>, vector<56x16xbf16>, vector<56x16xbf16>, vector<56x16xbf16> -> vector<224x16xbf16>
    %288 = vector.extract_strided_slice %1 {offsets = [3, 1, 0, 0], sizes = [1, 1, 16, 32], strides = [1, 1, 1, 1]} : vector<5x5x16x32xbf16> to vector<1x1x16x32xbf16>
    %289 = vector.shape_cast %288 : vector<1x1x16x32xbf16> to vector<16x32xbf16>
    %cst_24 = arith.constant dense<0.000000e+00> : vector<224x32xf32>
    %290 = tpu.matmul %287, %289, %cst_24 {dimension_numbers = #tpu.dot_dimension_numbers<[1], [0], [0], [1], [0, 0, 1, 1], [], []>} : vector<224x16xbf16>, vector<16x32xbf16>, vector<224x32xf32> -> vector<224x32xf32>
    %291 = arith.addf %274, %290 : vector<224x32xf32>
    %292 = vector.extract_strided_slice %0 {offsets = [0, 2, 1, 1, 0], sizes = [1, 1, 7, 8, 16], strides = [1, 1, 1, 1, 1]} : vector<1x4x9x10x16xbf16> to vector<1x1x7x8x16xbf16>
    %293 = vector.shape_cast %292 : vector<1x1x7x8x16xbf16> to vector<1x7x8x16xbf16>
    %294 = vector.shape_cast %293 : vector<1x7x8x16xbf16> to vector<56x16xbf16>
    %295 = vector.extract_strided_slice %0 {offsets = [0, 3, 1, 1, 0], sizes = [1, 1, 7, 8, 16], strides = [1, 1, 1, 1, 1]} : vector<1x4x9x10x16xbf16> to vector<1x1x7x8x16xbf16>
    %296 = vector.shape_cast %295 : vector<1x1x7x8x16xbf16> to vector<1x7x8x16xbf16>
    %297 = vector.shape_cast %296 : vector<1x7x8x16xbf16> to vector<56x16xbf16>
    %298 = vector.extract_strided_slice %0 {offsets = [0, 0, 2, 1, 0], sizes = [1, 1, 7, 8, 16], strides = [1, 1, 1, 1, 1]} : vector<1x4x9x10x16xbf16> to vector<1x1x7x8x16xbf16>
    %299 = vector.shape_cast %298 : vector<1x1x7x8x16xbf16> to vector<1x7x8x16xbf16>
    %300 = vector.shape_cast %299 : vector<1x7x8x16xbf16> to vector<56x16xbf16>
    %301 = vector.extract_strided_slice %0 {offsets = [0, 1, 2, 1, 0], sizes = [1, 1, 7, 8, 16], strides = [1, 1, 1, 1, 1]} : vector<1x4x9x10x16xbf16> to vector<1x1x7x8x16xbf16>
    %302 = vector.shape_cast %301 : vector<1x1x7x8x16xbf16> to vector<1x7x8x16xbf16>
    %303 = vector.shape_cast %302 : vector<1x7x8x16xbf16> to vector<56x16xbf16>
    %304 = tpu.concatenate %294, %297, %300, %303 in 0 : vector<56x16xbf16>, vector<56x16xbf16>, vector<56x16xbf16>, vector<56x16xbf16> -> vector<224x16xbf16>
    %305 = vector.extract_strided_slice %1 {offsets = [3, 2, 0, 0], sizes = [1, 1, 16, 32], strides = [1, 1, 1, 1]} : vector<5x5x16x32xbf16> to vector<1x1x16x32xbf16>
    %306 = vector.shape_cast %305 : vector<1x1x16x32xbf16> to vector<16x32xbf16>
    %cst_25 = arith.constant dense<0.000000e+00> : vector<224x32xf32>
    %307 = tpu.matmul %304, %306, %cst_25 {dimension_numbers = #tpu.dot_dimension_numbers<[1], [0], [0], [1], [0, 0, 1, 1], [], []>} : vector<224x16xbf16>, vector<16x32xbf16>, vector<224x32xf32> -> vector<224x32xf32>
    %308 = arith.addf %291, %307 : vector<224x32xf32>
    %309 = vector.extract_strided_slice %0 {offsets = [0, 3, 1, 1, 0], sizes = [1, 1, 7, 8, 16], strides = [1, 1, 1, 1, 1]} : vector<1x4x9x10x16xbf16> to vector<1x1x7x8x16xbf16>
    %310 = vector.shape_cast %309 : vector<1x1x7x8x16xbf16> to vector<1x7x8x16xbf16>
    %311 = vector.shape_cast %310 : vector<1x7x8x16xbf16> to vector<56x16xbf16>
    %312 = vector.extract_strided_slice %0 {offsets = [0, 2, 1, 2, 0], sizes = [1, 1, 7, 8, 16], strides = [1, 1, 1, 1, 1]} : vector<1x4x9x10x16xbf16> to vector<1x1x7x8x16xbf16>
    %313 = vector.shape_cast %312 : vector<1x1x7x8x16xbf16> to vector<1x7x8x16xbf16>
    %314 = vector.shape_cast %313 : vector<1x7x8x16xbf16> to vector<56x16xbf16>
    %315 = vector.extract_strided_slice %0 {offsets = [0, 1, 2, 1, 0], sizes = [1, 1, 7, 8, 16], strides = [1, 1, 1, 1, 1]} : vector<1x4x9x10x16xbf16> to vector<1x1x7x8x16xbf16>
    %316 = vector.shape_cast %315 : vector<1x1x7x8x16xbf16> to vector<1x7x8x16xbf16>
    %317 = vector.shape_cast %316 : vector<1x7x8x16xbf16> to vector<56x16xbf16>
    %318 = vector.extract_strided_slice %0 {offsets = [0, 0, 2, 2, 0], sizes = [1, 1, 7, 8, 16], strides = [1, 1, 1, 1, 1]} : vector<1x4x9x10x16xbf16> to vector<1x1x7x8x16xbf16>
    %319 = vector.shape_cast %318 : vector<1x1x7x8x16xbf16> to vector<1x7x8x16xbf16>
    %320 = vector.shape_cast %319 : vector<1x7x8x16xbf16> to vector<56x16xbf16>
    %321 = tpu.concatenate %311, %314, %317, %320 in 0 : vector<56x16xbf16>, vector<56x16xbf16>, vector<56x16xbf16>, vector<56x16xbf16> -> vector<224x16xbf16>
    %322 = vector.extract_strided_slice %1 {offsets = [3, 3, 0, 0], sizes = [1, 1, 16, 32], strides = [1, 1, 1, 1]} : vector<5x5x16x32xbf16> to vector<1x1x16x32xbf16>
    %323 = vector.shape_cast %322 : vector<1x1x16x32xbf16> to vector<16x32xbf16>
    %cst_26 = arith.constant dense<0.000000e+00> : vector<224x32xf32>
    %324 = tpu.matmul %321, %323, %cst_26 {dimension_numbers = #tpu.dot_dimension_numbers<[1], [0], [0], [1], [0, 0, 1, 1], [], []>} : vector<224x16xbf16>, vector<16x32xbf16>, vector<224x32xf32> -> vector<224x32xf32>
    %325 = arith.addf %308, %324 : vector<224x32xf32>
    %326 = vector.extract_strided_slice %0 {offsets = [0, 2, 1, 2, 0], sizes = [1, 1, 7, 8, 16], strides = [1, 1, 1, 1, 1]} : vector<1x4x9x10x16xbf16> to vector<1x1x7x8x16xbf16>
    %327 = vector.shape_cast %326 : vector<1x1x7x8x16xbf16> to vector<1x7x8x16xbf16>
    %328 = vector.shape_cast %327 : vector<1x7x8x16xbf16> to vector<56x16xbf16>
    %329 = vector.extract_strided_slice %0 {offsets = [0, 3, 1, 2, 0], sizes = [1, 1, 7, 8, 16], strides = [1, 1, 1, 1, 1]} : vector<1x4x9x10x16xbf16> to vector<1x1x7x8x16xbf16>
    %330 = vector.shape_cast %329 : vector<1x1x7x8x16xbf16> to vector<1x7x8x16xbf16>
    %331 = vector.shape_cast %330 : vector<1x7x8x16xbf16> to vector<56x16xbf16>
    %332 = vector.extract_strided_slice %0 {offsets = [0, 0, 2, 2, 0], sizes = [1, 1, 7, 8, 16], strides = [1, 1, 1, 1, 1]} : vector<1x4x9x10x16xbf16> to vector<1x1x7x8x16xbf16>
    %333 = vector.shape_cast %332 : vector<1x1x7x8x16xbf16> to vector<1x7x8x16xbf16>
    %334 = vector.shape_cast %333 : vector<1x7x8x16xbf16> to vector<56x16xbf16>
    %335 = vector.extract_strided_slice %0 {offsets = [0, 1, 2, 2, 0], sizes = [1, 1, 7, 8, 16], strides = [1, 1, 1, 1, 1]} : vector<1x4x9x10x16xbf16> to vector<1x1x7x8x16xbf16>
    %336 = vector.shape_cast %335 : vector<1x1x7x8x16xbf16> to vector<1x7x8x16xbf16>
    %337 = vector.shape_cast %336 : vector<1x7x8x16xbf16> to vector<56x16xbf16>
    %338 = tpu.concatenate %328, %331, %334, %337 in 0 : vector<56x16xbf16>, vector<56x16xbf16>, vector<56x16xbf16>, vector<56x16xbf16> -> vector<224x16xbf16>
    %339 = vector.extract_strided_slice %1 {offsets = [3, 4, 0, 0], sizes = [1, 1, 16, 32], strides = [1, 1, 1, 1]} : vector<5x5x16x32xbf16> to vector<1x1x16x32xbf16>
    %340 = vector.shape_cast %339 : vector<1x1x16x32xbf16> to vector<16x32xbf16>
    %cst_27 = arith.constant dense<0.000000e+00> : vector<224x32xf32>
    %341 = tpu.matmul %338, %340, %cst_27 {dimension_numbers = #tpu.dot_dimension_numbers<[1], [0], [0], [1], [0, 0, 1, 1], [], []>} : vector<224x16xbf16>, vector<16x32xbf16>, vector<224x32xf32> -> vector<224x32xf32>
    %342 = arith.addf %325, %341 : vector<224x32xf32>
    %343 = vector.extract_strided_slice %0 {offsets = [0, 0, 2, 0, 0], sizes = [1, 1, 7, 8, 16], strides = [1, 1, 1, 1, 1]} : vector<1x4x9x10x16xbf16> to vector<1x1x7x8x16xbf16>
    %344 = vector.shape_cast %343 : vector<1x1x7x8x16xbf16> to vector<1x7x8x16xbf16>
    %345 = vector.shape_cast %344 : vector<1x7x8x16xbf16> to vector<56x16xbf16>
    %346 = vector.extract_strided_slice %0 {offsets = [0, 1, 2, 0, 0], sizes = [1, 1, 7, 8, 16], strides = [1, 1, 1, 1, 1]} : vector<1x4x9x10x16xbf16> to vector<1x1x7x8x16xbf16>
    %347 = vector.shape_cast %346 : vector<1x1x7x8x16xbf16> to vector<1x7x8x16xbf16>
    %348 = vector.shape_cast %347 : vector<1x7x8x16xbf16> to vector<56x16xbf16>
    %349 = vector.extract_strided_slice %0 {offsets = [0, 2, 2, 0, 0], sizes = [1, 1, 7, 8, 16], strides = [1, 1, 1, 1, 1]} : vector<1x4x9x10x16xbf16> to vector<1x1x7x8x16xbf16>
    %350 = vector.shape_cast %349 : vector<1x1x7x8x16xbf16> to vector<1x7x8x16xbf16>
    %351 = vector.shape_cast %350 : vector<1x7x8x16xbf16> to vector<56x16xbf16>
    %352 = vector.extract_strided_slice %0 {offsets = [0, 3, 2, 0, 0], sizes = [1, 1, 7, 8, 16], strides = [1, 1, 1, 1, 1]} : vector<1x4x9x10x16xbf16> to vector<1x1x7x8x16xbf16>
    %353 = vector.shape_cast %352 : vector<1x1x7x8x16xbf16> to vector<1x7x8x16xbf16>
    %354 = vector.shape_cast %353 : vector<1x7x8x16xbf16> to vector<56x16xbf16>
    %355 = tpu.concatenate %345, %348, %351, %354 in 0 : vector<56x16xbf16>, vector<56x16xbf16>, vector<56x16xbf16>, vector<56x16xbf16> -> vector<224x16xbf16>
    %356 = vector.extract_strided_slice %1 {offsets = [4, 0, 0, 0], sizes = [1, 1, 16, 32], strides = [1, 1, 1, 1]} : vector<5x5x16x32xbf16> to vector<1x1x16x32xbf16>
    %357 = vector.shape_cast %356 : vector<1x1x16x32xbf16> to vector<16x32xbf16>
    %cst_28 = arith.constant dense<0.000000e+00> : vector<224x32xf32>
    %358 = tpu.matmul %355, %357, %cst_28 {dimension_numbers = #tpu.dot_dimension_numbers<[1], [0], [0], [1], [0, 0, 1, 1], [], []>} : vector<224x16xbf16>, vector<16x32xbf16>, vector<224x32xf32> -> vector<224x32xf32>
    %359 = arith.addf %342, %358 : vector<224x32xf32>
    %360 = vector.extract_strided_slice %0 {offsets = [0, 1, 2, 0, 0], sizes = [1, 1, 7, 8, 16], strides = [1, 1, 1, 1, 1]} : vector<1x4x9x10x16xbf16> to vector<1x1x7x8x16xbf16>
    %361 = vector.shape_cast %360 : vector<1x1x7x8x16xbf16> to vector<1x7x8x16xbf16>
    %362 = vector.shape_cast %361 : vector<1x7x8x16xbf16> to vector<56x16xbf16>
    %363 = vector.extract_strided_slice %0 {offsets = [0, 0, 2, 1, 0], sizes = [1, 1, 7, 8, 16], strides = [1, 1, 1, 1, 1]} : vector<1x4x9x10x16xbf16> to vector<1x1x7x8x16xbf16>
    %364 = vector.shape_cast %363 : vector<1x1x7x8x16xbf16> to vector<1x7x8x16xbf16>
    %365 = vector.shape_cast %364 : vector<1x7x8x16xbf16> to vector<56x16xbf16>
    %366 = vector.extract_strided_slice %0 {offsets = [0, 3, 2, 0, 0], sizes = [1, 1, 7, 8, 16], strides = [1, 1, 1, 1, 1]} : vector<1x4x9x10x16xbf16> to vector<1x1x7x8x16xbf16>
    %367 = vector.shape_cast %366 : vector<1x1x7x8x16xbf16> to vector<1x7x8x16xbf16>
    %368 = vector.shape_cast %367 : vector<1x7x8x16xbf16> to vector<56x16xbf16>
    %369 = vector.extract_strided_slice %0 {offsets = [0, 2, 2, 1, 0], sizes = [1, 1, 7, 8, 16], strides = [1, 1, 1, 1, 1]} : vector<1x4x9x10x16xbf16> to vector<1x1x7x8x16xbf16>
    %370 = vector.shape_cast %369 : vector<1x1x7x8x16xbf16> to vector<1x7x8x16xbf16>
    %371 = vector.shape_cast %370 : vector<1x7x8x16xbf16> to vector<56x16xbf16>
    %372 = tpu.concatenate %362, %365, %368, %371 in 0 : vector<56x16xbf16>, vector<56x16xbf16>, vector<56x16xbf16>, vector<56x16xbf16> -> vector<224x16xbf16>
    %373 = vector.extract_strided_slice %1 {offsets = [4, 1, 0, 0], sizes = [1, 1, 16, 32], strides = [1, 1, 1, 1]} : vector<5x5x16x32xbf16> to vector<1x1x16x32xbf16>
    %374 = vector.shape_cast %373 : vector<1x1x16x32xbf16> to vector<16x32xbf16>
    %cst_29 = arith.constant dense<0.000000e+00> : vector<224x32xf32>
    %375 = tpu.matmul %372, %374, %cst_29 {dimension_numbers = #tpu.dot_dimension_numbers<[1], [0], [0], [1], [0, 0, 1, 1], [], []>} : vector<224x16xbf16>, vector<16x32xbf16>, vector<224x32xf32> -> vector<224x32xf32>
    %376 = arith.addf %359, %375 : vector<224x32xf32>
    %377 = vector.extract_strided_slice %0 {offsets = [0, 0, 2, 1, 0], sizes = [1, 1, 7, 8, 16], strides = [1, 1, 1, 1, 1]} : vector<1x4x9x10x16xbf16> to vector<1x1x7x8x16xbf16>
    %378 = vector.shape_cast %377 : vector<1x1x7x8x16xbf16> to vector<1x7x8x16xbf16>
    %379 = vector.shape_cast %378 : vector<1x7x8x16xbf16> to vector<56x16xbf16>
    %380 = vector.extract_strided_slice %0 {offsets = [0, 1, 2, 1, 0], sizes = [1, 1, 7, 8, 16], strides = [1, 1, 1, 1, 1]} : vector<1x4x9x10x16xbf16> to vector<1x1x7x8x16xbf16>
    %381 = vector.shape_cast %380 : vector<1x1x7x8x16xbf16> to vector<1x7x8x16xbf16>
    %382 = vector.shape_cast %381 : vector<1x7x8x16xbf16> to vector<56x16xbf16>
    %383 = vector.extract_strided_slice %0 {offsets = [0, 2, 2, 1, 0], sizes = [1, 1, 7, 8, 16], strides = [1, 1, 1, 1, 1]} : vector<1x4x9x10x16xbf16> to vector<1x1x7x8x16xbf16>
    %384 = vector.shape_cast %383 : vector<1x1x7x8x16xbf16> to vector<1x7x8x16xbf16>
    %385 = vector.shape_cast %384 : vector<1x7x8x16xbf16> to vector<56x16xbf16>
    %386 = vector.extract_strided_slice %0 {offsets = [0, 3, 2, 1, 0], sizes = [1, 1, 7, 8, 16], strides = [1, 1, 1, 1, 1]} : vector<1x4x9x10x16xbf16> to vector<1x1x7x8x16xbf16>
    %387 = vector.shape_cast %386 : vector<1x1x7x8x16xbf16> to vector<1x7x8x16xbf16>
    %388 = vector.shape_cast %387 : vector<1x7x8x16xbf16> to vector<56x16xbf16>
    %389 = tpu.concatenate %379, %382, %385, %388 in 0 : vector<56x16xbf16>, vector<56x16xbf16>, vector<56x16xbf16>, vector<56x16xbf16> -> vector<224x16xbf16>
    %390 = vector.extract_strided_slice %1 {offsets = [4, 2, 0, 0], sizes = [1, 1, 16, 32], strides = [1, 1, 1, 1]} : vector<5x5x16x32xbf16> to vector<1x1x16x32xbf16>
    %391 = vector.shape_cast %390 : vector<1x1x16x32xbf16> to vector<16x32xbf16>
    %cst_30 = arith.constant dense<0.000000e+00> : vector<224x32xf32>
    %392 = tpu.matmul %389, %391, %cst_30 {dimension_numbers = #tpu.dot_dimension_numbers<[1], [0], [0], [1], [0, 0, 1, 1], [], []>} : vector<224x16xbf16>, vector<16x32xbf16>, vector<224x32xf32> -> vector<224x32xf32>
    %393 = arith.addf %376, %392 : vector<224x32xf32>
    %394 = vector.extract_strided_slice %0 {offsets = [0, 1, 2, 1, 0], sizes = [1, 1, 7, 8, 16], strides = [1, 1, 1, 1, 1]} : vector<1x4x9x10x16xbf16> to vector<1x1x7x8x16xbf16>
    %395 = vector.shape_cast %394 : vector<1x1x7x8x16xbf16> to vector<1x7x8x16xbf16>
    %396 = vector.shape_cast %395 : vector<1x7x8x16xbf16> to vector<56x16xbf16>
    %397 = vector.extract_strided_slice %0 {offsets = [0, 0, 2, 2, 0], sizes = [1, 1, 7, 8, 16], strides = [1, 1, 1, 1, 1]} : vector<1x4x9x10x16xbf16> to vector<1x1x7x8x16xbf16>
    %398 = vector.shape_cast %397 : vector<1x1x7x8x16xbf16> to vector<1x7x8x16xbf16>
    %399 = vector.shape_cast %398 : vector<1x7x8x16xbf16> to vector<56x16xbf16>
    %400 = vector.extract_strided_slice %0 {offsets = [0, 3, 2, 1, 0], sizes = [1, 1, 7, 8, 16], strides = [1, 1, 1, 1, 1]} : vector<1x4x9x10x16xbf16> to vector<1x1x7x8x16xbf16>
    %401 = vector.shape_cast %400 : vector<1x1x7x8x16xbf16> to vector<1x7x8x16xbf16>
    %402 = vector.shape_cast %401 : vector<1x7x8x16xbf16> to vector<56x16xbf16>
    %403 = vector.extract_strided_slice %0 {offsets = [0, 2, 2, 2, 0], sizes = [1, 1, 7, 8, 16], strides = [1, 1, 1, 1, 1]} : vector<1x4x9x10x16xbf16> to vector<1x1x7x8x16xbf16>
    %404 = vector.shape_cast %403 : vector<1x1x7x8x16xbf16> to vector<1x7x8x16xbf16>
    %405 = vector.shape_cast %404 : vector<1x7x8x16xbf16> to vector<56x16xbf16>
    %406 = tpu.concatenate %396, %399, %402, %405 in 0 : vector<56x16xbf16>, vector<56x16xbf16>, vector<56x16xbf16>, vector<56x16xbf16> -> vector<224x16xbf16>
    %407 = vector.extract_strided_slice %1 {offsets = [4, 3, 0, 0], sizes = [1, 1, 16, 32], strides = [1, 1, 1, 1]} : vector<5x5x16x32xbf16> to vector<1x1x16x32xbf16>
    %408 = vector.shape_cast %407 : vector<1x1x16x32xbf16> to vector<16x32xbf16>
    %cst_31 = arith.constant dense<0.000000e+00> : vector<224x32xf32>
    %409 = tpu.matmul %406, %408, %cst_31 {dimension_numbers = #tpu.dot_dimension_numbers<[1], [0], [0], [1], [0, 0, 1, 1], [], []>} : vector<224x16xbf16>, vector<16x32xbf16>, vector<224x32xf32> -> vector<224x32xf32>
    %410 = arith.addf %393, %409 : vector<224x32xf32>
    %411 = vector.extract_strided_slice %0 {offsets = [0, 0, 2, 2, 0], sizes = [1, 1, 7, 8, 16], strides = [1, 1, 1, 1, 1]} : vector<1x4x9x10x16xbf16> to vector<1x1x7x8x16xbf16>
    %412 = vector.shape_cast %411 : vector<1x1x7x8x16xbf16> to vector<1x7x8x16xbf16>
    %413 = vector.shape_cast %412 : vector<1x7x8x16xbf16> to vector<56x16xbf16>
    %414 = vector.extract_strided_slice %0 {offsets = [0, 1, 2, 2, 0], sizes = [1, 1, 7, 8, 16], strides = [1, 1, 1, 1, 1]} : vector<1x4x9x10x16xbf16> to vector<1x1x7x8x16xbf16>
    %415 = vector.shape_cast %414 : vector<1x1x7x8x16xbf16> to vector<1x7x8x16xbf16>
    %416 = vector.shape_cast %415 : vector<1x7x8x16xbf16> to vector<56x16xbf16>
    %417 = vector.extract_strided_slice %0 {offsets = [0, 2, 2, 2, 0], sizes = [1, 1, 7, 8, 16], strides = [1, 1, 1, 1, 1]} : vector<1x4x9x10x16xbf16> to vector<1x1x7x8x16xbf16>
    %418 = vector.shape_cast %417 : vector<1x1x7x8x16xbf16> to vector<1x7x8x16xbf16>
    %419 = vector.shape_cast %418 : vector<1x7x8x16xbf16> to vector<56x16xbf16>
    %420 = vector.extract_strided_slice %0 {offsets = [0, 3, 2, 2, 0], sizes = [1, 1, 7, 8, 16], strides = [1, 1, 1, 1, 1]} : vector<1x4x9x10x16xbf16> to vector<1x1x7x8x16xbf16>
    %421 = vector.shape_cast %420 : vector<1x1x7x8x16xbf16> to vector<1x7x8x16xbf16>
    %422 = vector.shape_cast %421 : vector<1x7x8x16xbf16> to vector<56x16xbf16>
    %423 = tpu.concatenate %413, %416, %419, %422 in 0 : vector<56x16xbf16>, vector<56x16xbf16>, vector<56x16xbf16>, vector<56x16xbf16> -> vector<224x16xbf16>
    %424 = vector.extract_strided_slice %1 {offsets = [4, 4, 0, 0], sizes = [1, 1, 16, 32], strides = [1, 1, 1, 1]} : vector<5x5x16x32xbf16> to vector<1x1x16x32xbf16>
    %425 = vector.shape_cast %424 : vector<1x1x16x32xbf16> to vector<16x32xbf16>
    %cst_32 = arith.constant dense<0.000000e+00> : vector<224x32xf32>
    %426 = tpu.matmul %423, %425, %cst_32 {dimension_numbers = #tpu.dot_dimension_numbers<[1], [0], [0], [1], [0, 0, 1, 1], [], []>} : vector<224x16xbf16>, vector<16x32xbf16>, vector<224x32xf32> -> vector<224x32xf32>
    %427 = arith.addf %410, %426 : vector<224x32xf32>
    %428 = vector.shape_cast %427 : vector<224x32xf32> to vector<4x56x32xf32>
    %cst_33 = arith.constant dense<0xFF800000> : vector<56x32xf32>
    %429 = vector.multi_reduction <maximumf>, %428, %cst_33 [0] : vector<4x56x32xf32> to vector<56x32xf32>
    %c0_34 = arith.constant 0 : index
    %c0_35 = arith.constant 0 : index
    %430 = vector.load %arg3[%c0_34, %c0_35] : memref<1x32xf32, #tpu.memory_space<vmem>>, vector<1x32xf32>
    %431 = vector.broadcast %430 : vector<1x32xf32> to vector<56x32xf32>
    %432 = arith.addf %429, %431 : vector<56x32xf32>
    %cst_36 = arith.constant 0.000000e+00 : f32
    %433 = vector.broadcast %cst_36 : f32 to vector<56x32xf32>
    %434 = arith.maximumf %432, %433 : vector<56x32xf32>
    %435 = vector.shape_cast %434 : vector<56x32xf32> to vector<1x7x8x32xf32>
    %436 = vector.extract_strided_slice %435 {offsets = [0, 0, 0, 0], sizes = [1, 7, 7, 32], strides = [1, 1, 1, 1]} : vector<1x7x8x32xf32> to vector<1x7x7x32xf32>
    %437 = arith.truncf %436 : vector<1x7x7x32xf32> to vector<1x7x7x32xbf16>
    %c0_37 = arith.constant 0 : index
    %c0_38 = arith.constant 0 : index
    %c0_39 = arith.constant 0 : index
    %c0_40 = arith.constant 0 : index
    %438 = vector.load %arg4[%c0_37, %c0_38, %c0_39, %c0_40] : memref<1x7x7x32xbf16, #tpu.memory_space<vmem>>, vector<1x7x7x32xbf16>
    tpu.vector_store %arg4[%c0_37, %c0_38, %c0_39, %c0_40], %437 {strides = array<i32>} : memref<1x7x7x32xbf16, #tpu.memory_space<vmem>>, vector<1x7x7x32xbf16>,
    return
  }
  func.func @transform_0(%arg0: i32) -> (i32, i32, i32, i32, i32) {
    %c0_i32 = arith.constant 0 : i32
    %c0_i32_0 = arith.constant 0 : i32
    %c0_i32_1 = arith.constant 0 : i32
    %c0_i32_2 = arith.constant 0 : i32
    %c0_i32_3 = arith.constant 0 : i32
    return %arg0, %c0_i32, %c0_i32_0, %c0_i32_1, %c0_i32_2 : i32, i32, i32, i32, i32
  }
  func.func @transform_1(%arg0: i32) -> (i32, i32, i32, i32) {
    %c0_i32 = arith.constant 0 : i32
    %c0_i32_0 = arith.constant 0 : i32
    %c0_i32_1 = arith.constant 0 : i32
    %c0_i32_2 = arith.constant 0 : i32
    %c0_i32_3 = arith.constant 0 : i32
    return %c0_i32, %c0_i32_0, %c0_i32_1, %c0_i32_2 : i32, i32, i32, i32
  }
  func.func @transform_2(%arg0: i32) -> (i32, i32) {
    %c0_i32 = arith.constant 0 : i32
    %c0_i32_0 = arith.constant 0 : i32
    %c0_i32_1 = arith.constant 0 : i32
    return %c0_i32, %c0_i32_0 : i32, i32
  }
  func.func @transform_3(%arg0: i32) -> (i32, i32, i32, i32) {
    %c0_i32 = arith.constant 0 : i32
    %c0_i32_0 = arith.constant 0 : i32
    %c0_i32_1 = arith.constant 0 : i32
    %c0_i32_2 = arith.constant 0 : i32
    return %arg0, %c0_i32, %c0_i32_0, %c0_i32_1 : i32, i32, i32, i32
  }
}

module attributes {stable_mosaic.version = 11 : i64} {
  func.func @_linear_kernel(%arg0: i32, %arg1: memref<8x1568xbf16, #tpu.memory_space<vmem>>, %arg2: memref<1568x128xbf16, #tpu.memory_space<vmem>>, %arg3: memref<1x128xf32, #tpu.memory_space<vmem>>, %arg4: memref<8x128xf32, #tpu.memory_space<vmem>>) attributes {dimension_semantics = [#tpu.dimension_semantics<parallel>], iteration_bounds = array<i64: 1>, scalar_prefetch = 0 : i64, scratch_operands = 0 : i64, tpu.core_type = #tpu.core_type<tc>, window_params = [{transform_indices = @transform_0, window_bounds = array<i64: 8, 1568>}, {pipeline_mode = #tpu.pipeline_mode<synchronous>, transform_indices = @transform_1, window_bounds = array<i64: 1568, 128>}, {pipeline_mode = #tpu.pipeline_mode<synchronous>, transform_indices = @transform_2, window_bounds = array<i64: 1, 128>}, {transform_indices = @transform_3, window_bounds = array<i64: 8, 128>}]} {
    %c0 = arith.constant 0 : index
    %c0_0 = arith.constant 0 : index
    %0 = vector.load %arg1[%c0, %c0_0] : memref<8x1568xbf16, #tpu.memory_space<vmem>>, vector<8x1568xbf16>
    %c0_1 = arith.constant 0 : index
    %c0_2 = arith.constant 0 : index
    %1 = vector.load %arg2[%c0_1, %c0_2] : memref<1568x128xbf16, #tpu.memory_space<vmem>>, vector<1568x128xbf16>
    %cst = arith.constant dense<0.000000e+00> : vector<8x128xf32>
    %2 = tpu.matmul %0, %1, %cst {dimension_numbers = #tpu.dot_dimension_numbers<[1], [0], [0], [1], [0, 0, 1, 1], [], []>} : vector<8x1568xbf16>, vector<1568x128xbf16>, vector<8x128xf32> -> vector<8x128xf32>
    %c0_3 = arith.constant 0 : index
    %c0_4 = arith.constant 0 : index
    %3 = vector.load %arg3[%c0_3, %c0_4] : memref<1x128xf32, #tpu.memory_space<vmem>>, vector<1x128xf32>
    %4 = vector.broadcast %3 : vector<1x128xf32> to vector<8x128xf32>
    %5 = arith.addf %2, %4 : vector<8x128xf32>
    %c0_5 = arith.constant 0 : index
    %c0_6 = arith.constant 0 : index
    %6 = vector.load %arg4[%c0_5, %c0_6] : memref<8x128xf32, #tpu.memory_space<vmem>>, vector<8x128xf32>
    tpu.vector_store %arg4[%c0_5, %c0_6], %5 {strides = array<i32>} : memref<8x128xf32, #tpu.memory_space<vmem>>, vector<8x128xf32>,
    return
  }
  func.func @transform_0(%arg0: i32) -> (i32, i32) {
    %c0_i32 = arith.constant 0 : i32
    %c0_i32_0 = arith.constant 0 : i32
    return %arg0, %c0_i32 : i32, i32
  }
  func.func @transform_1(%arg0: i32) -> (i32, i32) {
    %c0_i32 = arith.constant 0 : i32
    %c0_i32_0 = arith.constant 0 : i32
    %c0_i32_1 = arith.constant 0 : i32
    return %c0_i32, %c0_i32_0 : i32, i32
  }
  func.func @transform_2(%arg0: i32) -> (i32, i32) {
    %c0_i32 = arith.constant 0 : i32
    %c0_i32_0 = arith.constant 0 : i32
    %c0_i32_1 = arith.constant 0 : i32
    return %c0_i32, %c0_i32_0 : i32, i32
  }
  func.func @transform_3(%arg0: i32) -> (i32, i32) {
    %c0_i32 = arith.constant 0 : i32
    %c0_i32_0 = arith.constant 0 : i32
    return %arg0, %c0_i32 : i32, i32
  }
}

</mosaic_0001>

<llo_original>
// kernel: _lambda_.3
$region0: #{_lambda_.3}
  #allocation0 [shape = 'u32[]', space=smem, size = 0x4, offset = 0x4, fixed_abs, tag = 'smem constant byte address 0x4 - core index']
  #allocation1 [shape = 'u32[144,128]{1,0:T(1,128)}', space=vmem, size = 0x12000, scoped, tag = 'internal scratch']
  %s0 = inlined_call_operand.vmem [shape: bf16[4,392,25], index: 0, kind: input, shape index: {}]
  %s1 = inlined_call_operand.vmem [shape: bf16[25,16], index: 1, kind: input, shape index: {}]
  %s2 = inlined_call_operand.vmem [shape: f32[1,16], index: 2, kind: input, shape index: {}]
  %s3 = inlined_call_operand.vmem [shape: bf16[392,16], index: 3, kind: output, shape index: {}]
  %s4 = sld [smem:[#allocation0]]
  $region86: #{_lambda_.3} parent=0
    _
  %s6 = ssub.s32 1, %s4
  %s7 = scalar_select 0, %s6, %s4
  $region1: #{_lambda_.3} parent=0
    #allocation2 [shape = 'u8[114688]{0}', space=vmem, size = 0x1c000, scoped, tag = 'input window, operand 0']
    loop: start=0, step=1, limit=9
    $region2: #{_lambda_.3} parent=1 // loop_pre_header
      _
    $region3: #{_lambda_.3} parent=1 // loop_header
      %s9 = sphi 0, %s13
      %p10 = scmp.ge.s32.totalorder %s9, 9
      %s19 = sphi 0, %s21
      %s22 = sphi 0, %s19
      %s23 = sphi 0, %s22
      %s39 = sphi 0, %s23
      %s43 = sphi 0, %s43
      %s45 = sphi 0, %s43
      %s46 = sphi 0, %s45
      %s60 = sphi 0, %s46
      %s64 = sphi 0, %s64
      %s66 = sphi 0, %s64
      %s67 = sphi 0, %s66
      %s81 = sphi 0, %s67
      %s87 = sphi 0, %s89
      %s90 = sphi 0, %s87
      %s91 = sphi 0, %s90
      %s107 = sphi 0, %s91
    $region4: #{_lambda_.3} parent=1 // loop_header_branch
      %12 = sbr.rel (%p10) target = $region8
    $region5: #{_lambda_.3} parent=1 // loop_body
      %s14 = ssub.s32 %s9, 1
      %s15 = ssub.s32 %s9, 2
      %s16 = sadd.s32 %s9, 1
      %s17 = ssub.s32 %s9, %s16
      %p18 = scmp.eq.s32.totalorder %s17, 0
      %s20 = sadd.s32 %s19, 1
      %s21 = scalar_select %p18, %s19, %s20
      %p24 = pneg %p18
      %p25 = scmp.eq.s32.totalorder %s9, 6
      %p26 = por %p24, %p25
      %p27 = scmp.ne.s32.totalorder %s19, %s22
      %p28 = scmp.eq.s32.totalorder %s9, 0
      %p29 = por %p27, %p28
      %p30 = scmp.ne.s32.totalorder %s19, %s22
      %p31 = scmp.eq.s32.totalorder %s14, 6
      %p32 = por %p30, %p31
      %p33 = scmp.ne.s32.totalorder %s22, %s23
      %p34 = scmp.eq.s32.totalorder %s14, 0
      %p35 = por %p33, %p34
      %p36 = scmp.ne.s32.totalorder %s22, %s23
      %p37 = scmp.eq.s32.totalorder %s15, 6
      %p38 = por %p36, %p37
      %p40 = scmp.ne.s32.totalorder %s23, %s39
      %p41 = scmp.eq.s32.totalorder %s15, 0
      %p42 = por %p40, %p41
      %s44 = sadd.s32 %s43, 1
      %p47 = scmp.eq.s32.totalorder %s9, 6
      %p48 = scmp.ne.s32.totalorder %s43, %s45
      %p49 = scmp.eq.s32.totalorder %s9, 0
      %p50 = por %p48, %p49
      %p51 = scmp.ne.s32.totalorder %s43, %s45
      %p52 = scmp.eq.s32.totalorder %s14, 6
      %p53 = por %p51, %p52
      %p54 = scmp.ne.s32.totalorder %s45, %s46
      %p55 = scmp.eq.s32.totalorder %s14, 0
      %p56 = por %p54, %p55
      %p57 = scmp.ne.s32.totalorder %s45, %s46
      %p58 = scmp.eq.s32.totalorder %s15, 6
      %p59 = por %p57, %p58
      %p61 = scmp.ne.s32.totalorder %s46, %s60
      %p62 = scmp.eq.s32.totalorder %s15, 0
      %p63 = por %p61, %p62
      %s65 = sadd.s32 %s64, 1
      %p68 = scmp.eq.s32.totalorder %s9, 6
      %p69 = scmp.ne.s32.totalorder %s64, %s66
      %p70 = scmp.eq.s32.totalorder %s9, 0
      %p71 = por %p69, %p70
      %p72 = scmp.ne.s32.totalorder %s64, %s66
      %p73 = scmp.eq.s32.totalorder %s14, 6
      %p74 = por %p72, %p73
      %p75 = scmp.ne.s32.totalorder %s66, %s67
      %p76 = scmp.eq.s32.totalorder %s14, 0
      %p77 = por %p75, %p76
      %p78 = scmp.ne.s32.totalorder %s66, %s67
      %p79 = scmp.eq.s32.totalorder %s15, 6
      %p80 = por %p78, %p79
      %p82 = scmp.ne.s32.totalorder %s67, %s81
      %p83 = scmp.eq.s32.totalorder %s15, 0
      %p84 = por %p82, %p83
      %s85 = ssub.s32 %s9, %s16
      %p86 = scmp.eq.s32.totalorder %s85, 0
      %s88 = sadd.s32 %s87, 1
      %s89 = scalar_select %p86, %s87, %s88
      %p92 = pneg %p86
      %p93 = scmp.eq.s32.totalorder %s9, 6
      %p94 = por %p92, %p93
      %p95 = scmp.ne.s32.totalorder %s87, %s90
      %p96 = scmp.eq.s32.totalorder %s9, 0
      %p97 = por %p95, %p96
      %p98 = scmp.ne.s32.totalorder %s87, %s90
      %p99 = scmp.eq.s32.totalorder %s14, 6
      %p100 = por %p98, %p99
      %p101 = scmp.ne.s32.totalorder %s90, %s91
      %p102 = scmp.eq.s32.totalorder %s14, 0
      %p103 = por %p101, %p102
      %p104 = scmp.ne.s32.totalorder %s90, %s91
      %p105 = scmp.eq.s32.totalorder %s15, 6
      %p106 = por %p104, %p105
      %p108 = scmp.ne.s32.totalorder %s91, %s107
      %p109 = scmp.eq.s32.totalorder %s15, 0
      %p110 = por %p108, %p109
      %p111 = scmp.le.s32.totalorder 1, %s9
      %p112 = scmp.lt.s32.totalorder %s9, 8
      %p113 = pnand %p111, %p112
      %p114 = pneg %p113
      // Predicated region
      $region9: #{_lambda_.3} parent=5 // pred_check
        _
      $region10: #{_lambda_.3} parent=5 // pred_check_branch
        %116 = sbr.rel (%p113) target = $region12
      $region11: #{_lambda_.3} parent=5 // pred_region
        %s117 = ssub.s32 %s9, 1
        // Predicated region
        $region13: #{_lambda_.3} parent=11 // pred_check
          %p118 = pneg %p56
        $region14: #{_lambda_.3} parent=11 // pred_check_branch
          %120 = sbr.rel (%p118) target = $region16
        $region15: #{_lambda_.3} parent=11 // pred_region
          _
        $region16: #{_lambda_.3} parent=11 // pred_fallthru
          _
        // Predicated region
        $region17: #{_lambda_.3} parent=11 // pred_check
          %p121 = pneg %p77
        $region18: #{_lambda_.3} parent=11 // pred_check_branch
          %123 = sbr.rel (%p121) target = $region20
        $region19: #{_lambda_.3} parent=11 // pred_region
          _
        $region20: #{_lambda_.3} parent=11 // pred_fallthru
          _
      $region12: #{_lambda_.3} parent=5 // pred_fallthru
        _
      %p124 = scmp.lt.s32.totalorder %s9, 7
      // Predicated region
      $region21: #{_lambda_.3} parent=5 // pred_check
        %p125 = pneg %p124
      $region22: #{_lambda_.3} parent=5 // pred_check_branch
        %127 = sbr.rel (%p125) target = $region24
      $region23: #{_lambda_.3} parent=5 // pred_region
        // Predicated region
        $region25: #{_lambda_.3} parent=23 // pred_check
          %p128 = pneg %p29
        $region26: #{_lambda_.3} parent=23 // pred_check_branch
          %130 = sbr.rel (%p128) target = $region28
        $region27: #{_lambda_.3} parent=23 // pred_region
          %s131 = sand.u32 %s19, 1
          %s132 = sand.u32 %s19, 1
          %s133 = smul.addr %s132, 112
          %s134 = scalar_lea.vmem [#allocation2], %s133
          %s135 = smul.u32 7, %s9
          %s136 = smul.addr %s135, 4
          %s137 = scalar_lea.vmem %s0, %s136
          // Predicated region
          $region29: #{_lambda_.3} parent=27 // pred_check
            _
          $region30: #{_lambda_.3} parent=27 // pred_check_branch
            %139 = sbr.rel (0) target = $region32
          $region31: #{_lambda_.3} parent=27 // pred_region
            // Predicated region
            $region33: #{_lambda_.3} parent=31 // pred_check
              _
            $region34: #{_lambda_.3} parent=31 // pred_check_branch
              %141 = sbr.rel target = $region36
            $region35: #{_lambda_.3} parent=31 // pred_region
              // Predicated region
              $region48: #{_lambda_.3} parent=35 // pred_check
                _
              $region49: #{_lambda_.3} parent=35 // pred_check_branch
                %210 = sbr.rel (0) target = $region51
              $region50: #{_lambda_.3} parent=35 // pred_region
                loop: start=0, step=1, limit=1
                $region52: #{_lambda_.3} parent=50 // loop_pre_header
                  _
                $region53: #{_lambda_.3} parent=50 // loop_header
                  %s212 = sphi 0, %s216
                  %p213 = scmp.ge.s32.totalorder %s212, 1
                  %s217 = sphi %s137, %s137
                  %s218 = sphi %s134, %s134
                $region54: #{_lambda_.3} parent=50 // loop_header_branch
                  %215 = sbr.rel (%p213) target = $region58
                $region55: #{_lambda_.3} parent=50 // loop_body
                  _
                $region56: #{_lambda_.3} parent=50 // loop_footer
                  %s216 = sadd.s32 1, %s212
                $region57: #{_lambda_.3} parent=50 // loop_footer_branch
                  %211 = sbr.rel target = $region53
                $region58: #{_lambda_.3} parent=50 // loop_exit
                  _
                loop: start=0, step=1, limit=1
                $region59: #{_lambda_.3} parent=50 // loop_pre_header
                  _
                $region60: #{_lambda_.3} parent=50 // loop_header
                  %s221 = sphi 0, %s225
                  %p222 = scmp.ge.s32.totalorder %s221, 1
                  %s226 = sphi %s137, %s137
                  %s227 = sphi %s134, %s134
                $region61: #{_lambda_.3} parent=50 // loop_header_branch
                  %224 = sbr.rel (%p222) target = $region65
                $region62: #{_lambda_.3} parent=50 // loop_body
                  %v228 = vld [vmem:[%s226] sm:$0xf]
                  %229 = vst [vmem:[%s227] sm:$0xf] %v228
                  %v230 = vld [vmem:[%s226 + $0x4] sm:$0xf]
                  %231 = vst [vmem:[%s227 + $0x4] sm:$0xf] %v230
                  %v232 = vld [vmem:[%s226 + $0x8] sm:$0xf]
                  %233 = vst [vmem:[%s227 + $0x8] sm:$0xf] %v232
                  %v234 = vld [vmem:[%s226 + $0xc] sm:$0xf]
                  %235 = vst [vmem:[%s227 + $0xc] sm:$0xf] %v234
                  %v236 = vld [vmem:[%s226 + $0x10] sm:$0xf]
                  %237 = vst [vmem:[%s227 + $0x10] sm:$0xf] %v236
                  %v238 = vld [vmem:[%s226 + $0x14] sm:$0xf]
                  %239 = vst [vmem:[%s227 + $0x14] sm:$0xf] %v238
                  %v240 = vld [vmem:[%s226 + $0x18] sm:$0xf]
                  %241 = vst [vmem:[%s227 + $0x18] sm:$0xf] %v240
                  %v242 = vld [vmem:[%s226 + $0xc4] sm:$0xf]
                  %243 = vst [vmem:[%s227 + $0x1c] sm:$0xf] %v242
                  %v244 = vld [vmem:[%s226 + $0xc8] sm:$0xf]
                  %245 = vst [vmem:[%s227 + $0x20] sm:$0xf] %v244
                  %v246 = vld [vmem:[%s226 + $0xcc] sm:$0xf]
                  %247 = vst [vmem:[%s227 + $0x24] sm:$0xf] %v246
                  %v248 = vld [vmem:[%s226 + $0xd0] sm:$0xf]
                  %249 = vst [vmem:[%s227 + $0x28] sm:$0xf] %v248
                  %v250 = vld [vmem:[%s226 + $0xd4] sm:$0xf]
                  %251 = vst [vmem:[%s227 + $0x2c] sm:$0xf] %v250
                  %v252 = vld [vmem:[%s226 + $0xd8] sm:$0xf]
                  %253 = vst [vmem:[%s227 + $0x30] sm:$0xf] %v252
                  %v254 = vld [vmem:[%s226 + $0xdc] sm:$0xf]
                  %255 = vst [vmem:[%s227 + $0x34] sm:$0xf] %v254
                  %v256 = vld [vmem:[%s226 + $0x188] sm:$0xf]
                  %257 = vst [vmem:[%s227 + $0x38] sm:$0xf] %v256
                  %v258 = vld [vmem:[%s226 + $0x18c] sm:$0xf]
                  %259 = vst [vmem:[%s227 + $0x3c] sm:$0xf] %v258
                  %v260 = vld [vmem:[%s226 + $0x190] sm:$0xf]
                  %261 = vst [vmem:[%s227 + $0x40] sm:$0xf] %v260
                  %v262 = vld [vmem:[%s226 + $0x194] sm:$0xf]
                  %263 = vst [vmem:[%s227 + $0x44] sm:$0xf] %v262
                  %v264 = vld [vmem:[%s226 + $0x198] sm:$0xf]
                  %265 = vst [vmem:[%s227 + $0x48] sm:$0xf] %v264
                  %v266 = vld [vmem:[%s226 + $0x19c] sm:$0xf]
                  %267 = vst [vmem:[%s227 + $0x4c] sm:$0xf] %v266
                  %v268 = vld [vmem:[%s226 + $0x1a0] sm:$0xf]
                  %269 = vst [vmem:[%s227 + $0x50] sm:$0xf] %v268
                  %v270 = vld [vmem:[%s226 + $0x24c] sm:$0xf]
                  %271 = vst [vmem:[%s227 + $0x54] sm:$0xf] %v270
                  %v272 = vld [vmem:[%s226 + $0x250] sm:$0xf]
                  %273 = vst [vmem:[%s227 + $0x58] sm:$0xf] %v272
                  %v274 = vld [vmem:[%s226 + $0x254] sm:$0xf]
                  %275 = vst [vmem:[%s227 + $0x5c] sm:$0xf] %v274
                  %v276 = vld [vmem:[%s226 + $0x258] sm:$0xf]
                  %277 = vst [vmem:[%s227 + $0x60] sm:$0xf] %v276
                  %v278 = vld [vmem:[%s226 + $0x25c] sm:$0xf]
                  %279 = vst [vmem:[%s227 + $0x64] sm:$0xf] %v278
                  %v280 = vld [vmem:[%s226 + $0x260] sm:$0xf]
                  %281 = vst [vmem:[%s227 + $0x68] sm:$0xf] %v280
                  %v282 = vld [vmem:[%s226 + $0x264] sm:$0xf]
                  %283 = vst [vmem:[%s227 + $0x6c] sm:$0xf] %v282
                $region63: #{_lambda_.3} parent=50 // loop_footer
                  %s225 = sadd.s32 1, %s221
                $region64: #{_lambda_.3} parent=50 // loop_footer_branch
                  %220 = sbr.rel target = $region60
                $region65: #{_lambda_.3} parent=50 // loop_exit
                  _
              $region51: #{_lambda_.3} parent=35 // pred_fallthru
                _
            $region36: #{_lambda_.3} parent=31 // pred_fallthru
              _
            // Predicated region
            $region37: #{_lambda_.3} parent=31 // pred_check
              _
            $region38: #{_lambda_.3} parent=31 // pred_check_branch
              %143 = sbr.rel (0) target = $region40
            $region39: #{_lambda_.3} parent=31 // pred_region
              loop: start=0, step=1, limit=1
              $region41: #{_lambda_.3} parent=39 // loop_pre_header
                _
              $region42: #{_lambda_.3} parent=39 // loop_header
                %s146 = sphi 0, %s150
                %p147 = scmp.ge.s32.totalorder %s146, 1
                %s151 = sphi %s137, %s137
                %s152 = sphi %s134, %s134
              $region43: #{_lambda_.3} parent=39 // loop_header_branch
                %149 = sbr.rel (%p147) target = $region47
              $region44: #{_lambda_.3} parent=39 // loop_body
                %v153 = vld [vmem:[%s151] sm:$0xf]
                %154 = vst [vmem:[%s152] sm:$0xf] %v153
                %v155 = vld [vmem:[%s151 + $0x4] sm:$0xf]
                %156 = vst [vmem:[%s152 + $0x4] sm:$0xf] %v155
                %v157 = vld [vmem:[%s151 + $0x8] sm:$0xf]
                %158 = vst [vmem:[%s152 + $0x8] sm:$0xf] %v157
                %v159 = vld [vmem:[%s151 + $0xc] sm:$0xf]
                %160 = vst [vmem:[%s152 + $0xc] sm:$0xf] %v159
                %v161 = vld [vmem:[%s151 + $0x10] sm:$0xf]
                %162 = vst [vmem:[%s152 + $0x10] sm:$0xf] %v161
                %v163 = vld [vmem:[%s151 + $0x14] sm:$0xf]
                %164 = vst [vmem:[%s152 + $0x14] sm:$0xf] %v163
                %v165 = vld [vmem:[%s151 + $0x18] sm:$0xf]
                %166 = vst [vmem:[%s152 + $0x18] sm:$0xf] %v165
                %v167 = vld [vmem:[%s151 + $0xc4] sm:$0xf]
                %168 = vst [vmem:[%s152 + $0x1c] sm:$0xf] %v167
                %v169 = vld [vmem:[%s151 + $0xc8] sm:$0xf]
                %170 = vst [vmem:[%s152 + $0x20] sm:$0xf] %v169
                %v171 = vld [vmem:[%s151 + $0xcc] sm:$0xf]
                %172 = vst [vmem:[%s152 + $0x24] sm:$0xf] %v171
                %v173 = vld [vmem:[%s151 + $0xd0] sm:$0xf]
                %174 = vst [vmem:[%s152 + $0x28] sm:$0xf] %v173
                %v175 = vld [vmem:[%s151 + $0xd4] sm:$0xf]
                %176 = vst [vmem:[%s152 + $0x2c] sm:$0xf] %v175
                %v177 = vld [vmem:[%s151 + $0xd8] sm:$0xf]
                %178 = vst [vmem:[%s152 + $0x30] sm:$0xf] %v177
                %v179 = vld [vmem:[%s151 + $0xdc] sm:$0xf]
                %180 = vst [vmem:[%s152 + $0x34] sm:$0xf] %v179
                %v181 = vld [vmem:[%s151 + $0x188] sm:$0xf]
                %182 = vst [vmem:[%s152 + $0x38] sm:$0xf] %v181
                %v183 = vld [vmem:[%s151 + $0x18c] sm:$0xf]
                %184 = vst [vmem:[%s152 + $0x3c] sm:$0xf] %v183
                %v185 = vld [vmem:[%s151 + $0x190] sm:$0xf]
                %186 = vst [vmem:[%s152 + $0x40] sm:$0xf] %v185
                %v187 = vld [vmem:[%s151 + $0x194] sm:$0xf]
                %188 = vst [vmem:[%s152 + $0x44] sm:$0xf] %v187
                %v189 = vld [vmem:[%s151 + $0x198] sm:$0xf]
                %190 = vst [vmem:[%s152 + $0x48] sm:$0xf] %v189
                %v191 = vld [vmem:[%s151 + $0x19c] sm:$0xf]
                %192 = vst [vmem:[%s152 + $0x4c] sm:$0xf] %v191
                %v193 = vld [vmem:[%s151 + $0x1a0] sm:$0xf]
                %194 = vst [vmem:[%s152 + $0x50] sm:$0xf] %v193
                %v195 = vld [vmem:[%s151 + $0x24c] sm:$0xf]
                %196 = vst [vmem:[%s152 + $0x54] sm:$0xf] %v195
                %v197 = vld [vmem:[%s151 + $0x250] sm:$0xf]
                %198 = vst [vmem:[%s152 + $0x58] sm:$0xf] %v197
                %v199 = vld [vmem:[%s151 + $0x254] sm:$0xf]
                %200 = vst [vmem:[%s152 + $0x5c] sm:$0xf] %v199
                %v201 = vld [vmem:[%s151 + $0x258] sm:$0xf]
                %202 = vst [vmem:[%s152 + $0x60] sm:$0xf] %v201
                %v203 = vld [vmem:[%s151 + $0x25c] sm:$0xf]
                %204 = vst [vmem:[%s152 + $0x64] sm:$0xf] %v203
                %v205 = vld [vmem:[%s151 + $0x260] sm:$0xf]
                %206 = vst [vmem:[%s152 + $0x68] sm:$0xf] %v205
                %v207 = vld [vmem:[%s151 + $0x264] sm:$0xf]
                %208 = vst [vmem:[%s152 + $0x6c] sm:$0xf] %v207
              $region45: #{_lambda_.3} parent=39 // loop_footer
                %s150 = sadd.s32 1, %s146
              $region46: #{_lambda_.3} parent=39 // loop_footer_branch
                %145 = sbr.rel target = $region42
              $region47: #{_lambda_.3} parent=39 // loop_exit
                _
            $region40: #{_lambda_.3} parent=31 // pred_fallthru
              _
          $region32: #{_lambda_.3} parent=27 // pred_fallthru
            _
          %284 = vnop
        $region28: #{_lambda_.3} parent=23 // pred_fallthru
          _
      $region24: #{_lambda_.3} parent=5 // pred_fallthru
        _
      %p285 = scmp.le.s32.totalorder 1, %s9
      %p286 = scmp.lt.s32.totalorder %s9, 8
      %p287 = pnand %p285, %p286
      %p288 = pneg %p287
      // Predicated region
      $region66: #{_lambda_.3} parent=5 // pred_check
        _
      $region67: #{_lambda_.3} parent=5 // pred_check_branch
        %290 = sbr.rel (%p287) target = $region69
      $region68: #{_lambda_.3} parent=5 // pred_region
        %s291 = ssub.s32 %s9, 1
        %s292 = sand.u32 %s22, 1
        %s293 = sand.u32 %s22, 1
        %s294 = smul.addr %s293, 112
        %s295 = scalar_lea.vmem [#allocation2], %s294
        // Predicated region
        $region70: #{_lambda_.3} parent=68 // pred_check
          %p296 = pneg %p35
        $region71: #{_lambda_.3} parent=68 // pred_check_branch
          %298 = sbr.rel (%p296) target = $region73
        $region72: #{_lambda_.3} parent=68 // pred_region
          _
        $region73: #{_lambda_.3} parent=68 // pred_fallthru
          _
        %s299 = sand.u32 %s22, 1
        %s300 = sand.u32 %s22, 1
        %s301 = smul.addr %s300, 112
        %s302 = scalar_lea.vmem [#allocation2], %s301
        %p303 = pneg %p35
        %p304 = pneg %p32
        %p305 = pneg %p56
        %p306 = pneg %p53
        %p307 = pneg %p77
        %p308 = pneg %p74
        %p309 = pneg %p103
        %p310 = pneg %p100
        %s311 = smul.u32 7, %s14
        %p312 = scmp.lt.s32.totalorder %s311, 48
        %s313 = scalar_select %p312, %s311, 48
        %s314 = smul.addr %s313, 4
        %s315 = scalar_lea.vmem %s3, %s314
        %s316 = smul.u32 7, %s14
        %s317 = smul.u32 7, %s14
        %p318 = scmp.lt.s32.totalorder %s317, 48
        %s319 = scalar_select %p318, %s317, 48
        %s320 = smul.addr %s319, 4
        %s321 = scalar_lea.vmem %s3, %s320
        %s322 = smul.u32 7, %s14
        %v324 = vld [vmem:[%s295] sm:$0xf]
        %v325 = vld [vmem:[%s295 + $0x4] sm:$0xf]
        %v326 = vld [vmem:[%s295 + $0x8] sm:$0xf]
        %v327 = vld [vmem:[%s295 + $0xc] sm:$0xf]
        %v328 = vld [vmem:[%s295 + $0x10] sm:$0xf]
        %v329 = vld [vmem:[%s295 + $0x14] sm:$0xf]
        %v330 = vld [vmem:[%s295 + $0x18] sm:$0xf]
        %v331 = vld [vmem:[%s295 + $0x1c] sm:$0xf]
        %v332 = vld [vmem:[%s295 + $0x20] sm:$0xf]
        %v333 = vld [vmem:[%s295 + $0x24] sm:$0xf]
        %v334 = vld [vmem:[%s295 + $0x28] sm:$0xf]
        %v335 = vld [vmem:[%s295 + $0x2c] sm:$0xf]
        %v336 = vld [vmem:[%s295 + $0x30] sm:$0xf]
        %v337 = vld [vmem:[%s295 + $0x34] sm:$0xf]
        %v338 = vld [vmem:[%s295 + $0x38] sm:$0xf]
        %v339 = vld [vmem:[%s295 + $0x3c] sm:$0xf]
        %v340 = vld [vmem:[%s295 + $0x40] sm:$0xf]
        %v341 = vld [vmem:[%s295 + $0x44] sm:$0xf]
        %v342 = vld [vmem:[%s295 + $0x48] sm:$0xf]
        %v343 = vld [vmem:[%s295 + $0x4c] sm:$0xf]
        %v344 = vld [vmem:[%s295 + $0x50] sm:$0xf]
        %v345 = vld [vmem:[%s295 + $0x54] sm:$0xf]
        %v346 = vld [vmem:[%s295 + $0x58] sm:$0xf]
        %v347 = vld [vmem:[%s295 + $0x5c] sm:$0xf]
        %v348 = vld [vmem:[%s295 + $0x60] sm:$0xf]
        %v349 = vld [vmem:[%s295 + $0x64] sm:$0xf]
        %v350 = vld [vmem:[%s295 + $0x68] sm:$0xf]
        %v351 = vld [vmem:[%s295 + $0x6c] sm:$0xf]
        %v352 = vld [vmem:[%s1] sm:$0xf]
        %v353 = vld [vmem:[%s1 + $0x4] sm:$0xf]
        %v354 = vld [vmem:[%s1 + $0x8] sm:$0xf]
        %v355 = vld [vmem:[%s1 + $0xc] sm:$0x1]
        %v384 = vunpack.c.l.b16 %v324
        %v385 = vunpack.c.l.b16 %v325
        %v386 = vunpack.c.l.b16 %v326
        %v387 = vunpack.c.l.b16 %v327
        %v388 = vunpack.c.l.b16 %v328
        %v389 = vunpack.c.l.b16 %v329
        %v390 = vunpack.c.l.b16 %v330
        %v391 = vunpack.c.l.b16 %v331
        %v392 = vunpack.c.l.b16 %v332
        %v393 = vunpack.c.l.b16 %v333
        %v394 = vunpack.c.l.b16 %v334
        %v395 = vunpack.c.l.b16 %v335
        %v396 = vunpack.c.l.b16 %v336
        %v397 = vunpack.c.l.b16 %v337
        %v398 = vunpack.c.l.b16 %v338
        %v399 = vunpack.c.l.b16 %v339
        %v400 = vunpack.c.l.b16 %v340
        %v401 = vunpack.c.l.b16 %v341
        %v402 = vunpack.c.l.b16 %v342
        %v403 = vunpack.c.l.b16 %v343
        %v404 = vunpack.c.l.b16 %v344
        %v405 = vunpack.c.l.b16 %v345
        %v406 = vunpack.c.l.b16 %v346
        %v407 = vunpack.c.l.b16 %v347
        %v408 = vunpack.c.l.b16 %v348
        %v409 = vunpack.c.l.b16 %v349
        %v410 = vunpack.c.l.b16 %v350
        %v411 = vunpack.c.l.b16 %v351
        %v412 = vpack.c.b16 %v385, %v384
        %v413 = vpack.c.b16 %v387, %v386
        %v414 = vpack.c.b16 %v389, %v388
        %v415 = vpack.c.b16 %v391, %v390
        %v416 = vpack.c.b16 %v393, %v392
        %v417 = vpack.c.b16 %v395, %v394
        %v418 = vpack.c.b16 %v397, %v396
        %v419 = vpack.c.b16 %v399, %v398
        %v420 = vpack.c.b16 %v401, %v400
        %v421 = vpack.c.b16 %v403, %v402
        %v422 = vpack.c.b16 %v405, %v404
        %v423 = vpack.c.b16 %v407, %v406
        %v424 = vpack.c.b16 %v409, %v408
        %v425 = vpack.c.b16 %v411, %v410
        %v430 = vunpack.c.l.b16 %v352
        %v431 = vunpack.c.l.b16 %v353
        %v432 = vunpack.c.l.b16 %v354
        %v433 = vunpack.c.l.b16 %v355
        %v434 = vpack.c.b16 %v431, %v430
        %v435 = vpack.c.b16 %v433, %v432
        %vm437 = vcmask 203776
        %v439 = vsel %vm437, %v412, 0
        %v442 = vsel %vm437, %v413, 0
        %v445 = vsel %vm437, %v414, 0
        %v448 = vsel %vm437, %v415, 0
        %v451 = vsel %vm437, %v416, 0
        %v454 = vsel %vm437, %v417, 0
        %v457 = vsel %vm437, %v418, 0
        %v460 = vsel %vm437, %v419, 0
        %v463 = vsel %vm437, %v420, 0
        %v466 = vsel %vm437, %v421, 0
        %v469 = vsel %vm437, %v422, 0
        %v472 = vsel %vm437, %v423, 0
        %v475 = vsel %vm437, %v424, 0
        %v478 = vsel %vm437, %v425, 0
        %vm480 = vcmask 1043456
        %vm481 = vcmask 1044480
        %v482 = vsel %vm480, 4294967295, 65535
        %v483 = vsel %vm481, %v482, 0
        %v485 = vand.u32 %v435, %v483
        %487 = vmatprep.subr.bf16.mxu0 0
        %488 = vmatpush1.bf16.msra.mxu0 %v434
        %489 = vmatprep.subr.bf16.mxu0 0
        %490 = vmatpush1.bf16.msra.mxu0 %v485
        %491 = vmatprep.subr.bf16.mxu0 0
        %492 = vmatpush1.bf16.msra.mxu0 0
        %493 = vmatprep.subr.bf16.mxu0 0
        %494 = vmatpush1.bf16.msra.mxu0 0
        %495 = vmatprep.subr.bf16.mxu0 0
        %496 = vmatpush1.bf16.msra.mxu0 0
        %497 = vmatprep.subr.bf16.mxu0 0
        %498 = vmatpush1.bf16.msra.mxu0 0
        %499 = vmatprep.subr.bf16.mxu0 0
        %500 = vmatpush1.bf16.msra.mxu0 0
        %501 = vmatprep.subr.bf16.mxu0 0
        %502 = vmatpush1.bf16.msra.mxu0 0
        %503 = vmatprep.subr.bf16.mxu0 0
        %504 = vmatpush1.bf16.msra.mxu0 0
        %505 = vmatprep.subr.bf16.mxu0 0
        %506 = vmatpush1.bf16.msra.mxu0 0
        %507 = vmatprep.subr.bf16.mxu0 0
        %508 = vmatpush1.bf16.msra.mxu0 0
        %509 = vmatprep.subr.bf16.mxu0 0
        %510 = vmatpush1.bf16.msra.mxu0 0
        %511 = vmatprep.subr.bf16.mxu0 0
        %512 = vmatpush1.bf16.msra.mxu0 0
        %513 = vmatprep.subr.bf16.mxu0 0
        %514 = vmatpush1.bf16.msra.mxu0 0
        %515 = vmatprep.subr.bf16.mxu0 0
        %516 = vmatpush1.bf16.msra.mxu0 0
        %517 = vmatprep.subr.bf16.mxu0 0
        %518 = vmatpush1.bf16.msra.mxu0 0
        %519 = vmatprep.mubr.bf16.mxu0 0
        %520 = vmatmul.mubr.bf16.gmra.mrb[0].mxu0 %v439
        %v521 = vpop.f32.mrb[0].mxu0
        %v522 = vadd.f32 0.0, %v521
        %v523 = vpop.f32.mrb[0].mxu0
        %v524 = vpop.f32.mrb[0].mxu0
        %v525 = vadd.f32 0.0, %v524
        %v526 = vpop.f32.mrb[0].mxu0
        %527 = vmatprep.mubr.bf16.mxu0 0
        %528 = vmatmul.mubr.bf16.gmra.mrb[0].mxu0 %v442
        %v529 = vpop.f32.mrb[0].mxu0
        %v530 = vadd.f32 0.0, %v529
        %v531 = vpop.f32.mrb[0].mxu0
        %v532 = vpop.f32.mrb[0].mxu0
        %v533 = vadd.f32 0.0, %v532
        %v534 = vpop.f32.mrb[0].mxu0
        %535 = vmatprep.mubr.bf16.mxu0 0
        %536 = vmatmul.mubr.bf16.gmra.mrb[0].mxu0 %v445
        %v537 = vpop.f32.mrb[0].mxu0
        %v538 = vadd.f32 0.0, %v537
        %v539 = vpop.f32.mrb[0].mxu0
        %v540 = vpop.f32.mrb[0].mxu0
        %v541 = vadd.f32 0.0, %v540
        %v542 = vpop.f32.mrb[0].mxu0
        %543 = vmatprep.mubr.bf16.mxu0 0
        %544 = vmatmul.mubr.bf16.gmra.mrb[0].mxu0 %v448
        %v545 = vpop.f32.mrb[0].mxu0
        %v546 = vadd.f32 0.0, %v545
        %v547 = vpop.f32.mrb[0].mxu0
        %v548 = vpop.f32.mrb[0].mxu0
        %v549 = vadd.f32 0.0, %v548
        %v550 = vpop.f32.mrb[0].mxu0
        %551 = vmatprep.mubr.bf16.mxu0 0
        %552 = vmatmul.mubr.bf16.gmra.mrb[0].mxu0 %v451
        %v553 = vpop.f32.mrb[0].mxu0
        %v554 = vadd.f32 0.0, %v553
        %v555 = vpop.f32.mrb[0].mxu0
        %v556 = vpop.f32.mrb[0].mxu0
        %v557 = vadd.f32 0.0, %v556
        %v558 = vpop.f32.mrb[0].mxu0
        %559 = vmatprep.mubr.bf16.mxu0 0
        %560 = vmatmul.mubr.bf16.gmra.mrb[0].mxu0 %v454
        %v561 = vpop.f32.mrb[0].mxu0
        %v562 = vadd.f32 0.0, %v561
        %v563 = vpop.f32.mrb[0].mxu0
        %v564 = vpop.f32.mrb[0].mxu0
        %v565 = vadd.f32 0.0, %v564
        %v566 = vpop.f32.mrb[0].mxu0
        %567 = vmatprep.mubr.bf16.mxu0 0
        %568 = vmatmul.mubr.bf16.gmra.mrb[0].mxu0 %v457
        %v569 = vpop.f32.mrb[0].mxu0
        %v570 = vadd.f32 0.0, %v569
        %v571 = vpop.f32.mrb[0].mxu0
        %v572 = vpop.f32.mrb[0].mxu0
        %v573 = vadd.f32 0.0, %v572
        %v574 = vpop.f32.mrb[0].mxu0
        %575 = vmatprep.mubr.bf16.mxu0 0
        %576 = vmatmul.mubr.bf16.gmra.mrb[0].mxu0 %v460
        %v577 = vpop.f32.mrb[0].mxu0
        %v578 = vadd.f32 0.0, %v577
        %v579 = vpop.f32.mrb[0].mxu0
        %v580 = vpop.f32.mrb[0].mxu0
        %v581 = vadd.f32 0.0, %v580
        %v582 = vpop.f32.mrb[0].mxu0
        %583 = vmatprep.mubr.bf16.mxu0 0
        %584 = vmatmul.mubr.bf16.gmra.mrb[0].mxu0 %v463
        %v585 = vpop.f32.mrb[0].mxu0
        %v586 = vadd.f32 0.0, %v585
        %v587 = vpop.f32.mrb[0].mxu0
        %v588 = vpop.f32.mrb[0].mxu0
        %v589 = vadd.f32 0.0, %v588
        %v590 = vpop.f32.mrb[0].mxu0
        %591 = vmatprep.mubr.bf16.mxu0 0
        %592 = vmatmul.mubr.bf16.gmra.mrb[0].mxu0 %v466
        %v593 = vpop.f32.mrb[0].mxu0
        %v594 = vadd.f32 0.0, %v593
        %v595 = vpop.f32.mrb[0].mxu0
        %v596 = vpop.f32.mrb[0].mxu0
        %v597 = vadd.f32 0.0, %v596
        %v598 = vpop.f32.mrb[0].mxu0
        %599 = vmatprep.mubr.bf16.mxu0 0
        %600 = vmatmul.mubr.bf16.gmra.mrb[0].mxu0 %v469
        %v601 = vpop.f32.mrb[0].mxu0
        %v602 = vadd.f32 0.0, %v601
        %v603 = vpop.f32.mrb[0].mxu0
        %v604 = vpop.f32.mrb[0].mxu0
        %v605 = vadd.f32 0.0, %v604
        %v606 = vpop.f32.mrb[0].mxu0
        %607 = vmatprep.mubr.bf16.mxu0 0
        %608 = vmatmul.mubr.bf16.gmra.mrb[0].mxu0 %v472
        %v609 = vpop.f32.mrb[0].mxu0
        %v610 = vadd.f32 0.0, %v609
        %v611 = vpop.f32.mrb[0].mxu0
        %v612 = vpop.f32.mrb[0].mxu0
        %v613 = vadd.f32 0.0, %v612
        %v614 = vpop.f32.mrb[0].mxu0
        %615 = vmatprep.mubr.bf16.mxu0 0
        %616 = vmatmul.mubr.bf16.gmra.mrb[0].mxu0 %v475
        %v617 = vpop.f32.mrb[0].mxu0
        %v618 = vadd.f32 0.0, %v617
        %v619 = vpop.f32.mrb[0].mxu0
        %v620 = vpop.f32.mrb[0].mxu0
        %v621 = vadd.f32 0.0, %v620
        %v622 = vpop.f32.mrb[0].mxu0
        %623 = vmatprep.mubr.bf16.mxu0 0
        %624 = vmatmul.mubr.bf16.gmra.mrb[0].mxu0 %v478
        %v625 = vpop.f32.mrb[0].mxu0
        %v626 = vadd.f32 0.0, %v625
        %v627 = vpop.f32.mrb[0].mxu0
        %v628 = vpop.f32.mrb[0].mxu0
        %v629 = vadd.f32 0.0, %v628
        %v630 = vpop.f32.mrb[0].mxu0
        %631 = vdwg.mxu0
        %vm632 = vcmask 130048
        %v633 = vsel %vm632, %v522, -inf
        %v634 = vsel %vm632, %v549, -inf
        %v635 = vmax.f32 %v633, %v634
        %v636 = vsel %vm632, %v578, -inf
        %v637 = vmax.f32 %v635, %v636
        %v638 = vsel %vm632, %v605, -inf
        %v639 = vmax.f32 %v637, %v638
        %v640 = vsel %vm632, %v525, -inf
        %v641 = vsel %vm632, %v554, -inf
        %v642 = vmax.f32 %v640, %v641
        %v643 = vsel %vm632, %v581, -inf
        %v644 = vmax.f32 %v642, %v643
        %v645 = vsel %vm632, %v610, -inf
        %v646 = vmax.f32 %v644, %v645
        %v647 = vsel %vm632, %v530, -inf
        %v648 = vsel %vm632, %v557, -inf
        %v649 = vmax.f32 %v647, %v648
        %v650 = vsel %vm632, %v586, -inf
        %v651 = vmax.f32 %v649, %v650
        %v652 = vsel %vm632, %v613, -inf
        %v653 = vmax.f32 %v651, %v652
        %v654 = vsel %vm632, %v533, -inf
        %v655 = vsel %vm632, %v562, -inf
        %v656 = vmax.f32 %v654, %v655
        %v657 = vsel %vm632, %v589, -inf
        %v658 = vmax.f32 %v656, %v657
        %v659 = vsel %vm632, %v618, -inf
        %v660 = vmax.f32 %v658, %v659
        %v661 = vsel %vm632, %v538, -inf
        %v662 = vsel %vm632, %v565, -inf
        %v663 = vmax.f32 %v661, %v662
        %v664 = vsel %vm632, %v594, -inf
        %v665 = vmax.f32 %v663, %v664
        %v666 = vsel %vm632, %v621, -inf
        %v667 = vmax.f32 %v665, %v666
        %v668 = vsel %vm632, %v541, -inf
        %v669 = vsel %vm632, %v570, -inf
        %v670 = vmax.f32 %v668, %v669
        %v671 = vsel %vm632, %v597, -inf
        %v672 = vmax.f32 %v670, %v671
        %v673 = vsel %vm632, %v626, -inf
        %v674 = vmax.f32 %v672, %v673
        %v675 = vsel %vm632, %v546, -inf
        %v676 = vsel %vm632, %v573, -inf
        %v677 = vmax.f32 %v675, %v676
        %v678 = vsel %vm632, %v602, -inf
        %v679 = vmax.f32 %v677, %v678
        %v680 = vsel %vm632, %v629, -inf
        %v681 = vmax.f32 %v679, %v680
        %v682 = vld [vmem:[%s2] sm:$0x1]
        %v684 = vlaneseq
        %v685 = vshrl.u32 %v684, 7
        %v686 = vsub.s32 0, %v685
        %v687 = vrot.slane %v682, %v686
        %v689 = vadd.f32 %v639, %v687
        %v690 = vadd.f32 %v646, %v687
        %v691 = vadd.f32 %v653, %v687
        %v692 = vadd.f32 %v660, %v687
        %v693 = vadd.f32 %v667, %v687
        %v694 = vadd.f32 %v674, %v687
        %v695 = vadd.f32 %v681, %v687
        %v696 = vmax.f32 %v689, 0.0
        %v697 = vmax.f32 %v690, 0.0
        %v698 = vmax.f32 %v691, 0.0
        %v699 = vmax.f32 %v692, 0.0
        %v700 = vmax.f32 %v693, 0.0
        %v701 = vmax.f32 %v694, 0.0
        %v702 = vmax.f32 %v695, 0.0
        %v703 = vpack.c.bf16 %v697, %v696
        %v704 = vpack.c.bf16 %v699, %v698
        %v705 = vpack.c.bf16 %v701, %v700
        %v706 = vpack.c.bf16 %v702, %v702
        %v711 = vunpack.c.l.b16 %v703
        %v712 = vunpack.c.h.b16 %v703
        %v713 = vunpack.c.l.b16 %v704
        %v714 = vunpack.c.h.b16 %v704
        %v715 = vunpack.c.l.b16 %v705
        %v716 = vunpack.c.h.b16 %v705
        %v717 = vunpack.c.l.b16 %v706
        %v718 = vpack.c.b16 %v711, %v711
        %v719 = vpack.c.b16 %v712, %v712
        %v720 = vpack.c.b16 %v713, %v713
        %v721 = vpack.c.b16 %v714, %v714
        %v722 = vpack.c.b16 %v715, %v715
        %v723 = vpack.c.b16 %v716, %v716
        %v724 = vpack.c.b16 %v717, %v717
        %vm732 = vcmask 125952
        %733 = vst.msk [vmem:[%s321] sm:$0xf] %vm732, %v718
        %734 = vst.msk [vmem:[%s321 + $0x4] sm:$0xf] %vm732, %v719
        %735 = vst.msk [vmem:[%s321 + $0x8] sm:$0xf] %vm732, %v720
        %736 = vst.msk [vmem:[%s321 + $0xc] sm:$0xf] %vm732, %v721
        %737 = vst.msk [vmem:[%s321 + $0x10] sm:$0xf] %vm732, %v722
        %738 = vst.msk [vmem:[%s321 + $0x14] sm:$0xf] %vm732, %v723
        %739 = vst.msk [vmem:[%s321 + $0x18] sm:$0xf] %vm732, %v724
        %s740 = smul.u32 7, %s14
        %p741 = scmp.lt.s32.totalorder %s740, 48
        %s742 = scalar_select %p741, %s740, 48
        %s743 = smul.addr %s742, 4
        %s744 = scalar_lea.vmem %s3, %s743
        // Predicated region
        $region74: #{_lambda_.3} parent=68 // pred_check
          %p745 = pneg %p100
        $region75: #{_lambda_.3} parent=68 // pred_check_branch
          %747 = sbr.rel (%p745) target = $region77
        $region76: #{_lambda_.3} parent=68 // pred_region
          %s748 = smul.u32 7, %s14
        $region77: #{_lambda_.3} parent=68 // pred_fallthru
          _
      $region69: #{_lambda_.3} parent=5 // pred_fallthru
        _
      %p749 = scmp.le.s32.totalorder 2, %s9
      // Predicated region
      $region78: #{_lambda_.3} parent=5 // pred_check
        %p750 = pneg %p749
      $region79: #{_lambda_.3} parent=5 // pred_check_branch
        %752 = sbr.rel (%p750) target = $region81
      $region80: #{_lambda_.3} parent=5 // pred_region
        %s753 = ssub.s32 %s9, 2
        // Predicated region
        $region82: #{_lambda_.3} parent=80 // pred_check
          %p754 = pneg %p106
        $region83: #{_lambda_.3} parent=80 // pred_check_branch
          %756 = sbr.rel (%p754) target = $region85
        $region84: #{_lambda_.3} parent=80 // pred_region
          %s757 = smul.u32 7, %s15
          %p758 = scmp.lt.s32.totalorder %s757, 48
          %s759 = scalar_select %p758, %s757, 48
          %s760 = smul.addr %s759, 4
          %s761 = scalar_lea.vmem %s3, %s760
        $region85: #{_lambda_.3} parent=80 // pred_fallthru
          _
      $region81: #{_lambda_.3} parent=5 // pred_fallthru
        _
    $region6: #{_lambda_.3} parent=1 // loop_footer
      %s13 = sadd.s32 1, %s9
    $region7: #{_lambda_.3} parent=1 // loop_footer_branch
      %8 = sbr.rel target = $region3
    $region8: #{_lambda_.3} parent=1 // loop_exit
      _

// kernel: _lambda_.5
$region0: #{_lambda_.5}
  #allocation0 [shape = 'u32[]', space=smem, size = 0x4, offset = 0x4, fixed_abs, tag = 'smem constant byte address 0x4 - core index']
  #allocation1 [shape = 'u32[144,128]{1,0:T(1,128)}', space=vmem, size = 0x12000, scoped, tag = 'internal scratch']
  %s0 = inlined_call_operand.vmem [shape: bf16[8,1568], index: 0, kind: input, shape index: {}]
  %s1 = inlined_call_operand.vmem [shape: bf16[1568,128], index: 1, kind: input, shape index: {}]
  %s2 = inlined_call_operand.vmem [shape: f32[1,128], index: 2, kind: input, shape index: {}]
  %s3 = inlined_call_operand.vmem [shape: f32[8,128], index: 3, kind: output, shape index: {}]
  %s4 = sld [smem:[#allocation0]]
  $region22: #{_lambda_.5} parent=0
    _
  %s6 = ssub.s32 1, %s4
  %s7 = scalar_select 0, %s6, %s4
  // Predicated region
  $region2: #{_lambda_.5} parent=0 // pred_check
    _
  $region3: #{_lambda_.5} parent=0 // pred_check_branch
    %9 = sbr.rel (0) target = $region5
  $region4: #{_lambda_.5} parent=0 // pred_region
    _
  $region5: #{_lambda_.5} parent=0 // pred_fallthru
    _
  // Predicated region
  $region6: #{_lambda_.5} parent=0 // pred_check
    _
  $region7: #{_lambda_.5} parent=0 // pred_check_branch
    %11 = sbr.rel (0) target = $region9
  $region8: #{_lambda_.5} parent=0 // pred_region
    _
  $region9: #{_lambda_.5} parent=0 // pred_fallthru
    _
  // Predicated region
  $region10: #{_lambda_.5} parent=0 // pred_check
    _
  $region11: #{_lambda_.5} parent=0 // pred_check_branch
    %13 = sbr.rel (0) target = $region13
  $region12: #{_lambda_.5} parent=0 // pred_region
    _
  $region13: #{_lambda_.5} parent=0 // pred_fallthru
    _
  %v15 = vld [vmem:[%s0] sm:$0xff]
  %v16 = vld [vmem:[%s0 + $0x8] sm:$0xff]
  %v17 = vld [vmem:[%s0 + $0x10] sm:$0xff]
  %v18 = vld [vmem:[%s0 + $0x18] sm:$0xff]
  %v19 = vld [vmem:[%s0 + $0x20] sm:$0xff]
  %v20 = vld [vmem:[%s0 + $0x28] sm:$0xff]
  %v21 = vld [vmem:[%s0 + $0x30] sm:$0xf]
  %v22 = vld [vmem:[%s1] sm:$0xf]
  %v23 = vld [vmem:[%s1 + $0x4] sm:$0xf]
  %v24 = vld [vmem:[%s1 + $0x8] sm:$0xf]
  %v25 = vld [vmem:[%s1 + $0xc] sm:$0xf]
  %v26 = vld [vmem:[%s1 + $0x10] sm:$0xf]
  %v27 = vld [vmem:[%s1 + $0x14] sm:$0xf]
  %v28 = vld [vmem:[%s1 + $0x18] sm:$0xf]
  %v29 = vld [vmem:[%s1 + $0x1c] sm:$0xf]
  %v30 = vld [vmem:[%s1 + $0x20] sm:$0xf]
  %v31 = vld [vmem:[%s1 + $0x24] sm:$0xf]
  %v32 = vld [vmem:[%s1 + $0x28] sm:$0xf]
  %v33 = vld [vmem:[%s1 + $0x2c] sm:$0xf]
  %v34 = vld [vmem:[%s1 + $0x30] sm:$0xf]
  %v35 = vld [vmem:[%s1 + $0x34] sm:$0xf]
  %v36 = vld [vmem:[%s1 + $0x38] sm:$0xf]
  %v37 = vld [vmem:[%s1 + $0x3c] sm:$0xf]
  %v38 = vld [vmem:[%s1 + $0x40] sm:$0xf]
  %v39 = vld [vmem:[%s1 + $0x44] sm:$0xf]
  %v40 = vld [vmem:[%s1 + $0x48] sm:$0xf]
  %v41 = vld [vmem:[%s1 + $0x4c] sm:$0xf]
  %v42 = vld [vmem:[%s1 + $0x50] sm:$0xf]
  %v43 = vld [vmem:[%s1 + $0x54] sm:$0xf]
  %v44 = vld [vmem:[%s1 + $0x58] sm:$0xf]
  %v45 = vld [vmem:[%s1 + $0x5c] sm:$0xf]
  %v46 = vld [vmem:[%s1 + $0x60] sm:$0xf]
  %v47 = vld [vmem:[%s1 + $0x64] sm:$0xf]
  %v48 = vld [vmem:[%s1 + $0x68] sm:$0xf]
  %v49 = vld [vmem:[%s1 + $0x6c] sm:$0xf]
  %v50 = vld [vmem:[%s1 + $0x70] sm:$0xf]
  %v51 = vld [vmem:[%s1 + $0x74] sm:$0xf]
  %v52 = vld [vmem:[%s1 + $0x78] sm:$0xf]
  %v53 = vld [vmem:[%s1 + $0x7c] sm:$0xf]
  %v54 = vld [vmem:[%s1 + $0x80] sm:$0xf]
  %v55 = vld [vmem:[%s1 + $0x84] sm:$0xf]
  %v56 = vld [vmem:[%s1 + $0x88] sm:$0xf]
  %v57 = vld [vmem:[%s1 + $0x8c] sm:$0xf]
  %v58 = vld [vmem:[%s1 + $0x90] sm:$0xf]
  %v59 = vld [vmem:[%s1 + $0x94] sm:$0xf]
  %v60 = vld [vmem:[%s1 + $0x98] sm:$0xf]
  %v61 = vld [vmem:[%s1 + $0x9c] sm:$0xf]
  %v62 = vld [vmem:[%s1 + $0xa0] sm:$0xf]
  %v63 = vld [vmem:[%s1 + $0xa4] sm:$0xf]
  %v64 = vld [vmem:[%s1 + $0xa8] sm:$0xf]
  %v65 = vld [vmem:[%s1 + $0xac] sm:$0xf]
  %v66 = vld [vmem:[%s1 + $0xb0] sm:$0xf]
  %v67 = vld [vmem:[%s1 + $0xb4] sm:$0xf]
  %v68 = vld [vmem:[%s1 + $0xb8] sm:$0xf]
  %v69 = vld [vmem:[%s1 + $0xbc] sm:$0xf]
  %v70 = vld [vmem:[%s1 + $0xc0] sm:$0xf]
  %v71 = vld [vmem:[%s1 + $0xc4] sm:$0xf]
  %v72 = vld [vmem:[%s1 + $0xc8] sm:$0xf]
  %v73 = vld [vmem:[%s1 + $0xcc] sm:$0xf]
  %v74 = vld [vmem:[%s1 + $0xd0] sm:$0xf]
  %v75 = vld [vmem:[%s1 + $0xd4] sm:$0xf]
  %v76 = vld [vmem:[%s1 + $0xd8] sm:$0xf]
  %v77 = vld [vmem:[%s1 + $0xdc] sm:$0xf]
  %v78 = vld [vmem:[%s1 + $0xe0] sm:$0xf]
  %v79 = vld [vmem:[%s1 + $0xe4] sm:$0xf]
  %v80 = vld [vmem:[%s1 + $0xe8] sm:$0xf]
  %v81 = vld [vmem:[%s1 + $0xec] sm:$0xf]
  %v82 = vld [vmem:[%s1 + $0xf0] sm:$0xf]
  %v83 = vld [vmem:[%s1 + $0xf4] sm:$0xf]
  %v84 = vld [vmem:[%s1 + $0xf8] sm:$0xf]
  %v85 = vld [vmem:[%s1 + $0xfc] sm:$0xf]
  %v86 = vld [vmem:[%s1 + $0x100] sm:$0xf]
  %v87 = vld [vmem:[%s1 + $0x104] sm:$0xf]
  %v88 = vld [vmem:[%s1 + $0x108] sm:$0xf]
  %v89 = vld [vmem:[%s1 + $0x10c] sm:$0xf]
  %v90 = vld [vmem:[%s1 + $0x110] sm:$0xf]
  %v91 = vld [vmem:[%s1 + $0x114] sm:$0xf]
  %v92 = vld [vmem:[%s1 + $0x118] sm:$0xf]
  %v93 = vld [vmem:[%s1 + $0x11c] sm:$0xf]
  %v94 = vld [vmem:[%s1 + $0x120] sm:$0xf]
  %v95 = vld [vmem:[%s1 + $0x124] sm:$0xf]
  %v96 = vld [vmem:[%s1 + $0x128] sm:$0xf]
  %v97 = vld [vmem:[%s1 + $0x12c] sm:$0xf]
  %v98 = vld [vmem:[%s1 + $0x130] sm:$0xf]
  %v99 = vld [vmem:[%s1 + $0x134] sm:$0xf]
  %v100 = vld [vmem:[%s1 + $0x138] sm:$0xf]
  %v101 = vld [vmem:[%s1 + $0x13c] sm:$0xf]
  %v102 = vld [vmem:[%s1 + $0x140] sm:$0xf]
  %v103 = vld [vmem:[%s1 + $0x144] sm:$0xf]
  %v104 = vld [vmem:[%s1 + $0x148] sm:$0xf]
  %v105 = vld [vmem:[%s1 + $0x14c] sm:$0xf]
  %v106 = vld [vmem:[%s1 + $0x150] sm:$0xf]
  %v107 = vld [vmem:[%s1 + $0x154] sm:$0xf]
  %v108 = vld [vmem:[%s1 + $0x158] sm:$0xf]
  %v109 = vld [vmem:[%s1 + $0x15c] sm:$0xf]
  %v110 = vld [vmem:[%s1 + $0x160] sm:$0xf]
  %v111 = vld [vmem:[%s1 + $0x164] sm:$0xf]
  %v112 = vld [vmem:[%s1 + $0x168] sm:$0xf]
  %v113 = vld [vmem:[%s1 + $0x16c] sm:$0xf]
  %v114 = vld [vmem:[%s1 + $0x170] sm:$0xf]
  %v115 = vld [vmem:[%s1 + $0x174] sm:$0xf]
  %v116 = vld [vmem:[%s1 + $0x178] sm:$0xf]
  %v117 = vld [vmem:[%s1 + $0x17c] sm:$0xf]
  %v118 = vld [vmem:[%s1 + $0x180] sm:$0xf]
  %v119 = vld [vmem:[%s1 + $0x184] sm:$0xf]
  %v120 = vld [vmem:[%s1 + $0x188] sm:$0xf]
  %v121 = vld [vmem:[%s1 + $0x18c] sm:$0xf]
  %v122 = vld [vmem:[%s1 + $0x190] sm:$0xf]
  %v123 = vld [vmem:[%s1 + $0x194] sm:$0xf]
  %v124 = vld [vmem:[%s1 + $0x198] sm:$0xf]
  %v125 = vld [vmem:[%s1 + $0x19c] sm:$0xf]
  %v126 = vld [vmem:[%s1 + $0x1a0] sm:$0xf]
  %v127 = vld [vmem:[%s1 + $0x1a4] sm:$0xf]
  %v128 = vld [vmem:[%s1 + $0x1a8] sm:$0xf]
  %v129 = vld [vmem:[%s1 + $0x1ac] sm:$0xf]
  %v130 = vld [vmem:[%s1 + $0x1b0] sm:$0xf]
  %v131 = vld [vmem:[%s1 + $0x1b4] sm:$0xf]
  %v132 = vld [vmem:[%s1 + $0x1b8] sm:$0xf]
  %v133 = vld [vmem:[%s1 + $0x1bc] sm:$0xf]
  %v134 = vld [vmem:[%s1 + $0x1c0] sm:$0xf]
  %v135 = vld [vmem:[%s1 + $0x1c4] sm:$0xf]
  %v136 = vld [vmem:[%s1 + $0x1c8] sm:$0xf]
  %v137 = vld [vmem:[%s1 + $0x1cc] sm:$0xf]
  %v138 = vld [vmem:[%s1 + $0x1d0] sm:$0xf]
  %v139 = vld [vmem:[%s1 + $0x1d4] sm:$0xf]
  %v140 = vld [vmem:[%s1 + $0x1d8] sm:$0xf]
  %v141 = vld [vmem:[%s1 + $0x1dc] sm:$0xf]
  %v142 = vld [vmem:[%s1 + $0x1e0] sm:$0xf]
  %v143 = vld [vmem:[%s1 + $0x1e4] sm:$0xf]
  %v144 = vld [vmem:[%s1 + $0x1e8] sm:$0xf]
  %v145 = vld [vmem:[%s1 + $0x1ec] sm:$0xf]
  %v146 = vld [vmem:[%s1 + $0x1f0] sm:$0xf]
  %v147 = vld [vmem:[%s1 + $0x1f4] sm:$0xf]
  %v148 = vld [vmem:[%s1 + $0x1f8] sm:$0xf]
  %v149 = vld [vmem:[%s1 + $0x1fc] sm:$0xf]
  %v150 = vld [vmem:[%s1 + $0x200] sm:$0xf]
  %v151 = vld [vmem:[%s1 + $0x204] sm:$0xf]
  %v152 = vld [vmem:[%s1 + $0x208] sm:$0xf]
  %v153 = vld [vmem:[%s1 + $0x20c] sm:$0xf]
  %v154 = vld [vmem:[%s1 + $0x210] sm:$0xf]
  %v155 = vld [vmem:[%s1 + $0x214] sm:$0xf]
  %v156 = vld [vmem:[%s1 + $0x218] sm:$0xf]
  %v157 = vld [vmem:[%s1 + $0x21c] sm:$0xf]
  %v158 = vld [vmem:[%s1 + $0x220] sm:$0xf]
  %v159 = vld [vmem:[%s1 + $0x224] sm:$0xf]
  %v160 = vld [vmem:[%s1 + $0x228] sm:$0xf]
  %v161 = vld [vmem:[%s1 + $0x22c] sm:$0xf]
  %v162 = vld [vmem:[%s1 + $0x230] sm:$0xf]
  %v163 = vld [vmem:[%s1 + $0x234] sm:$0xf]
  %v164 = vld [vmem:[%s1 + $0x238] sm:$0xf]
  %v165 = vld [vmem:[%s1 + $0x23c] sm:$0xf]
  %v166 = vld [vmem:[%s1 + $0x240] sm:$0xf]
  %v167 = vld [vmem:[%s1 + $0x244] sm:$0xf]
  %v168 = vld [vmem:[%s1 + $0x248] sm:$0xf]
  %v169 = vld [vmem:[%s1 + $0x24c] sm:$0xf]
  %v170 = vld [vmem:[%s1 + $0x250] sm:$0xf]
  %v171 = vld [vmem:[%s1 + $0x254] sm:$0xf]
  %v172 = vld [vmem:[%s1 + $0x258] sm:$0xf]
  %v173 = vld [vmem:[%s1 + $0x25c] sm:$0xf]
  %v174 = vld [vmem:[%s1 + $0x260] sm:$0xf]
  %v175 = vld [vmem:[%s1 + $0x264] sm:$0xf]
  %v176 = vld [vmem:[%s1 + $0x268] sm:$0xf]
  %v177 = vld [vmem:[%s1 + $0x26c] sm:$0xf]
  %v178 = vld [vmem:[%s1 + $0x270] sm:$0xf]
  %v179 = vld [vmem:[%s1 + $0x274] sm:$0xf]
  %v180 = vld [vmem:[%s1 + $0x278] sm:$0xf]
  %v181 = vld [vmem:[%s1 + $0x27c] sm:$0xf]
  %v182 = vld [vmem:[%s1 + $0x280] sm:$0xf]
  %v183 = vld [vmem:[%s1 + $0x284] sm:$0xf]
  %v184 = vld [vmem:[%s1 + $0x288] sm:$0xf]
  %v185 = vld [vmem:[%s1 + $0x28c] sm:$0xf]
  %v186 = vld [vmem:[%s1 + $0x290] sm:$0xf]
  %v187 = vld [vmem:[%s1 + $0x294] sm:$0xf]
  %v188 = vld [vmem:[%s1 + $0x298] sm:$0xf]
  %v189 = vld [vmem:[%s1 + $0x29c] sm:$0xf]
  %v190 = vld [vmem:[%s1 + $0x2a0] sm:$0xf]
  %v191 = vld [vmem:[%s1 + $0x2a4] sm:$0xf]
  %v192 = vld [vmem:[%s1 + $0x2a8] sm:$0xf]
  %v193 = vld [vmem:[%s1 + $0x2ac] sm:$0xf]
  %v194 = vld [vmem:[%s1 + $0x2b0] sm:$0xf]
  %v195 = vld [vmem:[%s1 + $0x2b4] sm:$0xf]
  %v196 = vld [vmem:[%s1 + $0x2b8] sm:$0xf]
  %v197 = vld [vmem:[%s1 + $0x2bc] sm:$0xf]
  %v198 = vld [vmem:[%s1 + $0x2c0] sm:$0xf]
  %v199 = vld [vmem:[%s1 + $0x2c4] sm:$0xf]
  %v200 = vld [vmem:[%s1 + $0x2c8] sm:$0xf]
  %v201 = vld [vmem:[%s1 + $0x2cc] sm:$0xf]
  %v202 = vld [vmem:[%s1 + $0x2d0] sm:$0xf]
  %v203 = vld [vmem:[%s1 + $0x2d4] sm:$0xf]
  %v204 = vld [vmem:[%s1 + $0x2d8] sm:$0xf]
  %v205 = vld [vmem:[%s1 + $0x2dc] sm:$0xf]
  %v206 = vld [vmem:[%s1 + $0x2e0] sm:$0xf]
  %v207 = vld [vmem:[%s1 + $0x2e4] sm:$0xf]
  %v208 = vld [vmem:[%s1 + $0x2e8] sm:$0xf]
  %v209 = vld [vmem:[%s1 + $0x2ec] sm:$0xf]
  %v210 = vld [vmem:[%s1 + $0x2f0] sm:$0xf]
  %v211 = vld [vmem:[%s1 + $0x2f4] sm:$0xf]
  %v212 = vld [vmem:[%s1 + $0x2f8] sm:$0xf]
  %v213 = vld [vmem:[%s1 + $0x2fc] sm:$0xf]
  %v214 = vld [vmem:[%s1 + $0x300] sm:$0xf]
  %v215 = vld [vmem:[%s1 + $0x304] sm:$0xf]
  %v216 = vld [vmem:[%s1 + $0x308] sm:$0xf]
  %v217 = vld [vmem:[%s1 + $0x30c] sm:$0xf]
  %v218 = vld [vmem:[%s2] sm:$0x1]
  %v220 = vlaneseq
  %v221 = vshrl.u32 %v220, 7
  %v222 = vsub.s32 0, %v221
  %v223 = vrot.slane %v218, %v222
  %v232 = vunpack.c.l.b16 %v15
  %v233 = vunpack.c.h.b16 %v15
  %v234 = vunpack.c.l.b16 %v16
  %v235 = vunpack.c.h.b16 %v16
  %v236 = vunpack.c.l.b16 %v17
  %v237 = vunpack.c.h.b16 %v17
  %v238 = vunpack.c.l.b16 %v18
  %v239 = vunpack.c.h.b16 %v18
  %v240 = vunpack.c.l.b16 %v19
  %v241 = vunpack.c.h.b16 %v19
  %v242 = vunpack.c.l.b16 %v20
  %v243 = vunpack.c.h.b16 %v20
  %v244 = vunpack.c.l.b16 %v21
  %v245 = vpack.c.b16 %v232, %v232
  %v246 = vpack.c.b16 %v233, %v233
  %v247 = vpack.c.b16 %v234, %v234
  %v248 = vpack.c.b16 %v235, %v235
  %v249 = vpack.c.b16 %v236, %v236
  %v250 = vpack.c.b16 %v237, %v237
  %v251 = vpack.c.b16 %v238, %v238
  %v252 = vpack.c.b16 %v239, %v239
  %v253 = vpack.c.b16 %v240, %v240
  %v254 = vpack.c.b16 %v241, %v241
  %v255 = vpack.c.b16 %v242, %v242
  %v256 = vpack.c.b16 %v243, %v243
  %v257 = vpack.c.b16 %v244, %v244
  %v466 = vunpack.c.l.b16 %v22
  %v467 = vunpack.c.l.b16 %v23
  %v468 = vunpack.c.l.b16 %v24
  %v469 = vunpack.c.l.b16 %v25
  %v470 = vunpack.c.l.b16 %v26
  %v471 = vunpack.c.l.b16 %v27
  %v472 = vunpack.c.l.b16 %v28
  %v473 = vunpack.c.l.b16 %v29
  %v474 = vunpack.c.l.b16 %v30
  %v475 = vunpack.c.l.b16 %v31
  %v476 = vunpack.c.l.b16 %v32
  %v477 = vunpack.c.l.b16 %v33
  %v478 = vunpack.c.l.b16 %v34
  %v479 = vunpack.c.l.b16 %v35
  %v480 = vunpack.c.l.b16 %v36
  %v481 = vunpack.c.l.b16 %v37
  %v482 = vunpack.c.l.b16 %v38
  %v483 = vunpack.c.l.b16 %v39
  %v484 = vunpack.c.l.b16 %v40
  %v485 = vunpack.c.l.b16 %v41
  %v486 = vunpack.c.l.b16 %v42
  %v487 = vunpack.c.l.b16 %v43
  %v488 = vunpack.c.l.b16 %v44
  %v489 = vunpack.c.l.b16 %v45
  %v490 = vunpack.c.l.b16 %v46
  %v491 = vunpack.c.l.b16 %v47
  %v492 = vunpack.c.l.b16 %v48
  %v493 = vunpack.c.l.b16 %v49
  %v494 = vunpack.c.l.b16 %v50
  %v495 = vunpack.c.l.b16 %v51
  %v496 = vunpack.c.l.b16 %v52
  %v497 = vunpack.c.l.b16 %v53
  %v498 = vunpack.c.l.b16 %v54
  %v499 = vunpack.c.l.b16 %v55
  %v500 = vunpack.c.l.b16 %v56
  %v501 = vunpack.c.l.b16 %v57
  %v502 = vunpack.c.l.b16 %v58
  %v503 = vunpack.c.l.b16 %v59
  %v504 = vunpack.c.l.b16 %v60
  %v505 = vunpack.c.l.b16 %v61
  %v506 = vunpack.c.l.b16 %v62
  %v507 = vunpack.c.l.b16 %v63
  %v508 = vunpack.c.l.b16 %v64
  %v509 = vunpack.c.l.b16 %v65
  %v510 = vunpack.c.l.b16 %v66
  %v511 = vunpack.c.l.b16 %v67
  %v512 = vunpack.c.l.b16 %v68
  %v513 = vunpack.c.l.b16 %v69
  %v514 = vunpack.c.l.b16 %v70
  %v515 = vunpack.c.l.b16 %v71
  %v516 = vunpack.c.l.b16 %v72
  %v517 = vunpack.c.l.b16 %v73
  %v518 = vunpack.c.l.b16 %v74
  %v519 = vunpack.c.l.b16 %v75
  %v520 = vunpack.c.l.b16 %v76
  %v521 = vunpack.c.l.b16 %v77
  %v522 = vunpack.c.l.b16 %v78
  %v523 = vunpack.c.l.b16 %v79
  %v524 = vunpack.c.l.b16 %v80
  %v525 = vunpack.c.l.b16 %v81
  %v526 = vunpack.c.l.b16 %v82
  %v527 = vunpack.c.l.b16 %v83
  %v528 = vunpack.c.l.b16 %v84
  %v529 = vunpack.c.l.b16 %v85
  %v530 = vunpack.c.l.b16 %v86
  %v531 = vunpack.c.l.b16 %v87
  %v532 = vunpack.c.l.b16 %v88
  %v533 = vunpack.c.l.b16 %v89
  %v534 = vunpack.c.l.b16 %v90
  %v535 = vunpack.c.l.b16 %v91
  %v536 = vunpack.c.l.b16 %v92
  %v537 = vunpack.c.l.b16 %v93
  %v538 = vunpack.c.l.b16 %v94
  %v539 = vunpack.c.l.b16 %v95
  %v540 = vunpack.c.l.b16 %v96
  %v541 = vunpack.c.l.b16 %v97
  %v542 = vunpack.c.l.b16 %v98
  %v543 = vunpack.c.l.b16 %v99
  %v544 = vunpack.c.l.b16 %v100
  %v545 = vunpack.c.l.b16 %v101
  %v546 = vunpack.c.l.b16 %v102
  %v547 = vunpack.c.l.b16 %v103
  %v548 = vunpack.c.l.b16 %v104
  %v549 = vunpack.c.l.b16 %v105
  %v550 = vunpack.c.l.b16 %v106
  %v551 = vunpack.c.l.b16 %v107
  %v552 = vunpack.c.l.b16 %v108
  %v553 = vunpack.c.l.b16 %v109
  %v554 = vunpack.c.l.b16 %v110
  %v555 = vunpack.c.l.b16 %v111
  %v556 = vunpack.c.l.b16 %v112
  %v557 = vunpack.c.l.b16 %v113
  %v558 = vunpack.c.l.b16 %v114
  %v559 = vunpack.c.l.b16 %v115
  %v560 = vunpack.c.l.b16 %v116
  %v561 = vunpack.c.l.b16 %v117
  %v562 = vunpack.c.l.b16 %v118
  %v563 = vunpack.c.l.b16 %v119
  %v564 = vunpack.c.l.b16 %v120
  %v565 = vunpack.c.l.b16 %v121
  %v566 = vunpack.c.l.b16 %v122
  %v567 = vunpack.c.l.b16 %v123
  %v568 = vunpack.c.l.b16 %v124
  %v569 = vunpack.c.l.b16 %v125
  %v570 = vunpack.c.l.b16 %v126
  %v571 = vunpack.c.l.b16 %v127
  %v572 = vunpack.c.l.b16 %v128
  %v573 = vunpack.c.l.b16 %v129
  %v574 = vunpack.c.l.b16 %v130
  %v575 = vunpack.c.l.b16 %v131
  %v576 = vunpack.c.l.b16 %v132
  %v577 = vunpack.c.l.b16 %v133
  %v578 = vunpack.c.l.b16 %v134
  %v579 = vunpack.c.l.b16 %v135
  %v580 = vunpack.c.l.b16 %v136
  %v581 = vunpack.c.l.b16 %v137
  %v582 = vunpack.c.l.b16 %v138
  %v583 = vunpack.c.l.b16 %v139
  %v584 = vunpack.c.l.b16 %v140
  %v585 = vunpack.c.l.b16 %v141
  %v586 = vunpack.c.l.b16 %v142
  %v587 = vunpack.c.l.b16 %v143
  %v588 = vunpack.c.l.b16 %v144
  %v589 = vunpack.c.l.b16 %v145
  %v590 = vunpack.c.l.b16 %v146
  %v591 = vunpack.c.l.b16 %v147
  %v592 = vunpack.c.l.b16 %v148
  %v593 = vunpack.c.l.b16 %v149
  %v594 = vunpack.c.l.b16 %v150
  %v595 = vunpack.c.l.b16 %v151
  %v596 = vunpack.c.l.b16 %v152
  %v597 = vunpack.c.l.b16 %v153
  %v598 = vunpack.c.l.b16 %v154
  %v599 = vunpack.c.l.b16 %v155
  %v600 = vunpack.c.l.b16 %v156
  %v601 = vunpack.c.l.b16 %v157
  %v602 = vunpack.c.l.b16 %v158
  %v603 = vunpack.c.l.b16 %v159
  %v604 = vunpack.c.l.b16 %v160
  %v605 = vunpack.c.l.b16 %v161
  %v606 = vunpack.c.l.b16 %v162
  %v607 = vunpack.c.l.b16 %v163
  %v608 = vunpack.c.l.b16 %v164
  %v609 = vunpack.c.l.b16 %v165
  %v610 = vunpack.c.l.b16 %v166
  %v611 = vunpack.c.l.b16 %v167
  %v612 = vunpack.c.l.b16 %v168
  %v613 = vunpack.c.l.b16 %v169
  %v614 = vunpack.c.l.b16 %v170
  %v615 = vunpack.c.l.b16 %v171
  %v616 = vunpack.c.l.b16 %v172
  %v617 = vunpack.c.l.b16 %v173
  %v618 = vunpack.c.l.b16 %v174
  %v619 = vunpack.c.l.b16 %v175
  %v620 = vunpack.c.l.b16 %v176
  %v621 = vunpack.c.l.b16 %v177
  %v622 = vunpack.c.l.b16 %v178
  %v623 = vunpack.c.l.b16 %v179
  %v624 = vunpack.c.l.b16 %v180
  %v625 = vunpack.c.l.b16 %v181
  %v626 = vunpack.c.l.b16 %v182
  %v627 = vunpack.c.l.b16 %v183
  %v628 = vunpack.c.l.b16 %v184
  %v629 = vunpack.c.l.b16 %v185
  %v630 = vunpack.c.l.b16 %v186
  %v631 = vunpack.c.l.b16 %v187
  %v632 = vunpack.c.l.b16 %v188
  %v633 = vunpack.c.l.b16 %v189
  %v634 = vunpack.c.l.b16 %v190
  %v635 = vunpack.c.l.b16 %v191
  %v636 = vunpack.c.l.b16 %v192
  %v637 = vunpack.c.l.b16 %v193
  %v638 = vunpack.c.l.b16 %v194
  %v639 = vunpack.c.l.b16 %v195
  %v640 = vunpack.c.l.b16 %v196
  %v641 = vunpack.c.l.b16 %v197
  %v642 = vunpack.c.l.b16 %v198
  %v643 = vunpack.c.l.b16 %v199
  %v644 = vunpack.c.l.b16 %v200
  %v645 = vunpack.c.l.b16 %v201
  %v646 = vunpack.c.l.b16 %v202
  %v647 = vunpack.c.l.b16 %v203
  %v648 = vunpack.c.l.b16 %v204
  %v649 = vunpack.c.l.b16 %v205
  %v650 = vunpack.c.l.b16 %v206
  %v651 = vunpack.c.l.b16 %v207
  %v652 = vunpack.c.l.b16 %v208
  %v653 = vunpack.c.l.b16 %v209
  %v654 = vunpack.c.l.b16 %v210
  %v655 = vunpack.c.l.b16 %v211
  %v656 = vunpack.c.l.b16 %v212
  %v657 = vunpack.c.l.b16 %v213
  %v658 = vunpack.c.l.b16 %v214
  %v659 = vunpack.c.l.b16 %v215
  %v660 = vunpack.c.l.b16 %v216
  %v661 = vunpack.c.l.b16 %v217
  %v662 = vpack.c.b16 %v467, %v466
  %v663 = vpack.c.b16 %v469, %v468
  %v664 = vpack.c.b16 %v471, %v470
  %v665 = vpack.c.b16 %v473, %v472
  %v666 = vpack.c.b16 %v475, %v474
  %v667 = vpack.c.b16 %v477, %v476
  %v668 = vpack.c.b16 %v479, %v478
  %v669 = vpack.c.b16 %v481, %v480
  %v670 = vpack.c.b16 %v483, %v482
  %v671 = vpack.c.b16 %v485, %v484
  %v672 = vpack.c.b16 %v487, %v486
  %v673 = vpack.c.b16 %v489, %v488
  %v674 = vpack.c.b16 %v491, %v490
  %v675 = vpack.c.b16 %v493, %v492
  %v676 = vpack.c.b16 %v495, %v494
  %v677 = vpack.c.b16 %v497, %v496
  %v678 = vpack.c.b16 %v499, %v498
  %v679 = vpack.c.b16 %v501, %v500
  %v680 = vpack.c.b16 %v503, %v502
  %v681 = vpack.c.b16 %v505, %v504
  %v682 = vpack.c.b16 %v507, %v506
  %v683 = vpack.c.b16 %v509, %v508
  %v684 = vpack.c.b16 %v511, %v510
  %v685 = vpack.c.b16 %v513, %v512
  %v686 = vpack.c.b16 %v515, %v514
  %v687 = vpack.c.b16 %v517, %v516
  %v688 = vpack.c.b16 %v519, %v518
  %v689 = vpack.c.b16 %v521, %v520
  %v690 = vpack.c.b16 %v523, %v522
  %v691 = vpack.c.b16 %v525, %v524
  %v692 = vpack.c.b16 %v527, %v526
  %v693 = vpack.c.b16 %v529, %v528
  %v694 = vpack.c.b16 %v531, %v530
  %v695 = vpack.c.b16 %v533, %v532
  %v696 = vpack.c.b16 %v535, %v534
  %v697 = vpack.c.b16 %v537, %v536
  %v698 = vpack.c.b16 %v539, %v538
  %v699 = vpack.c.b16 %v541, %v540
  %v700 = vpack.c.b16 %v543, %v542
  %v701 = vpack.c.b16 %v545, %v544
  %v702 = vpack.c.b16 %v547, %v546
  %v703 = vpack.c.b16 %v549, %v548
  %v704 = vpack.c.b16 %v551, %v550
  %v705 = vpack.c.b16 %v553, %v552
  %v706 = vpack.c.b16 %v555, %v554
  %v707 = vpack.c.b16 %v557, %v556
  %v708 = vpack.c.b16 %v559, %v558
  %v709 = vpack.c.b16 %v561, %v560
  %v710 = vpack.c.b16 %v563, %v562
  %v711 = vpack.c.b16 %v565, %v564
  %v712 = vpack.c.b16 %v567, %v566
  %v713 = vpack.c.b16 %v569, %v568
  %v714 = vpack.c.b16 %v571, %v570
  %v715 = vpack.c.b16 %v573, %v572
  %v716 = vpack.c.b16 %v575, %v574
  %v717 = vpack.c.b16 %v577, %v576
  %v718 = vpack.c.b16 %v579, %v578
  %v719 = vpack.c.b16 %v581, %v580
  %v720 = vpack.c.b16 %v583, %v582
  %v721 = vpack.c.b16 %v585, %v584
  %v722 = vpack.c.b16 %v587, %v586
  %v723 = vpack.c.b16 %v589, %v588
  %v724 = vpack.c.b16 %v591, %v590
  %v725 = vpack.c.b16 %v593, %v592
  %v726 = vpack.c.b16 %v595, %v594
  %v727 = vpack.c.b16 %v597, %v596
  %v728 = vpack.c.b16 %v599, %v598
  %v729 = vpack.c.b16 %v601, %v600
  %v730 = vpack.c.b16 %v603, %v602
  %v731 = vpack.c.b16 %v605, %v604
  %v732 = vpack.c.b16 %v607, %v606
  %v733 = vpack.c.b16 %v609, %v608
  %v734 = vpack.c.b16 %v611, %v610
  %v735 = vpack.c.b16 %v613, %v612
  %v736 = vpack.c.b16 %v615, %v614
  %v737 = vpack.c.b16 %v617, %v616
  %v738 = vpack.c.b16 %v619, %v618
  %v739 = vpack.c.b16 %v621, %v620
  %v740 = vpack.c.b16 %v623, %v622
  %v741 = vpack.c.b16 %v625, %v624
  %v742 = vpack.c.b16 %v627, %v626
  %v743 = vpack.c.b16 %v629, %v628
  %v744 = vpack.c.b16 %v631, %v630
  %v745 = vpack.c.b16 %v633, %v632
  %v746 = vpack.c.b16 %v635, %v634
  %v747 = vpack.c.b16 %v637, %v636
  %v748 = vpack.c.b16 %v639, %v638
  %v749 = vpack.c.b16 %v641, %v640
  %v750 = vpack.c.b16 %v643, %v642
  %v751 = vpack.c.b16 %v645, %v644
  %v752 = vpack.c.b16 %v647, %v646
  %v753 = vpack.c.b16 %v649, %v648
  %v754 = vpack.c.b16 %v651, %v650
  %v755 = vpack.c.b16 %v653, %v652
  %v756 = vpack.c.b16 %v655, %v654
  %v757 = vpack.c.b16 %v657, %v656
  %v758 = vpack.c.b16 %v659, %v658
  %v759 = vpack.c.b16 %v661, %v660
  %vm858 = vcmask 261120
  %v860 = vsel %vm858, %v257, 0
  %862 = vmatprep.subr.bf16.mxu0 0
  %863 = vmatpush1.bf16.msra.mxu0 %v662
  %864 = vmatprep.subr.bf16.mxu0 0
  %865 = vmatpush1.bf16.msra.mxu0 %v663
  %866 = vmatprep.subr.bf16.mxu0 0
  %867 = vmatpush1.bf16.msra.mxu0 %v664
  %868 = vmatprep.subr.bf16.mxu0 0
  %869 = vmatpush1.bf16.msra.mxu0 %v665
  %870 = vmatprep.subr.bf16.mxu0 0
  %871 = vmatpush1.bf16.msra.mxu0 %v666
  %872 = vmatprep.subr.bf16.mxu0 0
  %873 = vmatpush1.bf16.msra.mxu0 %v667
  %874 = vmatprep.subr.bf16.mxu0 0
  %875 = vmatpush1.bf16.msra.mxu0 %v668
  %876 = vmatprep.subr.bf16.mxu0 0
  %877 = vmatpush1.bf16.msra.mxu0 %v669
  %878 = vmatprep.subr.bf16.mxu0 0
  %879 = vmatpush1.bf16.msra.mxu0 %v670
  %880 = vmatprep.subr.bf16.mxu0 0
  %881 = vmatpush1.bf16.msra.mxu0 %v671
  %882 = vmatprep.subr.bf16.mxu0 0
  %883 = vmatpush1.bf16.msra.mxu0 %v672
  %884 = vmatprep.subr.bf16.mxu0 0
  %885 = vmatpush1.bf16.msra.mxu0 %v673
  %886 = vmatprep.subr.bf16.mxu0 0
  %887 = vmatpush1.bf16.msra.mxu0 %v674
  %888 = vmatprep.subr.bf16.mxu0 0
  %889 = vmatpush1.bf16.msra.mxu0 %v675
  %890 = vmatprep.subr.bf16.mxu0 0
  %891 = vmatpush1.bf16.msra.mxu0 %v676
  %892 = vmatprep.subr.bf16.mxu0 0
  %893 = vmatpush1.bf16.msra.mxu0 %v677
  %894 = vmatprep.mubr.bf16.mxu0 %v246
  %895 = vmatmul.mubr.bf16.gmra.mrb[0].mxu0 %v245
  %v896 = vpop.f32.mrb[0].mxu0
  %v897 = vadd.f32 %v223, %v896
  %v898 = vpop.f32.mrb[0].mxu0
  %v899 = vpop.f32.mrb[0].mxu0
  %v900 = vpop.f32.mrb[0].mxu0
  %901 = vdwg.mxu0
  %902 = vmatprep.subr.bf16.mxu0 0
  %903 = vmatpush1.bf16.msra.mxu0 %v678
  %904 = vmatprep.subr.bf16.mxu0 0
  %905 = vmatpush1.bf16.msra.mxu0 %v679
  %906 = vmatprep.subr.bf16.mxu0 0
  %907 = vmatpush1.bf16.msra.mxu0 %v680
  %908 = vmatprep.subr.bf16.mxu0 0
  %909 = vmatpush1.bf16.msra.mxu0 %v681
  %910 = vmatprep.subr.bf16.mxu0 0
  %911 = vmatpush1.bf16.msra.mxu0 %v682
  %912 = vmatprep.subr.bf16.mxu0 0
  %913 = vmatpush1.bf16.msra.mxu0 %v683
  %914 = vmatprep.subr.bf16.mxu0 0
  %915 = vmatpush1.bf16.msra.mxu0 %v684
  %916 = vmatprep.subr.bf16.mxu0 0
  %917 = vmatpush1.bf16.msra.mxu0 %v685
  %918 = vmatprep.subr.bf16.mxu0 0
  %919 = vmatpush1.bf16.msra.mxu0 %v686
  %920 = vmatprep.subr.bf16.mxu0 0
  %921 = vmatpush1.bf16.msra.mxu0 %v687
  %922 = vmatprep.subr.bf16.mxu0 0
  %923 = vmatpush1.bf16.msra.mxu0 %v688
  %924 = vmatprep.subr.bf16.mxu0 0
  %925 = vmatpush1.bf16.msra.mxu0 %v689
  %926 = vmatprep.subr.bf16.mxu0 0
  %927 = vmatpush1.bf16.msra.mxu0 %v690
  %928 = vmatprep.subr.bf16.mxu0 0
  %929 = vmatpush1.bf16.msra.mxu0 %v691
  %930 = vmatprep.subr.bf16.mxu0 0
  %931 = vmatpush1.bf16.msra.mxu0 %v692
  %932 = vmatprep.subr.bf16.mxu0 0
  %933 = vmatpush1.bf16.msra.mxu0 %v693
  %934 = vmatprep.mubr.bf16.mxu0 %v248
  %935 = vmatmul.mubr.bf16.gmra.mrb[0].mxu0 %v247
  %v936 = vpop.f32.mrb[0].mxu0
  %v937 = vadd.f32 %v897, %v936
  %v938 = vpop.f32.mrb[0].mxu0
  %v939 = vpop.f32.mrb[0].mxu0
  %v940 = vpop.f32.mrb[0].mxu0
  %941 = vdwg.mxu0
  %942 = vmatprep.subr.bf16.mxu0 0
  %943 = vmatpush1.bf16.msra.mxu0 %v694
  %944 = vmatprep.subr.bf16.mxu0 0
  %945 = vmatpush1.bf16.msra.mxu0 %v695
  %946 = vmatprep.subr.bf16.mxu0 0
  %947 = vmatpush1.bf16.msra.mxu0 %v696
  %948 = vmatprep.subr.bf16.mxu0 0
  %949 = vmatpush1.bf16.msra.mxu0 %v697
  %950 = vmatprep.subr.bf16.mxu0 0
  %951 = vmatpush1.bf16.msra.mxu0 %v698
  %952 = vmatprep.subr.bf16.mxu0 0
  %953 = vmatpush1.bf16.msra.mxu0 %v699
  %954 = vmatprep.subr.bf16.mxu0 0
  %955 = vmatpush1.bf16.msra.mxu0 %v700
  %956 = vmatprep.subr.bf16.mxu0 0
  %957 = vmatpush1.bf16.msra.mxu0 %v701
  %958 = vmatprep.subr.bf16.mxu0 0
  %959 = vmatpush1.bf16.msra.mxu0 %v702
  %960 = vmatprep.subr.bf16.mxu0 0
  %961 = vmatpush1.bf16.msra.mxu0 %v703
  %962 = vmatprep.subr.bf16.mxu0 0
  %963 = vmatpush1.bf16.msra.mxu0 %v704
  %964 = vmatprep.subr.bf16.mxu0 0
  %965 = vmatpush1.bf16.msra.mxu0 %v705
  %966 = vmatprep.subr.bf16.mxu0 0
  %967 = vmatpush1.bf16.msra.mxu0 %v706
  %968 = vmatprep.subr.bf16.mxu0 0
  %969 = vmatpush1.bf16.msra.mxu0 %v707
  %970 = vmatprep.subr.bf16.mxu0 0
  %971 = vmatpush1.bf16.msra.mxu0 %v708
  %972 = vmatprep.subr.bf16.mxu0 0
  %973 = vmatpush1.bf16.msra.mxu0 %v709
  %974 = vmatprep.mubr.bf16.mxu0 %v250
  %975 = vmatmul.mubr.bf16.gmra.mrb[0].mxu0 %v249
  %v976 = vpop.f32.mrb[0].mxu0
  %v977 = vadd.f32 %v937, %v976
  %v978 = vpop.f32.mrb[0].mxu0
  %v979 = vpop.f32.mrb[0].mxu0
  %v980 = vpop.f32.mrb[0].mxu0
  %981 = vdwg.mxu0
  %982 = vmatprep.subr.bf16.mxu0 0
  %983 = vmatpush1.bf16.msra.mxu0 %v710
  %984 = vmatprep.subr.bf16.mxu0 0
  %985 = vmatpush1.bf16.msra.mxu0 %v711
  %986 = vmatprep.subr.bf16.mxu0 0
  %987 = vmatpush1.bf16.msra.mxu0 %v712
  %988 = vmatprep.subr.bf16.mxu0 0
  %989 = vmatpush1.bf16.msra.mxu0 %v713
  %990 = vmatprep.subr.bf16.mxu0 0
  %991 = vmatpush1.bf16.msra.mxu0 %v714
  %992 = vmatprep.subr.bf16.mxu0 0
  %993 = vmatpush1.bf16.msra.mxu0 %v715
  %994 = vmatprep.subr.bf16.mxu0 0
  %995 = vmatpush1.bf16.msra.mxu0 %v716
  %996 = vmatprep.subr.bf16.mxu0 0
  %997 = vmatpush1.bf16.msra.mxu0 %v717
  %998 = vmatprep.subr.bf16.mxu0 0
  %999 = vmatpush1.bf16.msra.mxu0 %v718
  %1000 = vmatprep.subr.bf16.mxu0 0
  %1001 = vmatpush1.bf16.msra.mxu0 %v719
  %1002 = vmatprep.subr.bf16.mxu0 0
  %1003 = vmatpush1.bf16.msra.mxu0 %v720
  %1004 = vmatprep.subr.bf16.mxu0 0
  %1005 = vmatpush1.bf16.msra.mxu0 %v721
  %1006 = vmatprep.subr.bf16.mxu0 0
  %1007 = vmatpush1.bf16.msra.mxu0 %v722
  %1008 = vmatprep.subr.bf16.mxu0 0
  %1009 = vmatpush1.bf16.msra.mxu0 %v723
  %1010 = vmatprep.subr.bf16.mxu0 0
  %1011 = vmatpush1.bf16.msra.mxu0 %v724
  %1012 = vmatprep.subr.bf16.mxu0 0
  %1013 = vmatpush1.bf16.msra.mxu0 %v725
  %1014 = vmatprep.mubr.bf16.mxu0 %v252
  %1015 = vmatmul.mubr.bf16.gmra.mrb[0].mxu0 %v251
  %v1016 = vpop.f32.mrb[0].mxu0
  %v1017 = vadd.f32 %v977, %v1016
  %v1018 = vpop.f32.mrb[0].mxu0
  %v1019 = vpop.f32.mrb[0].mxu0
  %v1020 = vpop.f32.mrb[0].mxu0
  %1021 = vdwg.mxu0
  %1022 = vmatprep.subr.bf16.mxu0 0
  %1023 = vmatpush1.bf16.msra.mxu0 %v726
  %1024 = vmatprep.subr.bf16.mxu0 0
  %1025 = vmatpush1.bf16.msra.mxu0 %v727
  %1026 = vmatprep.subr.bf16.mxu0 0
  %1027 = vmatpush1.bf16.msra.mxu0 %v728
  %1028 = vmatprep.subr.bf16.mxu0 0
  %1029 = vmatpush1.bf16.msra.mxu0 %v729
  %1030 = vmatprep.subr.bf16.mxu0 0
  %1031 = vmatpush1.bf16.msra.mxu0 %v730
  %1032 = vmatprep.subr.bf16.mxu0 0
  %1033 = vmatpush1.bf16.msra.mxu0 %v731
  %1034 = vmatprep.subr.bf16.mxu0 0
  %1035 = vmatpush1.bf16.msra.mxu0 %v732
  %1036 = vmatprep.subr.bf16.mxu0 0
  %1037 = vmatpush1.bf16.msra.mxu0 %v733
  %1038 = vmatprep.subr.bf16.mxu0 0
  %1039 = vmatpush1.bf16.msra.mxu0 %v734
  %1040 = vmatprep.subr.bf16.mxu0 0
  %1041 = vmatpush1.bf16.msra.mxu0 %v735
  %1042 = vmatprep.subr.bf16.mxu0 0
  %1043 = vmatpush1.bf16.msra.mxu0 %v736
  %1044 = vmatprep.subr.bf16.mxu0 0
  %1045 = vmatpush1.bf16.msra.mxu0 %v737
  %1046 = vmatprep.subr.bf16.mxu0 0
  %1047 = vmatpush1.bf16.msra.mxu0 %v738
  %1048 = vmatprep.subr.bf16.mxu0 0
  %1049 = vmatpush1.bf16.msra.mxu0 %v739
  %1050 = vmatprep.subr.bf16.mxu0 0
  %1051 = vmatpush1.bf16.msra.mxu0 %v740
  %1052 = vmatprep.subr.bf16.mxu0 0
  %1053 = vmatpush1.bf16.msra.mxu0 %v741
  %1054 = vmatprep.mubr.bf16.mxu0 %v254
  %1055 = vmatmul.mubr.bf16.gmra.mrb[0].mxu0 %v253
  %v1056 = vpop.f32.mrb[0].mxu0
  %v1057 = vadd.f32 %v1017, %v1056
  %v1058 = vpop.f32.mrb[0].mxu0
  %v1059 = vpop.f32.mrb[0].mxu0
  %v1060 = vpop.f32.mrb[0].mxu0
  %1061 = vdwg.mxu0
  %1062 = vmatprep.subr.bf16.mxu0 0
  %1063 = vmatpush1.bf16.msra.mxu0 %v742
  %1064 = vmatprep.subr.bf16.mxu0 0
  %1065 = vmatpush1.bf16.msra.mxu0 %v743
  %1066 = vmatprep.subr.bf16.mxu0 0
  %1067 = vmatpush1.bf16.msra.mxu0 %v744
  %1068 = vmatprep.subr.bf16.mxu0 0
  %1069 = vmatpush1.bf16.msra.mxu0 %v745
  %1070 = vmatprep.subr.bf16.mxu0 0
  %1071 = vmatpush1.bf16.msra.mxu0 %v746
  %1072 = vmatprep.subr.bf16.mxu0 0
  %1073 = vmatpush1.bf16.msra.mxu0 %v747
  %1074 = vmatprep.subr.bf16.mxu0 0
  %1075 = vmatpush1.bf16.msra.mxu0 %v748
  %1076 = vmatprep.subr.bf16.mxu0 0
  %1077 = vmatpush1.bf16.msra.mxu0 %v749
  %1078 = vmatprep.subr.bf16.mxu0 0
  %1079 = vmatpush1.bf16.msra.mxu0 %v750
  %1080 = vmatprep.subr.bf16.mxu0 0
  %1081 = vmatpush1.bf16.msra.mxu0 %v751
  %1082 = vmatprep.subr.bf16.mxu0 0
  %1083 = vmatpush1.bf16.msra.mxu0 %v752
  %1084 = vmatprep.subr.bf16.mxu0 0
  %1085 = vmatpush1.bf16.msra.mxu0 %v753
  %1086 = vmatprep.subr.bf16.mxu0 0
  %1087 = vmatpush1.bf16.msra.mxu0 %v754
  %1088 = vmatprep.subr.bf16.mxu0 0
  %1089 = vmatpush1.bf16.msra.mxu0 %v755
  %1090 = vmatprep.subr.bf16.mxu0 0
  %1091 = vmatpush1.bf16.msra.mxu0 %v756
  %1092 = vmatprep.subr.bf16.mxu0 0
  %1093 = vmatpush1.bf16.msra.mxu0 %v757
  %1094 = vmatprep.mubr.bf16.mxu0 %v256
  %1095 = vmatmul.mubr.bf16.gmra.mrb[0].mxu0 %v255
  %v1096 = vpop.f32.mrb[0].mxu0
  %v1097 = vadd.f32 %v1057, %v1096
  %v1098 = vpop.f32.mrb[0].mxu0
  %v1099 = vpop.f32.mrb[0].mxu0
  %v1100 = vpop.f32.mrb[0].mxu0
  %1101 = vdwg.mxu0
  %1102 = vmatprep.subr.bf16.mxu0 0
  %1103 = vmatpush1.bf16.msra.mxu0 %v758
  %1104 = vmatprep.subr.bf16.mxu0 0
  %1105 = vmatpush1.bf16.msra.mxu0 %v759
  %1106 = vmatprep.subr.bf16.mxu0 0
  %1107 = vmatpush1.bf16.msra.mxu0 0
  %1108 = vmatprep.subr.bf16.mxu0 0
  %1109 = vmatpush1.bf16.msra.mxu0 0
  %1110 = vmatprep.subr.bf16.mxu0 0
  %1111 = vmatpush1.bf16.msra.mxu0 0
  %1112 = vmatprep.subr.bf16.mxu0 0
  %1113 = vmatpush1.bf16.msra.mxu0 0
  %1114 = vmatprep.subr.bf16.mxu0 0
  %1115 = vmatpush1.bf16.msra.mxu0 0
  %1116 = vmatprep.subr.bf16.mxu0 0
  %1117 = vmatpush1.bf16.msra.mxu0 0
  %1118 = vmatprep.subr.bf16.mxu0 0
  %1119 = vmatpush1.bf16.msra.mxu0 0
  %1120 = vmatprep.subr.bf16.mxu0 0
  %1121 = vmatpush1.bf16.msra.mxu0 0
  %1122 = vmatprep.subr.bf16.mxu0 0
  %1123 = vmatpush1.bf16.msra.mxu0 0
  %1124 = vmatprep.subr.bf16.mxu0 0
  %1125 = vmatpush1.bf16.msra.mxu0 0
  %1126 = vmatprep.subr.bf16.mxu0 0
  %1127 = vmatpush1.bf16.msra.mxu0 0
  %1128 = vmatprep.subr.bf16.mxu0 0
  %1129 = vmatpush1.bf16.msra.mxu0 0
  %1130 = vmatprep.subr.bf16.mxu0 0
  %1131 = vmatpush1.bf16.msra.mxu0 0
  %1132 = vmatprep.subr.bf16.mxu0 0
  %1133 = vmatpush1.bf16.msra.mxu0 0
  %1134 = vmatprep.mubr.bf16.mxu0 0
  %1135 = vmatmul.mubr.bf16.gmra.mrb[0].mxu0 %v860
  %v1136 = vpop.f32.mrb[0].mxu0
  %v1137 = vadd.f32 %v1097, %v1136
  %v1138 = vpop.f32.mrb[0].mxu0
  %v1139 = vpop.f32.mrb[0].mxu0
  %v1140 = vpop.f32.mrb[0].mxu0
  %1141 = vdwg.mxu0
  %1142 = vst [vmem:[%s3] sm:$0xff] %v1137
  // Predicated region
  $region14: #{_lambda_.5} parent=0 // pred_check
    _
  $region15: #{_lambda_.5} parent=0 // pred_check_branch
    %1144 = sbr.rel (0) target = $region17
  $region16: #{_lambda_.5} parent=0 // pred_region
    _
  $region17: #{_lambda_.5} parent=0 // pred_fallthru
    _
  // Predicated region
  $region18: #{_lambda_.5} parent=0 // pred_check
    _
  $region19: #{_lambda_.5} parent=0 // pred_check_branch
    %1146 = sbr.rel (0) target = $region21
  $region20: #{_lambda_.5} parent=0 // pred_region
    _
  $region21: #{_lambda_.5} parent=0 // pred_fallthru
    _

// kernel: _lambda_.4
$region0: #{_lambda_.4}
  #allocation0 [shape = 'u32[]', space=smem, size = 0x4, offset = 0x4, fixed_abs, tag = 'smem constant byte address 0x4 - core index']
  #allocation1 [shape = 'u32[144,128]{1,0:T(1,128)}', space=vmem, size = 0x12000, scoped, tag = 'internal scratch']
  %s0 = inlined_call_operand.vmem [shape: bf16[2,4,9,10,16], index: 0, kind: input, shape index: {}]
  %s1 = inlined_call_operand.vmem [shape: bf16[5,5,16,32], index: 1, kind: input, shape index: {}]
  %s2 = inlined_call_operand.vmem [shape: f32[1,32], index: 2, kind: input, shape index: {}]
  %s3 = inlined_call_operand.vmem [shape: bf16[2,7,7,32], index: 3, kind: output, shape index: {}]
  %s4 = sld [smem:[#allocation0]]
  $region45: #{_lambda_.4} parent=0
    _
  %s6 = ssub.s32 1, %s4
  %s7 = scalar_select 0, %s6, %s4
  loop: start=0, step=1, limit=4
  $region2: #{_lambda_.4} parent=0 // loop_pre_header
    _
  $region3: #{_lambda_.4} parent=0 // loop_header
    %s9 = sphi 0, %s13
    %p10 = scmp.ge.s32.totalorder %s9, 4
    %s19 = sphi 0, %s21
    %s22 = sphi 0, %s19
    %s23 = sphi 0, %s22
    %s39 = sphi 0, %s23
    %s43 = sphi 0, %s43
    %s45 = sphi 0, %s43
    %s46 = sphi 0, %s45
    %s60 = sphi 0, %s46
    %s64 = sphi 0, %s64
    %s66 = sphi 0, %s64
    %s67 = sphi 0, %s66
    %s81 = sphi 0, %s67
    %s87 = sphi 0, %s89
    %s90 = sphi 0, %s87
    %s91 = sphi 0, %s90
    %s107 = sphi 0, %s91
  $region4: #{_lambda_.4} parent=0 // loop_header_branch
    %12 = sbr.rel (%p10) target = $region8
  $region5: #{_lambda_.4} parent=0 // loop_body
    %s14 = ssub.s32 %s9, 1
    %s15 = ssub.s32 %s9, 2
    %s16 = sadd.s32 %s9, 1
    %s17 = ssub.s32 %s9, %s16
    %p18 = scmp.eq.s32.totalorder %s17, 0
    %s20 = sadd.s32 %s19, 1
    %s21 = scalar_select %p18, %s19, %s20
    %p24 = pneg %p18
    %p25 = scmp.eq.s32.totalorder %s9, 1
    %p26 = por %p24, %p25
    %p27 = scmp.ne.s32.totalorder %s19, %s22
    %p28 = scmp.eq.s32.totalorder %s9, 0
    %p29 = por %p27, %p28
    %p30 = scmp.ne.s32.totalorder %s19, %s22
    %p31 = scmp.eq.s32.totalorder %s14, 1
    %p32 = por %p30, %p31
    %p33 = scmp.ne.s32.totalorder %s22, %s23
    %p34 = scmp.eq.s32.totalorder %s14, 0
    %p35 = por %p33, %p34
    %p36 = scmp.ne.s32.totalorder %s22, %s23
    %p37 = scmp.eq.s32.totalorder %s15, 1
    %p38 = por %p36, %p37
    %p40 = scmp.ne.s32.totalorder %s23, %s39
    %p41 = scmp.eq.s32.totalorder %s15, 0
    %p42 = por %p40, %p41
    %s44 = sadd.s32 %s43, 1
    %p47 = scmp.eq.s32.totalorder %s9, 1
    %p48 = scmp.ne.s32.totalorder %s43, %s45
    %p49 = scmp.eq.s32.totalorder %s9, 0
    %p50 = por %p48, %p49
    %p51 = scmp.ne.s32.totalorder %s43, %s45
    %p52 = scmp.eq.s32.totalorder %s14, 1
    %p53 = por %p51, %p52
    %p54 = scmp.ne.s32.totalorder %s45, %s46
    %p55 = scmp.eq.s32.totalorder %s14, 0
    %p56 = por %p54, %p55
    %p57 = scmp.ne.s32.totalorder %s45, %s46
    %p58 = scmp.eq.s32.totalorder %s15, 1
    %p59 = por %p57, %p58
    %p61 = scmp.ne.s32.totalorder %s46, %s60
    %p62 = scmp.eq.s32.totalorder %s15, 0
    %p63 = por %p61, %p62
    %s65 = sadd.s32 %s64, 1
    %p68 = scmp.eq.s32.totalorder %s9, 1
    %p69 = scmp.ne.s32.totalorder %s64, %s66
    %p70 = scmp.eq.s32.totalorder %s9, 0
    %p71 = por %p69, %p70
    %p72 = scmp.ne.s32.totalorder %s64, %s66
    %p73 = scmp.eq.s32.totalorder %s14, 1
    %p74 = por %p72, %p73
    %p75 = scmp.ne.s32.totalorder %s66, %s67
    %p76 = scmp.eq.s32.totalorder %s14, 0
    %p77 = por %p75, %p76
    %p78 = scmp.ne.s32.totalorder %s66, %s67
    %p79 = scmp.eq.s32.totalorder %s15, 1
    %p80 = por %p78, %p79
    %p82 = scmp.ne.s32.totalorder %s67, %s81
    %p83 = scmp.eq.s32.totalorder %s15, 0
    %p84 = por %p82, %p83
    %s85 = ssub.s32 %s9, %s16
    %p86 = scmp.eq.s32.totalorder %s85, 0
    %s88 = sadd.s32 %s87, 1
    %s89 = scalar_select %p86, %s87, %s88
    %p92 = pneg %p86
    %p93 = scmp.eq.s32.totalorder %s9, 1
    %p94 = por %p92, %p93
    %p95 = scmp.ne.s32.totalorder %s87, %s90
    %p96 = scmp.eq.s32.totalorder %s9, 0
    %p97 = por %p95, %p96
    %p98 = scmp.ne.s32.totalorder %s87, %s90
    %p99 = scmp.eq.s32.totalorder %s14, 1
    %p100 = por %p98, %p99
    %p101 = scmp.ne.s32.totalorder %s90, %s91
    %p102 = scmp.eq.s32.totalorder %s14, 0
    %p103 = por %p101, %p102
    %p104 = scmp.ne.s32.totalorder %s90, %s91
    %p105 = scmp.eq.s32.totalorder %s15, 1
    %p106 = por %p104, %p105
    %p108 = scmp.ne.s32.totalorder %s91, %s107
    %p109 = scmp.eq.s32.totalorder %s15, 0
    %p110 = por %p108, %p109
    %p111 = scmp.le.s32.totalorder 1, %s9
    %p112 = scmp.lt.s32.totalorder %s9, 3
    %p113 = pnand %p111, %p112
    %p114 = pneg %p113
    // Predicated region
    $region9: #{_lambda_.4} parent=5 // pred_check
      _
    $region10: #{_lambda_.4} parent=5 // pred_check_branch
      %116 = sbr.rel (%p113) target = $region12
    $region11: #{_lambda_.4} parent=5 // pred_region
      %s117 = ssub.s32 %s9, 1
      // Predicated region
      $region13: #{_lambda_.4} parent=11 // pred_check
        %p118 = pneg %p56
      $region14: #{_lambda_.4} parent=11 // pred_check_branch
        %120 = sbr.rel (%p118) target = $region16
      $region15: #{_lambda_.4} parent=11 // pred_region
        _
      $region16: #{_lambda_.4} parent=11 // pred_fallthru
        _
      // Predicated region
      $region17: #{_lambda_.4} parent=11 // pred_check
        %p121 = pneg %p77
      $region18: #{_lambda_.4} parent=11 // pred_check_branch
        %123 = sbr.rel (%p121) target = $region20
      $region19: #{_lambda_.4} parent=11 // pred_region
        _
      $region20: #{_lambda_.4} parent=11 // pred_fallthru
        _
    $region12: #{_lambda_.4} parent=5 // pred_fallthru
      _
    %p124 = scmp.lt.s32.totalorder %s9, 2
    // Predicated region
    $region21: #{_lambda_.4} parent=5 // pred_check
      %p125 = pneg %p124
    $region22: #{_lambda_.4} parent=5 // pred_check_branch
      %127 = sbr.rel (%p125) target = $region24
    $region23: #{_lambda_.4} parent=5 // pred_region
      // Predicated region
      $region25: #{_lambda_.4} parent=23 // pred_check
        %p128 = pneg %p29
      $region26: #{_lambda_.4} parent=23 // pred_check_branch
        %130 = sbr.rel (%p128) target = $region28
      $region27: #{_lambda_.4} parent=23 // pred_region
        %p131 = scmp.lt.s32.totalorder %s9, 1
        %s132 = scalar_select %p131, %s9, 1
        %s133 = smul.addr %s132, 72
        %s134 = smul.addr %s133, 4
        %s135 = scalar_lea.vmem %s0, %s134
      $region28: #{_lambda_.4} parent=23 // pred_fallthru
        _
    $region24: #{_lambda_.4} parent=5 // pred_fallthru
      _
    %p136 = scmp.le.s32.totalorder 1, %s9
    %p137 = scmp.lt.s32.totalorder %s9, 3
    %p138 = pnand %p136, %p137
    %p139 = pneg %p138
    // Predicated region
    $region29: #{_lambda_.4} parent=5 // pred_check
      _
    $region30: #{_lambda_.4} parent=5 // pred_check_branch
      %141 = sbr.rel (%p138) target = $region32
    $region31: #{_lambda_.4} parent=5 // pred_region
      %s142 = ssub.s32 %s9, 1
      %p143 = scmp.lt.s32.totalorder %s14, 1
      %s144 = scalar_select %p143, %s14, 1
      %s145 = smul.addr %s144, 72
      %s146 = smul.addr %s145, 4
      %s147 = scalar_lea.vmem %s0, %s146
      %p148 = pneg %p35
      %p149 = pneg %p32
      %p150 = pneg %p56
      %p151 = pneg %p53
      %p152 = pneg %p77
      %p153 = pneg %p74
      %p154 = pneg %p103
      %p155 = pneg %p100
      %p156 = scmp.lt.s32.totalorder %s14, 1
      %s157 = scalar_select %p156, %s14, 1
      %s158 = smul.addr %s157, 7
      %s159 = smul.addr %s158, 4
      %s160 = scalar_lea.vmem %s3, %s159
      %p161 = scmp.lt.s32.totalorder %s14, 1
      %s162 = scalar_select %p161, %s14, 1
      %s163 = smul.addr %s162, 72
      %s164 = smul.addr %s163, 4
      %s165 = scalar_lea.vmem %s0, %s164
      %p166 = scmp.lt.s32.totalorder %s14, 1
      %s167 = scalar_select %p166, %s14, 1
      %s168 = smul.addr %s167, 7
      %s169 = smul.addr %s168, 4
      %s170 = scalar_lea.vmem %s3, %s169
      %v172 = vld [vmem:[%s165] sm:$0xf]
      %v173 = vld [vmem:[%s165 + $0x4] sm:$0x1]
      %v174 = vld [vmem:[%s165 + $0x8] sm:$0xf]
      %v175 = vld [vmem:[%s165 + $0xc] sm:$0x1]
      %v176 = vld [vmem:[%s165 + $0x10] sm:$0xf]
      %v177 = vld [vmem:[%s165 + $0x14] sm:$0x1]
      %v178 = vld [vmem:[%s165 + $0x18] sm:$0xf]
      %v179 = vld [vmem:[%s165 + $0x1c] sm:$0x1]
      %v180 = vld [vmem:[%s165 + $0x20] sm:$0xf]
      %v181 = vld [vmem:[%s165 + $0x24] sm:$0x1]
      %v182 = vld [vmem:[%s165 + $0x28] sm:$0xf]
      %v183 = vld [vmem:[%s165 + $0x2c] sm:$0x1]
      %v184 = vld [vmem:[%s165 + $0x30] sm:$0xf]
      %v185 = vld [vmem:[%s165 + $0x34] sm:$0x1]
      %v186 = vld [vmem:[%s165 + $0x38] sm:$0xf]
      %v187 = vld [vmem:[%s165 + $0x3c] sm:$0x1]
      %v188 = vld [vmem:[%s165 + $0x40] sm:$0xf]
      %v189 = vld [vmem:[%s165 + $0x44] sm:$0x1]
      %v190 = vld [vmem:[%s165 + $0x48] sm:$0xf]
      %v191 = vld [vmem:[%s165 + $0x4c] sm:$0x1]
      %v192 = vld [vmem:[%s165 + $0x50] sm:$0xf]
      %v193 = vld [vmem:[%s165 + $0x54] sm:$0x1]
      %v194 = vld [vmem:[%s165 + $0x58] sm:$0xf]
      %v195 = vld [vmem:[%s165 + $0x5c] sm:$0x1]
      %v196 = vld [vmem:[%s165 + $0x60] sm:$0xf]
      %v197 = vld [vmem:[%s165 + $0x64] sm:$0x1]
      %v198 = vld [vmem:[%s165 + $0x68] sm:$0xf]
      %v199 = vld [vmem:[%s165 + $0x6c] sm:$0x1]
      %v200 = vld [vmem:[%s165 + $0x70] sm:$0xf]
      %v201 = vld [vmem:[%s165 + $0x74] sm:$0x1]
      %v202 = vld [vmem:[%s165 + $0x78] sm:$0xf]
      %v203 = vld [vmem:[%s165 + $0x7c] sm:$0x1]
      %v204 = vld [vmem:[%s165 + $0x80] sm:$0xf]
      %v205 = vld [vmem:[%s165 + $0x84] sm:$0x1]
      %v206 = vld [vmem:[%s165 + $0x88] sm:$0xf]
      %v207 = vld [vmem:[%s165 + $0x8c] sm:$0x1]
      %v208 = vld [vmem:[%s165 + $0x90] sm:$0xf]
      %v209 = vld [vmem:[%s165 + $0x94] sm:$0x1]
      %v210 = vld [vmem:[%s165 + $0x98] sm:$0xf]
      %v211 = vld [vmem:[%s165 + $0x9c] sm:$0x1]
      %v212 = vld [vmem:[%s165 + $0xa0] sm:$0xf]
      %v213 = vld [vmem:[%s165 + $0xa4] sm:$0x1]
      %v214 = vld [vmem:[%s165 + $0xa8] sm:$0xf]
      %v215 = vld [vmem:[%s165 + $0xac] sm:$0x1]
      %v216 = vld [vmem:[%s165 + $0xb0] sm:$0xf]
      %v217 = vld [vmem:[%s165 + $0xb4] sm:$0x1]
      %v218 = vld [vmem:[%s165 + $0xb8] sm:$0xf]
      %v219 = vld [vmem:[%s165 + $0xbc] sm:$0x1]
      %v220 = vld [vmem:[%s165 + $0xc0] sm:$0xf]
      %v221 = vld [vmem:[%s165 + $0xc4] sm:$0x1]
      %v222 = vld [vmem:[%s165 + $0xc8] sm:$0xf]
      %v223 = vld [vmem:[%s165 + $0xcc] sm:$0x1]
      %v224 = vld [vmem:[%s165 + $0xd0] sm:$0xf]
      %v225 = vld [vmem:[%s165 + $0xd4] sm:$0x1]
      %v226 = vld [vmem:[%s165 + $0xd8] sm:$0xf]
      %v227 = vld [vmem:[%s165 + $0xdc] sm:$0x1]
      %v228 = vld [vmem:[%s165 + $0xe0] sm:$0xf]
      %v229 = vld [vmem:[%s165 + $0xe4] sm:$0x1]
      %v230 = vld [vmem:[%s165 + $0xe8] sm:$0xf]
      %v231 = vld [vmem:[%s165 + $0xec] sm:$0x1]
      %v232 = vld [vmem:[%s165 + $0xf0] sm:$0xf]
      %v233 = vld [vmem:[%s165 + $0xf4] sm:$0x1]
      %v234 = vld [vmem:[%s165 + $0xf8] sm:$0xf]
      %v235 = vld [vmem:[%s165 + $0xfc] sm:$0x1]
      %v236 = vld [vmem:[%s165 + $0x100] sm:$0xf]
      %v237 = vld [vmem:[%s165 + $0x104] sm:$0x1]
      %v238 = vld [vmem:[%s165 + $0x108] sm:$0xf]
      %v239 = vld [vmem:[%s165 + $0x10c] sm:$0x1]
      %v240 = vld [vmem:[%s165 + $0x110] sm:$0xf]
      %v241 = vld [vmem:[%s165 + $0x114] sm:$0x1]
      %v242 = vld [vmem:[%s165 + $0x118] sm:$0xf]
      %v243 = vld [vmem:[%s165 + $0x11c] sm:$0x1]
      %v244 = vld [vmem:[%s1] sm:$0xf]
      %v245 = vld [vmem:[%s1 + $0x4] sm:$0xf]
      %v246 = vld [vmem:[%s1 + $0x8] sm:$0xf]
      %v247 = vld [vmem:[%s1 + $0xc] sm:$0xf]
      %v248 = vld [vmem:[%s1 + $0x10] sm:$0xf]
      %v249 = vld [vmem:[%s1 + $0x14] sm:$0xf]
      %v250 = vld [vmem:[%s1 + $0x18] sm:$0xf]
      %v251 = vld [vmem:[%s1 + $0x1c] sm:$0xf]
      %v252 = vld [vmem:[%s1 + $0x20] sm:$0xf]
      %v253 = vld [vmem:[%s1 + $0x24] sm:$0xf]
      %v254 = vld [vmem:[%s1 + $0x28] sm:$0xf]
      %v255 = vld [vmem:[%s1 + $0x2c] sm:$0xf]
      %v256 = vld [vmem:[%s1 + $0x30] sm:$0xf]
      %v257 = vld [vmem:[%s1 + $0x34] sm:$0xf]
      %v258 = vld [vmem:[%s1 + $0x38] sm:$0xf]
      %v259 = vld [vmem:[%s1 + $0x3c] sm:$0xf]
      %v260 = vld [vmem:[%s1 + $0x40] sm:$0xf]
      %v261 = vld [vmem:[%s1 + $0x44] sm:$0xf]
      %v262 = vld [vmem:[%s1 + $0x48] sm:$0xf]
      %v263 = vld [vmem:[%s1 + $0x4c] sm:$0xf]
      %v264 = vld [vmem:[%s1 + $0x50] sm:$0xf]
      %v265 = vld [vmem:[%s1 + $0x54] sm:$0xf]
      %v266 = vld [vmem:[%s1 + $0x58] sm:$0xf]
      %v267 = vld [vmem:[%s1 + $0x5c] sm:$0xf]
      %v268 = vld [vmem:[%s1 + $0x60] sm:$0xf]
      %v269 = vld [vmem:[%s1 + $0x64] sm:$0xf]
      %v270 = vld [vmem:[%s1 + $0x68] sm:$0xf]
      %v271 = vld [vmem:[%s1 + $0x6c] sm:$0xf]
      %v272 = vld [vmem:[%s1 + $0x70] sm:$0xf]
      %v273 = vld [vmem:[%s1 + $0x74] sm:$0xf]
      %v274 = vld [vmem:[%s1 + $0x78] sm:$0xf]
      %v275 = vld [vmem:[%s1 + $0x7c] sm:$0xf]
      %v276 = vld [vmem:[%s1 + $0x80] sm:$0xf]
      %v277 = vld [vmem:[%s1 + $0x84] sm:$0xf]
      %v278 = vld [vmem:[%s1 + $0x88] sm:$0xf]
      %v279 = vld [vmem:[%s1 + $0x8c] sm:$0xf]
      %v280 = vld [vmem:[%s1 + $0x90] sm:$0xf]
      %v281 = vld [vmem:[%s1 + $0x94] sm:$0xf]
      %v282 = vld [vmem:[%s1 + $0x98] sm:$0xf]
      %v283 = vld [vmem:[%s1 + $0x9c] sm:$0xf]
      %v284 = vld [vmem:[%s1 + $0xa0] sm:$0xf]
      %v285 = vld [vmem:[%s1 + $0xa4] sm:$0xf]
      %v286 = vld [vmem:[%s1 + $0xa8] sm:$0xf]
      %v287 = vld [vmem:[%s1 + $0xac] sm:$0xf]
      %v288 = vld [vmem:[%s1 + $0xb0] sm:$0xf]
      %v289 = vld [vmem:[%s1 + $0xb4] sm:$0xf]
      %v290 = vld [vmem:[%s1 + $0xb8] sm:$0xf]
      %v291 = vld [vmem:[%s1 + $0xbc] sm:$0xf]
      %v292 = vld [vmem:[%s1 + $0xc0] sm:$0xf]
      %v293 = vld [vmem:[%s1 + $0xc4] sm:$0xf]
      %v301 = vunpack.c.l.b16 %v172
      %v302 = vunpack.c.l.b16 %v174
      %v303 = vunpack.c.l.b16 %v176
      %v304 = vunpack.c.l.b16 %v178
      %v305 = vunpack.c.l.b16 %v180
      %v306 = vunpack.c.l.b16 %v182
      %v307 = vunpack.c.l.b16 %v184
      %v308 = vpack.c.b16 %v302, %v301
      %v309 = vpack.c.b16 %v304, %v303
      %v310 = vpack.c.b16 %v306, %v305
      %v311 = vpack.c.b16 %v307, %v307
      %v319 = vunpack.c.l.b16 %v190
      %v320 = vunpack.c.l.b16 %v192
      %v321 = vunpack.c.l.b16 %v194
      %v322 = vunpack.c.l.b16 %v196
      %v323 = vunpack.c.l.b16 %v198
      %v324 = vunpack.c.l.b16 %v200
      %v325 = vunpack.c.l.b16 %v202
      %v326 = vpack.c.b16 %v319, %v319
      %v327 = vpack.c.b16 %v321, %v320
      %v328 = vpack.c.b16 %v323, %v322
      %v329 = vpack.c.b16 %v325, %v324
      %v337 = vunpack.c.l.b16 %v208
      %v338 = vunpack.c.l.b16 %v210
      %v339 = vunpack.c.l.b16 %v212
      %v340 = vunpack.c.l.b16 %v214
      %v341 = vunpack.c.l.b16 %v216
      %v342 = vunpack.c.l.b16 %v218
      %v343 = vunpack.c.l.b16 %v220
      %v344 = vpack.c.b16 %v338, %v337
      %v345 = vpack.c.b16 %v340, %v339
      %v346 = vpack.c.b16 %v342, %v341
      %v347 = vpack.c.b16 %v343, %v343
      %v355 = vunpack.c.l.b16 %v226
      %v356 = vunpack.c.l.b16 %v228
      %v357 = vunpack.c.l.b16 %v230
      %v358 = vunpack.c.l.b16 %v232
      %v359 = vunpack.c.l.b16 %v234
      %v360 = vunpack.c.l.b16 %v236
      %v361 = vunpack.c.l.b16 %v238
      %v362 = vpack.c.b16 %v355, %v355
      %v363 = vpack.c.b16 %v357, %v356
      %v364 = vpack.c.b16 %v359, %v358
      %v365 = vpack.c.b16 %v361, %v360
      %vm366 = vcmask 1043456
      %v369 = vsel %vm366, %v311, %v326
      %v372 = vsel %vm366, %v347, %v362
      %vm373 = vsmask.f32 3328
      %vm374 = vsmask.f32 7440
      %vm375 = vmor %vm373, %vm374
      %v377 = vshrl.u32 %v172, 16
      %v379 = vrot.slane %v377, 4
      %v380 = vshll.u32 %v172, 16
      %v382 = vrot.slane %v380, 5
      %v383 = vor.u32 %v379, %v382
      %v384 = vrot.slane %v383, 4
      %v386 = vshll.u32 %v173, 16
      %v388 = vrot.slane %v386, 5
      %v389 = vsel %vm375, %v384, %v388
      %v391 = vshrl.u32 %v174, 16
      %v393 = vrot.slane %v391, 4
      %v394 = vshll.u32 %v174, 16
      %v396 = vrot.slane %v394, 5
      %v397 = vor.u32 %v393, %v396
      %v398 = vrot.slane %v397, 4
      %v400 = vshll.u32 %v175, 16
      %v402 = vrot.slane %v400, 5
      %v403 = vsel %vm375, %v398, %v402
      %v405 = vshrl.u32 %v176, 16
      %v407 = vrot.slane %v405, 4
      %v408 = vshll.u32 %v176, 16
      %v410 = vrot.slane %v408, 5
      %v411 = vor.u32 %v407, %v410
      %v412 = vrot.slane %v411, 4
      %v414 = vshll.u32 %v177, 16
      %v416 = vrot.slane %v414, 5
      %v417 = vsel %vm375, %v412, %v416
      %v419 = vshrl.u32 %v178, 16
      %v421 = vrot.slane %v419, 4
      %v422 = vshll.u32 %v178, 16
      %v424 = vrot.slane %v422, 5
      %v425 = vor.u32 %v421, %v424
      %v426 = vrot.slane %v425, 4
      %v428 = vshll.u32 %v179, 16
      %v430 = vrot.slane %v428, 5
      %v431 = vsel %vm375, %v426, %v430
      %v433 = vshrl.u32 %v180, 16
      %v435 = vrot.slane %v433, 4
      %v436 = vshll.u32 %v180, 16
      %v438 = vrot.slane %v436, 5
      %v439 = vor.u32 %v435, %v438
      %v440 = vrot.slane %v439, 4
      %v442 = vshll.u32 %v181, 16
      %v444 = vrot.slane %v442, 5
      %v445 = vsel %vm375, %v440, %v444
      %v447 = vshrl.u32 %v182, 16
      %v449 = vrot.slane %v447, 4
      %v450 = vshll.u32 %v182, 16
      %v452 = vrot.slane %v450, 5
      %v453 = vor.u32 %v449, %v452
      %v454 = vrot.slane %v453, 4
      %v456 = vshll.u32 %v183, 16
      %v458 = vrot.slane %v456, 5
      %v459 = vsel %vm375, %v454, %v458
      %v461 = vshrl.u32 %v184, 16
      %v463 = vrot.slane %v461, 4
      %v464 = vshll.u32 %v184, 16
      %v466 = vrot.slane %v464, 5
      %v467 = vor.u32 %v463, %v466
      %v468 = vrot.slane %v467, 4
      %v470 = vshll.u32 %v185, 16
      %v472 = vrot.slane %v470, 5
      %v473 = vsel %vm375, %v468, %v472
      %v475 = vshrl.u32 %v208, 16
      %v477 = vrot.slane %v475, 4
      %v478 = vshll.u32 %v208, 16
      %v480 = vrot.slane %v478, 5
      %v481 = vor.u32 %v477, %v480
      %v482 = vrot.slane %v481, 4
      %v484 = vshll.u32 %v209, 16
      %v486 = vrot.slane %v484, 5
      %v487 = vsel %vm375, %v482, %v486
      %v489 = vshrl.u32 %v210, 16
      %v491 = vrot.slane %v489, 4
      %v492 = vshll.u32 %v210, 16
      %v494 = vrot.slane %v492, 5
      %v495 = vor.u32 %v491, %v494
      %v496 = vrot.slane %v495, 4
      %v498 = vshll.u32 %v211, 16
      %v500 = vrot.slane %v498, 5
      %v501 = vsel %vm375, %v496, %v500
      %v503 = vshrl.u32 %v212, 16
      %v505 = vrot.slane %v503, 4
      %v506 = vshll.u32 %v212, 16
      %v508 = vrot.slane %v506, 5
      %v509 = vor.u32 %v505, %v508
      %v510 = vrot.slane %v509, 4
      %v512 = vshll.u32 %v213, 16
      %v514 = vrot.slane %v512, 5
      %v515 = vsel %vm375, %v510, %v514
      %v517 = vshrl.u32 %v214, 16
      %v519 = vrot.slane %v517, 4
      %v520 = vshll.u32 %v214, 16
      %v522 = vrot.slane %v520, 5
      %v523 = vor.u32 %v519, %v522
      %v524 = vrot.slane %v523, 4
      %v526 = vshll.u32 %v215, 16
      %v528 = vrot.slane %v526, 5
      %v529 = vsel %vm375, %v524, %v528
      %v531 = vshrl.u32 %v216, 16
      %v533 = vrot.slane %v531, 4
      %v534 = vshll.u32 %v216, 16
      %v536 = vrot.slane %v534, 5
      %v537 = vor.u32 %v533, %v536
      %v538 = vrot.slane %v537, 4
      %v540 = vshll.u32 %v217, 16
      %v542 = vrot.slane %v540, 5
      %v543 = vsel %vm375, %v538, %v542
      %v545 = vshrl.u32 %v218, 16
      %v547 = vrot.slane %v545, 4
      %v548 = vshll.u32 %v218, 16
      %v550 = vrot.slane %v548, 5
      %v551 = vor.u32 %v547, %v550
      %v552 = vrot.slane %v551, 4
      %v554 = vshll.u32 %v219, 16
      %v556 = vrot.slane %v554, 5
      %v557 = vsel %vm375, %v552, %v556
      %v559 = vshrl.u32 %v220, 16
      %v561 = vrot.slane %v559, 4
      %v562 = vshll.u32 %v220, 16
      %v564 = vrot.slane %v562, 5
      %v565 = vor.u32 %v561, %v564
      %v566 = vrot.slane %v565, 4
      %v568 = vshll.u32 %v221, 16
      %v570 = vrot.slane %v568, 5
      %v571 = vsel %vm375, %v566, %v570
      %v572 = vpack.c.b16 %v320, %v319
      %v573 = vpack.c.b16 %v322, %v321
      %v574 = vpack.c.b16 %v324, %v323
      %v575 = vpack.c.b16 %v325, %v325
      %v576 = vunpack.c.l.b16 %v389
      %v577 = vunpack.c.l.b16 %v403
      %v578 = vunpack.c.l.b16 %v417
      %v579 = vunpack.c.l.b16 %v431
      %v580 = vunpack.c.l.b16 %v445
      %v581 = vunpack.c.l.b16 %v459
      %v582 = vunpack.c.l.b16 %v473
      %v583 = vpack.c.b16 %v576, %v576
      %v584 = vpack.c.b16 %v578, %v577
      %v585 = vpack.c.b16 %v580, %v579
      %v586 = vpack.c.b16 %v582, %v581
      %v587 = vpack.c.b16 %v356, %v355
      %v588 = vpack.c.b16 %v358, %v357
      %v589 = vpack.c.b16 %v360, %v359
      %v590 = vpack.c.b16 %v361, %v361
      %v591 = vunpack.c.l.b16 %v487
      %v592 = vunpack.c.l.b16 %v501
      %v593 = vunpack.c.l.b16 %v515
      %v594 = vunpack.c.l.b16 %v529
      %v595 = vunpack.c.l.b16 %v543
      %v596 = vunpack.c.l.b16 %v557
      %v597 = vunpack.c.l.b16 %v571
      %v598 = vpack.c.b16 %v591, %v591
      %v599 = vpack.c.b16 %v593, %v592
      %v600 = vpack.c.b16 %v595, %v594
      %v601 = vpack.c.b16 %v597, %v596
      %v604 = vsel %vm366, %v575, %v583
      %v607 = vsel %vm366, %v590, %v598
      %v610 = vunpack.c.l.b16 %v246
      %v611 = vunpack.c.l.b16 %v247
      %v612 = vpack.c.b16 %v611, %v610
      %vm614 = vcmask 130048
      %v616 = vsel %vm614, %v572, 0
      %v619 = vsel %vm614, %v573, 0
      %v622 = vsel %vm614, %v574, 0
      %v624 = vsel %vm614, %v604, 0
      %v627 = vsel %vm614, %v584, 0
      %v630 = vsel %vm614, %v585, 0
      %v633 = vsel %vm614, %v586, 0
      %v636 = vsel %vm614, %v587, 0
      %v639 = vsel %vm614, %v588, 0
      %v642 = vsel %vm614, %v589, 0
      %v644 = vsel %vm614, %v607, 0
      %v647 = vsel %vm614, %v599, 0
      %v650 = vsel %vm614, %v600, 0
      %v653 = vsel %vm614, %v601, 0
      %655 = vmatprep.subr.bf16.mxu0 0
      %656 = vmatpush1.bf16.msra.mxu0 %v612
      %657 = vmatprep.subr.bf16.mxu0 0
      %658 = vmatpush1.bf16.msra.mxu0 0
      %659 = vmatprep.subr.bf16.mxu0 0
      %660 = vmatpush1.bf16.msra.mxu0 0
      %661 = vmatprep.subr.bf16.mxu0 0
      %662 = vmatpush1.bf16.msra.mxu0 0
      %663 = vmatprep.subr.bf16.mxu0 0
      %664 = vmatpush1.bf16.msra.mxu0 0
      %665 = vmatprep.subr.bf16.mxu0 0
      %666 = vmatpush1.bf16.msra.mxu0 0
      %667 = vmatprep.subr.bf16.mxu0 0
      %668 = vmatpush1.bf16.msra.mxu0 0
      %669 = vmatprep.subr.bf16.mxu0 0
      %670 = vmatpush1.bf16.msra.mxu0 0
      %671 = vmatprep.subr.bf16.mxu0 0
      %672 = vmatpush1.bf16.msra.mxu0 0
      %673 = vmatprep.subr.bf16.mxu0 0
      %674 = vmatpush1.bf16.msra.mxu0 0
      %675 = vmatprep.subr.bf16.mxu0 0
      %676 = vmatpush1.bf16.msra.mxu0 0
      %677 = vmatprep.subr.bf16.mxu0 0
      %678 = vmatpush1.bf16.msra.mxu0 0
      %679 = vmatprep.subr.bf16.mxu0 0
      %680 = vmatpush1.bf16.msra.mxu0 0
      %681 = vmatprep.subr.bf16.mxu0 0
      %682 = vmatpush1.bf16.msra.mxu0 0
      %683 = vmatprep.subr.bf16.mxu0 0
      %684 = vmatpush1.bf16.msra.mxu0 0
      %685 = vmatprep.subr.bf16.mxu0 0
      %686 = vmatpush1.bf16.msra.mxu0 0
      %687 = vmatprep.mubr.bf16.mxu0 0
      %688 = vmatmul.mubr.bf16.gmra.mrb[0].mxu0 %v616
      %v689 = vpop.f32.mrb[0].mxu0
      %v690 = vadd.f32 0.0, %v689
      %v691 = vpop.f32.mrb[0].mxu0
      %v692 = vpop.f32.mrb[0].mxu0
      %v693 = vadd.f32 0.0, %v692
      %v694 = vpop.f32.mrb[0].mxu0
      %695 = vmatprep.mubr.bf16.mxu0 0
      %696 = vmatmul.mubr.bf16.gmra.mrb[0].mxu0 %v619
      %v697 = vpop.f32.mrb[0].mxu0
      %v698 = vadd.f32 0.0, %v697
      %v699 = vpop.f32.mrb[0].mxu0
      %v700 = vpop.f32.mrb[0].mxu0
      %v701 = vadd.f32 0.0, %v700
      %v702 = vpop.f32.mrb[0].mxu0
      %703 = vmatprep.mubr.bf16.mxu0 0
      %704 = vmatmul.mubr.bf16.gmra.mrb[0].mxu0 %v622
      %v705 = vpop.f32.mrb[0].mxu0
      %v706 = vadd.f32 0.0, %v705
      %v707 = vpop.f32.mrb[0].mxu0
      %v708 = vpop.f32.mrb[0].mxu0
      %v709 = vadd.f32 0.0, %v708
      %v710 = vpop.f32.mrb[0].mxu0
      %711 = vmatprep.mubr.bf16.mxu0 0
      %712 = vmatmul.mubr.bf16.gmra.mrb[0].mxu0 %v624
      %v713 = vpop.f32.mrb[0].mxu0
      %v714 = vadd.f32 0.0, %v713
      %v715 = vpop.f32.mrb[0].mxu0
      %v716 = vpop.f32.mrb[0].mxu0
      %v717 = vadd.f32 0.0, %v716
      %v718 = vpop.f32.mrb[0].mxu0
      %719 = vmatprep.mubr.bf16.mxu0 0
      %720 = vmatmul.mubr.bf16.gmra.mrb[0].mxu0 %v627
      %v721 = vpop.f32.mrb[0].mxu0
      %v722 = vadd.f32 0.0, %v721
      %v723 = vpop.f32.mrb[0].mxu0
      %v724 = vpop.f32.mrb[0].mxu0
      %v725 = vadd.f32 0.0, %v724
      %v726 = vpop.f32.mrb[0].mxu0
      %727 = vmatprep.mubr.bf16.mxu0 0
      %728 = vmatmul.mubr.bf16.gmra.mrb[0].mxu0 %v630
      %v729 = vpop.f32.mrb[0].mxu0
      %v730 = vadd.f32 0.0, %v729
      %v731 = vpop.f32.mrb[0].mxu0
      %v732 = vpop.f32.mrb[0].mxu0
      %v733 = vadd.f32 0.0, %v732
      %v734 = vpop.f32.mrb[0].mxu0
      %735 = vmatprep.mubr.bf16.mxu0 0
      %736 = vmatmul.mubr.bf16.gmra.mrb[0].mxu0 %v633
      %v737 = vpop.f32.mrb[0].mxu0
      %v738 = vadd.f32 0.0, %v737
      %v739 = vpop.f32.mrb[0].mxu0
      %v740 = vpop.f32.mrb[0].mxu0
      %v741 = vadd.f32 0.0, %v740
      %v742 = vpop.f32.mrb[0].mxu0
      %743 = vmatprep.mubr.bf16.mxu0 0
      %744 = vmatmul.mubr.bf16.gmra.mrb[0].mxu0 %v636
      %v745 = vpop.f32.mrb[0].mxu0
      %v746 = vadd.f32 0.0, %v745
      %v747 = vpop.f32.mrb[0].mxu0
      %v748 = vpop.f32.mrb[0].mxu0
      %v749 = vadd.f32 0.0, %v748
      %v750 = vpop.f32.mrb[0].mxu0
      %751 = vmatprep.mubr.bf16.mxu0 0
      %752 = vmatmul.mubr.bf16.gmra.mrb[0].mxu0 %v639
      %v753 = vpop.f32.mrb[0].mxu0
      %v754 = vadd.f32 0.0, %v753
      %v755 = vpop.f32.mrb[0].mxu0
      %v756 = vpop.f32.mrb[0].mxu0
      %v757 = vadd.f32 0.0, %v756
      %v758 = vpop.f32.mrb[0].mxu0
      %759 = vmatprep.mubr.bf16.mxu0 0
      %760 = vmatmul.mubr.bf16.gmra.mrb[0].mxu0 %v642
      %v761 = vpop.f32.mrb[0].mxu0
      %v762 = vadd.f32 0.0, %v761
      %v763 = vpop.f32.mrb[0].mxu0
      %v764 = vpop.f32.mrb[0].mxu0
      %v765 = vadd.f32 0.0, %v764
      %v766 = vpop.f32.mrb[0].mxu0
      %767 = vmatprep.mubr.bf16.mxu0 0
      %768 = vmatmul.mubr.bf16.gmra.mrb[0].mxu0 %v644
      %v769 = vpop.f32.mrb[0].mxu0
      %v770 = vadd.f32 0.0, %v769
      %v771 = vpop.f32.mrb[0].mxu0
      %v772 = vpop.f32.mrb[0].mxu0
      %v773 = vadd.f32 0.0, %v772
      %v774 = vpop.f32.mrb[0].mxu0
      %775 = vmatprep.mubr.bf16.mxu0 0
      %776 = vmatmul.mubr.bf16.gmra.mrb[0].mxu0 %v647
      %v777 = vpop.f32.mrb[0].mxu0
      %v778 = vadd.f32 0.0, %v777
      %v779 = vpop.f32.mrb[0].mxu0
      %v780 = vpop.f32.mrb[0].mxu0
      %v781 = vadd.f32 0.0, %v780
      %v782 = vpop.f32.mrb[0].mxu0
      %783 = vmatprep.mubr.bf16.mxu0 0
      %784 = vmatmul.mubr.bf16.gmra.mrb[0].mxu0 %v650
      %v785 = vpop.f32.mrb[0].mxu0
      %v786 = vadd.f32 0.0, %v785
      %v787 = vpop.f32.mrb[0].mxu0
      %v788 = vpop.f32.mrb[0].mxu0
      %v789 = vadd.f32 0.0, %v788
      %v790 = vpop.f32.mrb[0].mxu0
      %791 = vmatprep.mubr.bf16.mxu0 0
      %792 = vmatmul.mubr.bf16.gmra.mrb[0].mxu0 %v653
      %v793 = vpop.f32.mrb[0].mxu0
      %v794 = vadd.f32 0.0, %v793
      %v795 = vpop.f32.mrb[0].mxu0
      %v796 = vpop.f32.mrb[0].mxu0
      %v797 = vadd.f32 0.0, %v796
      %v798 = vpop.f32.mrb[0].mxu0
      %799 = vdwg.mxu0
      %v802 = vunpack.c.l.b16 %v244
      %v803 = vunpack.c.l.b16 %v245
      %v804 = vpack.c.b16 %v803, %v802
      %v807 = vsel %vm614, %v308, 0
      %v810 = vsel %vm614, %v309, 0
      %v813 = vsel %vm614, %v310, 0
      %v815 = vsel %vm614, %v369, 0
      %v818 = vsel %vm614, %v327, 0
      %v821 = vsel %vm614, %v328, 0
      %v824 = vsel %vm614, %v329, 0
      %v827 = vsel %vm614, %v344, 0
      %v830 = vsel %vm614, %v345, 0
      %v833 = vsel %vm614, %v346, 0
      %v835 = vsel %vm614, %v372, 0
      %v838 = vsel %vm614, %v363, 0
      %v841 = vsel %vm614, %v364, 0
      %v844 = vsel %vm614, %v365, 0
      %846 = vmatprep.subr.bf16.mxu0 0
      %847 = vmatpush1.bf16.msra.mxu0 %v804
      %848 = vmatprep.subr.bf16.mxu0 0
      %849 = vmatpush1.bf16.msra.mxu0 0
      %850 = vmatprep.subr.bf16.mxu0 0
      %851 = vmatpush1.bf16.msra.mxu0 0
      %852 = vmatprep.subr.bf16.mxu0 0
      %853 = vmatpush1.bf16.msra.mxu0 0
      %854 = vmatprep.subr.bf16.mxu0 0
      %855 = vmatpush1.bf16.msra.mxu0 0
      %856 = vmatprep.subr.bf16.mxu0 0
      %857 = vmatpush1.bf16.msra.mxu0 0
      %858 = vmatprep.subr.bf16.mxu0 0
      %859 = vmatpush1.bf16.msra.mxu0 0
      %860 = vmatprep.subr.bf16.mxu0 0
      %861 = vmatpush1.bf16.msra.mxu0 0
      %862 = vmatprep.subr.bf16.mxu0 0
      %863 = vmatpush1.bf16.msra.mxu0 0
      %864 = vmatprep.subr.bf16.mxu0 0
      %865 = vmatpush1.bf16.msra.mxu0 0
      %866 = vmatprep.subr.bf16.mxu0 0
      %867 = vmatpush1.bf16.msra.mxu0 0
      %868 = vmatprep.subr.bf16.mxu0 0
      %869 = vmatpush1.bf16.msra.mxu0 0
      %870 = vmatprep.subr.bf16.mxu0 0
      %871 = vmatpush1.bf16.msra.mxu0 0
      %872 = vmatprep.subr.bf16.mxu0 0
      %873 = vmatpush1.bf16.msra.mxu0 0
      %874 = vmatprep.subr.bf16.mxu0 0
      %875 = vmatpush1.bf16.msra.mxu0 0
      %876 = vmatprep.subr.bf16.mxu0 0
      %877 = vmatpush1.bf16.msra.mxu0 0
      %878 = vmatprep.mubr.bf16.mxu0 0
      %879 = vmatmul.mubr.bf16.gmra.mrb[0].mxu0 %v807
      %v880 = vpop.f32.mrb[0].mxu0
      %v881 = vadd.f32 %v690, %v880
      %v882 = vpop.f32.mrb[0].mxu0
      %v883 = vpop.f32.mrb[0].mxu0
      %v884 = vadd.f32 %v693, %v883
      %v885 = vpop.f32.mrb[0].mxu0
      %886 = vmatprep.mubr.bf16.mxu0 0
      %887 = vmatmul.mubr.bf16.gmra.mrb[0].mxu0 %v810
      %v888 = vpop.f32.mrb[0].mxu0
      %v889 = vadd.f32 %v698, %v888
      %v890 = vpop.f32.mrb[0].mxu0
      %v891 = vpop.f32.mrb[0].mxu0
      %v892 = vadd.f32 %v701, %v891
      %v893 = vpop.f32.mrb[0].mxu0
      %894 = vmatprep.mubr.bf16.mxu0 0
      %895 = vmatmul.mubr.bf16.gmra.mrb[0].mxu0 %v813
      %v896 = vpop.f32.mrb[0].mxu0
      %v897 = vadd.f32 %v706, %v896
      %v898 = vpop.f32.mrb[0].mxu0
      %v899 = vpop.f32.mrb[0].mxu0
      %v900 = vadd.f32 %v709, %v899
      %v901 = vpop.f32.mrb[0].mxu0
      %902 = vmatprep.mubr.bf16.mxu0 0
      %903 = vmatmul.mubr.bf16.gmra.mrb[0].mxu0 %v815
      %v904 = vpop.f32.mrb[0].mxu0
      %v905 = vadd.f32 %v714, %v904
      %v906 = vpop.f32.mrb[0].mxu0
      %v907 = vpop.f32.mrb[0].mxu0
      %v908 = vadd.f32 %v717, %v907
      %v909 = vpop.f32.mrb[0].mxu0
      %910 = vmatprep.mubr.bf16.mxu0 0
      %911 = vmatmul.mubr.bf16.gmra.mrb[0].mxu0 %v818
      %v912 = vpop.f32.mrb[0].mxu0
      %v913 = vadd.f32 %v722, %v912
      %v914 = vpop.f32.mrb[0].mxu0
      %v915 = vpop.f32.mrb[0].mxu0
      %v916 = vadd.f32 %v725, %v915
      %v917 = vpop.f32.mrb[0].mxu0
      %918 = vmatprep.mubr.bf16.mxu0 0
      %919 = vmatmul.mubr.bf16.gmra.mrb[0].mxu0 %v821
      %v920 = vpop.f32.mrb[0].mxu0
      %v921 = vadd.f32 %v730, %v920
      %v922 = vpop.f32.mrb[0].mxu0
      %v923 = vpop.f32.mrb[0].mxu0
      %v924 = vadd.f32 %v733, %v923
      %v925 = vpop.f32.mrb[0].mxu0
      %926 = vmatprep.mubr.bf16.mxu0 0
      %927 = vmatmul.mubr.bf16.gmra.mrb[0].mxu0 %v824
      %v928 = vpop.f32.mrb[0].mxu0
      %v929 = vadd.f32 %v738, %v928
      %v930 = vpop.f32.mrb[0].mxu0
      %v931 = vpop.f32.mrb[0].mxu0
      %v932 = vadd.f32 %v741, %v931
      %v933 = vpop.f32.mrb[0].mxu0
      %934 = vmatprep.mubr.bf16.mxu0 0
      %935 = vmatmul.mubr.bf16.gmra.mrb[0].mxu0 %v827
      %v936 = vpop.f32.mrb[0].mxu0
      %v937 = vadd.f32 %v746, %v936
      %v938 = vpop.f32.mrb[0].mxu0
      %v939 = vpop.f32.mrb[0].mxu0
      %v940 = vadd.f32 %v749, %v939
      %v941 = vpop.f32.mrb[0].mxu0
      %942 = vmatprep.mubr.bf16.mxu0 0
      %943 = vmatmul.mubr.bf16.gmra.mrb[0].mxu0 %v830
      %v944 = vpop.f32.mrb[0].mxu0
      %v945 = vadd.f32 %v754, %v944
      %v946 = vpop.f32.mrb[0].mxu0
      %v947 = vpop.f32.mrb[0].mxu0
      %v948 = vadd.f32 %v757, %v947
      %v949 = vpop.f32.mrb[0].mxu0
      %950 = vmatprep.mubr.bf16.mxu0 0
      %951 = vmatmul.mubr.bf16.gmra.mrb[0].mxu0 %v833
      %v952 = vpop.f32.mrb[0].mxu0
      %v953 = vadd.f32 %v762, %v952
      %v954 = vpop.f32.mrb[0].mxu0
      %v955 = vpop.f32.mrb[0].mxu0
      %v956 = vadd.f32 %v765, %v955
      %v957 = vpop.f32.mrb[0].mxu0
      %958 = vmatprep.mubr.bf16.mxu0 0
      %959 = vmatmul.mubr.bf16.gmra.mrb[0].mxu0 %v835
      %v960 = vpop.f32.mrb[0].mxu0
      %v961 = vadd.f32 %v770, %v960
      %v962 = vpop.f32.mrb[0].mxu0
      %v963 = vpop.f32.mrb[0].mxu0
      %v964 = vadd.f32 %v773, %v963
      %v965 = vpop.f32.mrb[0].mxu0
      %966 = vmatprep.mubr.bf16.mxu0 0
      %967 = vmatmul.mubr.bf16.gmra.mrb[0].mxu0 %v838
      %v968 = vpop.f32.mrb[0].mxu0
      %v969 = vadd.f32 %v778, %v968
      %v970 = vpop.f32.mrb[0].mxu0
      %v971 = vpop.f32.mrb[0].mxu0
      %v972 = vadd.f32 %v781, %v971
      %v973 = vpop.f32.mrb[0].mxu0
      %974 = vmatprep.mubr.bf16.mxu0 0
      %975 = vmatmul.mubr.bf16.gmra.mrb[0].mxu0 %v841
      %v976 = vpop.f32.mrb[0].mxu0
      %v977 = vadd.f32 %v786, %v976
      %v978 = vpop.f32.mrb[0].mxu0
      %v979 = vpop.f32.mrb[0].mxu0
      %v980 = vadd.f32 %v789, %v979
      %v981 = vpop.f32.mrb[0].mxu0
      %982 = vmatprep.mubr.bf16.mxu0 0
      %983 = vmatmul.mubr.bf16.gmra.mrb[0].mxu0 %v844
      %v984 = vpop.f32.mrb[0].mxu0
      %v985 = vadd.f32 %v794, %v984
      %v986 = vpop.f32.mrb[0].mxu0
      %v987 = vpop.f32.mrb[0].mxu0
      %v988 = vadd.f32 %v797, %v987
      %v989 = vpop.f32.mrb[0].mxu0
      %990 = vdwg.mxu0
      %v992 = vshrl.u32 %v190, 16
      %v994 = vrot.slane %v992, 4
      %v995 = vshll.u32 %v190, 16
      %v997 = vrot.slane %v995, 5
      %v998 = vor.u32 %v994, %v997
      %v999 = vrot.slane %v998, 4
      %v1001 = vshll.u32 %v191, 16
      %v1003 = vrot.slane %v1001, 5
      %v1004 = vsel %vm375, %v999, %v1003
      %v1006 = vshrl.u32 %v192, 16
      %v1008 = vrot.slane %v1006, 4
      %v1009 = vshll.u32 %v192, 16
      %v1011 = vrot.slane %v1009, 5
      %v1012 = vor.u32 %v1008, %v1011
      %v1013 = vrot.slane %v1012, 4
      %v1015 = vshll.u32 %v193, 16
      %v1017 = vrot.slane %v1015, 5
      %v1018 = vsel %vm375, %v1013, %v1017
      %v1020 = vshrl.u32 %v194, 16
      %v1022 = vrot.slane %v1020, 4
      %v1023 = vshll.u32 %v194, 16
      %v1025 = vrot.slane %v1023, 5
      %v1026 = vor.u32 %v1022, %v1025
      %v1027 = vrot.slane %v1026, 4
      %v1029 = vshll.u32 %v195, 16
      %v1031 = vrot.slane %v1029, 5
      %v1032 = vsel %vm375, %v1027, %v1031
      %v1034 = vshrl.u32 %v196, 16
      %v1036 = vrot.slane %v1034, 4
      %v1037 = vshll.u32 %v196, 16
      %v1039 = vrot.slane %v1037, 5
      %v1040 = vor.u32 %v1036, %v1039
      %v1041 = vrot.slane %v1040, 4
      %v1043 = vshll.u32 %v197, 16
      %v1045 = vrot.slane %v1043, 5
      %v1046 = vsel %vm375, %v1041, %v1045
      %v1048 = vshrl.u32 %v198, 16
      %v1050 = vrot.slane %v1048, 4
      %v1051 = vshll.u32 %v198, 16
      %v1053 = vrot.slane %v1051, 5
      %v1054 = vor.u32 %v1050, %v1053
      %v1055 = vrot.slane %v1054, 4
      %v1057 = vshll.u32 %v199, 16
      %v1059 = vrot.slane %v1057, 5
      %v1060 = vsel %vm375, %v1055, %v1059
      %v1062 = vshrl.u32 %v200, 16
      %v1064 = vrot.slane %v1062, 4
      %v1065 = vshll.u32 %v200, 16
      %v1067 = vrot.slane %v1065, 5
      %v1068 = vor.u32 %v1064, %v1067
      %v1069 = vrot.slane %v1068, 4
      %v1071 = vshll.u32 %v201, 16
      %v1073 = vrot.slane %v1071, 5
      %v1074 = vsel %vm375, %v1069, %v1073
      %v1076 = vshrl.u32 %v202, 16
      %v1078 = vrot.slane %v1076, 4
      %v1079 = vshll.u32 %v202, 16
      %v1081 = vrot.slane %v1079, 5
      %v1082 = vor.u32 %v1078, %v1081
      %v1083 = vrot.slane %v1082, 4
      %v1085 = vshll.u32 %v203, 16
      %v1087 = vrot.slane %v1085, 5
      %v1088 = vsel %vm375, %v1083, %v1087
      %v1090 = vshrl.u32 %v226, 16
      %v1092 = vrot.slane %v1090, 4
      %v1093 = vshll.u32 %v226, 16
      %v1095 = vrot.slane %v1093, 5
      %v1096 = vor.u32 %v1092, %v1095
      %v1097 = vrot.slane %v1096, 4
      %v1099 = vshll.u32 %v227, 16
      %v1101 = vrot.slane %v1099, 5
      %v1102 = vsel %vm375, %v1097, %v1101
      %v1104 = vshrl.u32 %v228, 16
      %v1106 = vrot.slane %v1104, 4
      %v1107 = vshll.u32 %v228, 16
      %v1109 = vrot.slane %v1107, 5
      %v1110 = vor.u32 %v1106, %v1109
      %v1111 = vrot.slane %v1110, 4
      %v1113 = vshll.u32 %v229, 16
      %v1115 = vrot.slane %v1113, 5
      %v1116 = vsel %vm375, %v1111, %v1115
      %v1118 = vshrl.u32 %v230, 16
      %v1120 = vrot.slane %v1118, 4
      %v1121 = vshll.u32 %v230, 16
      %v1123 = vrot.slane %v1121, 5
      %v1124 = vor.u32 %v1120, %v1123
      %v1125 = vrot.slane %v1124, 4
      %v1127 = vshll.u32 %v231, 16
      %v1129 = vrot.slane %v1127, 5
      %v1130 = vsel %vm375, %v1125, %v1129
      %v1132 = vshrl.u32 %v232, 16
      %v1134 = vrot.slane %v1132, 4
      %v1135 = vshll.u32 %v232, 16
      %v1137 = vrot.slane %v1135, 5
      %v1138 = vor.u32 %v1134, %v1137
      %v1139 = vrot.slane %v1138, 4
      %v1141 = vshll.u32 %v233, 16
      %v1143 = vrot.slane %v1141, 5
      %v1144 = vsel %vm375, %v1139, %v1143
      %v1146 = vshrl.u32 %v234, 16
      %v1148 = vrot.slane %v1146, 4
      %v1149 = vshll.u32 %v234, 16
      %v1151 = vrot.slane %v1149, 5
      %v1152 = vor.u32 %v1148, %v1151
      %v1153 = vrot.slane %v1152, 4
      %v1155 = vshll.u32 %v235, 16
      %v1157 = vrot.slane %v1155, 5
      %v1158 = vsel %vm375, %v1153, %v1157
      %v1160 = vshrl.u32 %v236, 16
      %v1162 = vrot.slane %v1160, 4
      %v1163 = vshll.u32 %v236, 16
      %v1165 = vrot.slane %v1163, 5
      %v1166 = vor.u32 %v1162, %v1165
      %v1167 = vrot.slane %v1166, 4
      %v1169 = vshll.u32 %v237, 16
      %v1171 = vrot.slane %v1169, 5
      %v1172 = vsel %vm375, %v1167, %v1171
      %v1174 = vshrl.u32 %v238, 16
      %v1176 = vrot.slane %v1174, 4
      %v1177 = vshll.u32 %v238, 16
      %v1179 = vrot.slane %v1177, 5
      %v1180 = vor.u32 %v1176, %v1179
      %v1181 = vrot.slane %v1180, 4
      %v1183 = vshll.u32 %v239, 16
      %v1185 = vrot.slane %v1183, 5
      %v1186 = vsel %vm375, %v1181, %v1185
      %v1187 = vpack.c.b16 %v577, %v576
      %v1188 = vpack.c.b16 %v579, %v578
      %v1189 = vpack.c.b16 %v581, %v580
      %v1190 = vpack.c.b16 %v582, %v582
      %v1191 = vunpack.c.l.b16 %v1004
      %v1192 = vunpack.c.l.b16 %v1018
      %v1193 = vunpack.c.l.b16 %v1032
      %v1194 = vunpack.c.l.b16 %v1046
      %v1195 = vunpack.c.l.b16 %v1060
      %v1196 = vunpack.c.l.b16 %v1074
      %v1197 = vunpack.c.l.b16 %v1088
      %v1198 = vpack.c.b16 %v1191, %v1191
      %v1199 = vpack.c.b16 %v1193, %v1192
      %v1200 = vpack.c.b16 %v1195, %v1194
      %v1201 = vpack.c.b16 %v1197, %v1196
      %v1202 = vpack.c.b16 %v592, %v591
      %v1203 = vpack.c.b16 %v594, %v593
      %v1204 = vpack.c.b16 %v596, %v595
      %v1205 = vpack.c.b16 %v597, %v597
      %v1206 = vunpack.c.l.b16 %v1102
      %v1207 = vunpack.c.l.b16 %v1116
      %v1208 = vunpack.c.l.b16 %v1130
      %v1209 = vunpack.c.l.b16 %v1144
      %v1210 = vunpack.c.l.b16 %v1158
      %v1211 = vunpack.c.l.b16 %v1172
      %v1212 = vunpack.c.l.b16 %v1186
      %v1213 = vpack.c.b16 %v1206, %v1206
      %v1214 = vpack.c.b16 %v1208, %v1207
      %v1215 = vpack.c.b16 %v1210, %v1209
      %v1216 = vpack.c.b16 %v1212, %v1211
      %v1219 = vsel %vm366, %v1190, %v1198
      %v1222 = vsel %vm366, %v1205, %v1213
      %v1225 = vunpack.c.l.b16 %v248
      %v1226 = vunpack.c.l.b16 %v249
      %v1227 = vpack.c.b16 %v1226, %v1225
      %v1230 = vsel %vm614, %v1187, 0
      %v1233 = vsel %vm614, %v1188, 0
      %v1236 = vsel %vm614, %v1189, 0
      %v1238 = vsel %vm614, %v1219, 0
      %v1241 = vsel %vm614, %v1199, 0
      %v1244 = vsel %vm614, %v1200, 0
      %v1247 = vsel %vm614, %v1201, 0
      %v1250 = vsel %vm614, %v1202, 0
      %v1253 = vsel %vm614, %v1203, 0
      %v1256 = vsel %vm614, %v1204, 0
      %v1258 = vsel %vm614, %v1222, 0
      %v1261 = vsel %vm614, %v1214, 0
      %v1264 = vsel %vm614, %v1215, 0
      %v1267 = vsel %vm614, %v1216, 0
      %1269 = vmatprep.subr.bf16.mxu0 0
      %1270 = vmatpush1.bf16.msra.mxu0 %v1227
      %1271 = vmatprep.subr.bf16.mxu0 0
      %1272 = vmatpush1.bf16.msra.mxu0 0
      %1273 = vmatprep.subr.bf16.mxu0 0
      %1274 = vmatpush1.bf16.msra.mxu0 0
      %1275 = vmatprep.subr.bf16.mxu0 0
      %1276 = vmatpush1.bf16.msra.mxu0 0
      %1277 = vmatprep.subr.bf16.mxu0 0
      %1278 = vmatpush1.bf16.msra.mxu0 0
      %1279 = vmatprep.subr.bf16.mxu0 0
      %1280 = vmatpush1.bf16.msra.mxu0 0
      %1281 = vmatprep.subr.bf16.mxu0 0
      %1282 = vmatpush1.bf16.msra.mxu0 0
      %1283 = vmatprep.subr.bf16.mxu0 0
      %1284 = vmatpush1.bf16.msra.mxu0 0
      %1285 = vmatprep.subr.bf16.mxu0 0
      %1286 = vmatpush1.bf16.msra.mxu0 0
      %1287 = vmatprep.subr.bf16.mxu0 0
      %1288 = vmatpush1.bf16.msra.mxu0 0
      %1289 = vmatprep.subr.bf16.mxu0 0
      %1290 = vmatpush1.bf16.msra.mxu0 0
      %1291 = vmatprep.subr.bf16.mxu0 0
      %1292 = vmatpush1.bf16.msra.mxu0 0
      %1293 = vmatprep.subr.bf16.mxu0 0
      %1294 = vmatpush1.bf16.msra.mxu0 0
      %1295 = vmatprep.subr.bf16.mxu0 0
      %1296 = vmatpush1.bf16.msra.mxu0 0
      %1297 = vmatprep.subr.bf16.mxu0 0
      %1298 = vmatpush1.bf16.msra.mxu0 0
      %1299 = vmatprep.subr.bf16.mxu0 0
      %1300 = vmatpush1.bf16.msra.mxu0 0
      %1301 = vmatprep.mubr.bf16.mxu0 0
      %1302 = vmatmul.mubr.bf16.gmra.mrb[0].mxu0 %v1230
      %v1303 = vpop.f32.mrb[0].mxu0
      %v1304 = vadd.f32 0.0, %v1303
      %v1305 = vpop.f32.mrb[0].mxu0
      %v1306 = vpop.f32.mrb[0].mxu0
      %v1307 = vadd.f32 0.0, %v1306
      %v1308 = vpop.f32.mrb[0].mxu0
      %1309 = vmatprep.mubr.bf16.mxu0 0
      %1310 = vmatmul.mubr.bf16.gmra.mrb[0].mxu0 %v1233
      %v1311 = vpop.f32.mrb[0].mxu0
      %v1312 = vadd.f32 0.0, %v1311
      %v1313 = vpop.f32.mrb[0].mxu0
      %v1314 = vpop.f32.mrb[0].mxu0
      %v1315 = vadd.f32 0.0, %v1314
      %v1316 = vpop.f32.mrb[0].mxu0
      %1317 = vmatprep.mubr.bf16.mxu0 0
      %1318 = vmatmul.mubr.bf16.gmra.mrb[0].mxu0 %v1236
      %v1319 = vpop.f32.mrb[0].mxu0
      %v1320 = vadd.f32 0.0, %v1319
      %v1321 = vpop.f32.mrb[0].mxu0
      %v1322 = vpop.f32.mrb[0].mxu0
      %v1323 = vadd.f32 0.0, %v1322
      %v1324 = vpop.f32.mrb[0].mxu0
      %1325 = vmatprep.mubr.bf16.mxu0 0
      %1326 = vmatmul.mubr.bf16.gmra.mrb[0].mxu0 %v1238
      %v1327 = vpop.f32.mrb[0].mxu0
      %v1328 = vadd.f32 0.0, %v1327
      %v1329 = vpop.f32.mrb[0].mxu0
      %v1330 = vpop.f32.mrb[0].mxu0
      %v1331 = vadd.f32 0.0, %v1330
      %v1332 = vpop.f32.mrb[0].mxu0
      %1333 = vmatprep.mubr.bf16.mxu0 0
      %1334 = vmatmul.mubr.bf16.gmra.mrb[0].mxu0 %v1241
      %v1335 = vpop.f32.mrb[0].mxu0
      %v1336 = vadd.f32 0.0, %v1335
      %v1337 = vpop.f32.mrb[0].mxu0
      %v1338 = vpop.f32.mrb[0].mxu0
      %v1339 = vadd.f32 0.0, %v1338
      %v1340 = vpop.f32.mrb[0].mxu0
      %1341 = vmatprep.mubr.bf16.mxu0 0
      %1342 = vmatmul.mubr.bf16.gmra.mrb[0].mxu0 %v1244
      %v1343 = vpop.f32.mrb[0].mxu0
      %v1344 = vadd.f32 0.0, %v1343
      %v1345 = vpop.f32.mrb[0].mxu0
      %v1346 = vpop.f32.mrb[0].mxu0
      %v1347 = vadd.f32 0.0, %v1346
      %v1348 = vpop.f32.mrb[0].mxu0
      %1349 = vmatprep.mubr.bf16.mxu0 0
      %1350 = vmatmul.mubr.bf16.gmra.mrb[0].mxu0 %v1247
      %v1351 = vpop.f32.mrb[0].mxu0
      %v1352 = vadd.f32 0.0, %v1351
      %v1353 = vpop.f32.mrb[0].mxu0
      %v1354 = vpop.f32.mrb[0].mxu0
      %v1355 = vadd.f32 0.0, %v1354
      %v1356 = vpop.f32.mrb[0].mxu0
      %1357 = vmatprep.mubr.bf16.mxu0 0
      %1358 = vmatmul.mubr.bf16.gmra.mrb[0].mxu0 %v1250
      %v1359 = vpop.f32.mrb[0].mxu0
      %v1360 = vadd.f32 0.0, %v1359
      %v1361 = vpop.f32.mrb[0].mxu0
      %v1362 = vpop.f32.mrb[0].mxu0
      %v1363 = vadd.f32 0.0, %v1362
      %v1364 = vpop.f32.mrb[0].mxu0
      %1365 = vmatprep.mubr.bf16.mxu0 0
      %1366 = vmatmul.mubr.bf16.gmra.mrb[0].mxu0 %v1253
      %v1367 = vpop.f32.mrb[0].mxu0
      %v1368 = vadd.f32 0.0, %v1367
      %v1369 = vpop.f32.mrb[0].mxu0
      %v1370 = vpop.f32.mrb[0].mxu0
      %v1371 = vadd.f32 0.0, %v1370
      %v1372 = vpop.f32.mrb[0].mxu0
      %1373 = vmatprep.mubr.bf16.mxu0 0
      %1374 = vmatmul.mubr.bf16.gmra.mrb[0].mxu0 %v1256
      %v1375 = vpop.f32.mrb[0].mxu0
      %v1376 = vadd.f32 0.0, %v1375
      %v1377 = vpop.f32.mrb[0].mxu0
      %v1378 = vpop.f32.mrb[0].mxu0
      %v1379 = vadd.f32 0.0, %v1378
      %v1380 = vpop.f32.mrb[0].mxu0
      %1381 = vmatprep.mubr.bf16.mxu0 0
      %1382 = vmatmul.mubr.bf16.gmra.mrb[0].mxu0 %v1258
      %v1383 = vpop.f32.mrb[0].mxu0
      %v1384 = vadd.f32 0.0, %v1383
      %v1385 = vpop.f32.mrb[0].mxu0
      %v1386 = vpop.f32.mrb[0].mxu0
      %v1387 = vadd.f32 0.0, %v1386
      %v1388 = vpop.f32.mrb[0].mxu0
      %1389 = vmatprep.mubr.bf16.mxu0 0
      %1390 = vmatmul.mubr.bf16.gmra.mrb[0].mxu0 %v1261
      %v1391 = vpop.f32.mrb[0].mxu0
      %v1392 = vadd.f32 0.0, %v1391
      %v1393 = vpop.f32.mrb[0].mxu0
      %v1394 = vpop.f32.mrb[0].mxu0
      %v1395 = vadd.f32 0.0, %v1394
      %v1396 = vpop.f32.mrb[0].mxu0
      %1397 = vmatprep.mubr.bf16.mxu0 0
      %1398 = vmatmul.mubr.bf16.gmra.mrb[0].mxu0 %v1264
      %v1399 = vpop.f32.mrb[0].mxu0
      %v1400 = vadd.f32 0.0, %v1399
      %v1401 = vpop.f32.mrb[0].mxu0
      %v1402 = vpop.f32.mrb[0].mxu0
      %v1403 = vadd.f32 0.0, %v1402
      %v1404 = vpop.f32.mrb[0].mxu0
      %1405 = vmatprep.mubr.bf16.mxu0 0
      %1406 = vmatmul.mubr.bf16.gmra.mrb[0].mxu0 %v1267
      %v1407 = vpop.f32.mrb[0].mxu0
      %v1408 = vadd.f32 0.0, %v1407
      %v1409 = vpop.f32.mrb[0].mxu0
      %v1410 = vpop.f32.mrb[0].mxu0
      %v1411 = vadd.f32 0.0, %v1410
      %v1412 = vpop.f32.mrb[0].mxu0
      %1413 = vdwg.mxu0
      %v1414 = vadd.f32 %v881, %v1304
      %v1415 = vadd.f32 %v884, %v1307
      %v1416 = vadd.f32 %v889, %v1312
      %v1417 = vadd.f32 %v892, %v1315
      %v1418 = vadd.f32 %v897, %v1320
      %v1419 = vadd.f32 %v900, %v1323
      %v1420 = vadd.f32 %v905, %v1328
      %v1421 = vadd.f32 %v908, %v1331
      %v1422 = vadd.f32 %v913, %v1336
      %v1423 = vadd.f32 %v916, %v1339
      %v1424 = vadd.f32 %v921, %v1344
      %v1425 = vadd.f32 %v924, %v1347
      %v1426 = vadd.f32 %v929, %v1352
      %v1427 = vadd.f32 %v932, %v1355
      %v1428 = vadd.f32 %v937, %v1360
      %v1429 = vadd.f32 %v940, %v1363
      %v1430 = vadd.f32 %v945, %v1368
      %v1431 = vadd.f32 %v948, %v1371
      %v1432 = vadd.f32 %v953, %v1376
      %v1433 = vadd.f32 %v956, %v1379
      %v1434 = vadd.f32 %v961, %v1384
      %v1435 = vadd.f32 %v964, %v1387
      %v1436 = vadd.f32 %v969, %v1392
      %v1437 = vadd.f32 %v972, %v1395
      %v1438 = vadd.f32 %v977, %v1400
      %v1439 = vadd.f32 %v980, %v1403
      %v1440 = vadd.f32 %v985, %v1408
      %v1441 = vadd.f32 %v988, %v1411
      %vm1449 = vcmask 1042432
      %vm1450 = vcmask 1046532
      %vm1451 = vmor %vm1449, %vm1450
      %v1452 = vrot.slane %v172, 5
      %v1453 = vrot.slane %v1452, 4
      %v1454 = vrot.slane %v173, 5
      %v1455 = vsel %vm1451, %v1453, %v1454
      %v1456 = vrot.slane %v174, 5
      %v1457 = vrot.slane %v1456, 4
      %v1458 = vrot.slane %v175, 5
      %v1459 = vsel %vm1451, %v1457, %v1458
      %v1460 = vrot.slane %v176, 5
      %v1461 = vrot.slane %v1460, 4
      %v1462 = vrot.slane %v177, 5
      %v1463 = vsel %vm1451, %v1461, %v1462
      %v1464 = vrot.slane %v178, 5
      %v1465 = vrot.slane %v1464, 4
      %v1466 = vrot.slane %v179, 5
      %v1467 = vsel %vm1451, %v1465, %v1466
      %v1468 = vrot.slane %v180, 5
      %v1469 = vrot.slane %v1468, 4
      %v1470 = vrot.slane %v181, 5
      %v1471 = vsel %vm1451, %v1469, %v1470
      %v1472 = vrot.slane %v182, 5
      %v1473 = vrot.slane %v1472, 4
      %v1474 = vrot.slane %v183, 5
      %v1475 = vsel %vm1451, %v1473, %v1474
      %v1476 = vrot.slane %v184, 5
      %v1477 = vrot.slane %v1476, 4
      %v1478 = vrot.slane %v185, 5
      %v1479 = vsel %vm1451, %v1477, %v1478
      %v1487 = vrot.slane %v208, 5
      %v1488 = vrot.slane %v1487, 4
      %v1489 = vrot.slane %v209, 5
      %v1490 = vsel %vm1451, %v1488, %v1489
      %v1491 = vrot.slane %v210, 5
      %v1492 = vrot.slane %v1491, 4
      %v1493 = vrot.slane %v211, 5
      %v1494 = vsel %vm1451, %v1492, %v1493
      %v1495 = vrot.slane %v212, 5
      %v1496 = vrot.slane %v1495, 4
      %v1497 = vrot.slane %v213, 5
      %v1498 = vsel %vm1451, %v1496, %v1497
      %v1499 = vrot.slane %v214, 5
      %v1500 = vrot.slane %v1499, 4
      %v1501 = vrot.slane %v215, 5
      %v1502 = vsel %vm1451, %v1500, %v1501
      %v1503 = vrot.slane %v216, 5
      %v1504 = vrot.slane %v1503, 4
      %v1505 = vrot.slane %v217, 5
      %v1506 = vsel %vm1451, %v1504, %v1505
      %v1507 = vrot.slane %v218, 5
      %v1508 = vrot.slane %v1507, 4
      %v1509 = vrot.slane %v219, 5
      %v1510 = vsel %vm1451, %v1508, %v1509
      %v1511 = vrot.slane %v220, 5
      %v1512 = vrot.slane %v1511, 4
      %v1513 = vrot.slane %v221, 5
      %v1514 = vsel %vm1451, %v1512, %v1513
      %v1515 = vpack.c.b16 %v1192, %v1191
      %v1516 = vpack.c.b16 %v1194, %v1193
      %v1517 = vpack.c.b16 %v1196, %v1195
      %v1518 = vpack.c.b16 %v1197, %v1197
      %v1519 = vunpack.c.l.b16 %v1455
      %v1520 = vunpack.c.l.b16 %v1459
      %v1521 = vunpack.c.l.b16 %v1463
      %v1522 = vunpack.c.l.b16 %v1467
      %v1523 = vunpack.c.l.b16 %v1471
      %v1524 = vunpack.c.l.b16 %v1475
      %v1525 = vunpack.c.l.b16 %v1479
      %v1526 = vpack.c.b16 %v1519, %v1519
      %v1527 = vpack.c.b16 %v1521, %v1520
      %v1528 = vpack.c.b16 %v1523, %v1522
      %v1529 = vpack.c.b16 %v1525, %v1524
      %v1530 = vpack.c.b16 %v1207, %v1206
      %v1531 = vpack.c.b16 %v1209, %v1208
      %v1532 = vpack.c.b16 %v1211, %v1210
      %v1533 = vpack.c.b16 %v1212, %v1212
      %v1534 = vunpack.c.l.b16 %v1490
      %v1535 = vunpack.c.l.b16 %v1494
      %v1536 = vunpack.c.l.b16 %v1498
      %v1537 = vunpack.c.l.b16 %v1502
      %v1538 = vunpack.c.l.b16 %v1506
      %v1539 = vunpack.c.l.b16 %v1510
      %v1540 = vunpack.c.l.b16 %v1514
      %v1541 = vpack.c.b16 %v1534, %v1534
      %v1542 = vpack.c.b16 %v1536, %v1535
      %v1543 = vpack.c.b16 %v1538, %v1537
      %v1544 = vpack.c.b16 %v1540, %v1539
      %v1547 = vsel %vm366, %v1518, %v1526
      %v1550 = vsel %vm366, %v1533, %v1541
      %v1553 = vunpack.c.l.b16 %v250
      %v1554 = vunpack.c.l.b16 %v251
      %v1555 = vpack.c.b16 %v1554, %v1553
      %v1558 = vsel %vm614, %v1515, 0
      %v1561 = vsel %vm614, %v1516, 0
      %v1564 = vsel %vm614, %v1517, 0
      %v1566 = vsel %vm614, %v1547, 0
      %v1569 = vsel %vm614, %v1527, 0
      %v1572 = vsel %vm614, %v1528, 0
      %v1575 = vsel %vm614, %v1529, 0
      %v1578 = vsel %vm614, %v1530, 0
      %v1581 = vsel %vm614, %v1531, 0
      %v1584 = vsel %vm614, %v1532, 0
      %v1586 = vsel %vm614, %v1550, 0
      %v1589 = vsel %vm614, %v1542, 0
      %v1592 = vsel %vm614, %v1543, 0
      %v1595 = vsel %vm614, %v1544, 0
      %1597 = vmatprep.subr.bf16.mxu0 0
      %1598 = vmatpush1.bf16.msra.mxu0 %v1555
      %1599 = vmatprep.subr.bf16.mxu0 0
      %1600 = vmatpush1.bf16.msra.mxu0 0
      %1601 = vmatprep.subr.bf16.mxu0 0
      %1602 = vmatpush1.bf16.msra.mxu0 0
      %1603 = vmatprep.subr.bf16.mxu0 0
      %1604 = vmatpush1.bf16.msra.mxu0 0
      %1605 = vmatprep.subr.bf16.mxu0 0
      %1606 = vmatpush1.bf16.msra.mxu0 0
      %1607 = vmatprep.subr.bf16.mxu0 0
      %1608 = vmatpush1.bf16.msra.mxu0 0
      %1609 = vmatprep.subr.bf16.mxu0 0
      %1610 = vmatpush1.bf16.msra.mxu0 0
      %1611 = vmatprep.subr.bf16.mxu0 0
      %1612 = vmatpush1.bf16.msra.mxu0 0
      %1613 = vmatprep.subr.bf16.mxu0 0
      %1614 = vmatpush1.bf16.msra.mxu0 0
      %1615 = vmatprep.subr.bf16.mxu0 0
      %1616 = vmatpush1.bf16.msra.mxu0 0
      %1617 = vmatprep.subr.bf16.mxu0 0
      %1618 = vmatpush1.bf16.msra.mxu0 0
      %1619 = vmatprep.subr.bf16.mxu0 0
      %1620 = vmatpush1.bf16.msra.mxu0 0
      %1621 = vmatprep.subr.bf16.mxu0 0
      %1622 = vmatpush1.bf16.msra.mxu0 0
      %1623 = vmatprep.subr.bf16.mxu0 0
      %1624 = vmatpush1.bf16.msra.mxu0 0
      %1625 = vmatprep.subr.bf16.mxu0 0
      %1626 = vmatpush1.bf16.msra.mxu0 0
      %1627 = vmatprep.subr.bf16.mxu0 0
      %1628 = vmatpush1.bf16.msra.mxu0 0
      %1629 = vmatprep.mubr.bf16.mxu0 0
      %1630 = vmatmul.mubr.bf16.gmra.mrb[0].mxu0 %v1558
      %v1631 = vpop.f32.mrb[0].mxu0
      %v1632 = vadd.f32 0.0, %v1631
      %v1633 = vpop.f32.mrb[0].mxu0
      %v1634 = vpop.f32.mrb[0].mxu0
      %v1635 = vadd.f32 0.0, %v1634
      %v1636 = vpop.f32.mrb[0].mxu0
      %1637 = vmatprep.mubr.bf16.mxu0 0
      %1638 = vmatmul.mubr.bf16.gmra.mrb[0].mxu0 %v1561
      %v1639 = vpop.f32.mrb[0].mxu0
      %v1640 = vadd.f32 0.0, %v1639
      %v1641 = vpop.f32.mrb[0].mxu0
      %v1642 = vpop.f32.mrb[0].mxu0
      %v1643 = vadd.f32 0.0, %v1642
      %v1644 = vpop.f32.mrb[0].mxu0
      %1645 = vmatprep.mubr.bf16.mxu0 0
      %1646 = vmatmul.mubr.bf16.gmra.mrb[0].mxu0 %v1564
      %v1647 = vpop.f32.mrb[0].mxu0
      %v1648 = vadd.f32 0.0, %v1647
      %v1649 = vpop.f32.mrb[0].mxu0
      %v1650 = vpop.f32.mrb[0].mxu0
      %v1651 = vadd.f32 0.0, %v1650
      %v1652 = vpop.f32.mrb[0].mxu0
      %1653 = vmatprep.mubr.bf16.mxu0 0
      %1654 = vmatmul.mubr.bf16.gmra.mrb[0].mxu0 %v1566
      %v1655 = vpop.f32.mrb[0].mxu0
      %v1656 = vadd.f32 0.0, %v1655
      %v1657 = vpop.f32.mrb[0].mxu0
      %v1658 = vpop.f32.mrb[0].mxu0
      %v1659 = vadd.f32 0.0, %v1658
      %v1660 = vpop.f32.mrb[0].mxu0
      %1661 = vmatprep.mubr.bf16.mxu0 0
      %1662 = vmatmul.mubr.bf16.gmra.mrb[0].mxu0 %v1569
      %v1663 = vpop.f32.mrb[0].mxu0
      %v1664 = vadd.f32 0.0, %v1663
      %v1665 = vpop.f32.mrb[0].mxu0
      %v1666 = vpop.f32.mrb[0].mxu0
      %v1667 = vadd.f32 0.0, %v1666
      %v1668 = vpop.f32.mrb[0].mxu0
      %1669 = vmatprep.mubr.bf16.mxu0 0
      %1670 = vmatmul.mubr.bf16.gmra.mrb[0].mxu0 %v1572
      %v1671 = vpop.f32.mrb[0].mxu0
      %v1672 = vadd.f32 0.0, %v1671
      %v1673 = vpop.f32.mrb[0].mxu0
      %v1674 = vpop.f32.mrb[0].mxu0
      %v1675 = vadd.f32 0.0, %v1674
      %v1676 = vpop.f32.mrb[0].mxu0
      %1677 = vmatprep.mubr.bf16.mxu0 0
      %1678 = vmatmul.mubr.bf16.gmra.mrb[0].mxu0 %v1575
      %v1679 = vpop.f32.mrb[0].mxu0
      %v1680 = vadd.f32 0.0, %v1679
      %v1681 = vpop.f32.mrb[0].mxu0
      %v1682 = vpop.f32.mrb[0].mxu0
      %v1683 = vadd.f32 0.0, %v1682
      %v1684 = vpop.f32.mrb[0].mxu0
      %1685 = vmatprep.mubr.bf16.mxu0 0
      %1686 = vmatmul.mubr.bf16.gmra.mrb[0].mxu0 %v1578
      %v1687 = vpop.f32.mrb[0].mxu0
      %v1688 = vadd.f32 0.0, %v1687
      %v1689 = vpop.f32.mrb[0].mxu0
      %v1690 = vpop.f32.mrb[0].mxu0
      %v1691 = vadd.f32 0.0, %v1690
      %v1692 = vpop.f32.mrb[0].mxu0
      %1693 = vmatprep.mubr.bf16.mxu0 0
      %1694 = vmatmul.mubr.bf16.gmra.mrb[0].mxu0 %v1581
      %v1695 = vpop.f32.mrb[0].mxu0
      %v1696 = vadd.f32 0.0, %v1695
      %v1697 = vpop.f32.mrb[0].mxu0
      %v1698 = vpop.f32.mrb[0].mxu0
      %v1699 = vadd.f32 0.0, %v1698
      %v1700 = vpop.f32.mrb[0].mxu0
      %1701 = vmatprep.mubr.bf16.mxu0 0
      %1702 = vmatmul.mubr.bf16.gmra.mrb[0].mxu0 %v1584
      %v1703 = vpop.f32.mrb[0].mxu0
      %v1704 = vadd.f32 0.0, %v1703
      %v1705 = vpop.f32.mrb[0].mxu0
      %v1706 = vpop.f32.mrb[0].mxu0
      %v1707 = vadd.f32 0.0, %v1706
      %v1708 = vpop.f32.mrb[0].mxu0
      %1709 = vmatprep.mubr.bf16.mxu0 0
      %1710 = vmatmul.mubr.bf16.gmra.mrb[0].mxu0 %v1586
      %v1711 = vpop.f32.mrb[0].mxu0
      %v1712 = vadd.f32 0.0, %v1711
      %v1713 = vpop.f32.mrb[0].mxu0
      %v1714 = vpop.f32.mrb[0].mxu0
      %v1715 = vadd.f32 0.0, %v1714
      %v1716 = vpop.f32.mrb[0].mxu0
      %1717 = vmatprep.mubr.bf16.mxu0 0
      %1718 = vmatmul.mubr.bf16.gmra.mrb[0].mxu0 %v1589
      %v1719 = vpop.f32.mrb[0].mxu0
      %v1720 = vadd.f32 0.0, %v1719
      %v1721 = vpop.f32.mrb[0].mxu0
      %v1722 = vpop.f32.mrb[0].mxu0
      %v1723 = vadd.f32 0.0, %v1722
      %v1724 = vpop.f32.mrb[0].mxu0
      %1725 = vmatprep.mubr.bf16.mxu0 0
      %1726 = vmatmul.mubr.bf16.gmra.mrb[0].mxu0 %v1592
      %v1727 = vpop.f32.mrb[0].mxu0
      %v1728 = vadd.f32 0.0, %v1727
      %v1729 = vpop.f32.mrb[0].mxu0
      %v1730 = vpop.f32.mrb[0].mxu0
      %v1731 = vadd.f32 0.0, %v1730
      %v1732 = vpop.f32.mrb[0].mxu0
      %1733 = vmatprep.mubr.bf16.mxu0 0
      %1734 = vmatmul.mubr.bf16.gmra.mrb[0].mxu0 %v1595
      %v1735 = vpop.f32.mrb[0].mxu0
      %v1736 = vadd.f32 0.0, %v1735
      %v1737 = vpop.f32.mrb[0].mxu0
      %v1738 = vpop.f32.mrb[0].mxu0
      %v1739 = vadd.f32 0.0, %v1738
      %v1740 = vpop.f32.mrb[0].mxu0
      %1741 = vdwg.mxu0
      %v1742 = vadd.f32 %v1414, %v1632
      %v1743 = vadd.f32 %v1415, %v1635
      %v1744 = vadd.f32 %v1416, %v1640
      %v1745 = vadd.f32 %v1417, %v1643
      %v1746 = vadd.f32 %v1418, %v1648
      %v1747 = vadd.f32 %v1419, %v1651
      %v1748 = vadd.f32 %v1420, %v1656
      %v1749 = vadd.f32 %v1421, %v1659
      %v1750 = vadd.f32 %v1422, %v1664
      %v1751 = vadd.f32 %v1423, %v1667
      %v1752 = vadd.f32 %v1424, %v1672
      %v1753 = vadd.f32 %v1425, %v1675
      %v1754 = vadd.f32 %v1426, %v1680
      %v1755 = vadd.f32 %v1427, %v1683
      %v1756 = vadd.f32 %v1428, %v1688
      %v1757 = vadd.f32 %v1429, %v1691
      %v1758 = vadd.f32 %v1430, %v1696
      %v1759 = vadd.f32 %v1431, %v1699
      %v1760 = vadd.f32 %v1432, %v1704
      %v1761 = vadd.f32 %v1433, %v1707
      %v1762 = vadd.f32 %v1434, %v1712
      %v1763 = vadd.f32 %v1435, %v1715
      %v1764 = vadd.f32 %v1436, %v1720
      %v1765 = vadd.f32 %v1437, %v1723
      %v1766 = vadd.f32 %v1438, %v1728
      %v1767 = vadd.f32 %v1439, %v1731
      %v1768 = vadd.f32 %v1440, %v1736
      %v1769 = vadd.f32 %v1441, %v1739
      %v1777 = vrot.slane %v190, 5
      %v1778 = vrot.slane %v1777, 4
      %v1779 = vrot.slane %v191, 5
      %v1780 = vsel %vm1451, %v1778, %v1779
      %v1781 = vrot.slane %v192, 5
      %v1782 = vrot.slane %v1781, 4
      %v1783 = vrot.slane %v193, 5
      %v1784 = vsel %vm1451, %v1782, %v1783
      %v1785 = vrot.slane %v194, 5
      %v1786 = vrot.slane %v1785, 4
      %v1787 = vrot.slane %v195, 5
      %v1788 = vsel %vm1451, %v1786, %v1787
      %v1789 = vrot.slane %v196, 5
      %v1790 = vrot.slane %v1789, 4
      %v1791 = vrot.slane %v197, 5
      %v1792 = vsel %vm1451, %v1790, %v1791
      %v1793 = vrot.slane %v198, 5
      %v1794 = vrot.slane %v1793, 4
      %v1795 = vrot.slane %v199, 5
      %v1796 = vsel %vm1451, %v1794, %v1795
      %v1797 = vrot.slane %v200, 5
      %v1798 = vrot.slane %v1797, 4
      %v1799 = vrot.slane %v201, 5
      %v1800 = vsel %vm1451, %v1798, %v1799
      %v1801 = vrot.slane %v202, 5
      %v1802 = vrot.slane %v1801, 4
      %v1803 = vrot.slane %v203, 5
      %v1804 = vsel %vm1451, %v1802, %v1803
      %v1812 = vrot.slane %v226, 5
      %v1813 = vrot.slane %v1812, 4
      %v1814 = vrot.slane %v227, 5
      %v1815 = vsel %vm1451, %v1813, %v1814
      %v1816 = vrot.slane %v228, 5
      %v1817 = vrot.slane %v1816, 4
      %v1818 = vrot.slane %v229, 5
      %v1819 = vsel %vm1451, %v1817, %v1818
      %v1820 = vrot.slane %v230, 5
      %v1821 = vrot.slane %v1820, 4
      %v1822 = vrot.slane %v231, 5
      %v1823 = vsel %vm1451, %v1821, %v1822
      %v1824 = vrot.slane %v232, 5
      %v1825 = vrot.slane %v1824, 4
      %v1826 = vrot.slane %v233, 5
      %v1827 = vsel %vm1451, %v1825, %v1826
      %v1828 = vrot.slane %v234, 5
      %v1829 = vrot.slane %v1828, 4
      %v1830 = vrot.slane %v235, 5
      %v1831 = vsel %vm1451, %v1829, %v1830
      %v1832 = vrot.slane %v236, 5
      %v1833 = vrot.slane %v1832, 4
      %v1834 = vrot.slane %v237, 5
      %v1835 = vsel %vm1451, %v1833, %v1834
      %v1836 = vrot.slane %v238, 5
      %v1837 = vrot.slane %v1836, 4
      %v1838 = vrot.slane %v239, 5
      %v1839 = vsel %vm1451, %v1837, %v1838
      %v1840 = vpack.c.b16 %v1520, %v1519
      %v1841 = vpack.c.b16 %v1522, %v1521
      %v1842 = vpack.c.b16 %v1524, %v1523
      %v1843 = vpack.c.b16 %v1525, %v1525
      %v1844 = vunpack.c.l.b16 %v1780
      %v1845 = vunpack.c.l.b16 %v1784
      %v1846 = vunpack.c.l.b16 %v1788
      %v1847 = vunpack.c.l.b16 %v1792
      %v1848 = vunpack.c.l.b16 %v1796
      %v1849 = vunpack.c.l.b16 %v1800
      %v1850 = vunpack.c.l.b16 %v1804
      %v1851 = vpack.c.b16 %v1844, %v1844
      %v1852 = vpack.c.b16 %v1846, %v1845
      %v1853 = vpack.c.b16 %v1848, %v1847
      %v1854 = vpack.c.b16 %v1850, %v1849
      %v1855 = vpack.c.b16 %v1535, %v1534
      %v1856 = vpack.c.b16 %v1537, %v1536
      %v1857 = vpack.c.b16 %v1539, %v1538
      %v1858 = vpack.c.b16 %v1540, %v1540
      %v1859 = vunpack.c.l.b16 %v1815
      %v1860 = vunpack.c.l.b16 %v1819
      %v1861 = vunpack.c.l.b16 %v1823
      %v1862 = vunpack.c.l.b16 %v1827
      %v1863 = vunpack.c.l.b16 %v1831
      %v1864 = vunpack.c.l.b16 %v1835
      %v1865 = vunpack.c.l.b16 %v1839
      %v1866 = vpack.c.b16 %v1859, %v1859
      %v1867 = vpack.c.b16 %v1861, %v1860
      %v1868 = vpack.c.b16 %v1863, %v1862
      %v1869 = vpack.c.b16 %v1865, %v1864
      %v1872 = vsel %vm366, %v1843, %v1851
      %v1875 = vsel %vm366, %v1858, %v1866
      %v1878 = vunpack.c.l.b16 %v252
      %v1879 = vunpack.c.l.b16 %v253
      %v1880 = vpack.c.b16 %v1879, %v1878
      %v1883 = vsel %vm614, %v1840, 0
      %v1886 = vsel %vm614, %v1841, 0
      %v1889 = vsel %vm614, %v1842, 0
      %v1891 = vsel %vm614, %v1872, 0
      %v1894 = vsel %vm614, %v1852, 0
      %v1897 = vsel %vm614, %v1853, 0
      %v1900 = vsel %vm614, %v1854, 0
      %v1903 = vsel %vm614, %v1855, 0
      %v1906 = vsel %vm614, %v1856, 0
      %v1909 = vsel %vm614, %v1857, 0
      %v1911 = vsel %vm614, %v1875, 0
      %v1914 = vsel %vm614, %v1867, 0
      %v1917 = vsel %vm614, %v1868, 0
      %v1920 = vsel %vm614, %v1869, 0
      %1922 = vmatprep.subr.bf16.mxu0 0
      %1923 = vmatpush1.bf16.msra.mxu0 %v1880
      %1924 = vmatprep.subr.bf16.mxu0 0
      %1925 = vmatpush1.bf16.msra.mxu0 0
      %1926 = vmatprep.subr.bf16.mxu0 0
      %1927 = vmatpush1.bf16.msra.mxu0 0
      %1928 = vmatprep.subr.bf16.mxu0 0
      %1929 = vmatpush1.bf16.msra.mxu0 0
      %1930 = vmatprep.subr.bf16.mxu0 0
      %1931 = vmatpush1.bf16.msra.mxu0 0
      %1932 = vmatprep.subr.bf16.mxu0 0
      %1933 = vmatpush1.bf16.msra.mxu0 0
      %1934 = vmatprep.subr.bf16.mxu0 0
      %1935 = vmatpush1.bf16.msra.mxu0 0
      %1936 = vmatprep.subr.bf16.mxu0 0
      %1937 = vmatpush1.bf16.msra.mxu0 0
      %1938 = vmatprep.subr.bf16.mxu0 0
      %1939 = vmatpush1.bf16.msra.mxu0 0
      %1940 = vmatprep.subr.bf16.mxu0 0
      %1941 = vmatpush1.bf16.msra.mxu0 0
      %1942 = vmatprep.subr.bf16.mxu0 0
      %1943 = vmatpush1.bf16.msra.mxu0 0
      %1944 = vmatprep.subr.bf16.mxu0 0
      %1945 = vmatpush1.bf16.msra.mxu0 0
      %1946 = vmatprep.subr.bf16.mxu0 0
      %1947 = vmatpush1.bf16.msra.mxu0 0
      %1948 = vmatprep.subr.bf16.mxu0 0
      %1949 = vmatpush1.bf16.msra.mxu0 0
      %1950 = vmatprep.subr.bf16.mxu0 0
      %1951 = vmatpush1.bf16.msra.mxu0 0
      %1952 = vmatprep.subr.bf16.mxu0 0
      %1953 = vmatpush1.bf16.msra.mxu0 0
      %1954 = vmatprep.mubr.bf16.mxu0 0
      %1955 = vmatmul.mubr.bf16.gmra.mrb[0].mxu0 %v1883
      %v1956 = vpop.f32.mrb[0].mxu0
      %v1957 = vadd.f32 0.0, %v1956
      %v1958 = vpop.f32.mrb[0].mxu0
      %v1959 = vpop.f32.mrb[0].mxu0
      %v1960 = vadd.f32 0.0, %v1959
      %v1961 = vpop.f32.mrb[0].mxu0
      %1962 = vmatprep.mubr.bf16.mxu0 0
      %1963 = vmatmul.mubr.bf16.gmra.mrb[0].mxu0 %v1886
      %v1964 = vpop.f32.mrb[0].mxu0
      %v1965 = vadd.f32 0.0, %v1964
      %v1966 = vpop.f32.mrb[0].mxu0
      %v1967 = vpop.f32.mrb[0].mxu0
      %v1968 = vadd.f32 0.0, %v1967
      %v1969 = vpop.f32.mrb[0].mxu0
      %1970 = vmatprep.mubr.bf16.mxu0 0
      %1971 = vmatmul.mubr.bf16.gmra.mrb[0].mxu0 %v1889
      %v1972 = vpop.f32.mrb[0].mxu0
      %v1973 = vadd.f32 0.0, %v1972
      %v1974 = vpop.f32.mrb[0].mxu0
      %v1975 = vpop.f32.mrb[0].mxu0
      %v1976 = vadd.f32 0.0, %v1975
      %v1977 = vpop.f32.mrb[0].mxu0
      %1978 = vmatprep.mubr.bf16.mxu0 0
      %1979 = vmatmul.mubr.bf16.gmra.mrb[0].mxu0 %v1891
      %v1980 = vpop.f32.mrb[0].mxu0
      %v1981 = vadd.f32 0.0, %v1980
      %v1982 = vpop.f32.mrb[0].mxu0
      %v1983 = vpop.f32.mrb[0].mxu0
      %v1984 = vadd.f32 0.0, %v1983
      %v1985 = vpop.f32.mrb[0].mxu0
      %1986 = vmatprep.mubr.bf16.mxu0 0
      %1987 = vmatmul.mubr.bf16.gmra.mrb[0].mxu0 %v1894
      %v1988 = vpop.f32.mrb[0].mxu0
      %v1989 = vadd.f32 0.0, %v1988
      %v1990 = vpop.f32.mrb[0].mxu0
      %v1991 = vpop.f32.mrb[0].mxu0
      %v1992 = vadd.f32 0.0, %v1991
      %v1993 = vpop.f32.mrb[0].mxu0
      %1994 = vmatprep.mubr.bf16.mxu0 0
      %1995 = vmatmul.mubr.bf16.gmra.mrb[0].mxu0 %v1897
      %v1996 = vpop.f32.mrb[0].mxu0
      %v1997 = vadd.f32 0.0, %v1996
      %v1998 = vpop.f32.mrb[0].mxu0
      %v1999 = vpop.f32.mrb[0].mxu0
      %v2000 = vadd.f32 0.0, %v1999
      %v2001 = vpop.f32.mrb[0].mxu0
      %2002 = vmatprep.mubr.bf16.mxu0 0
      %2003 = vmatmul.mubr.bf16.gmra.mrb[0].mxu0 %v1900
      %v2004 = vpop.f32.mrb[0].mxu0
      %v2005 = vadd.f32 0.0, %v2004
      %v2006 = vpop.f32.mrb[0].mxu0
      %v2007 = vpop.f32.mrb[0].mxu0
      %v2008 = vadd.f32 0.0, %v2007
      %v2009 = vpop.f32.mrb[0].mxu0
      %2010 = vmatprep.mubr.bf16.mxu0 0
      %2011 = vmatmul.mubr.bf16.gmra.mrb[0].mxu0 %v1903
      %v2012 = vpop.f32.mrb[0].mxu0
      %v2013 = vadd.f32 0.0, %v2012
      %v2014 = vpop.f32.mrb[0].mxu0
      %v2015 = vpop.f32.mrb[0].mxu0
      %v2016 = vadd.f32 0.0, %v2015
      %v2017 = vpop.f32.mrb[0].mxu0
      %2018 = vmatprep.mubr.bf16.mxu0 0
      %2019 = vmatmul.mubr.bf16.gmra.mrb[0].mxu0 %v1906
      %v2020 = vpop.f32.mrb[0].mxu0
      %v2021 = vadd.f32 0.0, %v2020
      %v2022 = vpop.f32.mrb[0].mxu0
      %v2023 = vpop.f32.mrb[0].mxu0
      %v2024 = vadd.f32 0.0, %v2023
      %v2025 = vpop.f32.mrb[0].mxu0
      %2026 = vmatprep.mubr.bf16.mxu0 0
      %2027 = vmatmul.mubr.bf16.gmra.mrb[0].mxu0 %v1909
      %v2028 = vpop.f32.mrb[0].mxu0
      %v2029 = vadd.f32 0.0, %v2028
      %v2030 = vpop.f32.mrb[0].mxu0
      %v2031 = vpop.f32.mrb[0].mxu0
      %v2032 = vadd.f32 0.0, %v2031
      %v2033 = vpop.f32.mrb[0].mxu0
      %2034 = vmatprep.mubr.bf16.mxu0 0
      %2035 = vmatmul.mubr.bf16.gmra.mrb[0].mxu0 %v1911
      %v2036 = vpop.f32.mrb[0].mxu0
      %v2037 = vadd.f32 0.0, %v2036
      %v2038 = vpop.f32.mrb[0].mxu0
      %v2039 = vpop.f32.mrb[0].mxu0
      %v2040 = vadd.f32 0.0, %v2039
      %v2041 = vpop.f32.mrb[0].mxu0
      %2042 = vmatprep.mubr.bf16.mxu0 0
      %2043 = vmatmul.mubr.bf16.gmra.mrb[0].mxu0 %v1914
      %v2044 = vpop.f32.mrb[0].mxu0
      %v2045 = vadd.f32 0.0, %v2044
      %v2046 = vpop.f32.mrb[0].mxu0
      %v2047 = vpop.f32.mrb[0].mxu0
      %v2048 = vadd.f32 0.0, %v2047
      %v2049 = vpop.f32.mrb[0].mxu0
      %2050 = vmatprep.mubr.bf16.mxu0 0
      %2051 = vmatmul.mubr.bf16.gmra.mrb[0].mxu0 %v1917
      %v2052 = vpop.f32.mrb[0].mxu0
      %v2053 = vadd.f32 0.0, %v2052
      %v2054 = vpop.f32.mrb[0].mxu0
      %v2055 = vpop.f32.mrb[0].mxu0
      %v2056 = vadd.f32 0.0, %v2055
      %v2057 = vpop.f32.mrb[0].mxu0
      %2058 = vmatprep.mubr.bf16.mxu0 0
      %2059 = vmatmul.mubr.bf16.gmra.mrb[0].mxu0 %v1920
      %v2060 = vpop.f32.mrb[0].mxu0
      %v2061 = vadd.f32 0.0, %v2060
      %v2062 = vpop.f32.mrb[0].mxu0
      %v2063 = vpop.f32.mrb[0].mxu0
      %v2064 = vadd.f32 0.0, %v2063
      %v2065 = vpop.f32.mrb[0].mxu0
      %2066 = vdwg.mxu0
      %v2067 = vadd.f32 %v1742, %v1957
      %v2068 = vadd.f32 %v1743, %v1960
      %v2069 = vadd.f32 %v1744, %v1965
      %v2070 = vadd.f32 %v1745, %v1968
      %v2071 = vadd.f32 %v1746, %v1973
      %v2072 = vadd.f32 %v1747, %v1976
      %v2073 = vadd.f32 %v1748, %v1981
      %v2074 = vadd.f32 %v1749, %v1984
      %v2075 = vadd.f32 %v1750, %v1989
      %v2076 = vadd.f32 %v1751, %v1992
      %v2077 = vadd.f32 %v1752, %v1997
      %v2078 = vadd.f32 %v1753, %v2000
      %v2079 = vadd.f32 %v1754, %v2005
      %v2080 = vadd.f32 %v1755, %v2008
      %v2081 = vadd.f32 %v1756, %v2013
      %v2082 = vadd.f32 %v1757, %v2016
      %v2083 = vadd.f32 %v1758, %v2021
      %v2084 = vadd.f32 %v1759, %v2024
      %v2085 = vadd.f32 %v1760, %v2029
      %v2086 = vadd.f32 %v1761, %v2032
      %v2087 = vadd.f32 %v1762, %v2037
      %v2088 = vadd.f32 %v1763, %v2040
      %v2089 = vadd.f32 %v1764, %v2045
      %v2090 = vadd.f32 %v1765, %v2048
      %v2091 = vadd.f32 %v1766, %v2053
      %v2092 = vadd.f32 %v1767, %v2056
      %v2093 = vadd.f32 %v1768, %v2061
      %v2094 = vadd.f32 %v1769, %v2064
      %v2096 = vunpack.c.l.b16 %v186
      %v2097 = vpack.c.b16 %v303, %v302
      %v2098 = vpack.c.b16 %v305, %v304
      %v2099 = vpack.c.b16 %v307, %v306
      %v2100 = vpack.c.b16 %v2096, %v2096
      %v2102 = vunpack.c.l.b16 %v204
      %v2103 = vpack.c.b16 %v320, %v320
      %v2104 = vpack.c.b16 %v2102, %v325
      %v2107 = vsel %vm366, %v2100, %v2103
      %v2110 = vunpack.c.l.b16 %v254
      %v2111 = vunpack.c.l.b16 %v255
      %v2112 = vpack.c.b16 %v2111, %v2110
      %v2115 = vsel %vm614, %v2097, 0
      %v2118 = vsel %vm614, %v2098, 0
      %v2121 = vsel %vm614, %v2099, 0
      %v2123 = vsel %vm614, %v2107, 0
      %v2126 = vsel %vm614, %v2104, 0
      %2128 = vmatprep.subr.bf16.mxu0 0
      %2129 = vmatpush1.bf16.msra.mxu0 %v2112
      %2130 = vmatprep.subr.bf16.mxu0 0
      %2131 = vmatpush1.bf16.msra.mxu0 0
      %2132 = vmatprep.subr.bf16.mxu0 0
      %2133 = vmatpush1.bf16.msra.mxu0 0
      %2134 = vmatprep.subr.bf16.mxu0 0
      %2135 = vmatpush1.bf16.msra.mxu0 0
      %2136 = vmatprep.subr.bf16.mxu0 0
      %2137 = vmatpush1.bf16.msra.mxu0 0
      %2138 = vmatprep.subr.bf16.mxu0 0
      %2139 = vmatpush1.bf16.msra.mxu0 0
      %2140 = vmatprep.subr.bf16.mxu0 0
      %2141 = vmatpush1.bf16.msra.mxu0 0
      %2142 = vmatprep.subr.bf16.mxu0 0
      %2143 = vmatpush1.bf16.msra.mxu0 0
      %2144 = vmatprep.subr.bf16.mxu0 0
      %2145 = vmatpush1.bf16.msra.mxu0 0
      %2146 = vmatprep.subr.bf16.mxu0 0
      %2147 = vmatpush1.bf16.msra.mxu0 0
      %2148 = vmatprep.subr.bf16.mxu0 0
      %2149 = vmatpush1.bf16.msra.mxu0 0
      %2150 = vmatprep.subr.bf16.mxu0 0
      %2151 = vmatpush1.bf16.msra.mxu0 0
      %2152 = vmatprep.subr.bf16.mxu0 0
      %2153 = vmatpush1.bf16.msra.mxu0 0
      %2154 = vmatprep.subr.bf16.mxu0 0
      %2155 = vmatpush1.bf16.msra.mxu0 0
      %2156 = vmatprep.subr.bf16.mxu0 0
      %2157 = vmatpush1.bf16.msra.mxu0 0
      %2158 = vmatprep.subr.bf16.mxu0 0
      %2159 = vmatpush1.bf16.msra.mxu0 0
      %2160 = vmatprep.mubr.bf16.mxu0 0
      %2161 = vmatmul.mubr.bf16.gmra.mrb[0].mxu0 %v827
      %v2162 = vpop.f32.mrb[0].mxu0
      %v2163 = vadd.f32 0.0, %v2162
      %v2164 = vpop.f32.mrb[0].mxu0
      %v2165 = vpop.f32.mrb[0].mxu0
      %v2166 = vadd.f32 0.0, %v2165
      %v2167 = vpop.f32.mrb[0].mxu0
      %2168 = vmatprep.mubr.bf16.mxu0 0
      %2169 = vmatmul.mubr.bf16.gmra.mrb[0].mxu0 %v830
      %v2170 = vpop.f32.mrb[0].mxu0
      %v2171 = vadd.f32 0.0, %v2170
      %v2172 = vpop.f32.mrb[0].mxu0
      %v2173 = vpop.f32.mrb[0].mxu0
      %v2174 = vadd.f32 0.0, %v2173
      %v2175 = vpop.f32.mrb[0].mxu0
      %2176 = vmatprep.mubr.bf16.mxu0 0
      %2177 = vmatmul.mubr.bf16.gmra.mrb[0].mxu0 %v833
      %v2178 = vpop.f32.mrb[0].mxu0
      %v2179 = vadd.f32 0.0, %v2178
      %v2180 = vpop.f32.mrb[0].mxu0
      %v2181 = vpop.f32.mrb[0].mxu0
      %v2182 = vadd.f32 0.0, %v2181
      %v2183 = vpop.f32.mrb[0].mxu0
      %2184 = vmatprep.mubr.bf16.mxu0 0
      %2185 = vmatmul.mubr.bf16.gmra.mrb[0].mxu0 %v835
      %v2186 = vpop.f32.mrb[0].mxu0
      %v2187 = vadd.f32 0.0, %v2186
      %v2188 = vpop.f32.mrb[0].mxu0
      %v2189 = vpop.f32.mrb[0].mxu0
      %v2190 = vadd.f32 0.0, %v2189
      %v2191 = vpop.f32.mrb[0].mxu0
      %2192 = vmatprep.mubr.bf16.mxu0 0
      %2193 = vmatmul.mubr.bf16.gmra.mrb[0].mxu0 %v838
      %v2194 = vpop.f32.mrb[0].mxu0
      %v2195 = vadd.f32 0.0, %v2194
      %v2196 = vpop.f32.mrb[0].mxu0
      %v2197 = vpop.f32.mrb[0].mxu0
      %v2198 = vadd.f32 0.0, %v2197
      %v2199 = vpop.f32.mrb[0].mxu0
      %2200 = vmatprep.mubr.bf16.mxu0 0
      %2201 = vmatmul.mubr.bf16.gmra.mrb[0].mxu0 %v841
      %v2202 = vpop.f32.mrb[0].mxu0
      %v2203 = vadd.f32 0.0, %v2202
      %v2204 = vpop.f32.mrb[0].mxu0
      %v2205 = vpop.f32.mrb[0].mxu0
      %v2206 = vadd.f32 0.0, %v2205
      %v2207 = vpop.f32.mrb[0].mxu0
      %2208 = vmatprep.mubr.bf16.mxu0 0
      %2209 = vmatmul.mubr.bf16.gmra.mrb[0].mxu0 %v844
      %v2210 = vpop.f32.mrb[0].mxu0
      %v2211 = vadd.f32 0.0, %v2210
      %v2212 = vpop.f32.mrb[0].mxu0
      %v2213 = vpop.f32.mrb[0].mxu0
      %v2214 = vadd.f32 0.0, %v2213
      %v2215 = vpop.f32.mrb[0].mxu0
      %2216 = vmatprep.mubr.bf16.mxu0 0
      %2217 = vmatmul.mubr.bf16.gmra.mrb[0].mxu0 %v2115
      %v2218 = vpop.f32.mrb[0].mxu0
      %v2219 = vadd.f32 0.0, %v2218
      %v2220 = vpop.f32.mrb[0].mxu0
      %v2221 = vpop.f32.mrb[0].mxu0
      %v2222 = vadd.f32 0.0, %v2221
      %v2223 = vpop.f32.mrb[0].mxu0
      %2224 = vmatprep.mubr.bf16.mxu0 0
      %2225 = vmatmul.mubr.bf16.gmra.mrb[0].mxu0 %v2118
      %v2226 = vpop.f32.mrb[0].mxu0
      %v2227 = vadd.f32 0.0, %v2226
      %v2228 = vpop.f32.mrb[0].mxu0
      %v2229 = vpop.f32.mrb[0].mxu0
      %v2230 = vadd.f32 0.0, %v2229
      %v2231 = vpop.f32.mrb[0].mxu0
      %2232 = vmatprep.mubr.bf16.mxu0 0
      %2233 = vmatmul.mubr.bf16.gmra.mrb[0].mxu0 %v2121
      %v2234 = vpop.f32.mrb[0].mxu0
      %v2235 = vadd.f32 0.0, %v2234
      %v2236 = vpop.f32.mrb[0].mxu0
      %v2237 = vpop.f32.mrb[0].mxu0
      %v2238 = vadd.f32 0.0, %v2237
      %v2239 = vpop.f32.mrb[0].mxu0
      %2240 = vmatprep.mubr.bf16.mxu0 0
      %2241 = vmatmul.mubr.bf16.gmra.mrb[0].mxu0 %v2123
      %v2242 = vpop.f32.mrb[0].mxu0
      %v2243 = vadd.f32 0.0, %v2242
      %v2244 = vpop.f32.mrb[0].mxu0
      %v2245 = vpop.f32.mrb[0].mxu0
      %v2246 = vadd.f32 0.0, %v2245
      %v2247 = vpop.f32.mrb[0].mxu0
      %2248 = vmatprep.mubr.bf16.mxu0 0
      %2249 = vmatmul.mubr.bf16.gmra.mrb[0].mxu0 %v619
      %v2250 = vpop.f32.mrb[0].mxu0
      %v2251 = vadd.f32 0.0, %v2250
      %v2252 = vpop.f32.mrb[0].mxu0
      %v2253 = vpop.f32.mrb[0].mxu0
      %v2254 = vadd.f32 0.0, %v2253
      %v2255 = vpop.f32.mrb[0].mxu0
      %2256 = vmatprep.mubr.bf16.mxu0 0
      %2257 = vmatmul.mubr.bf16.gmra.mrb[0].mxu0 %v622
      %v2258 = vpop.f32.mrb[0].mxu0
      %v2259 = vadd.f32 0.0, %v2258
      %v2260 = vpop.f32.mrb[0].mxu0
      %v2261 = vpop.f32.mrb[0].mxu0
      %v2262 = vadd.f32 0.0, %v2261
      %v2263 = vpop.f32.mrb[0].mxu0
      %2264 = vmatprep.mubr.bf16.mxu0 0
      %2265 = vmatmul.mubr.bf16.gmra.mrb[0].mxu0 %v2126
      %v2266 = vpop.f32.mrb[0].mxu0
      %v2267 = vadd.f32 0.0, %v2266
      %v2268 = vpop.f32.mrb[0].mxu0
      %v2269 = vpop.f32.mrb[0].mxu0
      %v2270 = vadd.f32 0.0, %v2269
      %v2271 = vpop.f32.mrb[0].mxu0
      %2272 = vdwg.mxu0
      %v2273 = vadd.f32 %v2067, %v2163
      %v2274 = vadd.f32 %v2068, %v2166
      %v2275 = vadd.f32 %v2069, %v2171
      %v2276 = vadd.f32 %v2070, %v2174
      %v2277 = vadd.f32 %v2071, %v2179
      %v2278 = vadd.f32 %v2072, %v2182
      %v2279 = vadd.f32 %v2073, %v2187
      %v2280 = vadd.f32 %v2074, %v2190
      %v2281 = vadd.f32 %v2075, %v2195
      %v2282 = vadd.f32 %v2076, %v2198
      %v2283 = vadd.f32 %v2077, %v2203
      %v2284 = vadd.f32 %v2078, %v2206
      %v2285 = vadd.f32 %v2079, %v2211
      %v2286 = vadd.f32 %v2080, %v2214
      %v2287 = vadd.f32 %v2081, %v2219
      %v2288 = vadd.f32 %v2082, %v2222
      %v2289 = vadd.f32 %v2083, %v2227
      %v2290 = vadd.f32 %v2084, %v2230
      %v2291 = vadd.f32 %v2085, %v2235
      %v2292 = vadd.f32 %v2086, %v2238
      %v2293 = vadd.f32 %v2087, %v2243
      %v2294 = vadd.f32 %v2088, %v2246
      %v2295 = vadd.f32 %v2089, %v2251
      %v2296 = vadd.f32 %v2090, %v2254
      %v2297 = vadd.f32 %v2091, %v2259
      %v2298 = vadd.f32 %v2092, %v2262
      %v2299 = vadd.f32 %v2093, %v2267
      %v2300 = vadd.f32 %v2094, %v2270
      %v2302 = vshrl.u32 %v186, 16
      %v2304 = vrot.slane %v2302, 4
      %v2305 = vshll.u32 %v186, 16
      %v2307 = vrot.slane %v2305, 5
      %v2308 = vor.u32 %v2304, %v2307
      %v2309 = vrot.slane %v2308, 4
      %v2311 = vshll.u32 %v187, 16
      %v2313 = vrot.slane %v2311, 5
      %v2314 = vsel %vm375, %v2309, %v2313
      %v2315 = vpack.c.b16 %v2102, %v2102
      %v2316 = vunpack.c.l.b16 %v2314
      %v2317 = vpack.c.b16 %v577, %v577
      %v2318 = vpack.c.b16 %v2316, %v582
      %v2321 = vsel %vm366, %v2315, %v2317
      %v2324 = vunpack.c.l.b16 %v256
      %v2325 = vunpack.c.l.b16 %v257
      %v2326 = vpack.c.b16 %v2325, %v2324
      %v2328 = vsel %vm614, %v2321, 0
      %v2331 = vsel %vm614, %v2318, 0
      %2333 = vmatprep.subr.bf16.mxu0 0
      %2334 = vmatpush1.bf16.msra.mxu0 %v2326
      %2335 = vmatprep.subr.bf16.mxu0 0
      %2336 = vmatpush1.bf16.msra.mxu0 0
      %2337 = vmatprep.subr.bf16.mxu0 0
      %2338 = vmatpush1.bf16.msra.mxu0 0
      %2339 = vmatprep.subr.bf16.mxu0 0
      %2340 = vmatpush1.bf16.msra.mxu0 0
      %2341 = vmatprep.subr.bf16.mxu0 0
      %2342 = vmatpush1.bf16.msra.mxu0 0
      %2343 = vmatprep.subr.bf16.mxu0 0
      %2344 = vmatpush1.bf16.msra.mxu0 0
      %2345 = vmatprep.subr.bf16.mxu0 0
      %2346 = vmatpush1.bf16.msra.mxu0 0
      %2347 = vmatprep.subr.bf16.mxu0 0
      %2348 = vmatpush1.bf16.msra.mxu0 0
      %2349 = vmatprep.subr.bf16.mxu0 0
      %2350 = vmatpush1.bf16.msra.mxu0 0
      %2351 = vmatprep.subr.bf16.mxu0 0
      %2352 = vmatpush1.bf16.msra.mxu0 0
      %2353 = vmatprep.subr.bf16.mxu0 0
      %2354 = vmatpush1.bf16.msra.mxu0 0
      %2355 = vmatprep.subr.bf16.mxu0 0
      %2356 = vmatpush1.bf16.msra.mxu0 0
      %2357 = vmatprep.subr.bf16.mxu0 0
      %2358 = vmatpush1.bf16.msra.mxu0 0
      %2359 = vmatprep.subr.bf16.mxu0 0
      %2360 = vmatpush1.bf16.msra.mxu0 0
      %2361 = vmatprep.subr.bf16.mxu0 0
      %2362 = vmatpush1.bf16.msra.mxu0 0
      %2363 = vmatprep.subr.bf16.mxu0 0
      %2364 = vmatpush1.bf16.msra.mxu0 0
      %2365 = vmatprep.mubr.bf16.mxu0 0
      %2366 = vmatmul.mubr.bf16.gmra.mrb[0].mxu0 %v636
      %v2367 = vpop.f32.mrb[0].mxu0
      %v2368 = vadd.f32 0.0, %v2367
      %v2369 = vpop.f32.mrb[0].mxu0
      %v2370 = vpop.f32.mrb[0].mxu0
      %v2371 = vadd.f32 0.0, %v2370
      %v2372 = vpop.f32.mrb[0].mxu0
      %2373 = vmatprep.mubr.bf16.mxu0 0
      %2374 = vmatmul.mubr.bf16.gmra.mrb[0].mxu0 %v639
      %v2375 = vpop.f32.mrb[0].mxu0
      %v2376 = vadd.f32 0.0, %v2375
      %v2377 = vpop.f32.mrb[0].mxu0
      %v2378 = vpop.f32.mrb[0].mxu0
      %v2379 = vadd.f32 0.0, %v2378
      %v2380 = vpop.f32.mrb[0].mxu0
      %2381 = vmatprep.mubr.bf16.mxu0 0
      %2382 = vmatmul.mubr.bf16.gmra.mrb[0].mxu0 %v642
      %v2383 = vpop.f32.mrb[0].mxu0
      %v2384 = vadd.f32 0.0, %v2383
      %v2385 = vpop.f32.mrb[0].mxu0
      %v2386 = vpop.f32.mrb[0].mxu0
      %v2387 = vadd.f32 0.0, %v2386
      %v2388 = vpop.f32.mrb[0].mxu0
      %2389 = vmatprep.mubr.bf16.mxu0 0
      %2390 = vmatmul.mubr.bf16.gmra.mrb[0].mxu0 %v644
      %v2391 = vpop.f32.mrb[0].mxu0
      %v2392 = vadd.f32 0.0, %v2391
      %v2393 = vpop.f32.mrb[0].mxu0
      %v2394 = vpop.f32.mrb[0].mxu0
      %v2395 = vadd.f32 0.0, %v2394
      %v2396 = vpop.f32.mrb[0].mxu0
      %2397 = vmatprep.mubr.bf16.mxu0 0
      %2398 = vmatmul.mubr.bf16.gmra.mrb[0].mxu0 %v647
      %v2399 = vpop.f32.mrb[0].mxu0
      %v2400 = vadd.f32 0.0, %v2399
      %v2401 = vpop.f32.mrb[0].mxu0
      %v2402 = vpop.f32.mrb[0].mxu0
      %v2403 = vadd.f32 0.0, %v2402
      %v2404 = vpop.f32.mrb[0].mxu0
      %2405 = vmatprep.mubr.bf16.mxu0 0
      %2406 = vmatmul.mubr.bf16.gmra.mrb[0].mxu0 %v650
      %v2407 = vpop.f32.mrb[0].mxu0
      %v2408 = vadd.f32 0.0, %v2407
      %v2409 = vpop.f32.mrb[0].mxu0
      %v2410 = vpop.f32.mrb[0].mxu0
      %v2411 = vadd.f32 0.0, %v2410
      %v2412 = vpop.f32.mrb[0].mxu0
      %2413 = vmatprep.mubr.bf16.mxu0 0
      %2414 = vmatmul.mubr.bf16.gmra.mrb[0].mxu0 %v653
      %v2415 = vpop.f32.mrb[0].mxu0
      %v2416 = vadd.f32 0.0, %v2415
      %v2417 = vpop.f32.mrb[0].mxu0
      %v2418 = vpop.f32.mrb[0].mxu0
      %v2419 = vadd.f32 0.0, %v2418
      %v2420 = vpop.f32.mrb[0].mxu0
      %2421 = vmatprep.mubr.bf16.mxu0 0
      %2422 = vmatmul.mubr.bf16.gmra.mrb[0].mxu0 %v818
      %v2423 = vpop.f32.mrb[0].mxu0
      %v2424 = vadd.f32 0.0, %v2423
      %v2425 = vpop.f32.mrb[0].mxu0
      %v2426 = vpop.f32.mrb[0].mxu0
      %v2427 = vadd.f32 0.0, %v2426
      %v2428 = vpop.f32.mrb[0].mxu0
      %2429 = vmatprep.mubr.bf16.mxu0 0
      %2430 = vmatmul.mubr.bf16.gmra.mrb[0].mxu0 %v821
      %v2431 = vpop.f32.mrb[0].mxu0
      %v2432 = vadd.f32 0.0, %v2431
      %v2433 = vpop.f32.mrb[0].mxu0
      %v2434 = vpop.f32.mrb[0].mxu0
      %v2435 = vadd.f32 0.0, %v2434
      %v2436 = vpop.f32.mrb[0].mxu0
      %2437 = vmatprep.mubr.bf16.mxu0 0
      %2438 = vmatmul.mubr.bf16.gmra.mrb[0].mxu0 %v824
      %v2439 = vpop.f32.mrb[0].mxu0
      %v2440 = vadd.f32 0.0, %v2439
      %v2441 = vpop.f32.mrb[0].mxu0
      %v2442 = vpop.f32.mrb[0].mxu0
      %v2443 = vadd.f32 0.0, %v2442
      %v2444 = vpop.f32.mrb[0].mxu0
      %2445 = vmatprep.mubr.bf16.mxu0 0
      %2446 = vmatmul.mubr.bf16.gmra.mrb[0].mxu0 %v2328
      %v2447 = vpop.f32.mrb[0].mxu0
      %v2448 = vadd.f32 0.0, %v2447
      %v2449 = vpop.f32.mrb[0].mxu0
      %v2450 = vpop.f32.mrb[0].mxu0
      %v2451 = vadd.f32 0.0, %v2450
      %v2452 = vpop.f32.mrb[0].mxu0
      %2453 = vmatprep.mubr.bf16.mxu0 0
      %2454 = vmatmul.mubr.bf16.gmra.mrb[0].mxu0 %v1233
      %v2455 = vpop.f32.mrb[0].mxu0
      %v2456 = vadd.f32 0.0, %v2455
      %v2457 = vpop.f32.mrb[0].mxu0
      %v2458 = vpop.f32.mrb[0].mxu0
      %v2459 = vadd.f32 0.0, %v2458
      %v2460 = vpop.f32.mrb[0].mxu0
      %2461 = vmatprep.mubr.bf16.mxu0 0
      %2462 = vmatmul.mubr.bf16.gmra.mrb[0].mxu0 %v1236
      %v2463 = vpop.f32.mrb[0].mxu0
      %v2464 = vadd.f32 0.0, %v2463
      %v2465 = vpop.f32.mrb[0].mxu0
      %v2466 = vpop.f32.mrb[0].mxu0
      %v2467 = vadd.f32 0.0, %v2466
      %v2468 = vpop.f32.mrb[0].mxu0
      %2469 = vmatprep.mubr.bf16.mxu0 0
      %2470 = vmatmul.mubr.bf16.gmra.mrb[0].mxu0 %v2331
      %v2471 = vpop.f32.mrb[0].mxu0
      %v2472 = vadd.f32 0.0, %v2471
      %v2473 = vpop.f32.mrb[0].mxu0
      %v2474 = vpop.f32.mrb[0].mxu0
      %v2475 = vadd.f32 0.0, %v2474
      %v2476 = vpop.f32.mrb[0].mxu0
      %2477 = vdwg.mxu0
      %v2478 = vadd.f32 %v2273, %v2368
      %v2479 = vadd.f32 %v2274, %v2371
      %v2480 = vadd.f32 %v2275, %v2376
      %v2481 = vadd.f32 %v2276, %v2379
      %v2482 = vadd.f32 %v2277, %v2384
      %v2483 = vadd.f32 %v2278, %v2387
      %v2484 = vadd.f32 %v2279, %v2392
      %v2485 = vadd.f32 %v2280, %v2395
      %v2486 = vadd.f32 %v2281, %v2400
      %v2487 = vadd.f32 %v2282, %v2403
      %v2488 = vadd.f32 %v2283, %v2408
      %v2489 = vadd.f32 %v2284, %v2411
      %v2490 = vadd.f32 %v2285, %v2416
      %v2491 = vadd.f32 %v2286, %v2419
      %v2492 = vadd.f32 %v2287, %v2424
      %v2493 = vadd.f32 %v2288, %v2427
      %v2494 = vadd.f32 %v2289, %v2432
      %v2495 = vadd.f32 %v2290, %v2435
      %v2496 = vadd.f32 %v2291, %v2440
      %v2497 = vadd.f32 %v2292, %v2443
      %v2498 = vadd.f32 %v2293, %v2448
      %v2499 = vadd.f32 %v2294, %v2451
      %v2500 = vadd.f32 %v2295, %v2456
      %v2501 = vadd.f32 %v2296, %v2459
      %v2502 = vadd.f32 %v2297, %v2464
      %v2503 = vadd.f32 %v2298, %v2467
      %v2504 = vadd.f32 %v2299, %v2472
      %v2505 = vadd.f32 %v2300, %v2475
      %v2507 = vshrl.u32 %v204, 16
      %v2509 = vrot.slane %v2507, 4
      %v2510 = vshll.u32 %v204, 16
      %v2512 = vrot.slane %v2510, 5
      %v2513 = vor.u32 %v2509, %v2512
      %v2514 = vrot.slane %v2513, 4
      %v2516 = vshll.u32 %v205, 16
      %v2518 = vrot.slane %v2516, 5
      %v2519 = vsel %vm375, %v2514, %v2518
      %v2520 = vpack.c.b16 %v2316, %v2316
      %v2521 = vunpack.c.l.b16 %v2519
      %v2522 = vpack.c.b16 %v1192, %v1192
      %v2523 = vpack.c.b16 %v2521, %v1197
      %v2526 = vsel %vm366, %v2520, %v2522
      %v2529 = vunpack.c.l.b16 %v258
      %v2530 = vunpack.c.l.b16 %v259
      %v2531 = vpack.c.b16 %v2530, %v2529
      %v2533 = vsel %vm614, %v2526, 0
      %v2536 = vsel %vm614, %v2523, 0
      %2538 = vmatprep.subr.bf16.mxu0 0
      %2539 = vmatpush1.bf16.msra.mxu0 %v2531
      %2540 = vmatprep.subr.bf16.mxu0 0
      %2541 = vmatpush1.bf16.msra.mxu0 0
      %2542 = vmatprep.subr.bf16.mxu0 0
      %2543 = vmatpush1.bf16.msra.mxu0 0
      %2544 = vmatprep.subr.bf16.mxu0 0
      %2545 = vmatpush1.bf16.msra.mxu0 0
      %2546 = vmatprep.subr.bf16.mxu0 0
      %2547 = vmatpush1.bf16.msra.mxu0 0
      %2548 = vmatprep.subr.bf16.mxu0 0
      %2549 = vmatpush1.bf16.msra.mxu0 0
      %2550 = vmatprep.subr.bf16.mxu0 0
      %2551 = vmatpush1.bf16.msra.mxu0 0
      %2552 = vmatprep.subr.bf16.mxu0 0
      %2553 = vmatpush1.bf16.msra.mxu0 0
      %2554 = vmatprep.subr.bf16.mxu0 0
      %2555 = vmatpush1.bf16.msra.mxu0 0
      %2556 = vmatprep.subr.bf16.mxu0 0
      %2557 = vmatpush1.bf16.msra.mxu0 0
      %2558 = vmatprep.subr.bf16.mxu0 0
      %2559 = vmatpush1.bf16.msra.mxu0 0
      %2560 = vmatprep.subr.bf16.mxu0 0
      %2561 = vmatpush1.bf16.msra.mxu0 0
      %2562 = vmatprep.subr.bf16.mxu0 0
      %2563 = vmatpush1.bf16.msra.mxu0 0
      %2564 = vmatprep.subr.bf16.mxu0 0
      %2565 = vmatpush1.bf16.msra.mxu0 0
      %2566 = vmatprep.subr.bf16.mxu0 0
      %2567 = vmatpush1.bf16.msra.mxu0 0
      %2568 = vmatprep.subr.bf16.mxu0 0
      %2569 = vmatpush1.bf16.msra.mxu0 0
      %2570 = vmatprep.mubr.bf16.mxu0 0
      %2571 = vmatmul.mubr.bf16.gmra.mrb[0].mxu0 %v1250
      %v2572 = vpop.f32.mrb[0].mxu0
      %v2573 = vadd.f32 0.0, %v2572
      %v2574 = vpop.f32.mrb[0].mxu0
      %v2575 = vpop.f32.mrb[0].mxu0
      %v2576 = vadd.f32 0.0, %v2575
      %v2577 = vpop.f32.mrb[0].mxu0
      %2578 = vmatprep.mubr.bf16.mxu0 0
      %2579 = vmatmul.mubr.bf16.gmra.mrb[0].mxu0 %v1253
      %v2580 = vpop.f32.mrb[0].mxu0
      %v2581 = vadd.f32 0.0, %v2580
      %v2582 = vpop.f32.mrb[0].mxu0
      %v2583 = vpop.f32.mrb[0].mxu0
      %v2584 = vadd.f32 0.0, %v2583
      %v2585 = vpop.f32.mrb[0].mxu0
      %2586 = vmatprep.mubr.bf16.mxu0 0
      %2587 = vmatmul.mubr.bf16.gmra.mrb[0].mxu0 %v1256
      %v2588 = vpop.f32.mrb[0].mxu0
      %v2589 = vadd.f32 0.0, %v2588
      %v2590 = vpop.f32.mrb[0].mxu0
      %v2591 = vpop.f32.mrb[0].mxu0
      %v2592 = vadd.f32 0.0, %v2591
      %v2593 = vpop.f32.mrb[0].mxu0
      %2594 = vmatprep.mubr.bf16.mxu0 0
      %2595 = vmatmul.mubr.bf16.gmra.mrb[0].mxu0 %v1258
      %v2596 = vpop.f32.mrb[0].mxu0
      %v2597 = vadd.f32 0.0, %v2596
      %v2598 = vpop.f32.mrb[0].mxu0
      %v2599 = vpop.f32.mrb[0].mxu0
      %v2600 = vadd.f32 0.0, %v2599
      %v2601 = vpop.f32.mrb[0].mxu0
      %2602 = vmatprep.mubr.bf16.mxu0 0
      %2603 = vmatmul.mubr.bf16.gmra.mrb[0].mxu0 %v1261
      %v2604 = vpop.f32.mrb[0].mxu0
      %v2605 = vadd.f32 0.0, %v2604
      %v2606 = vpop.f32.mrb[0].mxu0
      %v2607 = vpop.f32.mrb[0].mxu0
      %v2608 = vadd.f32 0.0, %v2607
      %v2609 = vpop.f32.mrb[0].mxu0
      %2610 = vmatprep.mubr.bf16.mxu0 0
      %2611 = vmatmul.mubr.bf16.gmra.mrb[0].mxu0 %v1264
      %v2612 = vpop.f32.mrb[0].mxu0
      %v2613 = vadd.f32 0.0, %v2612
      %v2614 = vpop.f32.mrb[0].mxu0
      %v2615 = vpop.f32.mrb[0].mxu0
      %v2616 = vadd.f32 0.0, %v2615
      %v2617 = vpop.f32.mrb[0].mxu0
      %2618 = vmatprep.mubr.bf16.mxu0 0
      %2619 = vmatmul.mubr.bf16.gmra.mrb[0].mxu0 %v1267
      %v2620 = vpop.f32.mrb[0].mxu0
      %v2621 = vadd.f32 0.0, %v2620
      %v2622 = vpop.f32.mrb[0].mxu0
      %v2623 = vpop.f32.mrb[0].mxu0
      %v2624 = vadd.f32 0.0, %v2623
      %v2625 = vpop.f32.mrb[0].mxu0
      %2626 = vmatprep.mubr.bf16.mxu0 0
      %2627 = vmatmul.mubr.bf16.gmra.mrb[0].mxu0 %v627
      %v2628 = vpop.f32.mrb[0].mxu0
      %v2629 = vadd.f32 0.0, %v2628
      %v2630 = vpop.f32.mrb[0].mxu0
      %v2631 = vpop.f32.mrb[0].mxu0
      %v2632 = vadd.f32 0.0, %v2631
      %v2633 = vpop.f32.mrb[0].mxu0
      %2634 = vmatprep.mubr.bf16.mxu0 0
      %2635 = vmatmul.mubr.bf16.gmra.mrb[0].mxu0 %v630
      %v2636 = vpop.f32.mrb[0].mxu0
      %v2637 = vadd.f32 0.0, %v2636
      %v2638 = vpop.f32.mrb[0].mxu0
      %v2639 = vpop.f32.mrb[0].mxu0
      %v2640 = vadd.f32 0.0, %v2639
      %v2641 = vpop.f32.mrb[0].mxu0
      %2642 = vmatprep.mubr.bf16.mxu0 0
      %2643 = vmatmul.mubr.bf16.gmra.mrb[0].mxu0 %v633
      %v2644 = vpop.f32.mrb[0].mxu0
      %v2645 = vadd.f32 0.0, %v2644
      %v2646 = vpop.f32.mrb[0].mxu0
      %v2647 = vpop.f32.mrb[0].mxu0
      %v2648 = vadd.f32 0.0, %v2647
      %v2649 = vpop.f32.mrb[0].mxu0
      %2650 = vmatprep.mubr.bf16.mxu0 0
      %2651 = vmatmul.mubr.bf16.gmra.mrb[0].mxu0 %v2533
      %v2652 = vpop.f32.mrb[0].mxu0
      %v2653 = vadd.f32 0.0, %v2652
      %v2654 = vpop.f32.mrb[0].mxu0
      %v2655 = vpop.f32.mrb[0].mxu0
      %v2656 = vadd.f32 0.0, %v2655
      %v2657 = vpop.f32.mrb[0].mxu0
      %2658 = vmatprep.mubr.bf16.mxu0 0
      %2659 = vmatmul.mubr.bf16.gmra.mrb[0].mxu0 %v1561
      %v2660 = vpop.f32.mrb[0].mxu0
      %v2661 = vadd.f32 0.0, %v2660
      %v2662 = vpop.f32.mrb[0].mxu0
      %v2663 = vpop.f32.mrb[0].mxu0
      %v2664 = vadd.f32 0.0, %v2663
      %v2665 = vpop.f32.mrb[0].mxu0
      %2666 = vmatprep.mubr.bf16.mxu0 0
      %2667 = vmatmul.mubr.bf16.gmra.mrb[0].mxu0 %v1564
      %v2668 = vpop.f32.mrb[0].mxu0
      %v2669 = vadd.f32 0.0, %v2668
      %v2670 = vpop.f32.mrb[0].mxu0
      %v2671 = vpop.f32.mrb[0].mxu0
      %v2672 = vadd.f32 0.0, %v2671
      %v2673 = vpop.f32.mrb[0].mxu0
      %2674 = vmatprep.mubr.bf16.mxu0 0
      %2675 = vmatmul.mubr.bf16.gmra.mrb[0].mxu0 %v2536
      %v2676 = vpop.f32.mrb[0].mxu0
      %v2677 = vadd.f32 0.0, %v2676
      %v2678 = vpop.f32.mrb[0].mxu0
      %v2679 = vpop.f32.mrb[0].mxu0
      %v2680 = vadd.f32 0.0, %v2679
      %v2681 = vpop.f32.mrb[0].mxu0
      %2682 = vdwg.mxu0
      %v2683 = vadd.f32 %v2478, %v2573
      %v2684 = vadd.f32 %v2479, %v2576
      %v2685 = vadd.f32 %v2480, %v2581
      %v2686 = vadd.f32 %v2481, %v2584
      %v2687 = vadd.f32 %v2482, %v2589
      %v2688 = vadd.f32 %v2483, %v2592
      %v2689 = vadd.f32 %v2484, %v2597
      %v2690 = vadd.f32 %v2485, %v2600
      %v2691 = vadd.f32 %v2486, %v2605
      %v2692 = vadd.f32 %v2487, %v2608
      %v2693 = vadd.f32 %v2488, %v2613
      %v2694 = vadd.f32 %v2489, %v2616
      %v2695 = vadd.f32 %v2490, %v2621
      %v2696 = vadd.f32 %v2491, %v2624
      %v2697 = vadd.f32 %v2492, %v2629
      %v2698 = vadd.f32 %v2493, %v2632
      %v2699 = vadd.f32 %v2494, %v2637
      %v2700 = vadd.f32 %v2495, %v2640
      %v2701 = vadd.f32 %v2496, %v2645
      %v2702 = vadd.f32 %v2497, %v2648
      %v2703 = vadd.f32 %v2498, %v2653
      %v2704 = vadd.f32 %v2499, %v2656
      %v2705 = vadd.f32 %v2500, %v2661
      %v2706 = vadd.f32 %v2501, %v2664
      %v2707 = vadd.f32 %v2502, %v2669
      %v2708 = vadd.f32 %v2503, %v2672
      %v2709 = vadd.f32 %v2504, %v2677
      %v2710 = vadd.f32 %v2505, %v2680
      %v2712 = vrot.slane %v186, 5
      %v2713 = vrot.slane %v2712, 4
      %v2714 = vrot.slane %v187, 5
      %v2715 = vsel %vm1451, %v2713, %v2714
      %v2716 = vpack.c.b16 %v2521, %v2521
      %v2717 = vunpack.c.l.b16 %v2715
      %v2718 = vpack.c.b16 %v1520, %v1520
      %v2719 = vpack.c.b16 %v2717, %v1525
      %v2722 = vsel %vm366, %v2716, %v2718
      %v2725 = vunpack.c.l.b16 %v260
      %v2726 = vunpack.c.l.b16 %v261
      %v2727 = vpack.c.b16 %v2726, %v2725
      %v2729 = vsel %vm614, %v2722, 0
      %v2732 = vsel %vm614, %v2719, 0
      %2734 = vmatprep.subr.bf16.mxu0 0
      %2735 = vmatpush1.bf16.msra.mxu0 %v2727
      %2736 = vmatprep.subr.bf16.mxu0 0
      %2737 = vmatpush1.bf16.msra.mxu0 0
      %2738 = vmatprep.subr.bf16.mxu0 0
      %2739 = vmatpush1.bf16.msra.mxu0 0
      %2740 = vmatprep.subr.bf16.mxu0 0
      %2741 = vmatpush1.bf16.msra.mxu0 0
      %2742 = vmatprep.subr.bf16.mxu0 0
      %2743 = vmatpush1.bf16.msra.mxu0 0
      %2744 = vmatprep.subr.bf16.mxu0 0
      %2745 = vmatpush1.bf16.msra.mxu0 0
      %2746 = vmatprep.subr.bf16.mxu0 0
      %2747 = vmatpush1.bf16.msra.mxu0 0
      %2748 = vmatprep.subr.bf16.mxu0 0
      %2749 = vmatpush1.bf16.msra.mxu0 0
      %2750 = vmatprep.subr.bf16.mxu0 0
      %2751 = vmatpush1.bf16.msra.mxu0 0
      %2752 = vmatprep.subr.bf16.mxu0 0
      %2753 = vmatpush1.bf16.msra.mxu0 0
      %2754 = vmatprep.subr.bf16.mxu0 0
      %2755 = vmatpush1.bf16.msra.mxu0 0
      %2756 = vmatprep.subr.bf16.mxu0 0
      %2757 = vmatpush1.bf16.msra.mxu0 0
      %2758 = vmatprep.subr.bf16.mxu0 0
      %2759 = vmatpush1.bf16.msra.mxu0 0
      %2760 = vmatprep.subr.bf16.mxu0 0
      %2761 = vmatpush1.bf16.msra.mxu0 0
      %2762 = vmatprep.subr.bf16.mxu0 0
      %2763 = vmatpush1.bf16.msra.mxu0 0
      %2764 = vmatprep.subr.bf16.mxu0 0
      %2765 = vmatpush1.bf16.msra.mxu0 0
      %2766 = vmatprep.mubr.bf16.mxu0 0
      %2767 = vmatmul.mubr.bf16.gmra.mrb[0].mxu0 %v1578
      %v2768 = vpop.f32.mrb[0].mxu0
      %v2769 = vadd.f32 0.0, %v2768
      %v2770 = vpop.f32.mrb[0].mxu0
      %v2771 = vpop.f32.mrb[0].mxu0
      %v2772 = vadd.f32 0.0, %v2771
      %v2773 = vpop.f32.mrb[0].mxu0
      %2774 = vmatprep.mubr.bf16.mxu0 0
      %2775 = vmatmul.mubr.bf16.gmra.mrb[0].mxu0 %v1581
      %v2776 = vpop.f32.mrb[0].mxu0
      %v2777 = vadd.f32 0.0, %v2776
      %v2778 = vpop.f32.mrb[0].mxu0
      %v2779 = vpop.f32.mrb[0].mxu0
      %v2780 = vadd.f32 0.0, %v2779
      %v2781 = vpop.f32.mrb[0].mxu0
      %2782 = vmatprep.mubr.bf16.mxu0 0
      %2783 = vmatmul.mubr.bf16.gmra.mrb[0].mxu0 %v1584
      %v2784 = vpop.f32.mrb[0].mxu0
      %v2785 = vadd.f32 0.0, %v2784
      %v2786 = vpop.f32.mrb[0].mxu0
      %v2787 = vpop.f32.mrb[0].mxu0
      %v2788 = vadd.f32 0.0, %v2787
      %v2789 = vpop.f32.mrb[0].mxu0
      %2790 = vmatprep.mubr.bf16.mxu0 0
      %2791 = vmatmul.mubr.bf16.gmra.mrb[0].mxu0 %v1586
      %v2792 = vpop.f32.mrb[0].mxu0
      %v2793 = vadd.f32 0.0, %v2792
      %v2794 = vpop.f32.mrb[0].mxu0
      %v2795 = vpop.f32.mrb[0].mxu0
      %v2796 = vadd.f32 0.0, %v2795
      %v2797 = vpop.f32.mrb[0].mxu0
      %2798 = vmatprep.mubr.bf16.mxu0 0
      %2799 = vmatmul.mubr.bf16.gmra.mrb[0].mxu0 %v1589
      %v2800 = vpop.f32.mrb[0].mxu0
      %v2801 = vadd.f32 0.0, %v2800
      %v2802 = vpop.f32.mrb[0].mxu0
      %v2803 = vpop.f32.mrb[0].mxu0
      %v2804 = vadd.f32 0.0, %v2803
      %v2805 = vpop.f32.mrb[0].mxu0
      %2806 = vmatprep.mubr.bf16.mxu0 0
      %2807 = vmatmul.mubr.bf16.gmra.mrb[0].mxu0 %v1592
      %v2808 = vpop.f32.mrb[0].mxu0
      %v2809 = vadd.f32 0.0, %v2808
      %v2810 = vpop.f32.mrb[0].mxu0
      %v2811 = vpop.f32.mrb[0].mxu0
      %v2812 = vadd.f32 0.0, %v2811
      %v2813 = vpop.f32.mrb[0].mxu0
      %2814 = vmatprep.mubr.bf16.mxu0 0
      %2815 = vmatmul.mubr.bf16.gmra.mrb[0].mxu0 %v1595
      %v2816 = vpop.f32.mrb[0].mxu0
      %v2817 = vadd.f32 0.0, %v2816
      %v2818 = vpop.f32.mrb[0].mxu0
      %v2819 = vpop.f32.mrb[0].mxu0
      %v2820 = vadd.f32 0.0, %v2819
      %v2821 = vpop.f32.mrb[0].mxu0
      %2822 = vmatprep.mubr.bf16.mxu0 0
      %2823 = vmatmul.mubr.bf16.gmra.mrb[0].mxu0 %v1241
      %v2824 = vpop.f32.mrb[0].mxu0
      %v2825 = vadd.f32 0.0, %v2824
      %v2826 = vpop.f32.mrb[0].mxu0
      %v2827 = vpop.f32.mrb[0].mxu0
      %v2828 = vadd.f32 0.0, %v2827
      %v2829 = vpop.f32.mrb[0].mxu0
      %2830 = vmatprep.mubr.bf16.mxu0 0
      %2831 = vmatmul.mubr.bf16.gmra.mrb[0].mxu0 %v1244
      %v2832 = vpop.f32.mrb[0].mxu0
      %v2833 = vadd.f32 0.0, %v2832
      %v2834 = vpop.f32.mrb[0].mxu0
      %v2835 = vpop.f32.mrb[0].mxu0
      %v2836 = vadd.f32 0.0, %v2835
      %v2837 = vpop.f32.mrb[0].mxu0
      %2838 = vmatprep.mubr.bf16.mxu0 0
      %2839 = vmatmul.mubr.bf16.gmra.mrb[0].mxu0 %v1247
      %v2840 = vpop.f32.mrb[0].mxu0
      %v2841 = vadd.f32 0.0, %v2840
      %v2842 = vpop.f32.mrb[0].mxu0
      %v2843 = vpop.f32.mrb[0].mxu0
      %v2844 = vadd.f32 0.0, %v2843
      %v2845 = vpop.f32.mrb[0].mxu0
      %2846 = vmatprep.mubr.bf16.mxu0 0
      %2847 = vmatmul.mubr.bf16.gmra.mrb[0].mxu0 %v2729
      %v2848 = vpop.f32.mrb[0].mxu0
      %v2849 = vadd.f32 0.0, %v2848
      %v2850 = vpop.f32.mrb[0].mxu0
      %v2851 = vpop.f32.mrb[0].mxu0
      %v2852 = vadd.f32 0.0, %v2851
      %v2853 = vpop.f32.mrb[0].mxu0
      %2854 = vmatprep.mubr.bf16.mxu0 0
      %2855 = vmatmul.mubr.bf16.gmra.mrb[0].mxu0 %v1886
      %v2856 = vpop.f32.mrb[0].mxu0
      %v2857 = vadd.f32 0.0, %v2856
      %v2858 = vpop.f32.mrb[0].mxu0
      %v2859 = vpop.f32.mrb[0].mxu0
      %v2860 = vadd.f32 0.0, %v2859
      %v2861 = vpop.f32.mrb[0].mxu0
      %2862 = vmatprep.mubr.bf16.mxu0 0
      %2863 = vmatmul.mubr.bf16.gmra.mrb[0].mxu0 %v1889
      %v2864 = vpop.f32.mrb[0].mxu0
      %v2865 = vadd.f32 0.0, %v2864
      %v2866 = vpop.f32.mrb[0].mxu0
      %v2867 = vpop.f32.mrb[0].mxu0
      %v2868 = vadd.f32 0.0, %v2867
      %v2869 = vpop.f32.mrb[0].mxu0
      %2870 = vmatprep.mubr.bf16.mxu0 0
      %2871 = vmatmul.mubr.bf16.gmra.mrb[0].mxu0 %v2732
      %v2872 = vpop.f32.mrb[0].mxu0
      %v2873 = vadd.f32 0.0, %v2872
      %v2874 = vpop.f32.mrb[0].mxu0
      %v2875 = vpop.f32.mrb[0].mxu0
      %v2876 = vadd.f32 0.0, %v2875
      %v2877 = vpop.f32.mrb[0].mxu0
      %2878 = vdwg.mxu0
      %v2879 = vadd.f32 %v2683, %v2769
      %v2880 = vadd.f32 %v2684, %v2772
      %v2881 = vadd.f32 %v2685, %v2777
      %v2882 = vadd.f32 %v2686, %v2780
      %v2883 = vadd.f32 %v2687, %v2785
      %v2884 = vadd.f32 %v2688, %v2788
      %v2885 = vadd.f32 %v2689, %v2793
      %v2886 = vadd.f32 %v2690, %v2796
      %v2887 = vadd.f32 %v2691, %v2801
      %v2888 = vadd.f32 %v2692, %v2804
      %v2889 = vadd.f32 %v2693, %v2809
      %v2890 = vadd.f32 %v2694, %v2812
      %v2891 = vadd.f32 %v2695, %v2817
      %v2892 = vadd.f32 %v2696, %v2820
      %v2893 = vadd.f32 %v2697, %v2825
      %v2894 = vadd.f32 %v2698, %v2828
      %v2895 = vadd.f32 %v2699, %v2833
      %v2896 = vadd.f32 %v2700, %v2836
      %v2897 = vadd.f32 %v2701, %v2841
      %v2898 = vadd.f32 %v2702, %v2844
      %v2899 = vadd.f32 %v2703, %v2849
      %v2900 = vadd.f32 %v2704, %v2852
      %v2901 = vadd.f32 %v2705, %v2857
      %v2902 = vadd.f32 %v2706, %v2860
      %v2903 = vadd.f32 %v2707, %v2865
      %v2904 = vadd.f32 %v2708, %v2868
      %v2905 = vadd.f32 %v2709, %v2873
      %v2906 = vadd.f32 %v2710, %v2876
      %v2908 = vrot.slane %v204, 5
      %v2909 = vrot.slane %v2908, 4
      %v2910 = vrot.slane %v205, 5
      %v2911 = vsel %vm1451, %v2909, %v2910
      %v2912 = vpack.c.b16 %v2717, %v2717
      %v2913 = vunpack.c.l.b16 %v2911
      %v2914 = vpack.c.b16 %v1845, %v1845
      %v2915 = vpack.c.b16 %v1847, %v1846
      %v2916 = vpack.c.b16 %v1849, %v1848
      %v2917 = vpack.c.b16 %v2913, %v1850
      %v2920 = vsel %vm366, %v2912, %v2914
      %v2923 = vunpack.c.l.b16 %v262
      %v2924 = vunpack.c.l.b16 %v263
      %v2925 = vpack.c.b16 %v2924, %v2923
      %v2927 = vsel %vm614, %v2920, 0
      %v2930 = vsel %vm614, %v2915, 0
      %v2933 = vsel %vm614, %v2916, 0
      %v2936 = vsel %vm614, %v2917, 0
      %2938 = vmatprep.subr.bf16.mxu0 0
      %2939 = vmatpush1.bf16.msra.mxu0 %v2925
      %2940 = vmatprep.subr.bf16.mxu0 0
      %2941 = vmatpush1.bf16.msra.mxu0 0
      %2942 = vmatprep.subr.bf16.mxu0 0
      %2943 = vmatpush1.bf16.msra.mxu0 0
      %2944 = vmatprep.subr.bf16.mxu0 0
      %2945 = vmatpush1.bf16.msra.mxu0 0
      %2946 = vmatprep.subr.bf16.mxu0 0
      %2947 = vmatpush1.bf16.msra.mxu0 0
      %2948 = vmatprep.subr.bf16.mxu0 0
      %2949 = vmatpush1.bf16.msra.mxu0 0
      %2950 = vmatprep.subr.bf16.mxu0 0
      %2951 = vmatpush1.bf16.msra.mxu0 0
      %2952 = vmatprep.subr.bf16.mxu0 0
      %2953 = vmatpush1.bf16.msra.mxu0 0
      %2954 = vmatprep.subr.bf16.mxu0 0
      %2955 = vmatpush1.bf16.msra.mxu0 0
      %2956 = vmatprep.subr.bf16.mxu0 0
      %2957 = vmatpush1.bf16.msra.mxu0 0
      %2958 = vmatprep.subr.bf16.mxu0 0
      %2959 = vmatpush1.bf16.msra.mxu0 0
      %2960 = vmatprep.subr.bf16.mxu0 0
      %2961 = vmatpush1.bf16.msra.mxu0 0
      %2962 = vmatprep.subr.bf16.mxu0 0
      %2963 = vmatpush1.bf16.msra.mxu0 0
      %2964 = vmatprep.subr.bf16.mxu0 0
      %2965 = vmatpush1.bf16.msra.mxu0 0
      %2966 = vmatprep.subr.bf16.mxu0 0
      %2967 = vmatpush1.bf16.msra.mxu0 0
      %2968 = vmatprep.subr.bf16.mxu0 0
      %2969 = vmatpush1.bf16.msra.mxu0 0
      %2970 = vmatprep.mubr.bf16.mxu0 0
      %2971 = vmatmul.mubr.bf16.gmra.mrb[0].mxu0 %v1903
      %v2972 = vpop.f32.mrb[0].mxu0
      %v2973 = vadd.f32 0.0, %v2972
      %v2974 = vpop.f32.mrb[0].mxu0
      %v2975 = vpop.f32.mrb[0].mxu0
      %v2976 = vadd.f32 0.0, %v2975
      %v2977 = vpop.f32.mrb[0].mxu0
      %2978 = vmatprep.mubr.bf16.mxu0 0
      %2979 = vmatmul.mubr.bf16.gmra.mrb[0].mxu0 %v1906
      %v2980 = vpop.f32.mrb[0].mxu0
      %v2981 = vadd.f32 0.0, %v2980
      %v2982 = vpop.f32.mrb[0].mxu0
      %v2983 = vpop.f32.mrb[0].mxu0
      %v2984 = vadd.f32 0.0, %v2983
      %v2985 = vpop.f32.mrb[0].mxu0
      %2986 = vmatprep.mubr.bf16.mxu0 0
      %2987 = vmatmul.mubr.bf16.gmra.mrb[0].mxu0 %v1909
      %v2988 = vpop.f32.mrb[0].mxu0
      %v2989 = vadd.f32 0.0, %v2988
      %v2990 = vpop.f32.mrb[0].mxu0
      %v2991 = vpop.f32.mrb[0].mxu0
      %v2992 = vadd.f32 0.0, %v2991
      %v2993 = vpop.f32.mrb[0].mxu0
      %2994 = vmatprep.mubr.bf16.mxu0 0
      %2995 = vmatmul.mubr.bf16.gmra.mrb[0].mxu0 %v1911
      %v2996 = vpop.f32.mrb[0].mxu0
      %v2997 = vadd.f32 0.0, %v2996
      %v2998 = vpop.f32.mrb[0].mxu0
      %v2999 = vpop.f32.mrb[0].mxu0
      %v3000 = vadd.f32 0.0, %v2999
      %v3001 = vpop.f32.mrb[0].mxu0
      %3002 = vmatprep.mubr.bf16.mxu0 0
      %3003 = vmatmul.mubr.bf16.gmra.mrb[0].mxu0 %v1914
      %v3004 = vpop.f32.mrb[0].mxu0
      %v3005 = vadd.f32 0.0, %v3004
      %v3006 = vpop.f32.mrb[0].mxu0
      %v3007 = vpop.f32.mrb[0].mxu0
      %v3008 = vadd.f32 0.0, %v3007
      %v3009 = vpop.f32.mrb[0].mxu0
      %3010 = vmatprep.mubr.bf16.mxu0 0
      %3011 = vmatmul.mubr.bf16.gmra.mrb[0].mxu0 %v1917
      %v3012 = vpop.f32.mrb[0].mxu0
      %v3013 = vadd.f32 0.0, %v3012
      %v3014 = vpop.f32.mrb[0].mxu0
      %v3015 = vpop.f32.mrb[0].mxu0
      %v3016 = vadd.f32 0.0, %v3015
      %v3017 = vpop.f32.mrb[0].mxu0
      %3018 = vmatprep.mubr.bf16.mxu0 0
      %3019 = vmatmul.mubr.bf16.gmra.mrb[0].mxu0 %v1920
      %v3020 = vpop.f32.mrb[0].mxu0
      %v3021 = vadd.f32 0.0, %v3020
      %v3022 = vpop.f32.mrb[0].mxu0
      %v3023 = vpop.f32.mrb[0].mxu0
      %v3024 = vadd.f32 0.0, %v3023
      %v3025 = vpop.f32.mrb[0].mxu0
      %3026 = vmatprep.mubr.bf16.mxu0 0
      %3027 = vmatmul.mubr.bf16.gmra.mrb[0].mxu0 %v1569
      %v3028 = vpop.f32.mrb[0].mxu0
      %v3029 = vadd.f32 0.0, %v3028
      %v3030 = vpop.f32.mrb[0].mxu0
      %v3031 = vpop.f32.mrb[0].mxu0
      %v3032 = vadd.f32 0.0, %v3031
      %v3033 = vpop.f32.mrb[0].mxu0
      %3034 = vmatprep.mubr.bf16.mxu0 0
      %3035 = vmatmul.mubr.bf16.gmra.mrb[0].mxu0 %v1572
      %v3036 = vpop.f32.mrb[0].mxu0
      %v3037 = vadd.f32 0.0, %v3036
      %v3038 = vpop.f32.mrb[0].mxu0
      %v3039 = vpop.f32.mrb[0].mxu0
      %v3040 = vadd.f32 0.0, %v3039
      %v3041 = vpop.f32.mrb[0].mxu0
      %3042 = vmatprep.mubr.bf16.mxu0 0
      %3043 = vmatmul.mubr.bf16.gmra.mrb[0].mxu0 %v1575
      %v3044 = vpop.f32.mrb[0].mxu0
      %v3045 = vadd.f32 0.0, %v3044
      %v3046 = vpop.f32.mrb[0].mxu0
      %v3047 = vpop.f32.mrb[0].mxu0
      %v3048 = vadd.f32 0.0, %v3047
      %v3049 = vpop.f32.mrb[0].mxu0
      %3050 = vmatprep.mubr.bf16.mxu0 0
      %3051 = vmatmul.mubr.bf16.gmra.mrb[0].mxu0 %v2927
      %v3052 = vpop.f32.mrb[0].mxu0
      %v3053 = vadd.f32 0.0, %v3052
      %v3054 = vpop.f32.mrb[0].mxu0
      %v3055 = vpop.f32.mrb[0].mxu0
      %v3056 = vadd.f32 0.0, %v3055
      %v3057 = vpop.f32.mrb[0].mxu0
      %3058 = vmatprep.mubr.bf16.mxu0 0
      %3059 = vmatmul.mubr.bf16.gmra.mrb[0].mxu0 %v2930
      %v3060 = vpop.f32.mrb[0].mxu0
      %v3061 = vadd.f32 0.0, %v3060
      %v3062 = vpop.f32.mrb[0].mxu0
      %v3063 = vpop.f32.mrb[0].mxu0
      %v3064 = vadd.f32 0.0, %v3063
      %v3065 = vpop.f32.mrb[0].mxu0
      %3066 = vmatprep.mubr.bf16.mxu0 0
      %3067 = vmatmul.mubr.bf16.gmra.mrb[0].mxu0 %v2933
      %v3068 = vpop.f32.mrb[0].mxu0
      %v3069 = vadd.f32 0.0, %v3068
      %v3070 = vpop.f32.mrb[0].mxu0
      %v3071 = vpop.f32.mrb[0].mxu0
      %v3072 = vadd.f32 0.0, %v3071
      %v3073 = vpop.f32.mrb[0].mxu0
      %3074 = vmatprep.mubr.bf16.mxu0 0
      %3075 = vmatmul.mubr.bf16.gmra.mrb[0].mxu0 %v2936
      %v3076 = vpop.f32.mrb[0].mxu0
      %v3077 = vadd.f32 0.0, %v3076
      %v3078 = vpop.f32.mrb[0].mxu0
      %v3079 = vpop.f32.mrb[0].mxu0
      %v3080 = vadd.f32 0.0, %v3079
      %v3081 = vpop.f32.mrb[0].mxu0
      %3082 = vdwg.mxu0
      %v3083 = vadd.f32 %v2879, %v2973
      %v3084 = vadd.f32 %v2880, %v2976
      %v3085 = vadd.f32 %v2881, %v2981
      %v3086 = vadd.f32 %v2882, %v2984
      %v3087 = vadd.f32 %v2883, %v2989
      %v3088 = vadd.f32 %v2884, %v2992
      %v3089 = vadd.f32 %v2885, %v2997
      %v3090 = vadd.f32 %v2886, %v3000
      %v3091 = vadd.f32 %v2887, %v3005
      %v3092 = vadd.f32 %v2888, %v3008
      %v3093 = vadd.f32 %v2889, %v3013
      %v3094 = vadd.f32 %v2890, %v3016
      %v3095 = vadd.f32 %v2891, %v3021
      %v3096 = vadd.f32 %v2892, %v3024
      %v3097 = vadd.f32 %v2893, %v3029
      %v3098 = vadd.f32 %v2894, %v3032
      %v3099 = vadd.f32 %v2895, %v3037
      %v3100 = vadd.f32 %v2896, %v3040
      %v3101 = vadd.f32 %v2897, %v3045
      %v3102 = vadd.f32 %v2898, %v3048
      %v3103 = vadd.f32 %v2899, %v3053
      %v3104 = vadd.f32 %v2900, %v3056
      %v3105 = vadd.f32 %v2901, %v3061
      %v3106 = vadd.f32 %v2902, %v3064
      %v3107 = vadd.f32 %v2903, %v3069
      %v3108 = vadd.f32 %v2904, %v3072
      %v3109 = vadd.f32 %v2905, %v3077
      %v3110 = vadd.f32 %v2906, %v3080
      %v3112 = vunpack.c.l.b16 %v222
      %v3113 = vpack.c.b16 %v339, %v338
      %v3114 = vpack.c.b16 %v341, %v340
      %v3115 = vpack.c.b16 %v343, %v342
      %v3116 = vpack.c.b16 %v3112, %v3112
      %v3118 = vunpack.c.l.b16 %v240
      %v3119 = vpack.c.b16 %v356, %v356
      %v3120 = vpack.c.b16 %v3118, %v361
      %v3123 = vsel %vm366, %v3116, %v3119
      %v3126 = vunpack.c.l.b16 %v264
      %v3127 = vunpack.c.l.b16 %v265
      %v3128 = vpack.c.b16 %v3127, %v3126
      %v3131 = vsel %vm614, %v3113, 0
      %v3134 = vsel %vm614, %v3114, 0
      %v3137 = vsel %vm614, %v3115, 0
      %v3139 = vsel %vm614, %v3123, 0
      %v3142 = vsel %vm614, %v3120, 0
      %3144 = vmatprep.subr.bf16.mxu0 0
      %3145 = vmatpush1.bf16.msra.mxu0 %v3128
      %3146 = vmatprep.subr.bf16.mxu0 0
      %3147 = vmatpush1.bf16.msra.mxu0 0
      %3148 = vmatprep.subr.bf16.mxu0 0
      %3149 = vmatpush1.bf16.msra.mxu0 0
      %3150 = vmatprep.subr.bf16.mxu0 0
      %3151 = vmatpush1.bf16.msra.mxu0 0
      %3152 = vmatprep.subr.bf16.mxu0 0
      %3153 = vmatpush1.bf16.msra.mxu0 0
      %3154 = vmatprep.subr.bf16.mxu0 0
      %3155 = vmatpush1.bf16.msra.mxu0 0
      %3156 = vmatprep.subr.bf16.mxu0 0
      %3157 = vmatpush1.bf16.msra.mxu0 0
      %3158 = vmatprep.subr.bf16.mxu0 0
      %3159 = vmatpush1.bf16.msra.mxu0 0
      %3160 = vmatprep.subr.bf16.mxu0 0
      %3161 = vmatpush1.bf16.msra.mxu0 0
      %3162 = vmatprep.subr.bf16.mxu0 0
      %3163 = vmatpush1.bf16.msra.mxu0 0
      %3164 = vmatprep.subr.bf16.mxu0 0
      %3165 = vmatpush1.bf16.msra.mxu0 0
      %3166 = vmatprep.subr.bf16.mxu0 0
      %3167 = vmatpush1.bf16.msra.mxu0 0
      %3168 = vmatprep.subr.bf16.mxu0 0
      %3169 = vmatpush1.bf16.msra.mxu0 0
      %3170 = vmatprep.subr.bf16.mxu0 0
      %3171 = vmatpush1.bf16.msra.mxu0 0
      %3172 = vmatprep.subr.bf16.mxu0 0
      %3173 = vmatpush1.bf16.msra.mxu0 0
      %3174 = vmatprep.subr.bf16.mxu0 0
      %3175 = vmatpush1.bf16.msra.mxu0 0
      %3176 = vmatprep.mubr.bf16.mxu0 0
      %3177 = vmatmul.mubr.bf16.gmra.mrb[0].mxu0 %v2115
      %v3178 = vpop.f32.mrb[0].mxu0
      %v3179 = vadd.f32 0.0, %v3178
      %v3180 = vpop.f32.mrb[0].mxu0
      %v3181 = vpop.f32.mrb[0].mxu0
      %v3182 = vadd.f32 0.0, %v3181
      %v3183 = vpop.f32.mrb[0].mxu0
      %3184 = vmatprep.mubr.bf16.mxu0 0
      %3185 = vmatmul.mubr.bf16.gmra.mrb[0].mxu0 %v2118
      %v3186 = vpop.f32.mrb[0].mxu0
      %v3187 = vadd.f32 0.0, %v3186
      %v3188 = vpop.f32.mrb[0].mxu0
      %v3189 = vpop.f32.mrb[0].mxu0
      %v3190 = vadd.f32 0.0, %v3189
      %v3191 = vpop.f32.mrb[0].mxu0
      %3192 = vmatprep.mubr.bf16.mxu0 0
      %3193 = vmatmul.mubr.bf16.gmra.mrb[0].mxu0 %v2121
      %v3194 = vpop.f32.mrb[0].mxu0
      %v3195 = vadd.f32 0.0, %v3194
      %v3196 = vpop.f32.mrb[0].mxu0
      %v3197 = vpop.f32.mrb[0].mxu0
      %v3198 = vadd.f32 0.0, %v3197
      %v3199 = vpop.f32.mrb[0].mxu0
      %3200 = vmatprep.mubr.bf16.mxu0 0
      %3201 = vmatmul.mubr.bf16.gmra.mrb[0].mxu0 %v2123
      %v3202 = vpop.f32.mrb[0].mxu0
      %v3203 = vadd.f32 0.0, %v3202
      %v3204 = vpop.f32.mrb[0].mxu0
      %v3205 = vpop.f32.mrb[0].mxu0
      %v3206 = vadd.f32 0.0, %v3205
      %v3207 = vpop.f32.mrb[0].mxu0
      %3208 = vmatprep.mubr.bf16.mxu0 0
      %3209 = vmatmul.mubr.bf16.gmra.mrb[0].mxu0 %v619
      %v3210 = vpop.f32.mrb[0].mxu0
      %v3211 = vadd.f32 0.0, %v3210
      %v3212 = vpop.f32.mrb[0].mxu0
      %v3213 = vpop.f32.mrb[0].mxu0
      %v3214 = vadd.f32 0.0, %v3213
      %v3215 = vpop.f32.mrb[0].mxu0
      %3216 = vmatprep.mubr.bf16.mxu0 0
      %3217 = vmatmul.mubr.bf16.gmra.mrb[0].mxu0 %v622
      %v3218 = vpop.f32.mrb[0].mxu0
      %v3219 = vadd.f32 0.0, %v3218
      %v3220 = vpop.f32.mrb[0].mxu0
      %v3221 = vpop.f32.mrb[0].mxu0
      %v3222 = vadd.f32 0.0, %v3221
      %v3223 = vpop.f32.mrb[0].mxu0
      %3224 = vmatprep.mubr.bf16.mxu0 0
      %3225 = vmatmul.mubr.bf16.gmra.mrb[0].mxu0 %v2126
      %v3226 = vpop.f32.mrb[0].mxu0
      %v3227 = vadd.f32 0.0, %v3226
      %v3228 = vpop.f32.mrb[0].mxu0
      %v3229 = vpop.f32.mrb[0].mxu0
      %v3230 = vadd.f32 0.0, %v3229
      %v3231 = vpop.f32.mrb[0].mxu0
      %3232 = vmatprep.mubr.bf16.mxu0 0
      %3233 = vmatmul.mubr.bf16.gmra.mrb[0].mxu0 %v3131
      %v3234 = vpop.f32.mrb[0].mxu0
      %v3235 = vadd.f32 0.0, %v3234
      %v3236 = vpop.f32.mrb[0].mxu0
      %v3237 = vpop.f32.mrb[0].mxu0
      %v3238 = vadd.f32 0.0, %v3237
      %v3239 = vpop.f32.mrb[0].mxu0
      %3240 = vmatprep.mubr.bf16.mxu0 0
      %3241 = vmatmul.mubr.bf16.gmra.mrb[0].mxu0 %v3134
      %v3242 = vpop.f32.mrb[0].mxu0
      %v3243 = vadd.f32 0.0, %v3242
      %v3244 = vpop.f32.mrb[0].mxu0
      %v3245 = vpop.f32.mrb[0].mxu0
      %v3246 = vadd.f32 0.0, %v3245
      %v3247 = vpop.f32.mrb[0].mxu0
      %3248 = vmatprep.mubr.bf16.mxu0 0
      %3249 = vmatmul.mubr.bf16.gmra.mrb[0].mxu0 %v3137
      %v3250 = vpop.f32.mrb[0].mxu0
      %v3251 = vadd.f32 0.0, %v3250
      %v3252 = vpop.f32.mrb[0].mxu0
      %v3253 = vpop.f32.mrb[0].mxu0
      %v3254 = vadd.f32 0.0, %v3253
      %v3255 = vpop.f32.mrb[0].mxu0
      %3256 = vmatprep.mubr.bf16.mxu0 0
      %3257 = vmatmul.mubr.bf16.gmra.mrb[0].mxu0 %v3139
      %v3258 = vpop.f32.mrb[0].mxu0
      %v3259 = vadd.f32 0.0, %v3258
      %v3260 = vpop.f32.mrb[0].mxu0
      %v3261 = vpop.f32.mrb[0].mxu0
      %v3262 = vadd.f32 0.0, %v3261
      %v3263 = vpop.f32.mrb[0].mxu0
      %3264 = vmatprep.mubr.bf16.mxu0 0
      %3265 = vmatmul.mubr.bf16.gmra.mrb[0].mxu0 %v639
      %v3266 = vpop.f32.mrb[0].mxu0
      %v3267 = vadd.f32 0.0, %v3266
      %v3268 = vpop.f32.mrb[0].mxu0
      %v3269 = vpop.f32.mrb[0].mxu0
      %v3270 = vadd.f32 0.0, %v3269
      %v3271 = vpop.f32.mrb[0].mxu0
      %3272 = vmatprep.mubr.bf16.mxu0 0
      %3273 = vmatmul.mubr.bf16.gmra.mrb[0].mxu0 %v642
      %v3274 = vpop.f32.mrb[0].mxu0
      %v3275 = vadd.f32 0.0, %v3274
      %v3276 = vpop.f32.mrb[0].mxu0
      %v3277 = vpop.f32.mrb[0].mxu0
      %v3278 = vadd.f32 0.0, %v3277
      %v3279 = vpop.f32.mrb[0].mxu0
      %3280 = vmatprep.mubr.bf16.mxu0 0
      %3281 = vmatmul.mubr.bf16.gmra.mrb[0].mxu0 %v3142
      %v3282 = vpop.f32.mrb[0].mxu0
      %v3283 = vadd.f32 0.0, %v3282
      %v3284 = vpop.f32.mrb[0].mxu0
      %v3285 = vpop.f32.mrb[0].mxu0
      %v3286 = vadd.f32 0.0, %v3285
      %v3287 = vpop.f32.mrb[0].mxu0
      %3288 = vdwg.mxu0
      %v3289 = vadd.f32 %v3083, %v3179
      %v3290 = vadd.f32 %v3084, %v3182
      %v3291 = vadd.f32 %v3085, %v3187
      %v3292 = vadd.f32 %v3086, %v3190
      %v3293 = vadd.f32 %v3087, %v3195
      %v3294 = vadd.f32 %v3088, %v3198
      %v3295 = vadd.f32 %v3089, %v3203
      %v3296 = vadd.f32 %v3090, %v3206
      %v3297 = vadd.f32 %v3091, %v3211
      %v3298 = vadd.f32 %v3092, %v3214
      %v3299 = vadd.f32 %v3093, %v3219
      %v3300 = vadd.f32 %v3094, %v3222
      %v3301 = vadd.f32 %v3095, %v3227
      %v3302 = vadd.f32 %v3096, %v3230
      %v3303 = vadd.f32 %v3097, %v3235
      %v3304 = vadd.f32 %v3098, %v3238
      %v3305 = vadd.f32 %v3099, %v3243
      %v3306 = vadd.f32 %v3100, %v3246
      %v3307 = vadd.f32 %v3101, %v3251
      %v3308 = vadd.f32 %v3102, %v3254
      %v3309 = vadd.f32 %v3103, %v3259
      %v3310 = vadd.f32 %v3104, %v3262
      %v3311 = vadd.f32 %v3105, %v3267
      %v3312 = vadd.f32 %v3106, %v3270
      %v3313 = vadd.f32 %v3107, %v3275
      %v3314 = vadd.f32 %v3108, %v3278
      %v3315 = vadd.f32 %v3109, %v3283
      %v3316 = vadd.f32 %v3110, %v3286
      %v3318 = vshrl.u32 %v222, 16
      %v3320 = vrot.slane %v3318, 4
      %v3321 = vshll.u32 %v222, 16
      %v3323 = vrot.slane %v3321, 5
      %v3324 = vor.u32 %v3320, %v3323
      %v3325 = vrot.slane %v3324, 4
      %v3327 = vshll.u32 %v223, 16
      %v3329 = vrot.slane %v3327, 5
      %v3330 = vsel %vm375, %v3325, %v3329
      %v3331 = vpack.c.b16 %v3118, %v3118
      %v3332 = vunpack.c.l.b16 %v3330
      %v3333 = vpack.c.b16 %v592, %v592
      %v3334 = vpack.c.b16 %v3332, %v597
      %v3337 = vsel %vm366, %v3331, %v3333
      %v3340 = vunpack.c.l.b16 %v266
      %v3341 = vunpack.c.l.b16 %v267
      %v3342 = vpack.c.b16 %v3341, %v3340
      %v3344 = vsel %vm614, %v3337, 0
      %v3347 = vsel %vm614, %v3334, 0
      %3349 = vmatprep.subr.bf16.mxu0 0
      %3350 = vmatpush1.bf16.msra.mxu0 %v3342
      %3351 = vmatprep.subr.bf16.mxu0 0
      %3352 = vmatpush1.bf16.msra.mxu0 0
      %3353 = vmatprep.subr.bf16.mxu0 0
      %3354 = vmatpush1.bf16.msra.mxu0 0
      %3355 = vmatprep.subr.bf16.mxu0 0
      %3356 = vmatpush1.bf16.msra.mxu0 0
      %3357 = vmatprep.subr.bf16.mxu0 0
      %3358 = vmatpush1.bf16.msra.mxu0 0
      %3359 = vmatprep.subr.bf16.mxu0 0
      %3360 = vmatpush1.bf16.msra.mxu0 0
      %3361 = vmatprep.subr.bf16.mxu0 0
      %3362 = vmatpush1.bf16.msra.mxu0 0
      %3363 = vmatprep.subr.bf16.mxu0 0
      %3364 = vmatpush1.bf16.msra.mxu0 0
      %3365 = vmatprep.subr.bf16.mxu0 0
      %3366 = vmatpush1.bf16.msra.mxu0 0
      %3367 = vmatprep.subr.bf16.mxu0 0
      %3368 = vmatpush1.bf16.msra.mxu0 0
      %3369 = vmatprep.subr.bf16.mxu0 0
      %3370 = vmatpush1.bf16.msra.mxu0 0
      %3371 = vmatprep.subr.bf16.mxu0 0
      %3372 = vmatpush1.bf16.msra.mxu0 0
      %3373 = vmatprep.subr.bf16.mxu0 0
      %3374 = vmatpush1.bf16.msra.mxu0 0
      %3375 = vmatprep.subr.bf16.mxu0 0
      %3376 = vmatpush1.bf16.msra.mxu0 0
      %3377 = vmatprep.subr.bf16.mxu0 0
      %3378 = vmatpush1.bf16.msra.mxu0 0
      %3379 = vmatprep.subr.bf16.mxu0 0
      %3380 = vmatpush1.bf16.msra.mxu0 0
      %3381 = vmatprep.mubr.bf16.mxu0 0
      %3382 = vmatmul.mubr.bf16.gmra.mrb[0].mxu0 %v818
      %v3383 = vpop.f32.mrb[0].mxu0
      %v3384 = vadd.f32 0.0, %v3383
      %v3385 = vpop.f32.mrb[0].mxu0
      %v3386 = vpop.f32.mrb[0].mxu0
      %v3387 = vadd.f32 0.0, %v3386
      %v3388 = vpop.f32.mrb[0].mxu0
      %3389 = vmatprep.mubr.bf16.mxu0 0
      %3390 = vmatmul.mubr.bf16.gmra.mrb[0].mxu0 %v821
      %v3391 = vpop.f32.mrb[0].mxu0
      %v3392 = vadd.f32 0.0, %v3391
      %v3393 = vpop.f32.mrb[0].mxu0
      %v3394 = vpop.f32.mrb[0].mxu0
      %v3395 = vadd.f32 0.0, %v3394
      %v3396 = vpop.f32.mrb[0].mxu0
      %3397 = vmatprep.mubr.bf16.mxu0 0
      %3398 = vmatmul.mubr.bf16.gmra.mrb[0].mxu0 %v824
      %v3399 = vpop.f32.mrb[0].mxu0
      %v3400 = vadd.f32 0.0, %v3399
      %v3401 = vpop.f32.mrb[0].mxu0
      %v3402 = vpop.f32.mrb[0].mxu0
      %v3403 = vadd.f32 0.0, %v3402
      %v3404 = vpop.f32.mrb[0].mxu0
      %3405 = vmatprep.mubr.bf16.mxu0 0
      %3406 = vmatmul.mubr.bf16.gmra.mrb[0].mxu0 %v2328
      %v3407 = vpop.f32.mrb[0].mxu0
      %v3408 = vadd.f32 0.0, %v3407
      %v3409 = vpop.f32.mrb[0].mxu0
      %v3410 = vpop.f32.mrb[0].mxu0
      %v3411 = vadd.f32 0.0, %v3410
      %v3412 = vpop.f32.mrb[0].mxu0
      %3413 = vmatprep.mubr.bf16.mxu0 0
      %3414 = vmatmul.mubr.bf16.gmra.mrb[0].mxu0 %v1233
      %v3415 = vpop.f32.mrb[0].mxu0
      %v3416 = vadd.f32 0.0, %v3415
      %v3417 = vpop.f32.mrb[0].mxu0
      %v3418 = vpop.f32.mrb[0].mxu0
      %v3419 = vadd.f32 0.0, %v3418
      %v3420 = vpop.f32.mrb[0].mxu0
      %3421 = vmatprep.mubr.bf16.mxu0 0
      %3422 = vmatmul.mubr.bf16.gmra.mrb[0].mxu0 %v1236
      %v3423 = vpop.f32.mrb[0].mxu0
      %v3424 = vadd.f32 0.0, %v3423
      %v3425 = vpop.f32.mrb[0].mxu0
      %v3426 = vpop.f32.mrb[0].mxu0
      %v3427 = vadd.f32 0.0, %v3426
      %v3428 = vpop.f32.mrb[0].mxu0
      %3429 = vmatprep.mubr.bf16.mxu0 0
      %3430 = vmatmul.mubr.bf16.gmra.mrb[0].mxu0 %v2331
      %v3431 = vpop.f32.mrb[0].mxu0
      %v3432 = vadd.f32 0.0, %v3431
      %v3433 = vpop.f32.mrb[0].mxu0
      %v3434 = vpop.f32.mrb[0].mxu0
      %v3435 = vadd.f32 0.0, %v3434
      %v3436 = vpop.f32.mrb[0].mxu0
      %3437 = vmatprep.mubr.bf16.mxu0 0
      %3438 = vmatmul.mubr.bf16.gmra.mrb[0].mxu0 %v838
      %v3439 = vpop.f32.mrb[0].mxu0
      %v3440 = vadd.f32 0.0, %v3439
      %v3441 = vpop.f32.mrb[0].mxu0
      %v3442 = vpop.f32.mrb[0].mxu0
      %v3443 = vadd.f32 0.0, %v3442
      %v3444 = vpop.f32.mrb[0].mxu0
      %3445 = vmatprep.mubr.bf16.mxu0 0
      %3446 = vmatmul.mubr.bf16.gmra.mrb[0].mxu0 %v841
      %v3447 = vpop.f32.mrb[0].mxu0
      %v3448 = vadd.f32 0.0, %v3447
      %v3449 = vpop.f32.mrb[0].mxu0
      %v3450 = vpop.f32.mrb[0].mxu0
      %v3451 = vadd.f32 0.0, %v3450
      %v3452 = vpop.f32.mrb[0].mxu0
      %3453 = vmatprep.mubr.bf16.mxu0 0
      %3454 = vmatmul.mubr.bf16.gmra.mrb[0].mxu0 %v844
      %v3455 = vpop.f32.mrb[0].mxu0
      %v3456 = vadd.f32 0.0, %v3455
      %v3457 = vpop.f32.mrb[0].mxu0
      %v3458 = vpop.f32.mrb[0].mxu0
      %v3459 = vadd.f32 0.0, %v3458
      %v3460 = vpop.f32.mrb[0].mxu0
      %3461 = vmatprep.mubr.bf16.mxu0 0
      %3462 = vmatmul.mubr.bf16.gmra.mrb[0].mxu0 %v3344
      %v3463 = vpop.f32.mrb[0].mxu0
      %v3464 = vadd.f32 0.0, %v3463
      %v3465 = vpop.f32.mrb[0].mxu0
      %v3466 = vpop.f32.mrb[0].mxu0
      %v3467 = vadd.f32 0.0, %v3466
      %v3468 = vpop.f32.mrb[0].mxu0
      %3469 = vmatprep.mubr.bf16.mxu0 0
      %3470 = vmatmul.mubr.bf16.gmra.mrb[0].mxu0 %v1253
      %v3471 = vpop.f32.mrb[0].mxu0
      %v3472 = vadd.f32 0.0, %v3471
      %v3473 = vpop.f32.mrb[0].mxu0
      %v3474 = vpop.f32.mrb[0].mxu0
      %v3475 = vadd.f32 0.0, %v3474
      %v3476 = vpop.f32.mrb[0].mxu0
      %3477 = vmatprep.mubr.bf16.mxu0 0
      %3478 = vmatmul.mubr.bf16.gmra.mrb[0].mxu0 %v1256
      %v3479 = vpop.f32.mrb[0].mxu0
      %v3480 = vadd.f32 0.0, %v3479
      %v3481 = vpop.f32.mrb[0].mxu0
      %v3482 = vpop.f32.mrb[0].mxu0
      %v3483 = vadd.f32 0.0, %v3482
      %v3484 = vpop.f32.mrb[0].mxu0
      %3485 = vmatprep.mubr.bf16.mxu0 0
      %3486 = vmatmul.mubr.bf16.gmra.mrb[0].mxu0 %v3347
      %v3487 = vpop.f32.mrb[0].mxu0
      %v3488 = vadd.f32 0.0, %v3487
      %v3489 = vpop.f32.mrb[0].mxu0
      %v3490 = vpop.f32.mrb[0].mxu0
      %v3491 = vadd.f32 0.0, %v3490
      %v3492 = vpop.f32.mrb[0].mxu0
      %3493 = vdwg.mxu0
      %v3494 = vadd.f32 %v3289, %v3384
      %v3495 = vadd.f32 %v3290, %v3387
      %v3496 = vadd.f32 %v3291, %v3392
      %v3497 = vadd.f32 %v3292, %v3395
      %v3498 = vadd.f32 %v3293, %v3400
      %v3499 = vadd.f32 %v3294, %v3403
      %v3500 = vadd.f32 %v3295, %v3408
      %v3501 = vadd.f32 %v3296, %v3411
      %v3502 = vadd.f32 %v3297, %v3416
      %v3503 = vadd.f32 %v3298, %v3419
      %v3504 = vadd.f32 %v3299, %v3424
      %v3505 = vadd.f32 %v3300, %v3427
      %v3506 = vadd.f32 %v3301, %v3432
      %v3507 = vadd.f32 %v3302, %v3435
      %v3508 = vadd.f32 %v3303, %v3440
      %v3509 = vadd.f32 %v3304, %v3443
      %v3510 = vadd.f32 %v3305, %v3448
      %v3511 = vadd.f32 %v3306, %v3451
      %v3512 = vadd.f32 %v3307, %v3456
      %v3513 = vadd.f32 %v3308, %v3459
      %v3514 = vadd.f32 %v3309, %v3464
      %v3515 = vadd.f32 %v3310, %v3467
      %v3516 = vadd.f32 %v3311, %v3472
      %v3517 = vadd.f32 %v3312, %v3475
      %v3518 = vadd.f32 %v3313, %v3480
      %v3519 = vadd.f32 %v3314, %v3483
      %v3520 = vadd.f32 %v3315, %v3488
      %v3521 = vadd.f32 %v3316, %v3491
      %v3523 = vshrl.u32 %v240, 16
      %v3525 = vrot.slane %v3523, 4
      %v3526 = vshll.u32 %v240, 16
      %v3528 = vrot.slane %v3526, 5
      %v3529 = vor.u32 %v3525, %v3528
      %v3530 = vrot.slane %v3529, 4
      %v3532 = vshll.u32 %v241, 16
      %v3534 = vrot.slane %v3532, 5
      %v3535 = vsel %vm375, %v3530, %v3534
      %v3536 = vpack.c.b16 %v3332, %v3332
      %v3537 = vunpack.c.l.b16 %v3535
      %v3538 = vpack.c.b16 %v1207, %v1207
      %v3539 = vpack.c.b16 %v3537, %v1212
      %v3542 = vsel %vm366, %v3536, %v3538
      %v3545 = vunpack.c.l.b16 %v268
      %v3546 = vunpack.c.l.b16 %v269
      %v3547 = vpack.c.b16 %v3546, %v3545
      %v3549 = vsel %vm614, %v3542, 0
      %v3552 = vsel %vm614, %v3539, 0
      %3554 = vmatprep.subr.bf16.mxu0 0
      %3555 = vmatpush1.bf16.msra.mxu0 %v3547
      %3556 = vmatprep.subr.bf16.mxu0 0
      %3557 = vmatpush1.bf16.msra.mxu0 0
      %3558 = vmatprep.subr.bf16.mxu0 0
      %3559 = vmatpush1.bf16.msra.mxu0 0
      %3560 = vmatprep.subr.bf16.mxu0 0
      %3561 = vmatpush1.bf16.msra.mxu0 0
      %3562 = vmatprep.subr.bf16.mxu0 0
      %3563 = vmatpush1.bf16.msra.mxu0 0
      %3564 = vmatprep.subr.bf16.mxu0 0
      %3565 = vmatpush1.bf16.msra.mxu0 0
      %3566 = vmatprep.subr.bf16.mxu0 0
      %3567 = vmatpush1.bf16.msra.mxu0 0
      %3568 = vmatprep.subr.bf16.mxu0 0
      %3569 = vmatpush1.bf16.msra.mxu0 0
      %3570 = vmatprep.subr.bf16.mxu0 0
      %3571 = vmatpush1.bf16.msra.mxu0 0
      %3572 = vmatprep.subr.bf16.mxu0 0
      %3573 = vmatpush1.bf16.msra.mxu0 0
      %3574 = vmatprep.subr.bf16.mxu0 0
      %3575 = vmatpush1.bf16.msra.mxu0 0
      %3576 = vmatprep.subr.bf16.mxu0 0
      %3577 = vmatpush1.bf16.msra.mxu0 0
      %3578 = vmatprep.subr.bf16.mxu0 0
      %3579 = vmatpush1.bf16.msra.mxu0 0
      %3580 = vmatprep.subr.bf16.mxu0 0
      %3581 = vmatpush1.bf16.msra.mxu0 0
      %3582 = vmatprep.subr.bf16.mxu0 0
      %3583 = vmatpush1.bf16.msra.mxu0 0
      %3584 = vmatprep.subr.bf16.mxu0 0
      %3585 = vmatpush1.bf16.msra.mxu0 0
      %3586 = vmatprep.mubr.bf16.mxu0 0
      %3587 = vmatmul.mubr.bf16.gmra.mrb[0].mxu0 %v627
      %v3588 = vpop.f32.mrb[0].mxu0
      %v3589 = vadd.f32 0.0, %v3588
      %v3590 = vpop.f32.mrb[0].mxu0
      %v3591 = vpop.f32.mrb[0].mxu0
      %v3592 = vadd.f32 0.0, %v3591
      %v3593 = vpop.f32.mrb[0].mxu0
      %3594 = vmatprep.mubr.bf16.mxu0 0
      %3595 = vmatmul.mubr.bf16.gmra.mrb[0].mxu0 %v630
      %v3596 = vpop.f32.mrb[0].mxu0
      %v3597 = vadd.f32 0.0, %v3596
      %v3598 = vpop.f32.mrb[0].mxu0
      %v3599 = vpop.f32.mrb[0].mxu0
      %v3600 = vadd.f32 0.0, %v3599
      %v3601 = vpop.f32.mrb[0].mxu0
      %3602 = vmatprep.mubr.bf16.mxu0 0
      %3603 = vmatmul.mubr.bf16.gmra.mrb[0].mxu0 %v633
      %v3604 = vpop.f32.mrb[0].mxu0
      %v3605 = vadd.f32 0.0, %v3604
      %v3606 = vpop.f32.mrb[0].mxu0
      %v3607 = vpop.f32.mrb[0].mxu0
      %v3608 = vadd.f32 0.0, %v3607
      %v3609 = vpop.f32.mrb[0].mxu0
      %3610 = vmatprep.mubr.bf16.mxu0 0
      %3611 = vmatmul.mubr.bf16.gmra.mrb[0].mxu0 %v2533
      %v3612 = vpop.f32.mrb[0].mxu0
      %v3613 = vadd.f32 0.0, %v3612
      %v3614 = vpop.f32.mrb[0].mxu0
      %v3615 = vpop.f32.mrb[0].mxu0
      %v3616 = vadd.f32 0.0, %v3615
      %v3617 = vpop.f32.mrb[0].mxu0
      %3618 = vmatprep.mubr.bf16.mxu0 0
      %3619 = vmatmul.mubr.bf16.gmra.mrb[0].mxu0 %v1561
      %v3620 = vpop.f32.mrb[0].mxu0
      %v3621 = vadd.f32 0.0, %v3620
      %v3622 = vpop.f32.mrb[0].mxu0
      %v3623 = vpop.f32.mrb[0].mxu0
      %v3624 = vadd.f32 0.0, %v3623
      %v3625 = vpop.f32.mrb[0].mxu0
      %3626 = vmatprep.mubr.bf16.mxu0 0
      %3627 = vmatmul.mubr.bf16.gmra.mrb[0].mxu0 %v1564
      %v3628 = vpop.f32.mrb[0].mxu0
      %v3629 = vadd.f32 0.0, %v3628
      %v3630 = vpop.f32.mrb[0].mxu0
      %v3631 = vpop.f32.mrb[0].mxu0
      %v3632 = vadd.f32 0.0, %v3631
      %v3633 = vpop.f32.mrb[0].mxu0
      %3634 = vmatprep.mubr.bf16.mxu0 0
      %3635 = vmatmul.mubr.bf16.gmra.mrb[0].mxu0 %v2536
      %v3636 = vpop.f32.mrb[0].mxu0
      %v3637 = vadd.f32 0.0, %v3636
      %v3638 = vpop.f32.mrb[0].mxu0
      %v3639 = vpop.f32.mrb[0].mxu0
      %v3640 = vadd.f32 0.0, %v3639
      %v3641 = vpop.f32.mrb[0].mxu0
      %3642 = vmatprep.mubr.bf16.mxu0 0
      %3643 = vmatmul.mubr.bf16.gmra.mrb[0].mxu0 %v647
      %v3644 = vpop.f32.mrb[0].mxu0
      %v3645 = vadd.f32 0.0, %v3644
      %v3646 = vpop.f32.mrb[0].mxu0
      %v3647 = vpop.f32.mrb[0].mxu0
      %v3648 = vadd.f32 0.0, %v3647
      %v3649 = vpop.f32.mrb[0].mxu0
      %3650 = vmatprep.mubr.bf16.mxu0 0
      %3651 = vmatmul.mubr.bf16.gmra.mrb[0].mxu0 %v650
      %v3652 = vpop.f32.mrb[0].mxu0
      %v3653 = vadd.f32 0.0, %v3652
      %v3654 = vpop.f32.mrb[0].mxu0
      %v3655 = vpop.f32.mrb[0].mxu0
      %v3656 = vadd.f32 0.0, %v3655
      %v3657 = vpop.f32.mrb[0].mxu0
      %3658 = vmatprep.mubr.bf16.mxu0 0
      %3659 = vmatmul.mubr.bf16.gmra.mrb[0].mxu0 %v653
      %v3660 = vpop.f32.mrb[0].mxu0
      %v3661 = vadd.f32 0.0, %v3660
      %v3662 = vpop.f32.mrb[0].mxu0
      %v3663 = vpop.f32.mrb[0].mxu0
      %v3664 = vadd.f32 0.0, %v3663
      %v3665 = vpop.f32.mrb[0].mxu0
      %3666 = vmatprep.mubr.bf16.mxu0 0
      %3667 = vmatmul.mubr.bf16.gmra.mrb[0].mxu0 %v3549
      %v3668 = vpop.f32.mrb[0].mxu0
      %v3669 = vadd.f32 0.0, %v3668
      %v3670 = vpop.f32.mrb[0].mxu0
      %v3671 = vpop.f32.mrb[0].mxu0
      %v3672 = vadd.f32 0.0, %v3671
      %v3673 = vpop.f32.mrb[0].mxu0
      %3674 = vmatprep.mubr.bf16.mxu0 0
      %3675 = vmatmul.mubr.bf16.gmra.mrb[0].mxu0 %v1581
      %v3676 = vpop.f32.mrb[0].mxu0
      %v3677 = vadd.f32 0.0, %v3676
      %v3678 = vpop.f32.mrb[0].mxu0
      %v3679 = vpop.f32.mrb[0].mxu0
      %v3680 = vadd.f32 0.0, %v3679
      %v3681 = vpop.f32.mrb[0].mxu0
      %3682 = vmatprep.mubr.bf16.mxu0 0
      %3683 = vmatmul.mubr.bf16.gmra.mrb[0].mxu0 %v1584
      %v3684 = vpop.f32.mrb[0].mxu0
      %v3685 = vadd.f32 0.0, %v3684
      %v3686 = vpop.f32.mrb[0].mxu0
      %v3687 = vpop.f32.mrb[0].mxu0
      %v3688 = vadd.f32 0.0, %v3687
      %v3689 = vpop.f32.mrb[0].mxu0
      %3690 = vmatprep.mubr.bf16.mxu0 0
      %3691 = vmatmul.mubr.bf16.gmra.mrb[0].mxu0 %v3552
      %v3692 = vpop.f32.mrb[0].mxu0
      %v3693 = vadd.f32 0.0, %v3692
      %v3694 = vpop.f32.mrb[0].mxu0
      %v3695 = vpop.f32.mrb[0].mxu0
      %v3696 = vadd.f32 0.0, %v3695
      %v3697 = vpop.f32.mrb[0].mxu0
      %3698 = vdwg.mxu0
      %v3699 = vadd.f32 %v3494, %v3589
      %v3700 = vadd.f32 %v3495, %v3592
      %v3701 = vadd.f32 %v3496, %v3597
      %v3702 = vadd.f32 %v3497, %v3600
      %v3703 = vadd.f32 %v3498, %v3605
      %v3704 = vadd.f32 %v3499, %v3608
      %v3705 = vadd.f32 %v3500, %v3613
      %v3706 = vadd.f32 %v3501, %v3616
      %v3707 = vadd.f32 %v3502, %v3621
      %v3708 = vadd.f32 %v3503, %v3624
      %v3709 = vadd.f32 %v3504, %v3629
      %v3710 = vadd.f32 %v3505, %v3632
      %v3711 = vadd.f32 %v3506, %v3637
      %v3712 = vadd.f32 %v3507, %v3640
      %v3713 = vadd.f32 %v3508, %v3645
      %v3714 = vadd.f32 %v3509, %v3648
      %v3715 = vadd.f32 %v3510, %v3653
      %v3716 = vadd.f32 %v3511, %v3656
      %v3717 = vadd.f32 %v3512, %v3661
      %v3718 = vadd.f32 %v3513, %v3664
      %v3719 = vadd.f32 %v3514, %v3669
      %v3720 = vadd.f32 %v3515, %v3672
      %v3721 = vadd.f32 %v3516, %v3677
      %v3722 = vadd.f32 %v3517, %v3680
      %v3723 = vadd.f32 %v3518, %v3685
      %v3724 = vadd.f32 %v3519, %v3688
      %v3725 = vadd.f32 %v3520, %v3693
      %v3726 = vadd.f32 %v3521, %v3696
      %v3728 = vrot.slane %v222, 5
      %v3729 = vrot.slane %v3728, 4
      %v3730 = vrot.slane %v223, 5
      %v3731 = vsel %vm1451, %v3729, %v3730
      %v3732 = vpack.c.b16 %v3537, %v3537
      %v3733 = vunpack.c.l.b16 %v3731
      %v3734 = vpack.c.b16 %v1535, %v1535
      %v3735 = vpack.c.b16 %v3733, %v1540
      %v3738 = vsel %vm366, %v3732, %v3734
      %v3741 = vunpack.c.l.b16 %v270
      %v3742 = vunpack.c.l.b16 %v271
      %v3743 = vpack.c.b16 %v3742, %v3741
      %v3745 = vsel %vm614, %v3738, 0
      %v3748 = vsel %vm614, %v3735, 0
      %3750 = vmatprep.subr.bf16.mxu0 0
      %3751 = vmatpush1.bf16.msra.mxu0 %v3743
      %3752 = vmatprep.subr.bf16.mxu0 0
      %3753 = vmatpush1.bf16.msra.mxu0 0
      %3754 = vmatprep.subr.bf16.mxu0 0
      %3755 = vmatpush1.bf16.msra.mxu0 0
      %3756 = vmatprep.subr.bf16.mxu0 0
      %3757 = vmatpush1.bf16.msra.mxu0 0
      %3758 = vmatprep.subr.bf16.mxu0 0
      %3759 = vmatpush1.bf16.msra.mxu0 0
      %3760 = vmatprep.subr.bf16.mxu0 0
      %3761 = vmatpush1.bf16.msra.mxu0 0
      %3762 = vmatprep.subr.bf16.mxu0 0
      %3763 = vmatpush1.bf16.msra.mxu0 0
      %3764 = vmatprep.subr.bf16.mxu0 0
      %3765 = vmatpush1.bf16.msra.mxu0 0
      %3766 = vmatprep.subr.bf16.mxu0 0
      %3767 = vmatpush1.bf16.msra.mxu0 0
      %3768 = vmatprep.subr.bf16.mxu0 0
      %3769 = vmatpush1.bf16.msra.mxu0 0
      %3770 = vmatprep.subr.bf16.mxu0 0
      %3771 = vmatpush1.bf16.msra.mxu0 0
      %3772 = vmatprep.subr.bf16.mxu0 0
      %3773 = vmatpush1.bf16.msra.mxu0 0
      %3774 = vmatprep.subr.bf16.mxu0 0
      %3775 = vmatpush1.bf16.msra.mxu0 0
      %3776 = vmatprep.subr.bf16.mxu0 0
      %3777 = vmatpush1.bf16.msra.mxu0 0
      %3778 = vmatprep.subr.bf16.mxu0 0
      %3779 = vmatpush1.bf16.msra.mxu0 0
      %3780 = vmatprep.subr.bf16.mxu0 0
      %3781 = vmatpush1.bf16.msra.mxu0 0
      %3782 = vmatprep.mubr.bf16.mxu0 0
      %3783 = vmatmul.mubr.bf16.gmra.mrb[0].mxu0 %v1241
      %v3784 = vpop.f32.mrb[0].mxu0
      %v3785 = vadd.f32 0.0, %v3784
      %v3786 = vpop.f32.mrb[0].mxu0
      %v3787 = vpop.f32.mrb[0].mxu0
      %v3788 = vadd.f32 0.0, %v3787
      %v3789 = vpop.f32.mrb[0].mxu0
      %3790 = vmatprep.mubr.bf16.mxu0 0
      %3791 = vmatmul.mubr.bf16.gmra.mrb[0].mxu0 %v1244
      %v3792 = vpop.f32.mrb[0].mxu0
      %v3793 = vadd.f32 0.0, %v3792
      %v3794 = vpop.f32.mrb[0].mxu0
      %v3795 = vpop.f32.mrb[0].mxu0
      %v3796 = vadd.f32 0.0, %v3795
      %v3797 = vpop.f32.mrb[0].mxu0
      %3798 = vmatprep.mubr.bf16.mxu0 0
      %3799 = vmatmul.mubr.bf16.gmra.mrb[0].mxu0 %v1247
      %v3800 = vpop.f32.mrb[0].mxu0
      %v3801 = vadd.f32 0.0, %v3800
      %v3802 = vpop.f32.mrb[0].mxu0
      %v3803 = vpop.f32.mrb[0].mxu0
      %v3804 = vadd.f32 0.0, %v3803
      %v3805 = vpop.f32.mrb[0].mxu0
      %3806 = vmatprep.mubr.bf16.mxu0 0
      %3807 = vmatmul.mubr.bf16.gmra.mrb[0].mxu0 %v2729
      %v3808 = vpop.f32.mrb[0].mxu0
      %v3809 = vadd.f32 0.0, %v3808
      %v3810 = vpop.f32.mrb[0].mxu0
      %v3811 = vpop.f32.mrb[0].mxu0
      %v3812 = vadd.f32 0.0, %v3811
      %v3813 = vpop.f32.mrb[0].mxu0
      %3814 = vmatprep.mubr.bf16.mxu0 0
      %3815 = vmatmul.mubr.bf16.gmra.mrb[0].mxu0 %v1886
      %v3816 = vpop.f32.mrb[0].mxu0
      %v3817 = vadd.f32 0.0, %v3816
      %v3818 = vpop.f32.mrb[0].mxu0
      %v3819 = vpop.f32.mrb[0].mxu0
      %v3820 = vadd.f32 0.0, %v3819
      %v3821 = vpop.f32.mrb[0].mxu0
      %3822 = vmatprep.mubr.bf16.mxu0 0
      %3823 = vmatmul.mubr.bf16.gmra.mrb[0].mxu0 %v1889
      %v3824 = vpop.f32.mrb[0].mxu0
      %v3825 = vadd.f32 0.0, %v3824
      %v3826 = vpop.f32.mrb[0].mxu0
      %v3827 = vpop.f32.mrb[0].mxu0
      %v3828 = vadd.f32 0.0, %v3827
      %v3829 = vpop.f32.mrb[0].mxu0
      %3830 = vmatprep.mubr.bf16.mxu0 0
      %3831 = vmatmul.mubr.bf16.gmra.mrb[0].mxu0 %v2732
      %v3832 = vpop.f32.mrb[0].mxu0
      %v3833 = vadd.f32 0.0, %v3832
      %v3834 = vpop.f32.mrb[0].mxu0
      %v3835 = vpop.f32.mrb[0].mxu0
      %v3836 = vadd.f32 0.0, %v3835
      %v3837 = vpop.f32.mrb[0].mxu0
      %3838 = vmatprep.mubr.bf16.mxu0 0
      %3839 = vmatmul.mubr.bf16.gmra.mrb[0].mxu0 %v1261
      %v3840 = vpop.f32.mrb[0].mxu0
      %v3841 = vadd.f32 0.0, %v3840
      %v3842 = vpop.f32.mrb[0].mxu0
      %v3843 = vpop.f32.mrb[0].mxu0
      %v3844 = vadd.f32 0.0, %v3843
      %v3845 = vpop.f32.mrb[0].mxu0
      %3846 = vmatprep.mubr.bf16.mxu0 0
      %3847 = vmatmul.mubr.bf16.gmra.mrb[0].mxu0 %v1264
      %v3848 = vpop.f32.mrb[0].mxu0
      %v3849 = vadd.f32 0.0, %v3848
      %v3850 = vpop.f32.mrb[0].mxu0
      %v3851 = vpop.f32.mrb[0].mxu0
      %v3852 = vadd.f32 0.0, %v3851
      %v3853 = vpop.f32.mrb[0].mxu0
      %3854 = vmatprep.mubr.bf16.mxu0 0
      %3855 = vmatmul.mubr.bf16.gmra.mrb[0].mxu0 %v1267
      %v3856 = vpop.f32.mrb[0].mxu0
      %v3857 = vadd.f32 0.0, %v3856
      %v3858 = vpop.f32.mrb[0].mxu0
      %v3859 = vpop.f32.mrb[0].mxu0
      %v3860 = vadd.f32 0.0, %v3859
      %v3861 = vpop.f32.mrb[0].mxu0
      %3862 = vmatprep.mubr.bf16.mxu0 0
      %3863 = vmatmul.mubr.bf16.gmra.mrb[0].mxu0 %v3745
      %v3864 = vpop.f32.mrb[0].mxu0
      %v3865 = vadd.f32 0.0, %v3864
      %v3866 = vpop.f32.mrb[0].mxu0
      %v3867 = vpop.f32.mrb[0].mxu0
      %v3868 = vadd.f32 0.0, %v3867
      %v3869 = vpop.f32.mrb[0].mxu0
      %3870 = vmatprep.mubr.bf16.mxu0 0
      %3871 = vmatmul.mubr.bf16.gmra.mrb[0].mxu0 %v1906
      %v3872 = vpop.f32.mrb[0].mxu0
      %v3873 = vadd.f32 0.0, %v3872
      %v3874 = vpop.f32.mrb[0].mxu0
      %v3875 = vpop.f32.mrb[0].mxu0
      %v3876 = vadd.f32 0.0, %v3875
      %v3877 = vpop.f32.mrb[0].mxu0
      %3878 = vmatprep.mubr.bf16.mxu0 0
      %3879 = vmatmul.mubr.bf16.gmra.mrb[0].mxu0 %v1909
      %v3880 = vpop.f32.mrb[0].mxu0
      %v3881 = vadd.f32 0.0, %v3880
      %v3882 = vpop.f32.mrb[0].mxu0
      %v3883 = vpop.f32.mrb[0].mxu0
      %v3884 = vadd.f32 0.0, %v3883
      %v3885 = vpop.f32.mrb[0].mxu0
      %3886 = vmatprep.mubr.bf16.mxu0 0
      %3887 = vmatmul.mubr.bf16.gmra.mrb[0].mxu0 %v3748
      %v3888 = vpop.f32.mrb[0].mxu0
      %v3889 = vadd.f32 0.0, %v3888
      %v3890 = vpop.f32.mrb[0].mxu0
      %v3891 = vpop.f32.mrb[0].mxu0
      %v3892 = vadd.f32 0.0, %v3891
      %v3893 = vpop.f32.mrb[0].mxu0
      %3894 = vdwg.mxu0
      %v3895 = vadd.f32 %v3699, %v3785
      %v3896 = vadd.f32 %v3700, %v3788
      %v3897 = vadd.f32 %v3701, %v3793
      %v3898 = vadd.f32 %v3702, %v3796
      %v3899 = vadd.f32 %v3703, %v3801
      %v3900 = vadd.f32 %v3704, %v3804
      %v3901 = vadd.f32 %v3705, %v3809
      %v3902 = vadd.f32 %v3706, %v3812
      %v3903 = vadd.f32 %v3707, %v3817
      %v3904 = vadd.f32 %v3708, %v3820
      %v3905 = vadd.f32 %v3709, %v3825
      %v3906 = vadd.f32 %v3710, %v3828
      %v3907 = vadd.f32 %v3711, %v3833
      %v3908 = vadd.f32 %v3712, %v3836
      %v3909 = vadd.f32 %v3713, %v3841
      %v3910 = vadd.f32 %v3714, %v3844
      %v3911 = vadd.f32 %v3715, %v3849
      %v3912 = vadd.f32 %v3716, %v3852
      %v3913 = vadd.f32 %v3717, %v3857
      %v3914 = vadd.f32 %v3718, %v3860
      %v3915 = vadd.f32 %v3719, %v3865
      %v3916 = vadd.f32 %v3720, %v3868
      %v3917 = vadd.f32 %v3721, %v3873
      %v3918 = vadd.f32 %v3722, %v3876
      %v3919 = vadd.f32 %v3723, %v3881
      %v3920 = vadd.f32 %v3724, %v3884
      %v3921 = vadd.f32 %v3725, %v3889
      %v3922 = vadd.f32 %v3726, %v3892
      %v3924 = vrot.slane %v240, 5
      %v3925 = vrot.slane %v3924, 4
      %v3926 = vrot.slane %v241, 5
      %v3927 = vsel %vm1451, %v3925, %v3926
      %v3928 = vpack.c.b16 %v3733, %v3733
      %v3929 = vunpack.c.l.b16 %v3927
      %v3930 = vpack.c.b16 %v1860, %v1860
      %v3931 = vpack.c.b16 %v1862, %v1861
      %v3932 = vpack.c.b16 %v1864, %v1863
      %v3933 = vpack.c.b16 %v3929, %v1865
      %v3936 = vsel %vm366, %v3928, %v3930
      %v3939 = vunpack.c.l.b16 %v272
      %v3940 = vunpack.c.l.b16 %v273
      %v3941 = vpack.c.b16 %v3940, %v3939
      %v3943 = vsel %vm614, %v3936, 0
      %v3946 = vsel %vm614, %v3931, 0
      %v3949 = vsel %vm614, %v3932, 0
      %v3952 = vsel %vm614, %v3933, 0
      %3954 = vmatprep.subr.bf16.mxu0 0
      %3955 = vmatpush1.bf16.msra.mxu0 %v3941
      %3956 = vmatprep.subr.bf16.mxu0 0
      %3957 = vmatpush1.bf16.msra.mxu0 0
      %3958 = vmatprep.subr.bf16.mxu0 0
      %3959 = vmatpush1.bf16.msra.mxu0 0
      %3960 = vmatprep.subr.bf16.mxu0 0
      %3961 = vmatpush1.bf16.msra.mxu0 0
      %3962 = vmatprep.subr.bf16.mxu0 0
      %3963 = vmatpush1.bf16.msra.mxu0 0
      %3964 = vmatprep.subr.bf16.mxu0 0
      %3965 = vmatpush1.bf16.msra.mxu0 0
      %3966 = vmatprep.subr.bf16.mxu0 0
      %3967 = vmatpush1.bf16.msra.mxu0 0
      %3968 = vmatprep.subr.bf16.mxu0 0
      %3969 = vmatpush1.bf16.msra.mxu0 0
      %3970 = vmatprep.subr.bf16.mxu0 0
      %3971 = vmatpush1.bf16.msra.mxu0 0
      %3972 = vmatprep.subr.bf16.mxu0 0
      %3973 = vmatpush1.bf16.msra.mxu0 0
      %3974 = vmatprep.subr.bf16.mxu0 0
      %3975 = vmatpush1.bf16.msra.mxu0 0
      %3976 = vmatprep.subr.bf16.mxu0 0
      %3977 = vmatpush1.bf16.msra.mxu0 0
      %3978 = vmatprep.subr.bf16.mxu0 0
      %3979 = vmatpush1.bf16.msra.mxu0 0
      %3980 = vmatprep.subr.bf16.mxu0 0
      %3981 = vmatpush1.bf16.msra.mxu0 0
      %3982 = vmatprep.subr.bf16.mxu0 0
      %3983 = vmatpush1.bf16.msra.mxu0 0
      %3984 = vmatprep.subr.bf16.mxu0 0
      %3985 = vmatpush1.bf16.msra.mxu0 0
      %3986 = vmatprep.mubr.bf16.mxu0 0
      %3987 = vmatmul.mubr.bf16.gmra.mrb[0].mxu0 %v1569
      %v3988 = vpop.f32.mrb[0].mxu0
      %v3989 = vadd.f32 0.0, %v3988
      %v3990 = vpop.f32.mrb[0].mxu0
      %v3991 = vpop.f32.mrb[0].mxu0
      %v3992 = vadd.f32 0.0, %v3991
      %v3993 = vpop.f32.mrb[0].mxu0
      %3994 = vmatprep.mubr.bf16.mxu0 0
      %3995 = vmatmul.mubr.bf16.gmra.mrb[0].mxu0 %v1572
      %v3996 = vpop.f32.mrb[0].mxu0
      %v3997 = vadd.f32 0.0, %v3996
      %v3998 = vpop.f32.mrb[0].mxu0
      %v3999 = vpop.f32.mrb[0].mxu0
      %v4000 = vadd.f32 0.0, %v3999
      %v4001 = vpop.f32.mrb[0].mxu0
      %4002 = vmatprep.mubr.bf16.mxu0 0
      %4003 = vmatmul.mubr.bf16.gmra.mrb[0].mxu0 %v1575
      %v4004 = vpop.f32.mrb[0].mxu0
      %v4005 = vadd.f32 0.0, %v4004
      %v4006 = vpop.f32.mrb[0].mxu0
      %v4007 = vpop.f32.mrb[0].mxu0
      %v4008 = vadd.f32 0.0, %v4007
      %v4009 = vpop.f32.mrb[0].mxu0
      %4010 = vmatprep.mubr.bf16.mxu0 0
      %4011 = vmatmul.mubr.bf16.gmra.mrb[0].mxu0 %v2927
      %v4012 = vpop.f32.mrb[0].mxu0
      %v4013 = vadd.f32 0.0, %v4012
      %v4014 = vpop.f32.mrb[0].mxu0
      %v4015 = vpop.f32.mrb[0].mxu0
      %v4016 = vadd.f32 0.0, %v4015
      %v4017 = vpop.f32.mrb[0].mxu0
      %4018 = vmatprep.mubr.bf16.mxu0 0
      %4019 = vmatmul.mubr.bf16.gmra.mrb[0].mxu0 %v2930
      %v4020 = vpop.f32.mrb[0].mxu0
      %v4021 = vadd.f32 0.0, %v4020
      %v4022 = vpop.f32.mrb[0].mxu0
      %v4023 = vpop.f32.mrb[0].mxu0
      %v4024 = vadd.f32 0.0, %v4023
      %v4025 = vpop.f32.mrb[0].mxu0
      %4026 = vmatprep.mubr.bf16.mxu0 0
      %4027 = vmatmul.mubr.bf16.gmra.mrb[0].mxu0 %v2933
      %v4028 = vpop.f32.mrb[0].mxu0
      %v4029 = vadd.f32 0.0, %v4028
      %v4030 = vpop.f32.mrb[0].mxu0
      %v4031 = vpop.f32.mrb[0].mxu0
      %v4032 = vadd.f32 0.0, %v4031
      %v4033 = vpop.f32.mrb[0].mxu0
      %4034 = vmatprep.mubr.bf16.mxu0 0
      %4035 = vmatmul.mubr.bf16.gmra.mrb[0].mxu0 %v2936
      %v4036 = vpop.f32.mrb[0].mxu0
      %v4037 = vadd.f32 0.0, %v4036
      %v4038 = vpop.f32.mrb[0].mxu0
      %v4039 = vpop.f32.mrb[0].mxu0
      %v4040 = vadd.f32 0.0, %v4039
      %v4041 = vpop.f32.mrb[0].mxu0
      %4042 = vmatprep.mubr.bf16.mxu0 0
      %4043 = vmatmul.mubr.bf16.gmra.mrb[0].mxu0 %v1589
      %v4044 = vpop.f32.mrb[0].mxu0
      %v4045 = vadd.f32 0.0, %v4044
      %v4046 = vpop.f32.mrb[0].mxu0
      %v4047 = vpop.f32.mrb[0].mxu0
      %v4048 = vadd.f32 0.0, %v4047
      %v4049 = vpop.f32.mrb[0].mxu0
      %4050 = vmatprep.mubr.bf16.mxu0 0
      %4051 = vmatmul.mubr.bf16.gmra.mrb[0].mxu0 %v1592
      %v4052 = vpop.f32.mrb[0].mxu0
      %v4053 = vadd.f32 0.0, %v4052
      %v4054 = vpop.f32.mrb[0].mxu0
      %v4055 = vpop.f32.mrb[0].mxu0
      %v4056 = vadd.f32 0.0, %v4055
      %v4057 = vpop.f32.mrb[0].mxu0
      %4058 = vmatprep.mubr.bf16.mxu0 0
      %4059 = vmatmul.mubr.bf16.gmra.mrb[0].mxu0 %v1595
      %v4060 = vpop.f32.mrb[0].mxu0
      %v4061 = vadd.f32 0.0, %v4060
      %v4062 = vpop.f32.mrb[0].mxu0
      %v4063 = vpop.f32.mrb[0].mxu0
      %v4064 = vadd.f32 0.0, %v4063
      %v4065 = vpop.f32.mrb[0].mxu0
      %4066 = vmatprep.mubr.bf16.mxu0 0
      %4067 = vmatmul.mubr.bf16.gmra.mrb[0].mxu0 %v3943
      %v4068 = vpop.f32.mrb[0].mxu0
      %v4069 = vadd.f32 0.0, %v4068
      %v4070 = vpop.f32.mrb[0].mxu0
      %v4071 = vpop.f32.mrb[0].mxu0
      %v4072 = vadd.f32 0.0, %v4071
      %v4073 = vpop.f32.mrb[0].mxu0
      %4074 = vmatprep.mubr.bf16.mxu0 0
      %4075 = vmatmul.mubr.bf16.gmra.mrb[0].mxu0 %v3946
      %v4076 = vpop.f32.mrb[0].mxu0
      %v4077 = vadd.f32 0.0, %v4076
      %v4078 = vpop.f32.mrb[0].mxu0
      %v4079 = vpop.f32.mrb[0].mxu0
      %v4080 = vadd.f32 0.0, %v4079
      %v4081 = vpop.f32.mrb[0].mxu0
      %4082 = vmatprep.mubr.bf16.mxu0 0
      %4083 = vmatmul.mubr.bf16.gmra.mrb[0].mxu0 %v3949
      %v4084 = vpop.f32.mrb[0].mxu0
      %v4085 = vadd.f32 0.0, %v4084
      %v4086 = vpop.f32.mrb[0].mxu0
      %v4087 = vpop.f32.mrb[0].mxu0
      %v4088 = vadd.f32 0.0, %v4087
      %v4089 = vpop.f32.mrb[0].mxu0
      %4090 = vmatprep.mubr.bf16.mxu0 0
      %4091 = vmatmul.mubr.bf16.gmra.mrb[0].mxu0 %v3952
      %v4092 = vpop.f32.mrb[0].mxu0
      %v4093 = vadd.f32 0.0, %v4092
      %v4094 = vpop.f32.mrb[0].mxu0
      %v4095 = vpop.f32.mrb[0].mxu0
      %v4096 = vadd.f32 0.0, %v4095
      %v4097 = vpop.f32.mrb[0].mxu0
      %4098 = vdwg.mxu0
      %v4099 = vadd.f32 %v3895, %v3989
      %v4100 = vadd.f32 %v3896, %v3992
      %v4101 = vadd.f32 %v3897, %v3997
      %v4102 = vadd.f32 %v3898, %v4000
      %v4103 = vadd.f32 %v3899, %v4005
      %v4104 = vadd.f32 %v3900, %v4008
      %v4105 = vadd.f32 %v3901, %v4013
      %v4106 = vadd.f32 %v3902, %v4016
      %v4107 = vadd.f32 %v3903, %v4021
      %v4108 = vadd.f32 %v3904, %v4024
      %v4109 = vadd.f32 %v3905, %v4029
      %v4110 = vadd.f32 %v3906, %v4032
      %v4111 = vadd.f32 %v3907, %v4037
      %v4112 = vadd.f32 %v3908, %v4040
      %v4113 = vadd.f32 %v3909, %v4045
      %v4114 = vadd.f32 %v3910, %v4048
      %v4115 = vadd.f32 %v3911, %v4053
      %v4116 = vadd.f32 %v3912, %v4056
      %v4117 = vadd.f32 %v3913, %v4061
      %v4118 = vadd.f32 %v3914, %v4064
      %v4119 = vadd.f32 %v3915, %v4069
      %v4120 = vadd.f32 %v3916, %v4072
      %v4121 = vadd.f32 %v3917, %v4077
      %v4122 = vadd.f32 %v3918, %v4080
      %v4123 = vadd.f32 %v3919, %v4085
      %v4124 = vadd.f32 %v3920, %v4088
      %v4125 = vadd.f32 %v3921, %v4093
      %v4126 = vadd.f32 %v3922, %v4096
      %v4128 = vunpack.c.l.b16 %v188
      %v4129 = vpack.c.b16 %v2096, %v307
      %v4130 = vpack.c.b16 %v4128, %v4128
      %v4132 = vunpack.c.l.b16 %v206
      %v4133 = vpack.c.b16 %v321, %v321
      %v4134 = vpack.c.b16 %v4132, %v2102
      %v4137 = vsel %vm366, %v4130, %v4133
      %v4140 = vunpack.c.l.b16 %v274
      %v4141 = vunpack.c.l.b16 %v275
      %v4142 = vpack.c.b16 %v4141, %v4140
      %v4145 = vsel %vm614, %v4129, 0
      %v4147 = vsel %vm614, %v4137, 0
      %v4150 = vsel %vm614, %v4134, 0
      %4152 = vmatprep.subr.bf16.mxu0 0
      %4153 = vmatpush1.bf16.msra.mxu0 %v4142
      %4154 = vmatprep.subr.bf16.mxu0 0
      %4155 = vmatpush1.bf16.msra.mxu0 0
      %4156 = vmatprep.subr.bf16.mxu0 0
      %4157 = vmatpush1.bf16.msra.mxu0 0
      %4158 = vmatprep.subr.bf16.mxu0 0
      %4159 = vmatpush1.bf16.msra.mxu0 0
      %4160 = vmatprep.subr.bf16.mxu0 0
      %4161 = vmatpush1.bf16.msra.mxu0 0
      %4162 = vmatprep.subr.bf16.mxu0 0
      %4163 = vmatpush1.bf16.msra.mxu0 0
      %4164 = vmatprep.subr.bf16.mxu0 0
      %4165 = vmatpush1.bf16.msra.mxu0 0
      %4166 = vmatprep.subr.bf16.mxu0 0
      %4167 = vmatpush1.bf16.msra.mxu0 0
      %4168 = vmatprep.subr.bf16.mxu0 0
      %4169 = vmatpush1.bf16.msra.mxu0 0
      %4170 = vmatprep.subr.bf16.mxu0 0
      %4171 = vmatpush1.bf16.msra.mxu0 0
      %4172 = vmatprep.subr.bf16.mxu0 0
      %4173 = vmatpush1.bf16.msra.mxu0 0
      %4174 = vmatprep.subr.bf16.mxu0 0
      %4175 = vmatpush1.bf16.msra.mxu0 0
      %4176 = vmatprep.subr.bf16.mxu0 0
      %4177 = vmatpush1.bf16.msra.mxu0 0
      %4178 = vmatprep.subr.bf16.mxu0 0
      %4179 = vmatpush1.bf16.msra.mxu0 0
      %4180 = vmatprep.subr.bf16.mxu0 0
      %4181 = vmatpush1.bf16.msra.mxu0 0
      %4182 = vmatprep.subr.bf16.mxu0 0
      %4183 = vmatpush1.bf16.msra.mxu0 0
      %4184 = vmatprep.mubr.bf16.mxu0 0
      %4185 = vmatmul.mubr.bf16.gmra.mrb[0].mxu0 %v3131
      %v4186 = vpop.f32.mrb[0].mxu0
      %v4187 = vadd.f32 0.0, %v4186
      %v4188 = vpop.f32.mrb[0].mxu0
      %v4189 = vpop.f32.mrb[0].mxu0
      %v4190 = vadd.f32 0.0, %v4189
      %v4191 = vpop.f32.mrb[0].mxu0
      %4192 = vmatprep.mubr.bf16.mxu0 0
      %4193 = vmatmul.mubr.bf16.gmra.mrb[0].mxu0 %v3134
      %v4194 = vpop.f32.mrb[0].mxu0
      %v4195 = vadd.f32 0.0, %v4194
      %v4196 = vpop.f32.mrb[0].mxu0
      %v4197 = vpop.f32.mrb[0].mxu0
      %v4198 = vadd.f32 0.0, %v4197
      %v4199 = vpop.f32.mrb[0].mxu0
      %4200 = vmatprep.mubr.bf16.mxu0 0
      %4201 = vmatmul.mubr.bf16.gmra.mrb[0].mxu0 %v3137
      %v4202 = vpop.f32.mrb[0].mxu0
      %v4203 = vadd.f32 0.0, %v4202
      %v4204 = vpop.f32.mrb[0].mxu0
      %v4205 = vpop.f32.mrb[0].mxu0
      %v4206 = vadd.f32 0.0, %v4205
      %v4207 = vpop.f32.mrb[0].mxu0
      %4208 = vmatprep.mubr.bf16.mxu0 0
      %4209 = vmatmul.mubr.bf16.gmra.mrb[0].mxu0 %v3139
      %v4210 = vpop.f32.mrb[0].mxu0
      %v4211 = vadd.f32 0.0, %v4210
      %v4212 = vpop.f32.mrb[0].mxu0
      %v4213 = vpop.f32.mrb[0].mxu0
      %v4214 = vadd.f32 0.0, %v4213
      %v4215 = vpop.f32.mrb[0].mxu0
      %4216 = vmatprep.mubr.bf16.mxu0 0
      %4217 = vmatmul.mubr.bf16.gmra.mrb[0].mxu0 %v639
      %v4218 = vpop.f32.mrb[0].mxu0
      %v4219 = vadd.f32 0.0, %v4218
      %v4220 = vpop.f32.mrb[0].mxu0
      %v4221 = vpop.f32.mrb[0].mxu0
      %v4222 = vadd.f32 0.0, %v4221
      %v4223 = vpop.f32.mrb[0].mxu0
      %4224 = vmatprep.mubr.bf16.mxu0 0
      %4225 = vmatmul.mubr.bf16.gmra.mrb[0].mxu0 %v642
      %v4226 = vpop.f32.mrb[0].mxu0
      %v4227 = vadd.f32 0.0, %v4226
      %v4228 = vpop.f32.mrb[0].mxu0
      %v4229 = vpop.f32.mrb[0].mxu0
      %v4230 = vadd.f32 0.0, %v4229
      %v4231 = vpop.f32.mrb[0].mxu0
      %4232 = vmatprep.mubr.bf16.mxu0 0
      %4233 = vmatmul.mubr.bf16.gmra.mrb[0].mxu0 %v3142
      %v4234 = vpop.f32.mrb[0].mxu0
      %v4235 = vadd.f32 0.0, %v4234
      %v4236 = vpop.f32.mrb[0].mxu0
      %v4237 = vpop.f32.mrb[0].mxu0
      %v4238 = vadd.f32 0.0, %v4237
      %v4239 = vpop.f32.mrb[0].mxu0
      %4240 = vmatprep.mubr.bf16.mxu0 0
      %4241 = vmatmul.mubr.bf16.gmra.mrb[0].mxu0 %v810
      %v4242 = vpop.f32.mrb[0].mxu0
      %v4243 = vadd.f32 0.0, %v4242
      %v4244 = vpop.f32.mrb[0].mxu0
      %v4245 = vpop.f32.mrb[0].mxu0
      %v4246 = vadd.f32 0.0, %v4245
      %v4247 = vpop.f32.mrb[0].mxu0
      %4248 = vmatprep.mubr.bf16.mxu0 0
      %4249 = vmatmul.mubr.bf16.gmra.mrb[0].mxu0 %v813
      %v4250 = vpop.f32.mrb[0].mxu0
      %v4251 = vadd.f32 0.0, %v4250
      %v4252 = vpop.f32.mrb[0].mxu0
      %v4253 = vpop.f32.mrb[0].mxu0
      %v4254 = vadd.f32 0.0, %v4253
      %v4255 = vpop.f32.mrb[0].mxu0
      %4256 = vmatprep.mubr.bf16.mxu0 0
      %4257 = vmatmul.mubr.bf16.gmra.mrb[0].mxu0 %v4145
      %v4258 = vpop.f32.mrb[0].mxu0
      %v4259 = vadd.f32 0.0, %v4258
      %v4260 = vpop.f32.mrb[0].mxu0
      %v4261 = vpop.f32.mrb[0].mxu0
      %v4262 = vadd.f32 0.0, %v4261
      %v4263 = vpop.f32.mrb[0].mxu0
      %4264 = vmatprep.mubr.bf16.mxu0 0
      %4265 = vmatmul.mubr.bf16.gmra.mrb[0].mxu0 %v4147
      %v4266 = vpop.f32.mrb[0].mxu0
      %v4267 = vadd.f32 0.0, %v4266
      %v4268 = vpop.f32.mrb[0].mxu0
      %v4269 = vpop.f32.mrb[0].mxu0
      %v4270 = vadd.f32 0.0, %v4269
      %v4271 = vpop.f32.mrb[0].mxu0
      %4272 = vmatprep.mubr.bf16.mxu0 0
      %4273 = vmatmul.mubr.bf16.gmra.mrb[0].mxu0 %v821
      %v4274 = vpop.f32.mrb[0].mxu0
      %v4275 = vadd.f32 0.0, %v4274
      %v4276 = vpop.f32.mrb[0].mxu0
      %v4277 = vpop.f32.mrb[0].mxu0
      %v4278 = vadd.f32 0.0, %v4277
      %v4279 = vpop.f32.mrb[0].mxu0
      %4280 = vmatprep.mubr.bf16.mxu0 0
      %4281 = vmatmul.mubr.bf16.gmra.mrb[0].mxu0 %v824
      %v4282 = vpop.f32.mrb[0].mxu0
      %v4283 = vadd.f32 0.0, %v4282
      %v4284 = vpop.f32.mrb[0].mxu0
      %v4285 = vpop.f32.mrb[0].mxu0
      %v4286 = vadd.f32 0.0, %v4285
      %v4287 = vpop.f32.mrb[0].mxu0
      %4288 = vmatprep.mubr.bf16.mxu0 0
      %4289 = vmatmul.mubr.bf16.gmra.mrb[0].mxu0 %v4150
      %v4290 = vpop.f32.mrb[0].mxu0
      %v4291 = vadd.f32 0.0, %v4290
      %v4292 = vpop.f32.mrb[0].mxu0
      %v4293 = vpop.f32.mrb[0].mxu0
      %v4294 = vadd.f32 0.0, %v4293
      %v4295 = vpop.f32.mrb[0].mxu0
      %4296 = vdwg.mxu0
      %v4297 = vadd.f32 %v4099, %v4187
      %v4298 = vadd.f32 %v4100, %v4190
      %v4299 = vadd.f32 %v4101, %v4195
      %v4300 = vadd.f32 %v4102, %v4198
      %v4301 = vadd.f32 %v4103, %v4203
      %v4302 = vadd.f32 %v4104, %v4206
      %v4303 = vadd.f32 %v4105, %v4211
      %v4304 = vadd.f32 %v4106, %v4214
      %v4305 = vadd.f32 %v4107, %v4219
      %v4306 = vadd.f32 %v4108, %v4222
      %v4307 = vadd.f32 %v4109, %v4227
      %v4308 = vadd.f32 %v4110, %v4230
      %v4309 = vadd.f32 %v4111, %v4235
      %v4310 = vadd.f32 %v4112, %v4238
      %v4311 = vadd.f32 %v4113, %v4243
      %v4312 = vadd.f32 %v4114, %v4246
      %v4313 = vadd.f32 %v4115, %v4251
      %v4314 = vadd.f32 %v4116, %v4254
      %v4315 = vadd.f32 %v4117, %v4259
      %v4316 = vadd.f32 %v4118, %v4262
      %v4317 = vadd.f32 %v4119, %v4267
      %v4318 = vadd.f32 %v4120, %v4270
      %v4319 = vadd.f32 %v4121, %v4275
      %v4320 = vadd.f32 %v4122, %v4278
      %v4321 = vadd.f32 %v4123, %v4283
      %v4322 = vadd.f32 %v4124, %v4286
      %v4323 = vadd.f32 %v4125, %v4291
      %v4324 = vadd.f32 %v4126, %v4294
      %v4326 = vshrl.u32 %v188, 16
      %v4328 = vrot.slane %v4326, 4
      %v4329 = vshll.u32 %v188, 16
      %v4331 = vrot.slane %v4329, 5
      %v4332 = vor.u32 %v4328, %v4331
      %v4333 = vrot.slane %v4332, 4
      %v4335 = vshll.u32 %v189, 16
      %v4337 = vrot.slane %v4335, 5
      %v4338 = vsel %vm375, %v4333, %v4337
      %v4339 = vpack.c.b16 %v4132, %v4132
      %v4340 = vunpack.c.l.b16 %v4338
      %v4341 = vpack.c.b16 %v578, %v578
      %v4342 = vpack.c.b16 %v4340, %v2316
      %v4345 = vsel %vm366, %v4339, %v4341
      %v4348 = vunpack.c.l.b16 %v276
      %v4349 = vunpack.c.l.b16 %v277
      %v4350 = vpack.c.b16 %v4349, %v4348
      %v4352 = vsel %vm614, %v4345, 0
      %v4355 = vsel %vm614, %v4342, 0
      %4357 = vmatprep.subr.bf16.mxu0 0
      %4358 = vmatpush1.bf16.msra.mxu0 %v4350
      %4359 = vmatprep.subr.bf16.mxu0 0
      %4360 = vmatpush1.bf16.msra.mxu0 0
      %4361 = vmatprep.subr.bf16.mxu0 0
      %4362 = vmatpush1.bf16.msra.mxu0 0
      %4363 = vmatprep.subr.bf16.mxu0 0
      %4364 = vmatpush1.bf16.msra.mxu0 0
      %4365 = vmatprep.subr.bf16.mxu0 0
      %4366 = vmatpush1.bf16.msra.mxu0 0
      %4367 = vmatprep.subr.bf16.mxu0 0
      %4368 = vmatpush1.bf16.msra.mxu0 0
      %4369 = vmatprep.subr.bf16.mxu0 0
      %4370 = vmatpush1.bf16.msra.mxu0 0
      %4371 = vmatprep.subr.bf16.mxu0 0
      %4372 = vmatpush1.bf16.msra.mxu0 0
      %4373 = vmatprep.subr.bf16.mxu0 0
      %4374 = vmatpush1.bf16.msra.mxu0 0
      %4375 = vmatprep.subr.bf16.mxu0 0
      %4376 = vmatpush1.bf16.msra.mxu0 0
      %4377 = vmatprep.subr.bf16.mxu0 0
      %4378 = vmatpush1.bf16.msra.mxu0 0
      %4379 = vmatprep.subr.bf16.mxu0 0
      %4380 = vmatpush1.bf16.msra.mxu0 0
      %4381 = vmatprep.subr.bf16.mxu0 0
      %4382 = vmatpush1.bf16.msra.mxu0 0
      %4383 = vmatprep.subr.bf16.mxu0 0
      %4384 = vmatpush1.bf16.msra.mxu0 0
      %4385 = vmatprep.subr.bf16.mxu0 0
      %4386 = vmatpush1.bf16.msra.mxu0 0
      %4387 = vmatprep.subr.bf16.mxu0 0
      %4388 = vmatpush1.bf16.msra.mxu0 0
      %4389 = vmatprep.mubr.bf16.mxu0 0
      %4390 = vmatmul.mubr.bf16.gmra.mrb[0].mxu0 %v838
      %v4391 = vpop.f32.mrb[0].mxu0
      %v4392 = vadd.f32 0.0, %v4391
      %v4393 = vpop.f32.mrb[0].mxu0
      %v4394 = vpop.f32.mrb[0].mxu0
      %v4395 = vadd.f32 0.0, %v4394
      %v4396 = vpop.f32.mrb[0].mxu0
      %4397 = vmatprep.mubr.bf16.mxu0 0
      %4398 = vmatmul.mubr.bf16.gmra.mrb[0].mxu0 %v841
      %v4399 = vpop.f32.mrb[0].mxu0
      %v4400 = vadd.f32 0.0, %v4399
      %v4401 = vpop.f32.mrb[0].mxu0
      %v4402 = vpop.f32.mrb[0].mxu0
      %v4403 = vadd.f32 0.0, %v4402
      %v4404 = vpop.f32.mrb[0].mxu0
      %4405 = vmatprep.mubr.bf16.mxu0 0
      %4406 = vmatmul.mubr.bf16.gmra.mrb[0].mxu0 %v844
      %v4407 = vpop.f32.mrb[0].mxu0
      %v4408 = vadd.f32 0.0, %v4407
      %v4409 = vpop.f32.mrb[0].mxu0
      %v4410 = vpop.f32.mrb[0].mxu0
      %v4411 = vadd.f32 0.0, %v4410
      %v4412 = vpop.f32.mrb[0].mxu0
      %4413 = vmatprep.mubr.bf16.mxu0 0
      %4414 = vmatmul.mubr.bf16.gmra.mrb[0].mxu0 %v3344
      %v4415 = vpop.f32.mrb[0].mxu0
      %v4416 = vadd.f32 0.0, %v4415
      %v4417 = vpop.f32.mrb[0].mxu0
      %v4418 = vpop.f32.mrb[0].mxu0
      %v4419 = vadd.f32 0.0, %v4418
      %v4420 = vpop.f32.mrb[0].mxu0
      %4421 = vmatprep.mubr.bf16.mxu0 0
      %4422 = vmatmul.mubr.bf16.gmra.mrb[0].mxu0 %v1253
      %v4423 = vpop.f32.mrb[0].mxu0
      %v4424 = vadd.f32 0.0, %v4423
      %v4425 = vpop.f32.mrb[0].mxu0
      %v4426 = vpop.f32.mrb[0].mxu0
      %v4427 = vadd.f32 0.0, %v4426
      %v4428 = vpop.f32.mrb[0].mxu0
      %4429 = vmatprep.mubr.bf16.mxu0 0
      %4430 = vmatmul.mubr.bf16.gmra.mrb[0].mxu0 %v1256
      %v4431 = vpop.f32.mrb[0].mxu0
      %v4432 = vadd.f32 0.0, %v4431
      %v4433 = vpop.f32.mrb[0].mxu0
      %v4434 = vpop.f32.mrb[0].mxu0
      %v4435 = vadd.f32 0.0, %v4434
      %v4436 = vpop.f32.mrb[0].mxu0
      %4437 = vmatprep.mubr.bf16.mxu0 0
      %4438 = vmatmul.mubr.bf16.gmra.mrb[0].mxu0 %v3347
      %v4439 = vpop.f32.mrb[0].mxu0
      %v4440 = vadd.f32 0.0, %v4439
      %v4441 = vpop.f32.mrb[0].mxu0
      %v4442 = vpop.f32.mrb[0].mxu0
      %v4443 = vadd.f32 0.0, %v4442
      %v4444 = vpop.f32.mrb[0].mxu0
      %4445 = vmatprep.mubr.bf16.mxu0 0
      %4446 = vmatmul.mubr.bf16.gmra.mrb[0].mxu0 %v619
      %v4447 = vpop.f32.mrb[0].mxu0
      %v4448 = vadd.f32 0.0, %v4447
      %v4449 = vpop.f32.mrb[0].mxu0
      %v4450 = vpop.f32.mrb[0].mxu0
      %v4451 = vadd.f32 0.0, %v4450
      %v4452 = vpop.f32.mrb[0].mxu0
      %4453 = vmatprep.mubr.bf16.mxu0 0
      %4454 = vmatmul.mubr.bf16.gmra.mrb[0].mxu0 %v622
      %v4455 = vpop.f32.mrb[0].mxu0
      %v4456 = vadd.f32 0.0, %v4455
      %v4457 = vpop.f32.mrb[0].mxu0
      %v4458 = vpop.f32.mrb[0].mxu0
      %v4459 = vadd.f32 0.0, %v4458
      %v4460 = vpop.f32.mrb[0].mxu0
      %4461 = vmatprep.mubr.bf16.mxu0 0
      %4462 = vmatmul.mubr.bf16.gmra.mrb[0].mxu0 %v2126
      %v4463 = vpop.f32.mrb[0].mxu0
      %v4464 = vadd.f32 0.0, %v4463
      %v4465 = vpop.f32.mrb[0].mxu0
      %v4466 = vpop.f32.mrb[0].mxu0
      %v4467 = vadd.f32 0.0, %v4466
      %v4468 = vpop.f32.mrb[0].mxu0
      %4469 = vmatprep.mubr.bf16.mxu0 0
      %4470 = vmatmul.mubr.bf16.gmra.mrb[0].mxu0 %v4352
      %v4471 = vpop.f32.mrb[0].mxu0
      %v4472 = vadd.f32 0.0, %v4471
      %v4473 = vpop.f32.mrb[0].mxu0
      %v4474 = vpop.f32.mrb[0].mxu0
      %v4475 = vadd.f32 0.0, %v4474
      %v4476 = vpop.f32.mrb[0].mxu0
      %4477 = vmatprep.mubr.bf16.mxu0 0
      %4478 = vmatmul.mubr.bf16.gmra.mrb[0].mxu0 %v630
      %v4479 = vpop.f32.mrb[0].mxu0
      %v4480 = vadd.f32 0.0, %v4479
      %v4481 = vpop.f32.mrb[0].mxu0
      %v4482 = vpop.f32.mrb[0].mxu0
      %v4483 = vadd.f32 0.0, %v4482
      %v4484 = vpop.f32.mrb[0].mxu0
      %4485 = vmatprep.mubr.bf16.mxu0 0
      %4486 = vmatmul.mubr.bf16.gmra.mrb[0].mxu0 %v633
      %v4487 = vpop.f32.mrb[0].mxu0
      %v4488 = vadd.f32 0.0, %v4487
      %v4489 = vpop.f32.mrb[0].mxu0
      %v4490 = vpop.f32.mrb[0].mxu0
      %v4491 = vadd.f32 0.0, %v4490
      %v4492 = vpop.f32.mrb[0].mxu0
      %4493 = vmatprep.mubr.bf16.mxu0 0
      %4494 = vmatmul.mubr.bf16.gmra.mrb[0].mxu0 %v4355
      %v4495 = vpop.f32.mrb[0].mxu0
      %v4496 = vadd.f32 0.0, %v4495
      %v4497 = vpop.f32.mrb[0].mxu0
      %v4498 = vpop.f32.mrb[0].mxu0
      %v4499 = vadd.f32 0.0, %v4498
      %v4500 = vpop.f32.mrb[0].mxu0
      %4501 = vdwg.mxu0
      %v4502 = vadd.f32 %v4297, %v4392
      %v4503 = vadd.f32 %v4298, %v4395
      %v4504 = vadd.f32 %v4299, %v4400
      %v4505 = vadd.f32 %v4300, %v4403
      %v4506 = vadd.f32 %v4301, %v4408
      %v4507 = vadd.f32 %v4302, %v4411
      %v4508 = vadd.f32 %v4303, %v4416
      %v4509 = vadd.f32 %v4304, %v4419
      %v4510 = vadd.f32 %v4305, %v4424
      %v4511 = vadd.f32 %v4306, %v4427
      %v4512 = vadd.f32 %v4307, %v4432
      %v4513 = vadd.f32 %v4308, %v4435
      %v4514 = vadd.f32 %v4309, %v4440
      %v4515 = vadd.f32 %v4310, %v4443
      %v4516 = vadd.f32 %v4311, %v4448
      %v4517 = vadd.f32 %v4312, %v4451
      %v4518 = vadd.f32 %v4313, %v4456
      %v4519 = vadd.f32 %v4314, %v4459
      %v4520 = vadd.f32 %v4315, %v4464
      %v4521 = vadd.f32 %v4316, %v4467
      %v4522 = vadd.f32 %v4317, %v4472
      %v4523 = vadd.f32 %v4318, %v4475
      %v4524 = vadd.f32 %v4319, %v4480
      %v4525 = vadd.f32 %v4320, %v4483
      %v4526 = vadd.f32 %v4321, %v4488
      %v4527 = vadd.f32 %v4322, %v4491
      %v4528 = vadd.f32 %v4323, %v4496
      %v4529 = vadd.f32 %v4324, %v4499
      %v4531 = vshrl.u32 %v206, 16
      %v4533 = vrot.slane %v4531, 4
      %v4534 = vshll.u32 %v206, 16
      %v4536 = vrot.slane %v4534, 5
      %v4537 = vor.u32 %v4533, %v4536
      %v4538 = vrot.slane %v4537, 4
      %v4540 = vshll.u32 %v207, 16
      %v4542 = vrot.slane %v4540, 5
      %v4543 = vsel %vm375, %v4538, %v4542
      %v4544 = vpack.c.b16 %v4340, %v4340
      %v4545 = vunpack.c.l.b16 %v4543
      %v4546 = vpack.c.b16 %v1193, %v1193
      %v4547 = vpack.c.b16 %v4545, %v2521
      %v4550 = vsel %vm366, %v4544, %v4546
      %v4553 = vunpack.c.l.b16 %v278
      %v4554 = vunpack.c.l.b16 %v279
      %v4555 = vpack.c.b16 %v4554, %v4553
      %v4557 = vsel %vm614, %v4550, 0
      %v4560 = vsel %vm614, %v4547, 0
      %4562 = vmatprep.subr.bf16.mxu0 0
      %4563 = vmatpush1.bf16.msra.mxu0 %v4555
      %4564 = vmatprep.subr.bf16.mxu0 0
      %4565 = vmatpush1.bf16.msra.mxu0 0
      %4566 = vmatprep.subr.bf16.mxu0 0
      %4567 = vmatpush1.bf16.msra.mxu0 0
      %4568 = vmatprep.subr.bf16.mxu0 0
      %4569 = vmatpush1.bf16.msra.mxu0 0
      %4570 = vmatprep.subr.bf16.mxu0 0
      %4571 = vmatpush1.bf16.msra.mxu0 0
      %4572 = vmatprep.subr.bf16.mxu0 0
      %4573 = vmatpush1.bf16.msra.mxu0 0
      %4574 = vmatprep.subr.bf16.mxu0 0
      %4575 = vmatpush1.bf16.msra.mxu0 0
      %4576 = vmatprep.subr.bf16.mxu0 0
      %4577 = vmatpush1.bf16.msra.mxu0 0
      %4578 = vmatprep.subr.bf16.mxu0 0
      %4579 = vmatpush1.bf16.msra.mxu0 0
      %4580 = vmatprep.subr.bf16.mxu0 0
      %4581 = vmatpush1.bf16.msra.mxu0 0
      %4582 = vmatprep.subr.bf16.mxu0 0
      %4583 = vmatpush1.bf16.msra.mxu0 0
      %4584 = vmatprep.subr.bf16.mxu0 0
      %4585 = vmatpush1.bf16.msra.mxu0 0
      %4586 = vmatprep.subr.bf16.mxu0 0
      %4587 = vmatpush1.bf16.msra.mxu0 0
      %4588 = vmatprep.subr.bf16.mxu0 0
      %4589 = vmatpush1.bf16.msra.mxu0 0
      %4590 = vmatprep.subr.bf16.mxu0 0
      %4591 = vmatpush1.bf16.msra.mxu0 0
      %4592 = vmatprep.subr.bf16.mxu0 0
      %4593 = vmatpush1.bf16.msra.mxu0 0
      %4594 = vmatprep.mubr.bf16.mxu0 0
      %4595 = vmatmul.mubr.bf16.gmra.mrb[0].mxu0 %v647
      %v4596 = vpop.f32.mrb[0].mxu0
      %v4597 = vadd.f32 0.0, %v4596
      %v4598 = vpop.f32.mrb[0].mxu0
      %v4599 = vpop.f32.mrb[0].mxu0
      %v4600 = vadd.f32 0.0, %v4599
      %v4601 = vpop.f32.mrb[0].mxu0
      %4602 = vmatprep.mubr.bf16.mxu0 0
      %4603 = vmatmul.mubr.bf16.gmra.mrb[0].mxu0 %v650
      %v4604 = vpop.f32.mrb[0].mxu0
      %v4605 = vadd.f32 0.0, %v4604
      %v4606 = vpop.f32.mrb[0].mxu0
      %v4607 = vpop.f32.mrb[0].mxu0
      %v4608 = vadd.f32 0.0, %v4607
      %v4609 = vpop.f32.mrb[0].mxu0
      %4610 = vmatprep.mubr.bf16.mxu0 0
      %4611 = vmatmul.mubr.bf16.gmra.mrb[0].mxu0 %v653
      %v4612 = vpop.f32.mrb[0].mxu0
      %v4613 = vadd.f32 0.0, %v4612
      %v4614 = vpop.f32.mrb[0].mxu0
      %v4615 = vpop.f32.mrb[0].mxu0
      %v4616 = vadd.f32 0.0, %v4615
      %v4617 = vpop.f32.mrb[0].mxu0
      %4618 = vmatprep.mubr.bf16.mxu0 0
      %4619 = vmatmul.mubr.bf16.gmra.mrb[0].mxu0 %v3549
      %v4620 = vpop.f32.mrb[0].mxu0
      %v4621 = vadd.f32 0.0, %v4620
      %v4622 = vpop.f32.mrb[0].mxu0
      %v4623 = vpop.f32.mrb[0].mxu0
      %v4624 = vadd.f32 0.0, %v4623
      %v4625 = vpop.f32.mrb[0].mxu0
      %4626 = vmatprep.mubr.bf16.mxu0 0
      %4627 = vmatmul.mubr.bf16.gmra.mrb[0].mxu0 %v1581
      %v4628 = vpop.f32.mrb[0].mxu0
      %v4629 = vadd.f32 0.0, %v4628
      %v4630 = vpop.f32.mrb[0].mxu0
      %v4631 = vpop.f32.mrb[0].mxu0
      %v4632 = vadd.f32 0.0, %v4631
      %v4633 = vpop.f32.mrb[0].mxu0
      %4634 = vmatprep.mubr.bf16.mxu0 0
      %4635 = vmatmul.mubr.bf16.gmra.mrb[0].mxu0 %v1584
      %v4636 = vpop.f32.mrb[0].mxu0
      %v4637 = vadd.f32 0.0, %v4636
      %v4638 = vpop.f32.mrb[0].mxu0
      %v4639 = vpop.f32.mrb[0].mxu0
      %v4640 = vadd.f32 0.0, %v4639
      %v4641 = vpop.f32.mrb[0].mxu0
      %4642 = vmatprep.mubr.bf16.mxu0 0
      %4643 = vmatmul.mubr.bf16.gmra.mrb[0].mxu0 %v3552
      %v4644 = vpop.f32.mrb[0].mxu0
      %v4645 = vadd.f32 0.0, %v4644
      %v4646 = vpop.f32.mrb[0].mxu0
      %v4647 = vpop.f32.mrb[0].mxu0
      %v4648 = vadd.f32 0.0, %v4647
      %v4649 = vpop.f32.mrb[0].mxu0
      %4650 = vmatprep.mubr.bf16.mxu0 0
      %4651 = vmatmul.mubr.bf16.gmra.mrb[0].mxu0 %v1233
      %v4652 = vpop.f32.mrb[0].mxu0
      %v4653 = vadd.f32 0.0, %v4652
      %v4654 = vpop.f32.mrb[0].mxu0
      %v4655 = vpop.f32.mrb[0].mxu0
      %v4656 = vadd.f32 0.0, %v4655
      %v4657 = vpop.f32.mrb[0].mxu0
      %4658 = vmatprep.mubr.bf16.mxu0 0
      %4659 = vmatmul.mubr.bf16.gmra.mrb[0].mxu0 %v1236
      %v4660 = vpop.f32.mrb[0].mxu0
      %v4661 = vadd.f32 0.0, %v4660
      %v4662 = vpop.f32.mrb[0].mxu0
      %v4663 = vpop.f32.mrb[0].mxu0
      %v4664 = vadd.f32 0.0, %v4663
      %v4665 = vpop.f32.mrb[0].mxu0
      %4666 = vmatprep.mubr.bf16.mxu0 0
      %4667 = vmatmul.mubr.bf16.gmra.mrb[0].mxu0 %v2331
      %v4668 = vpop.f32.mrb[0].mxu0
      %v4669 = vadd.f32 0.0, %v4668
      %v4670 = vpop.f32.mrb[0].mxu0
      %v4671 = vpop.f32.mrb[0].mxu0
      %v4672 = vadd.f32 0.0, %v4671
      %v4673 = vpop.f32.mrb[0].mxu0
      %4674 = vmatprep.mubr.bf16.mxu0 0
      %4675 = vmatmul.mubr.bf16.gmra.mrb[0].mxu0 %v4557
      %v4676 = vpop.f32.mrb[0].mxu0
      %v4677 = vadd.f32 0.0, %v4676
      %v4678 = vpop.f32.mrb[0].mxu0
      %v4679 = vpop.f32.mrb[0].mxu0
      %v4680 = vadd.f32 0.0, %v4679
      %v4681 = vpop.f32.mrb[0].mxu0
      %4682 = vmatprep.mubr.bf16.mxu0 0
      %4683 = vmatmul.mubr.bf16.gmra.mrb[0].mxu0 %v1244
      %v4684 = vpop.f32.mrb[0].mxu0
      %v4685 = vadd.f32 0.0, %v4684
      %v4686 = vpop.f32.mrb[0].mxu0
      %v4687 = vpop.f32.mrb[0].mxu0
      %v4688 = vadd.f32 0.0, %v4687
      %v4689 = vpop.f32.mrb[0].mxu0
      %4690 = vmatprep.mubr.bf16.mxu0 0
      %4691 = vmatmul.mubr.bf16.gmra.mrb[0].mxu0 %v1247
      %v4692 = vpop.f32.mrb[0].mxu0
      %v4693 = vadd.f32 0.0, %v4692
      %v4694 = vpop.f32.mrb[0].mxu0
      %v4695 = vpop.f32.mrb[0].mxu0
      %v4696 = vadd.f32 0.0, %v4695
      %v4697 = vpop.f32.mrb[0].mxu0
      %4698 = vmatprep.mubr.bf16.mxu0 0
      %4699 = vmatmul.mubr.bf16.gmra.mrb[0].mxu0 %v4560
      %v4700 = vpop.f32.mrb[0].mxu0
      %v4701 = vadd.f32 0.0, %v4700
      %v4702 = vpop.f32.mrb[0].mxu0
      %v4703 = vpop.f32.mrb[0].mxu0
      %v4704 = vadd.f32 0.0, %v4703
      %v4705 = vpop.f32.mrb[0].mxu0
      %4706 = vdwg.mxu0
      %v4707 = vadd.f32 %v4502, %v4597
      %v4708 = vadd.f32 %v4503, %v4600
      %v4709 = vadd.f32 %v4504, %v4605
      %v4710 = vadd.f32 %v4505, %v4608
      %v4711 = vadd.f32 %v4506, %v4613
      %v4712 = vadd.f32 %v4507, %v4616
      %v4713 = vadd.f32 %v4508, %v4621
      %v4714 = vadd.f32 %v4509, %v4624
      %v4715 = vadd.f32 %v4510, %v4629
      %v4716 = vadd.f32 %v4511, %v4632
      %v4717 = vadd.f32 %v4512, %v4637
      %v4718 = vadd.f32 %v4513, %v4640
      %v4719 = vadd.f32 %v4514, %v4645
      %v4720 = vadd.f32 %v4515, %v4648
      %v4721 = vadd.f32 %v4516, %v4653
      %v4722 = vadd.f32 %v4517, %v4656
      %v4723 = vadd.f32 %v4518, %v4661
      %v4724 = vadd.f32 %v4519, %v4664
      %v4725 = vadd.f32 %v4520, %v4669
      %v4726 = vadd.f32 %v4521, %v4672
      %v4727 = vadd.f32 %v4522, %v4677
      %v4728 = vadd.f32 %v4523, %v4680
      %v4729 = vadd.f32 %v4524, %v4685
      %v4730 = vadd.f32 %v4525, %v4688
      %v4731 = vadd.f32 %v4526, %v4693
      %v4732 = vadd.f32 %v4527, %v4696
      %v4733 = vadd.f32 %v4528, %v4701
      %v4734 = vadd.f32 %v4529, %v4704
      %v4736 = vrot.slane %v188, 5
      %v4737 = vrot.slane %v4736, 4
      %v4738 = vrot.slane %v189, 5
      %v4739 = vsel %vm1451, %v4737, %v4738
      %v4740 = vpack.c.b16 %v4545, %v4545
      %v4741 = vunpack.c.l.b16 %v4739
      %v4742 = vpack.c.b16 %v1521, %v1521
      %v4743 = vpack.c.b16 %v4741, %v2717
      %v4746 = vsel %vm366, %v4740, %v4742
      %v4749 = vunpack.c.l.b16 %v280
      %v4750 = vunpack.c.l.b16 %v281
      %v4751 = vpack.c.b16 %v4750, %v4749
      %v4753 = vsel %vm614, %v4746, 0
      %v4756 = vsel %vm614, %v4743, 0
      %4758 = vmatprep.subr.bf16.mxu0 0
      %4759 = vmatpush1.bf16.msra.mxu0 %v4751
      %4760 = vmatprep.subr.bf16.mxu0 0
      %4761 = vmatpush1.bf16.msra.mxu0 0
      %4762 = vmatprep.subr.bf16.mxu0 0
      %4763 = vmatpush1.bf16.msra.mxu0 0
      %4764 = vmatprep.subr.bf16.mxu0 0
      %4765 = vmatpush1.bf16.msra.mxu0 0
      %4766 = vmatprep.subr.bf16.mxu0 0
      %4767 = vmatpush1.bf16.msra.mxu0 0
      %4768 = vmatprep.subr.bf16.mxu0 0
      %4769 = vmatpush1.bf16.msra.mxu0 0
      %4770 = vmatprep.subr.bf16.mxu0 0
      %4771 = vmatpush1.bf16.msra.mxu0 0
      %4772 = vmatprep.subr.bf16.mxu0 0
      %4773 = vmatpush1.bf16.msra.mxu0 0
      %4774 = vmatprep.subr.bf16.mxu0 0
      %4775 = vmatpush1.bf16.msra.mxu0 0
      %4776 = vmatprep.subr.bf16.mxu0 0
      %4777 = vmatpush1.bf16.msra.mxu0 0
      %4778 = vmatprep.subr.bf16.mxu0 0
      %4779 = vmatpush1.bf16.msra.mxu0 0
      %4780 = vmatprep.subr.bf16.mxu0 0
      %4781 = vmatpush1.bf16.msra.mxu0 0
      %4782 = vmatprep.subr.bf16.mxu0 0
      %4783 = vmatpush1.bf16.msra.mxu0 0
      %4784 = vmatprep.subr.bf16.mxu0 0
      %4785 = vmatpush1.bf16.msra.mxu0 0
      %4786 = vmatprep.subr.bf16.mxu0 0
      %4787 = vmatpush1.bf16.msra.mxu0 0
      %4788 = vmatprep.subr.bf16.mxu0 0
      %4789 = vmatpush1.bf16.msra.mxu0 0
      %4790 = vmatprep.mubr.bf16.mxu0 0
      %4791 = vmatmul.mubr.bf16.gmra.mrb[0].mxu0 %v1261
      %v4792 = vpop.f32.mrb[0].mxu0
      %v4793 = vadd.f32 0.0, %v4792
      %v4794 = vpop.f32.mrb[0].mxu0
      %v4795 = vpop.f32.mrb[0].mxu0
      %v4796 = vadd.f32 0.0, %v4795
      %v4797 = vpop.f32.mrb[0].mxu0
      %4798 = vmatprep.mubr.bf16.mxu0 0
      %4799 = vmatmul.mubr.bf16.gmra.mrb[0].mxu0 %v1264
      %v4800 = vpop.f32.mrb[0].mxu0
      %v4801 = vadd.f32 0.0, %v4800
      %v4802 = vpop.f32.mrb[0].mxu0
      %v4803 = vpop.f32.mrb[0].mxu0
      %v4804 = vadd.f32 0.0, %v4803
      %v4805 = vpop.f32.mrb[0].mxu0
      %4806 = vmatprep.mubr.bf16.mxu0 0
      %4807 = vmatmul.mubr.bf16.gmra.mrb[0].mxu0 %v1267
      %v4808 = vpop.f32.mrb[0].mxu0
      %v4809 = vadd.f32 0.0, %v4808
      %v4810 = vpop.f32.mrb[0].mxu0
      %v4811 = vpop.f32.mrb[0].mxu0
      %v4812 = vadd.f32 0.0, %v4811
      %v4813 = vpop.f32.mrb[0].mxu0
      %4814 = vmatprep.mubr.bf16.mxu0 0
      %4815 = vmatmul.mubr.bf16.gmra.mrb[0].mxu0 %v3745
      %v4816 = vpop.f32.mrb[0].mxu0
      %v4817 = vadd.f32 0.0, %v4816
      %v4818 = vpop.f32.mrb[0].mxu0
      %v4819 = vpop.f32.mrb[0].mxu0
      %v4820 = vadd.f32 0.0, %v4819
      %v4821 = vpop.f32.mrb[0].mxu0
      %4822 = vmatprep.mubr.bf16.mxu0 0
      %4823 = vmatmul.mubr.bf16.gmra.mrb[0].mxu0 %v1906
      %v4824 = vpop.f32.mrb[0].mxu0
      %v4825 = vadd.f32 0.0, %v4824
      %v4826 = vpop.f32.mrb[0].mxu0
      %v4827 = vpop.f32.mrb[0].mxu0
      %v4828 = vadd.f32 0.0, %v4827
      %v4829 = vpop.f32.mrb[0].mxu0
      %4830 = vmatprep.mubr.bf16.mxu0 0
      %4831 = vmatmul.mubr.bf16.gmra.mrb[0].mxu0 %v1909
      %v4832 = vpop.f32.mrb[0].mxu0
      %v4833 = vadd.f32 0.0, %v4832
      %v4834 = vpop.f32.mrb[0].mxu0
      %v4835 = vpop.f32.mrb[0].mxu0
      %v4836 = vadd.f32 0.0, %v4835
      %v4837 = vpop.f32.mrb[0].mxu0
      %4838 = vmatprep.mubr.bf16.mxu0 0
      %4839 = vmatmul.mubr.bf16.gmra.mrb[0].mxu0 %v3748
      %v4840 = vpop.f32.mrb[0].mxu0
      %v4841 = vadd.f32 0.0, %v4840
      %v4842 = vpop.f32.mrb[0].mxu0
      %v4843 = vpop.f32.mrb[0].mxu0
      %v4844 = vadd.f32 0.0, %v4843
      %v4845 = vpop.f32.mrb[0].mxu0
      %4846 = vmatprep.mubr.bf16.mxu0 0
      %4847 = vmatmul.mubr.bf16.gmra.mrb[0].mxu0 %v1561
      %v4848 = vpop.f32.mrb[0].mxu0
      %v4849 = vadd.f32 0.0, %v4848
      %v4850 = vpop.f32.mrb[0].mxu0
      %v4851 = vpop.f32.mrb[0].mxu0
      %v4852 = vadd.f32 0.0, %v4851
      %v4853 = vpop.f32.mrb[0].mxu0
      %4854 = vmatprep.mubr.bf16.mxu0 0
      %4855 = vmatmul.mubr.bf16.gmra.mrb[0].mxu0 %v1564
      %v4856 = vpop.f32.mrb[0].mxu0
      %v4857 = vadd.f32 0.0, %v4856
      %v4858 = vpop.f32.mrb[0].mxu0
      %v4859 = vpop.f32.mrb[0].mxu0
      %v4860 = vadd.f32 0.0, %v4859
      %v4861 = vpop.f32.mrb[0].mxu0
      %4862 = vmatprep.mubr.bf16.mxu0 0
      %4863 = vmatmul.mubr.bf16.gmra.mrb[0].mxu0 %v2536
      %v4864 = vpop.f32.mrb[0].mxu0
      %v4865 = vadd.f32 0.0, %v4864
      %v4866 = vpop.f32.mrb[0].mxu0
      %v4867 = vpop.f32.mrb[0].mxu0
      %v4868 = vadd.f32 0.0, %v4867
      %v4869 = vpop.f32.mrb[0].mxu0
      %4870 = vmatprep.mubr.bf16.mxu0 0
      %4871 = vmatmul.mubr.bf16.gmra.mrb[0].mxu0 %v4753
      %v4872 = vpop.f32.mrb[0].mxu0
      %v4873 = vadd.f32 0.0, %v4872
      %v4874 = vpop.f32.mrb[0].mxu0
      %v4875 = vpop.f32.mrb[0].mxu0
      %v4876 = vadd.f32 0.0, %v4875
      %v4877 = vpop.f32.mrb[0].mxu0
      %4878 = vmatprep.mubr.bf16.mxu0 0
      %4879 = vmatmul.mubr.bf16.gmra.mrb[0].mxu0 %v1572
      %v4880 = vpop.f32.mrb[0].mxu0
      %v4881 = vadd.f32 0.0, %v4880
      %v4882 = vpop.f32.mrb[0].mxu0
      %v4883 = vpop.f32.mrb[0].mxu0
      %v4884 = vadd.f32 0.0, %v4883
      %v4885 = vpop.f32.mrb[0].mxu0
      %4886 = vmatprep.mubr.bf16.mxu0 0
      %4887 = vmatmul.mubr.bf16.gmra.mrb[0].mxu0 %v1575
      %v4888 = vpop.f32.mrb[0].mxu0
      %v4889 = vadd.f32 0.0, %v4888
      %v4890 = vpop.f32.mrb[0].mxu0
      %v4891 = vpop.f32.mrb[0].mxu0
      %v4892 = vadd.f32 0.0, %v4891
      %v4893 = vpop.f32.mrb[0].mxu0
      %4894 = vmatprep.mubr.bf16.mxu0 0
      %4895 = vmatmul.mubr.bf16.gmra.mrb[0].mxu0 %v4756
      %v4896 = vpop.f32.mrb[0].mxu0
      %v4897 = vadd.f32 0.0, %v4896
      %v4898 = vpop.f32.mrb[0].mxu0
      %v4899 = vpop.f32.mrb[0].mxu0
      %v4900 = vadd.f32 0.0, %v4899
      %v4901 = vpop.f32.mrb[0].mxu0
      %4902 = vdwg.mxu0
      %v4903 = vadd.f32 %v4707, %v4793
      %v4904 = vadd.f32 %v4708, %v4796
      %v4905 = vadd.f32 %v4709, %v4801
      %v4906 = vadd.f32 %v4710, %v4804
      %v4907 = vadd.f32 %v4711, %v4809
      %v4908 = vadd.f32 %v4712, %v4812
      %v4909 = vadd.f32 %v4713, %v4817
      %v4910 = vadd.f32 %v4714, %v4820
      %v4911 = vadd.f32 %v4715, %v4825
      %v4912 = vadd.f32 %v4716, %v4828
      %v4913 = vadd.f32 %v4717, %v4833
      %v4914 = vadd.f32 %v4718, %v4836
      %v4915 = vadd.f32 %v4719, %v4841
      %v4916 = vadd.f32 %v4720, %v4844
      %v4917 = vadd.f32 %v4721, %v4849
      %v4918 = vadd.f32 %v4722, %v4852
      %v4919 = vadd.f32 %v4723, %v4857
      %v4920 = vadd.f32 %v4724, %v4860
      %v4921 = vadd.f32 %v4725, %v4865
      %v4922 = vadd.f32 %v4726, %v4868
      %v4923 = vadd.f32 %v4727, %v4873
      %v4924 = vadd.f32 %v4728, %v4876
      %v4925 = vadd.f32 %v4729, %v4881
      %v4926 = vadd.f32 %v4730, %v4884
      %v4927 = vadd.f32 %v4731, %v4889
      %v4928 = vadd.f32 %v4732, %v4892
      %v4929 = vadd.f32 %v4733, %v4897
      %v4930 = vadd.f32 %v4734, %v4900
      %v4932 = vrot.slane %v206, 5
      %v4933 = vrot.slane %v4932, 4
      %v4934 = vrot.slane %v207, 5
      %v4935 = vsel %vm1451, %v4933, %v4934
      %v4936 = vpack.c.b16 %v4741, %v4741
      %v4937 = vunpack.c.l.b16 %v4935
      %v4938 = vpack.c.b16 %v1846, %v1846
      %v4939 = vpack.c.b16 %v4937, %v2913
      %v4942 = vsel %vm366, %v4936, %v4938
      %v4945 = vunpack.c.l.b16 %v282
      %v4946 = vunpack.c.l.b16 %v283
      %v4947 = vpack.c.b16 %v4946, %v4945
      %v4949 = vsel %vm614, %v4942, 0
      %v4952 = vsel %vm614, %v4939, 0
      %4954 = vmatprep.subr.bf16.mxu0 0
      %4955 = vmatpush1.bf16.msra.mxu0 %v4947
      %4956 = vmatprep.subr.bf16.mxu0 0
      %4957 = vmatpush1.bf16.msra.mxu0 0
      %4958 = vmatprep.subr.bf16.mxu0 0
      %4959 = vmatpush1.bf16.msra.mxu0 0
      %4960 = vmatprep.subr.bf16.mxu0 0
      %4961 = vmatpush1.bf16.msra.mxu0 0
      %4962 = vmatprep.subr.bf16.mxu0 0
      %4963 = vmatpush1.bf16.msra.mxu0 0
      %4964 = vmatprep.subr.bf16.mxu0 0
      %4965 = vmatpush1.bf16.msra.mxu0 0
      %4966 = vmatprep.subr.bf16.mxu0 0
      %4967 = vmatpush1.bf16.msra.mxu0 0
      %4968 = vmatprep.subr.bf16.mxu0 0
      %4969 = vmatpush1.bf16.msra.mxu0 0
      %4970 = vmatprep.subr.bf16.mxu0 0
      %4971 = vmatpush1.bf16.msra.mxu0 0
      %4972 = vmatprep.subr.bf16.mxu0 0
      %4973 = vmatpush1.bf16.msra.mxu0 0
      %4974 = vmatprep.subr.bf16.mxu0 0
      %4975 = vmatpush1.bf16.msra.mxu0 0
      %4976 = vmatprep.subr.bf16.mxu0 0
      %4977 = vmatpush1.bf16.msra.mxu0 0
      %4978 = vmatprep.subr.bf16.mxu0 0
      %4979 = vmatpush1.bf16.msra.mxu0 0
      %4980 = vmatprep.subr.bf16.mxu0 0
      %4981 = vmatpush1.bf16.msra.mxu0 0
      %4982 = vmatprep.subr.bf16.mxu0 0
      %4983 = vmatpush1.bf16.msra.mxu0 0
      %4984 = vmatprep.subr.bf16.mxu0 0
      %4985 = vmatpush1.bf16.msra.mxu0 0
      %4986 = vmatprep.mubr.bf16.mxu0 0
      %4987 = vmatmul.mubr.bf16.gmra.mrb[0].mxu0 %v1589
      %v4988 = vpop.f32.mrb[0].mxu0
      %v4989 = vadd.f32 0.0, %v4988
      %v4990 = vpop.f32.mrb[0].mxu0
      %v4991 = vpop.f32.mrb[0].mxu0
      %v4992 = vadd.f32 0.0, %v4991
      %v4993 = vpop.f32.mrb[0].mxu0
      %4994 = vmatprep.mubr.bf16.mxu0 0
      %4995 = vmatmul.mubr.bf16.gmra.mrb[0].mxu0 %v1592
      %v4996 = vpop.f32.mrb[0].mxu0
      %v4997 = vadd.f32 0.0, %v4996
      %v4998 = vpop.f32.mrb[0].mxu0
      %v4999 = vpop.f32.mrb[0].mxu0
      %v5000 = vadd.f32 0.0, %v4999
      %v5001 = vpop.f32.mrb[0].mxu0
      %5002 = vmatprep.mubr.bf16.mxu0 0
      %5003 = vmatmul.mubr.bf16.gmra.mrb[0].mxu0 %v1595
      %v5004 = vpop.f32.mrb[0].mxu0
      %v5005 = vadd.f32 0.0, %v5004
      %v5006 = vpop.f32.mrb[0].mxu0
      %v5007 = vpop.f32.mrb[0].mxu0
      %v5008 = vadd.f32 0.0, %v5007
      %v5009 = vpop.f32.mrb[0].mxu0
      %5010 = vmatprep.mubr.bf16.mxu0 0
      %5011 = vmatmul.mubr.bf16.gmra.mrb[0].mxu0 %v3943
      %v5012 = vpop.f32.mrb[0].mxu0
      %v5013 = vadd.f32 0.0, %v5012
      %v5014 = vpop.f32.mrb[0].mxu0
      %v5015 = vpop.f32.mrb[0].mxu0
      %v5016 = vadd.f32 0.0, %v5015
      %v5017 = vpop.f32.mrb[0].mxu0
      %5018 = vmatprep.mubr.bf16.mxu0 0
      %5019 = vmatmul.mubr.bf16.gmra.mrb[0].mxu0 %v3946
      %v5020 = vpop.f32.mrb[0].mxu0
      %v5021 = vadd.f32 0.0, %v5020
      %v5022 = vpop.f32.mrb[0].mxu0
      %v5023 = vpop.f32.mrb[0].mxu0
      %v5024 = vadd.f32 0.0, %v5023
      %v5025 = vpop.f32.mrb[0].mxu0
      %5026 = vmatprep.mubr.bf16.mxu0 0
      %5027 = vmatmul.mubr.bf16.gmra.mrb[0].mxu0 %v3949
      %v5028 = vpop.f32.mrb[0].mxu0
      %v5029 = vadd.f32 0.0, %v5028
      %v5030 = vpop.f32.mrb[0].mxu0
      %v5031 = vpop.f32.mrb[0].mxu0
      %v5032 = vadd.f32 0.0, %v5031
      %v5033 = vpop.f32.mrb[0].mxu0
      %5034 = vmatprep.mubr.bf16.mxu0 0
      %5035 = vmatmul.mubr.bf16.gmra.mrb[0].mxu0 %v3952
      %v5036 = vpop.f32.mrb[0].mxu0
      %v5037 = vadd.f32 0.0, %v5036
      %v5038 = vpop.f32.mrb[0].mxu0
      %v5039 = vpop.f32.mrb[0].mxu0
      %v5040 = vadd.f32 0.0, %v5039
      %v5041 = vpop.f32.mrb[0].mxu0
      %5042 = vmatprep.mubr.bf16.mxu0 0
      %5043 = vmatmul.mubr.bf16.gmra.mrb[0].mxu0 %v1886
      %v5044 = vpop.f32.mrb[0].mxu0
      %v5045 = vadd.f32 0.0, %v5044
      %v5046 = vpop.f32.mrb[0].mxu0
      %v5047 = vpop.f32.mrb[0].mxu0
      %v5048 = vadd.f32 0.0, %v5047
      %v5049 = vpop.f32.mrb[0].mxu0
      %5050 = vmatprep.mubr.bf16.mxu0 0
      %5051 = vmatmul.mubr.bf16.gmra.mrb[0].mxu0 %v1889
      %v5052 = vpop.f32.mrb[0].mxu0
      %v5053 = vadd.f32 0.0, %v5052
      %v5054 = vpop.f32.mrb[0].mxu0
      %v5055 = vpop.f32.mrb[0].mxu0
      %v5056 = vadd.f32 0.0, %v5055
      %v5057 = vpop.f32.mrb[0].mxu0
      %5058 = vmatprep.mubr.bf16.mxu0 0
      %5059 = vmatmul.mubr.bf16.gmra.mrb[0].mxu0 %v2732
      %v5060 = vpop.f32.mrb[0].mxu0
      %v5061 = vadd.f32 0.0, %v5060
      %v5062 = vpop.f32.mrb[0].mxu0
      %v5063 = vpop.f32.mrb[0].mxu0
      %v5064 = vadd.f32 0.0, %v5063
      %v5065 = vpop.f32.mrb[0].mxu0
      %5066 = vmatprep.mubr.bf16.mxu0 0
      %5067 = vmatmul.mubr.bf16.gmra.mrb[0].mxu0 %v4949
      %v5068 = vpop.f32.mrb[0].mxu0
      %v5069 = vadd.f32 0.0, %v5068
      %v5070 = vpop.f32.mrb[0].mxu0
      %v5071 = vpop.f32.mrb[0].mxu0
      %v5072 = vadd.f32 0.0, %v5071
      %v5073 = vpop.f32.mrb[0].mxu0
      %5074 = vmatprep.mubr.bf16.mxu0 0
      %5075 = vmatmul.mubr.bf16.gmra.mrb[0].mxu0 %v1897
      %v5076 = vpop.f32.mrb[0].mxu0
      %v5077 = vadd.f32 0.0, %v5076
      %v5078 = vpop.f32.mrb[0].mxu0
      %v5079 = vpop.f32.mrb[0].mxu0
      %v5080 = vadd.f32 0.0, %v5079
      %v5081 = vpop.f32.mrb[0].mxu0
      %5082 = vmatprep.mubr.bf16.mxu0 0
      %5083 = vmatmul.mubr.bf16.gmra.mrb[0].mxu0 %v1900
      %v5084 = vpop.f32.mrb[0].mxu0
      %v5085 = vadd.f32 0.0, %v5084
      %v5086 = vpop.f32.mrb[0].mxu0
      %v5087 = vpop.f32.mrb[0].mxu0
      %v5088 = vadd.f32 0.0, %v5087
      %v5089 = vpop.f32.mrb[0].mxu0
      %5090 = vmatprep.mubr.bf16.mxu0 0
      %5091 = vmatmul.mubr.bf16.gmra.mrb[0].mxu0 %v4952
      %v5092 = vpop.f32.mrb[0].mxu0
      %v5093 = vadd.f32 0.0, %v5092
      %v5094 = vpop.f32.mrb[0].mxu0
      %v5095 = vpop.f32.mrb[0].mxu0
      %v5096 = vadd.f32 0.0, %v5095
      %v5097 = vpop.f32.mrb[0].mxu0
      %5098 = vdwg.mxu0
      %v5099 = vadd.f32 %v4903, %v4989
      %v5100 = vadd.f32 %v4904, %v4992
      %v5101 = vadd.f32 %v4905, %v4997
      %v5102 = vadd.f32 %v4906, %v5000
      %v5103 = vadd.f32 %v4907, %v5005
      %v5104 = vadd.f32 %v4908, %v5008
      %v5105 = vadd.f32 %v4909, %v5013
      %v5106 = vadd.f32 %v4910, %v5016
      %v5107 = vadd.f32 %v4911, %v5021
      %v5108 = vadd.f32 %v4912, %v5024
      %v5109 = vadd.f32 %v4913, %v5029
      %v5110 = vadd.f32 %v4914, %v5032
      %v5111 = vadd.f32 %v4915, %v5037
      %v5112 = vadd.f32 %v4916, %v5040
      %v5113 = vadd.f32 %v4917, %v5045
      %v5114 = vadd.f32 %v4918, %v5048
      %v5115 = vadd.f32 %v4919, %v5053
      %v5116 = vadd.f32 %v4920, %v5056
      %v5117 = vadd.f32 %v4921, %v5061
      %v5118 = vadd.f32 %v4922, %v5064
      %v5119 = vadd.f32 %v4923, %v5069
      %v5120 = vadd.f32 %v4924, %v5072
      %v5121 = vadd.f32 %v4925, %v5077
      %v5122 = vadd.f32 %v4926, %v5080
      %v5123 = vadd.f32 %v4927, %v5085
      %v5124 = vadd.f32 %v4928, %v5088
      %v5125 = vadd.f32 %v4929, %v5093
      %v5126 = vadd.f32 %v4930, %v5096
      %v5128 = vunpack.c.l.b16 %v224
      %v5129 = vpack.c.b16 %v3112, %v343
      %v5130 = vpack.c.b16 %v5128, %v5128
      %v5132 = vunpack.c.l.b16 %v242
      %v5133 = vpack.c.b16 %v357, %v357
      %v5134 = vpack.c.b16 %v5132, %v3118
      %v5137 = vsel %vm366, %v5130, %v5133
      %v5140 = vunpack.c.l.b16 %v284
      %v5141 = vunpack.c.l.b16 %v285
      %v5142 = vpack.c.b16 %v5141, %v5140
      %v5145 = vsel %vm614, %v5129, 0
      %v5147 = vsel %vm614, %v5137, 0
      %v5150 = vsel %vm614, %v5134, 0
      %5152 = vmatprep.subr.bf16.mxu0 0
      %5153 = vmatpush1.bf16.msra.mxu0 %v5142
      %5154 = vmatprep.subr.bf16.mxu0 0
      %5155 = vmatpush1.bf16.msra.mxu0 0
      %5156 = vmatprep.subr.bf16.mxu0 0
      %5157 = vmatpush1.bf16.msra.mxu0 0
      %5158 = vmatprep.subr.bf16.mxu0 0
      %5159 = vmatpush1.bf16.msra.mxu0 0
      %5160 = vmatprep.subr.bf16.mxu0 0
      %5161 = vmatpush1.bf16.msra.mxu0 0
      %5162 = vmatprep.subr.bf16.mxu0 0
      %5163 = vmatpush1.bf16.msra.mxu0 0
      %5164 = vmatprep.subr.bf16.mxu0 0
      %5165 = vmatpush1.bf16.msra.mxu0 0
      %5166 = vmatprep.subr.bf16.mxu0 0
      %5167 = vmatpush1.bf16.msra.mxu0 0
      %5168 = vmatprep.subr.bf16.mxu0 0
      %5169 = vmatpush1.bf16.msra.mxu0 0
      %5170 = vmatprep.subr.bf16.mxu0 0
      %5171 = vmatpush1.bf16.msra.mxu0 0
      %5172 = vmatprep.subr.bf16.mxu0 0
      %5173 = vmatpush1.bf16.msra.mxu0 0
      %5174 = vmatprep.subr.bf16.mxu0 0
      %5175 = vmatpush1.bf16.msra.mxu0 0
      %5176 = vmatprep.subr.bf16.mxu0 0
      %5177 = vmatpush1.bf16.msra.mxu0 0
      %5178 = vmatprep.subr.bf16.mxu0 0
      %5179 = vmatpush1.bf16.msra.mxu0 0
      %5180 = vmatprep.subr.bf16.mxu0 0
      %5181 = vmatpush1.bf16.msra.mxu0 0
      %5182 = vmatprep.subr.bf16.mxu0 0
      %5183 = vmatpush1.bf16.msra.mxu0 0
      %5184 = vmatprep.mubr.bf16.mxu0 0
      %5185 = vmatmul.mubr.bf16.gmra.mrb[0].mxu0 %v810
      %v5186 = vpop.f32.mrb[0].mxu0
      %v5187 = vadd.f32 0.0, %v5186
      %v5188 = vpop.f32.mrb[0].mxu0
      %v5189 = vpop.f32.mrb[0].mxu0
      %v5190 = vadd.f32 0.0, %v5189
      %v5191 = vpop.f32.mrb[0].mxu0
      %5192 = vmatprep.mubr.bf16.mxu0 0
      %5193 = vmatmul.mubr.bf16.gmra.mrb[0].mxu0 %v813
      %v5194 = vpop.f32.mrb[0].mxu0
      %v5195 = vadd.f32 0.0, %v5194
      %v5196 = vpop.f32.mrb[0].mxu0
      %v5197 = vpop.f32.mrb[0].mxu0
      %v5198 = vadd.f32 0.0, %v5197
      %v5199 = vpop.f32.mrb[0].mxu0
      %5200 = vmatprep.mubr.bf16.mxu0 0
      %5201 = vmatmul.mubr.bf16.gmra.mrb[0].mxu0 %v4145
      %v5202 = vpop.f32.mrb[0].mxu0
      %v5203 = vadd.f32 0.0, %v5202
      %v5204 = vpop.f32.mrb[0].mxu0
      %v5205 = vpop.f32.mrb[0].mxu0
      %v5206 = vadd.f32 0.0, %v5205
      %v5207 = vpop.f32.mrb[0].mxu0
      %5208 = vmatprep.mubr.bf16.mxu0 0
      %5209 = vmatmul.mubr.bf16.gmra.mrb[0].mxu0 %v4147
      %v5210 = vpop.f32.mrb[0].mxu0
      %v5211 = vadd.f32 0.0, %v5210
      %v5212 = vpop.f32.mrb[0].mxu0
      %v5213 = vpop.f32.mrb[0].mxu0
      %v5214 = vadd.f32 0.0, %v5213
      %v5215 = vpop.f32.mrb[0].mxu0
      %5216 = vmatprep.mubr.bf16.mxu0 0
      %5217 = vmatmul.mubr.bf16.gmra.mrb[0].mxu0 %v821
      %v5218 = vpop.f32.mrb[0].mxu0
      %v5219 = vadd.f32 0.0, %v5218
      %v5220 = vpop.f32.mrb[0].mxu0
      %v5221 = vpop.f32.mrb[0].mxu0
      %v5222 = vadd.f32 0.0, %v5221
      %v5223 = vpop.f32.mrb[0].mxu0
      %5224 = vmatprep.mubr.bf16.mxu0 0
      %5225 = vmatmul.mubr.bf16.gmra.mrb[0].mxu0 %v824
      %v5226 = vpop.f32.mrb[0].mxu0
      %v5227 = vadd.f32 0.0, %v5226
      %v5228 = vpop.f32.mrb[0].mxu0
      %v5229 = vpop.f32.mrb[0].mxu0
      %v5230 = vadd.f32 0.0, %v5229
      %v5231 = vpop.f32.mrb[0].mxu0
      %5232 = vmatprep.mubr.bf16.mxu0 0
      %5233 = vmatmul.mubr.bf16.gmra.mrb[0].mxu0 %v4150
      %v5234 = vpop.f32.mrb[0].mxu0
      %v5235 = vadd.f32 0.0, %v5234
      %v5236 = vpop.f32.mrb[0].mxu0
      %v5237 = vpop.f32.mrb[0].mxu0
      %v5238 = vadd.f32 0.0, %v5237
      %v5239 = vpop.f32.mrb[0].mxu0
      %5240 = vmatprep.mubr.bf16.mxu0 0
      %5241 = vmatmul.mubr.bf16.gmra.mrb[0].mxu0 %v830
      %v5242 = vpop.f32.mrb[0].mxu0
      %v5243 = vadd.f32 0.0, %v5242
      %v5244 = vpop.f32.mrb[0].mxu0
      %v5245 = vpop.f32.mrb[0].mxu0
      %v5246 = vadd.f32 0.0, %v5245
      %v5247 = vpop.f32.mrb[0].mxu0
      %5248 = vmatprep.mubr.bf16.mxu0 0
      %5249 = vmatmul.mubr.bf16.gmra.mrb[0].mxu0 %v833
      %v5250 = vpop.f32.mrb[0].mxu0
      %v5251 = vadd.f32 0.0, %v5250
      %v5252 = vpop.f32.mrb[0].mxu0
      %v5253 = vpop.f32.mrb[0].mxu0
      %v5254 = vadd.f32 0.0, %v5253
      %v5255 = vpop.f32.mrb[0].mxu0
      %5256 = vmatprep.mubr.bf16.mxu0 0
      %5257 = vmatmul.mubr.bf16.gmra.mrb[0].mxu0 %v5145
      %v5258 = vpop.f32.mrb[0].mxu0
      %v5259 = vadd.f32 0.0, %v5258
      %v5260 = vpop.f32.mrb[0].mxu0
      %v5261 = vpop.f32.mrb[0].mxu0
      %v5262 = vadd.f32 0.0, %v5261
      %v5263 = vpop.f32.mrb[0].mxu0
      %5264 = vmatprep.mubr.bf16.mxu0 0
      %5265 = vmatmul.mubr.bf16.gmra.mrb[0].mxu0 %v5147
      %v5266 = vpop.f32.mrb[0].mxu0
      %v5267 = vadd.f32 0.0, %v5266
      %v5268 = vpop.f32.mrb[0].mxu0
      %v5269 = vpop.f32.mrb[0].mxu0
      %v5270 = vadd.f32 0.0, %v5269
      %v5271 = vpop.f32.mrb[0].mxu0
      %5272 = vmatprep.mubr.bf16.mxu0 0
      %5273 = vmatmul.mubr.bf16.gmra.mrb[0].mxu0 %v841
      %v5274 = vpop.f32.mrb[0].mxu0
      %v5275 = vadd.f32 0.0, %v5274
      %v5276 = vpop.f32.mrb[0].mxu0
      %v5277 = vpop.f32.mrb[0].mxu0
      %v5278 = vadd.f32 0.0, %v5277
      %v5279 = vpop.f32.mrb[0].mxu0
      %5280 = vmatprep.mubr.bf16.mxu0 0
      %5281 = vmatmul.mubr.bf16.gmra.mrb[0].mxu0 %v844
      %v5282 = vpop.f32.mrb[0].mxu0
      %v5283 = vadd.f32 0.0, %v5282
      %v5284 = vpop.f32.mrb[0].mxu0
      %v5285 = vpop.f32.mrb[0].mxu0
      %v5286 = vadd.f32 0.0, %v5285
      %v5287 = vpop.f32.mrb[0].mxu0
      %5288 = vmatprep.mubr.bf16.mxu0 0
      %5289 = vmatmul.mubr.bf16.gmra.mrb[0].mxu0 %v5150
      %v5290 = vpop.f32.mrb[0].mxu0
      %v5291 = vadd.f32 0.0, %v5290
      %v5292 = vpop.f32.mrb[0].mxu0
      %v5293 = vpop.f32.mrb[0].mxu0
      %v5294 = vadd.f32 0.0, %v5293
      %v5295 = vpop.f32.mrb[0].mxu0
      %5296 = vdwg.mxu0
      %v5297 = vadd.f32 %v5099, %v5187
      %v5298 = vadd.f32 %v5100, %v5190
      %v5299 = vadd.f32 %v5101, %v5195
      %v5300 = vadd.f32 %v5102, %v5198
      %v5301 = vadd.f32 %v5103, %v5203
      %v5302 = vadd.f32 %v5104, %v5206
      %v5303 = vadd.f32 %v5105, %v5211
      %v5304 = vadd.f32 %v5106, %v5214
      %v5305 = vadd.f32 %v5107, %v5219
      %v5306 = vadd.f32 %v5108, %v5222
      %v5307 = vadd.f32 %v5109, %v5227
      %v5308 = vadd.f32 %v5110, %v5230
      %v5309 = vadd.f32 %v5111, %v5235
      %v5310 = vadd.f32 %v5112, %v5238
      %v5311 = vadd.f32 %v5113, %v5243
      %v5312 = vadd.f32 %v5114, %v5246
      %v5313 = vadd.f32 %v5115, %v5251
      %v5314 = vadd.f32 %v5116, %v5254
      %v5315 = vadd.f32 %v5117, %v5259
      %v5316 = vadd.f32 %v5118, %v5262
      %v5317 = vadd.f32 %v5119, %v5267
      %v5318 = vadd.f32 %v5120, %v5270
      %v5319 = vadd.f32 %v5121, %v5275
      %v5320 = vadd.f32 %v5122, %v5278
      %v5321 = vadd.f32 %v5123, %v5283
      %v5322 = vadd.f32 %v5124, %v5286
      %v5323 = vadd.f32 %v5125, %v5291
      %v5324 = vadd.f32 %v5126, %v5294
      %v5326 = vshrl.u32 %v224, 16
      %v5328 = vrot.slane %v5326, 4
      %v5329 = vshll.u32 %v224, 16
      %v5331 = vrot.slane %v5329, 5
      %v5332 = vor.u32 %v5328, %v5331
      %v5333 = vrot.slane %v5332, 4
      %v5335 = vshll.u32 %v225, 16
      %v5337 = vrot.slane %v5335, 5
      %v5338 = vsel %vm375, %v5333, %v5337
      %v5339 = vpack.c.b16 %v5132, %v5132
      %v5340 = vunpack.c.l.b16 %v5338
      %v5341 = vpack.c.b16 %v593, %v593
      %v5342 = vpack.c.b16 %v5340, %v3332
      %v5345 = vsel %vm366, %v5339, %v5341
      %v5348 = vunpack.c.l.b16 %v286
      %v5349 = vunpack.c.l.b16 %v287
      %v5350 = vpack.c.b16 %v5349, %v5348
      %v5352 = vsel %vm614, %v5345, 0
      %v5355 = vsel %vm614, %v5342, 0
      %5357 = vmatprep.subr.bf16.mxu0 0
      %5358 = vmatpush1.bf16.msra.mxu0 %v5350
      %5359 = vmatprep.subr.bf16.mxu0 0
      %5360 = vmatpush1.bf16.msra.mxu0 0
      %5361 = vmatprep.subr.bf16.mxu0 0
      %5362 = vmatpush1.bf16.msra.mxu0 0
      %5363 = vmatprep.subr.bf16.mxu0 0
      %5364 = vmatpush1.bf16.msra.mxu0 0
      %5365 = vmatprep.subr.bf16.mxu0 0
      %5366 = vmatpush1.bf16.msra.mxu0 0
      %5367 = vmatprep.subr.bf16.mxu0 0
      %5368 = vmatpush1.bf16.msra.mxu0 0
      %5369 = vmatprep.subr.bf16.mxu0 0
      %5370 = vmatpush1.bf16.msra.mxu0 0
      %5371 = vmatprep.subr.bf16.mxu0 0
      %5372 = vmatpush1.bf16.msra.mxu0 0
      %5373 = vmatprep.subr.bf16.mxu0 0
      %5374 = vmatpush1.bf16.msra.mxu0 0
      %5375 = vmatprep.subr.bf16.mxu0 0
      %5376 = vmatpush1.bf16.msra.mxu0 0
      %5377 = vmatprep.subr.bf16.mxu0 0
      %5378 = vmatpush1.bf16.msra.mxu0 0
      %5379 = vmatprep.subr.bf16.mxu0 0
      %5380 = vmatpush1.bf16.msra.mxu0 0
      %5381 = vmatprep.subr.bf16.mxu0 0
      %5382 = vmatpush1.bf16.msra.mxu0 0
      %5383 = vmatprep.subr.bf16.mxu0 0
      %5384 = vmatpush1.bf16.msra.mxu0 0
      %5385 = vmatprep.subr.bf16.mxu0 0
      %5386 = vmatpush1.bf16.msra.mxu0 0
      %5387 = vmatprep.subr.bf16.mxu0 0
      %5388 = vmatpush1.bf16.msra.mxu0 0
      %5389 = vmatprep.mubr.bf16.mxu0 0
      %5390 = vmatmul.mubr.bf16.gmra.mrb[0].mxu0 %v619
      %v5391 = vpop.f32.mrb[0].mxu0
      %v5392 = vadd.f32 0.0, %v5391
      %v5393 = vpop.f32.mrb[0].mxu0
      %v5394 = vpop.f32.mrb[0].mxu0
      %v5395 = vadd.f32 0.0, %v5394
      %v5396 = vpop.f32.mrb[0].mxu0
      %5397 = vmatprep.mubr.bf16.mxu0 0
      %5398 = vmatmul.mubr.bf16.gmra.mrb[0].mxu0 %v622
      %v5399 = vpop.f32.mrb[0].mxu0
      %v5400 = vadd.f32 0.0, %v5399
      %v5401 = vpop.f32.mrb[0].mxu0
      %v5402 = vpop.f32.mrb[0].mxu0
      %v5403 = vadd.f32 0.0, %v5402
      %v5404 = vpop.f32.mrb[0].mxu0
      %5405 = vmatprep.mubr.bf16.mxu0 0
      %5406 = vmatmul.mubr.bf16.gmra.mrb[0].mxu0 %v2126
      %v5407 = vpop.f32.mrb[0].mxu0
      %v5408 = vadd.f32 0.0, %v5407
      %v5409 = vpop.f32.mrb[0].mxu0
      %v5410 = vpop.f32.mrb[0].mxu0
      %v5411 = vadd.f32 0.0, %v5410
      %v5412 = vpop.f32.mrb[0].mxu0
      %5413 = vmatprep.mubr.bf16.mxu0 0
      %5414 = vmatmul.mubr.bf16.gmra.mrb[0].mxu0 %v4352
      %v5415 = vpop.f32.mrb[0].mxu0
      %v5416 = vadd.f32 0.0, %v5415
      %v5417 = vpop.f32.mrb[0].mxu0
      %v5418 = vpop.f32.mrb[0].mxu0
      %v5419 = vadd.f32 0.0, %v5418
      %v5420 = vpop.f32.mrb[0].mxu0
      %5421 = vmatprep.mubr.bf16.mxu0 0
      %5422 = vmatmul.mubr.bf16.gmra.mrb[0].mxu0 %v630
      %v5423 = vpop.f32.mrb[0].mxu0
      %v5424 = vadd.f32 0.0, %v5423
      %v5425 = vpop.f32.mrb[0].mxu0
      %v5426 = vpop.f32.mrb[0].mxu0
      %v5427 = vadd.f32 0.0, %v5426
      %v5428 = vpop.f32.mrb[0].mxu0
      %5429 = vmatprep.mubr.bf16.mxu0 0
      %5430 = vmatmul.mubr.bf16.gmra.mrb[0].mxu0 %v633
      %v5431 = vpop.f32.mrb[0].mxu0
      %v5432 = vadd.f32 0.0, %v5431
      %v5433 = vpop.f32.mrb[0].mxu0
      %v5434 = vpop.f32.mrb[0].mxu0
      %v5435 = vadd.f32 0.0, %v5434
      %v5436 = vpop.f32.mrb[0].mxu0
      %5437 = vmatprep.mubr.bf16.mxu0 0
      %5438 = vmatmul.mubr.bf16.gmra.mrb[0].mxu0 %v4355
      %v5439 = vpop.f32.mrb[0].mxu0
      %v5440 = vadd.f32 0.0, %v5439
      %v5441 = vpop.f32.mrb[0].mxu0
      %v5442 = vpop.f32.mrb[0].mxu0
      %v5443 = vadd.f32 0.0, %v5442
      %v5444 = vpop.f32.mrb[0].mxu0
      %5445 = vmatprep.mubr.bf16.mxu0 0
      %5446 = vmatmul.mubr.bf16.gmra.mrb[0].mxu0 %v639
      %v5447 = vpop.f32.mrb[0].mxu0
      %v5448 = vadd.f32 0.0, %v5447
      %v5449 = vpop.f32.mrb[0].mxu0
      %v5450 = vpop.f32.mrb[0].mxu0
      %v5451 = vadd.f32 0.0, %v5450
      %v5452 = vpop.f32.mrb[0].mxu0
      %5453 = vmatprep.mubr.bf16.mxu0 0
      %5454 = vmatmul.mubr.bf16.gmra.mrb[0].mxu0 %v642
      %v5455 = vpop.f32.mrb[0].mxu0
      %v5456 = vadd.f32 0.0, %v5455
      %v5457 = vpop.f32.mrb[0].mxu0
      %v5458 = vpop.f32.mrb[0].mxu0
      %v5459 = vadd.f32 0.0, %v5458
      %v5460 = vpop.f32.mrb[0].mxu0
      %5461 = vmatprep.mubr.bf16.mxu0 0
      %5462 = vmatmul.mubr.bf16.gmra.mrb[0].mxu0 %v3142
      %v5463 = vpop.f32.mrb[0].mxu0
      %v5464 = vadd.f32 0.0, %v5463
      %v5465 = vpop.f32.mrb[0].mxu0
      %v5466 = vpop.f32.mrb[0].mxu0
      %v5467 = vadd.f32 0.0, %v5466
      %v5468 = vpop.f32.mrb[0].mxu0
      %5469 = vmatprep.mubr.bf16.mxu0 0
      %5470 = vmatmul.mubr.bf16.gmra.mrb[0].mxu0 %v5352
      %v5471 = vpop.f32.mrb[0].mxu0
      %v5472 = vadd.f32 0.0, %v5471
      %v5473 = vpop.f32.mrb[0].mxu0
      %v5474 = vpop.f32.mrb[0].mxu0
      %v5475 = vadd.f32 0.0, %v5474
      %v5476 = vpop.f32.mrb[0].mxu0
      %5477 = vmatprep.mubr.bf16.mxu0 0
      %5478 = vmatmul.mubr.bf16.gmra.mrb[0].mxu0 %v650
      %v5479 = vpop.f32.mrb[0].mxu0
      %v5480 = vadd.f32 0.0, %v5479
      %v5481 = vpop.f32.mrb[0].mxu0
      %v5482 = vpop.f32.mrb[0].mxu0
      %v5483 = vadd.f32 0.0, %v5482
      %v5484 = vpop.f32.mrb[0].mxu0
      %5485 = vmatprep.mubr.bf16.mxu0 0
      %5486 = vmatmul.mubr.bf16.gmra.mrb[0].mxu0 %v653
      %v5487 = vpop.f32.mrb[0].mxu0
      %v5488 = vadd.f32 0.0, %v5487
      %v5489 = vpop.f32.mrb[0].mxu0
      %v5490 = vpop.f32.mrb[0].mxu0
      %v5491 = vadd.f32 0.0, %v5490
      %v5492 = vpop.f32.mrb[0].mxu0
      %5493 = vmatprep.mubr.bf16.mxu0 0
      %5494 = vmatmul.mubr.bf16.gmra.mrb[0].mxu0 %v5355
      %v5495 = vpop.f32.mrb[0].mxu0
      %v5496 = vadd.f32 0.0, %v5495
      %v5497 = vpop.f32.mrb[0].mxu0
      %v5498 = vpop.f32.mrb[0].mxu0
      %v5499 = vadd.f32 0.0, %v5498
      %v5500 = vpop.f32.mrb[0].mxu0
      %5501 = vdwg.mxu0
      %v5502 = vadd.f32 %v5297, %v5392
      %v5503 = vadd.f32 %v5298, %v5395
      %v5504 = vadd.f32 %v5299, %v5400
      %v5505 = vadd.f32 %v5300, %v5403
      %v5506 = vadd.f32 %v5301, %v5408
      %v5507 = vadd.f32 %v5302, %v5411
      %v5508 = vadd.f32 %v5303, %v5416
      %v5509 = vadd.f32 %v5304, %v5419
      %v5510 = vadd.f32 %v5305, %v5424
      %v5511 = vadd.f32 %v5306, %v5427
      %v5512 = vadd.f32 %v5307, %v5432
      %v5513 = vadd.f32 %v5308, %v5435
      %v5514 = vadd.f32 %v5309, %v5440
      %v5515 = vadd.f32 %v5310, %v5443
      %v5516 = vadd.f32 %v5311, %v5448
      %v5517 = vadd.f32 %v5312, %v5451
      %v5518 = vadd.f32 %v5313, %v5456
      %v5519 = vadd.f32 %v5314, %v5459
      %v5520 = vadd.f32 %v5315, %v5464
      %v5521 = vadd.f32 %v5316, %v5467
      %v5522 = vadd.f32 %v5317, %v5472
      %v5523 = vadd.f32 %v5318, %v5475
      %v5524 = vadd.f32 %v5319, %v5480
      %v5525 = vadd.f32 %v5320, %v5483
      %v5526 = vadd.f32 %v5321, %v5488
      %v5527 = vadd.f32 %v5322, %v5491
      %v5528 = vadd.f32 %v5323, %v5496
      %v5529 = vadd.f32 %v5324, %v5499
      %v5531 = vshrl.u32 %v242, 16
      %v5533 = vrot.slane %v5531, 4
      %v5534 = vshll.u32 %v242, 16
      %v5536 = vrot.slane %v5534, 5
      %v5537 = vor.u32 %v5533, %v5536
      %v5538 = vrot.slane %v5537, 4
      %v5540 = vshll.u32 %v243, 16
      %v5542 = vrot.slane %v5540, 5
      %v5543 = vsel %vm375, %v5538, %v5542
      %v5544 = vpack.c.b16 %v5340, %v5340
      %v5545 = vunpack.c.l.b16 %v5543
      %v5546 = vpack.c.b16 %v1208, %v1208
      %v5547 = vpack.c.b16 %v5545, %v3537
      %v5550 = vsel %vm366, %v5544, %v5546
      %v5553 = vunpack.c.l.b16 %v288
      %v5554 = vunpack.c.l.b16 %v289
      %v5555 = vpack.c.b16 %v5554, %v5553
      %v5557 = vsel %vm614, %v5550, 0
      %v5560 = vsel %vm614, %v5547, 0
      %5562 = vmatprep.subr.bf16.mxu0 0
      %5563 = vmatpush1.bf16.msra.mxu0 %v5555
      %5564 = vmatprep.subr.bf16.mxu0 0
      %5565 = vmatpush1.bf16.msra.mxu0 0
      %5566 = vmatprep.subr.bf16.mxu0 0
      %5567 = vmatpush1.bf16.msra.mxu0 0
      %5568 = vmatprep.subr.bf16.mxu0 0
      %5569 = vmatpush1.bf16.msra.mxu0 0
      %5570 = vmatprep.subr.bf16.mxu0 0
      %5571 = vmatpush1.bf16.msra.mxu0 0
      %5572 = vmatprep.subr.bf16.mxu0 0
      %5573 = vmatpush1.bf16.msra.mxu0 0
      %5574 = vmatprep.subr.bf16.mxu0 0
      %5575 = vmatpush1.bf16.msra.mxu0 0
      %5576 = vmatprep.subr.bf16.mxu0 0
      %5577 = vmatpush1.bf16.msra.mxu0 0
      %5578 = vmatprep.subr.bf16.mxu0 0
      %5579 = vmatpush1.bf16.msra.mxu0 0
      %5580 = vmatprep.subr.bf16.mxu0 0
      %5581 = vmatpush1.bf16.msra.mxu0 0
      %5582 = vmatprep.subr.bf16.mxu0 0
      %5583 = vmatpush1.bf16.msra.mxu0 0
      %5584 = vmatprep.subr.bf16.mxu0 0
      %5585 = vmatpush1.bf16.msra.mxu0 0
      %5586 = vmatprep.subr.bf16.mxu0 0
      %5587 = vmatpush1.bf16.msra.mxu0 0
      %5588 = vmatprep.subr.bf16.mxu0 0
      %5589 = vmatpush1.bf16.msra.mxu0 0
      %5590 = vmatprep.subr.bf16.mxu0 0
      %5591 = vmatpush1.bf16.msra.mxu0 0
      %5592 = vmatprep.subr.bf16.mxu0 0
      %5593 = vmatpush1.bf16.msra.mxu0 0
      %5594 = vmatprep.mubr.bf16.mxu0 0
      %5595 = vmatmul.mubr.bf16.gmra.mrb[0].mxu0 %v1233
      %v5596 = vpop.f32.mrb[0].mxu0
      %v5597 = vadd.f32 0.0, %v5596
      %v5598 = vpop.f32.mrb[0].mxu0
      %v5599 = vpop.f32.mrb[0].mxu0
      %v5600 = vadd.f32 0.0, %v5599
      %v5601 = vpop.f32.mrb[0].mxu0
      %5602 = vmatprep.mubr.bf16.mxu0 0
      %5603 = vmatmul.mubr.bf16.gmra.mrb[0].mxu0 %v1236
      %v5604 = vpop.f32.mrb[0].mxu0
      %v5605 = vadd.f32 0.0, %v5604
      %v5606 = vpop.f32.mrb[0].mxu0
      %v5607 = vpop.f32.mrb[0].mxu0
      %v5608 = vadd.f32 0.0, %v5607
      %v5609 = vpop.f32.mrb[0].mxu0
      %5610 = vmatprep.mubr.bf16.mxu0 0
      %5611 = vmatmul.mubr.bf16.gmra.mrb[0].mxu0 %v2331
      %v5612 = vpop.f32.mrb[0].mxu0
      %v5613 = vadd.f32 0.0, %v5612
      %v5614 = vpop.f32.mrb[0].mxu0
      %v5615 = vpop.f32.mrb[0].mxu0
      %v5616 = vadd.f32 0.0, %v5615
      %v5617 = vpop.f32.mrb[0].mxu0
      %5618 = vmatprep.mubr.bf16.mxu0 0
      %5619 = vmatmul.mubr.bf16.gmra.mrb[0].mxu0 %v4557
      %v5620 = vpop.f32.mrb[0].mxu0
      %v5621 = vadd.f32 0.0, %v5620
      %v5622 = vpop.f32.mrb[0].mxu0
      %v5623 = vpop.f32.mrb[0].mxu0
      %v5624 = vadd.f32 0.0, %v5623
      %v5625 = vpop.f32.mrb[0].mxu0
      %5626 = vmatprep.mubr.bf16.mxu0 0
      %5627 = vmatmul.mubr.bf16.gmra.mrb[0].mxu0 %v1244
      %v5628 = vpop.f32.mrb[0].mxu0
      %v5629 = vadd.f32 0.0, %v5628
      %v5630 = vpop.f32.mrb[0].mxu0
      %v5631 = vpop.f32.mrb[0].mxu0
      %v5632 = vadd.f32 0.0, %v5631
      %v5633 = vpop.f32.mrb[0].mxu0
      %5634 = vmatprep.mubr.bf16.mxu0 0
      %5635 = vmatmul.mubr.bf16.gmra.mrb[0].mxu0 %v1247
      %v5636 = vpop.f32.mrb[0].mxu0
      %v5637 = vadd.f32 0.0, %v5636
      %v5638 = vpop.f32.mrb[0].mxu0
      %v5639 = vpop.f32.mrb[0].mxu0
      %v5640 = vadd.f32 0.0, %v5639
      %v5641 = vpop.f32.mrb[0].mxu0
      %5642 = vmatprep.mubr.bf16.mxu0 0
      %5643 = vmatmul.mubr.bf16.gmra.mrb[0].mxu0 %v4560
      %v5644 = vpop.f32.mrb[0].mxu0
      %v5645 = vadd.f32 0.0, %v5644
      %v5646 = vpop.f32.mrb[0].mxu0
      %v5647 = vpop.f32.mrb[0].mxu0
      %v5648 = vadd.f32 0.0, %v5647
      %v5649 = vpop.f32.mrb[0].mxu0
      %5650 = vmatprep.mubr.bf16.mxu0 0
      %5651 = vmatmul.mubr.bf16.gmra.mrb[0].mxu0 %v1253
      %v5652 = vpop.f32.mrb[0].mxu0
      %v5653 = vadd.f32 0.0, %v5652
      %v5654 = vpop.f32.mrb[0].mxu0
      %v5655 = vpop.f32.mrb[0].mxu0
      %v5656 = vadd.f32 0.0, %v5655
      %v5657 = vpop.f32.mrb[0].mxu0
      %5658 = vmatprep.mubr.bf16.mxu0 0
      %5659 = vmatmul.mubr.bf16.gmra.mrb[0].mxu0 %v1256
      %v5660 = vpop.f32.mrb[0].mxu0
      %v5661 = vadd.f32 0.0, %v5660
      %v5662 = vpop.f32.mrb[0].mxu0
      %v5663 = vpop.f32.mrb[0].mxu0
      %v5664 = vadd.f32 0.0, %v5663
      %v5665 = vpop.f32.mrb[0].mxu0
      %5666 = vmatprep.mubr.bf16.mxu0 0
      %5667 = vmatmul.mubr.bf16.gmra.mrb[0].mxu0 %v3347
      %v5668 = vpop.f32.mrb[0].mxu0
      %v5669 = vadd.f32 0.0, %v5668
      %v5670 = vpop.f32.mrb[0].mxu0
      %v5671 = vpop.f32.mrb[0].mxu0
      %v5672 = vadd.f32 0.0, %v5671
      %v5673 = vpop.f32.mrb[0].mxu0
      %5674 = vmatprep.mubr.bf16.mxu0 0
      %5675 = vmatmul.mubr.bf16.gmra.mrb[0].mxu0 %v5557
      %v5676 = vpop.f32.mrb[0].mxu0
      %v5677 = vadd.f32 0.0, %v5676
      %v5678 = vpop.f32.mrb[0].mxu0
      %v5679 = vpop.f32.mrb[0].mxu0
      %v5680 = vadd.f32 0.0, %v5679
      %v5681 = vpop.f32.mrb[0].mxu0
      %5682 = vmatprep.mubr.bf16.mxu0 0
      %5683 = vmatmul.mubr.bf16.gmra.mrb[0].mxu0 %v1264
      %v5684 = vpop.f32.mrb[0].mxu0
      %v5685 = vadd.f32 0.0, %v5684
      %v5686 = vpop.f32.mrb[0].mxu0
      %v5687 = vpop.f32.mrb[0].mxu0
      %v5688 = vadd.f32 0.0, %v5687
      %v5689 = vpop.f32.mrb[0].mxu0
      %5690 = vmatprep.mubr.bf16.mxu0 0
      %5691 = vmatmul.mubr.bf16.gmra.mrb[0].mxu0 %v1267
      %v5692 = vpop.f32.mrb[0].mxu0
      %v5693 = vadd.f32 0.0, %v5692
      %v5694 = vpop.f32.mrb[0].mxu0
      %v5695 = vpop.f32.mrb[0].mxu0
      %v5696 = vadd.f32 0.0, %v5695
      %v5697 = vpop.f32.mrb[0].mxu0
      %5698 = vmatprep.mubr.bf16.mxu0 0
      %5699 = vmatmul.mubr.bf16.gmra.mrb[0].mxu0 %v5560
      %v5700 = vpop.f32.mrb[0].mxu0
      %v5701 = vadd.f32 0.0, %v5700
      %v5702 = vpop.f32.mrb[0].mxu0
      %v5703 = vpop.f32.mrb[0].mxu0
      %v5704 = vadd.f32 0.0, %v5703
      %v5705 = vpop.f32.mrb[0].mxu0
      %5706 = vdwg.mxu0
      %v5707 = vadd.f32 %v5502, %v5597
      %v5708 = vadd.f32 %v5503, %v5600
      %v5709 = vadd.f32 %v5504, %v5605
      %v5710 = vadd.f32 %v5505, %v5608
      %v5711 = vadd.f32 %v5506, %v5613
      %v5712 = vadd.f32 %v5507, %v5616
      %v5713 = vadd.f32 %v5508, %v5621
      %v5714 = vadd.f32 %v5509, %v5624
      %v5715 = vadd.f32 %v5510, %v5629
      %v5716 = vadd.f32 %v5511, %v5632
      %v5717 = vadd.f32 %v5512, %v5637
      %v5718 = vadd.f32 %v5513, %v5640
      %v5719 = vadd.f32 %v5514, %v5645
      %v5720 = vadd.f32 %v5515, %v5648
      %v5721 = vadd.f32 %v5516, %v5653
      %v5722 = vadd.f32 %v5517, %v5656
      %v5723 = vadd.f32 %v5518, %v5661
      %v5724 = vadd.f32 %v5519, %v5664
      %v5725 = vadd.f32 %v5520, %v5669
      %v5726 = vadd.f32 %v5521, %v5672
      %v5727 = vadd.f32 %v5522, %v5677
      %v5728 = vadd.f32 %v5523, %v5680
      %v5729 = vadd.f32 %v5524, %v5685
      %v5730 = vadd.f32 %v5525, %v5688
      %v5731 = vadd.f32 %v5526, %v5693
      %v5732 = vadd.f32 %v5527, %v5696
      %v5733 = vadd.f32 %v5528, %v5701
      %v5734 = vadd.f32 %v5529, %v5704
      %v5736 = vrot.slane %v224, 5
      %v5737 = vrot.slane %v5736, 4
      %v5738 = vrot.slane %v225, 5
      %v5739 = vsel %vm1451, %v5737, %v5738
      %v5740 = vpack.c.b16 %v5545, %v5545
      %v5741 = vunpack.c.l.b16 %v5739
      %v5742 = vpack.c.b16 %v1536, %v1536
      %v5743 = vpack.c.b16 %v5741, %v3733
      %v5746 = vsel %vm366, %v5740, %v5742
      %v5749 = vunpack.c.l.b16 %v290
      %v5750 = vunpack.c.l.b16 %v291
      %v5751 = vpack.c.b16 %v5750, %v5749
      %v5753 = vsel %vm614, %v5746, 0
      %v5756 = vsel %vm614, %v5743, 0
      %5758 = vmatprep.subr.bf16.mxu0 0
      %5759 = vmatpush1.bf16.msra.mxu0 %v5751
      %5760 = vmatprep.subr.bf16.mxu0 0
      %5761 = vmatpush1.bf16.msra.mxu0 0
      %5762 = vmatprep.subr.bf16.mxu0 0
      %5763 = vmatpush1.bf16.msra.mxu0 0
      %5764 = vmatprep.subr.bf16.mxu0 0
      %5765 = vmatpush1.bf16.msra.mxu0 0
      %5766 = vmatprep.subr.bf16.mxu0 0
      %5767 = vmatpush1.bf16.msra.mxu0 0
      %5768 = vmatprep.subr.bf16.mxu0 0
      %5769 = vmatpush1.bf16.msra.mxu0 0
      %5770 = vmatprep.subr.bf16.mxu0 0
      %5771 = vmatpush1.bf16.msra.mxu0 0
      %5772 = vmatprep.subr.bf16.mxu0 0
      %5773 = vmatpush1.bf16.msra.mxu0 0
      %5774 = vmatprep.subr.bf16.mxu0 0
      %5775 = vmatpush1.bf16.msra.mxu0 0
      %5776 = vmatprep.subr.bf16.mxu0 0
      %5777 = vmatpush1.bf16.msra.mxu0 0
      %5778 = vmatprep.subr.bf16.mxu0 0
      %5779 = vmatpush1.bf16.msra.mxu0 0
      %5780 = vmatprep.subr.bf16.mxu0 0
      %5781 = vmatpush1.bf16.msra.mxu0 0
      %5782 = vmatprep.subr.bf16.mxu0 0
      %5783 = vmatpush1.bf16.msra.mxu0 0
      %5784 = vmatprep.subr.bf16.mxu0 0
      %5785 = vmatpush1.bf16.msra.mxu0 0
      %5786 = vmatprep.subr.bf16.mxu0 0
      %5787 = vmatpush1.bf16.msra.mxu0 0
      %5788 = vmatprep.subr.bf16.mxu0 0
      %5789 = vmatpush1.bf16.msra.mxu0 0
      %5790 = vmatprep.mubr.bf16.mxu0 0
      %5791 = vmatmul.mubr.bf16.gmra.mrb[0].mxu0 %v1561
      %v5792 = vpop.f32.mrb[0].mxu0
      %v5793 = vadd.f32 0.0, %v5792
      %v5794 = vpop.f32.mrb[0].mxu0
      %v5795 = vpop.f32.mrb[0].mxu0
      %v5796 = vadd.f32 0.0, %v5795
      %v5797 = vpop.f32.mrb[0].mxu0
      %5798 = vmatprep.mubr.bf16.mxu0 0
      %5799 = vmatmul.mubr.bf16.gmra.mrb[0].mxu0 %v1564
      %v5800 = vpop.f32.mrb[0].mxu0
      %v5801 = vadd.f32 0.0, %v5800
      %v5802 = vpop.f32.mrb[0].mxu0
      %v5803 = vpop.f32.mrb[0].mxu0
      %v5804 = vadd.f32 0.0, %v5803
      %v5805 = vpop.f32.mrb[0].mxu0
      %5806 = vmatprep.mubr.bf16.mxu0 0
      %5807 = vmatmul.mubr.bf16.gmra.mrb[0].mxu0 %v2536
      %v5808 = vpop.f32.mrb[0].mxu0
      %v5809 = vadd.f32 0.0, %v5808
      %v5810 = vpop.f32.mrb[0].mxu0
      %v5811 = vpop.f32.mrb[0].mxu0
      %v5812 = vadd.f32 0.0, %v5811
      %v5813 = vpop.f32.mrb[0].mxu0
      %5814 = vmatprep.mubr.bf16.mxu0 0
      %5815 = vmatmul.mubr.bf16.gmra.mrb[0].mxu0 %v4753
      %v5816 = vpop.f32.mrb[0].mxu0
      %v5817 = vadd.f32 0.0, %v5816
      %v5818 = vpop.f32.mrb[0].mxu0
      %v5819 = vpop.f32.mrb[0].mxu0
      %v5820 = vadd.f32 0.0, %v5819
      %v5821 = vpop.f32.mrb[0].mxu0
      %5822 = vmatprep.mubr.bf16.mxu0 0
      %5823 = vmatmul.mubr.bf16.gmra.mrb[0].mxu0 %v1572
      %v5824 = vpop.f32.mrb[0].mxu0
      %v5825 = vadd.f32 0.0, %v5824
      %v5826 = vpop.f32.mrb[0].mxu0
      %v5827 = vpop.f32.mrb[0].mxu0
      %v5828 = vadd.f32 0.0, %v5827
      %v5829 = vpop.f32.mrb[0].mxu0
      %5830 = vmatprep.mubr.bf16.mxu0 0
      %5831 = vmatmul.mubr.bf16.gmra.mrb[0].mxu0 %v1575
      %v5832 = vpop.f32.mrb[0].mxu0
      %v5833 = vadd.f32 0.0, %v5832
      %v5834 = vpop.f32.mrb[0].mxu0
      %v5835 = vpop.f32.mrb[0].mxu0
      %v5836 = vadd.f32 0.0, %v5835
      %v5837 = vpop.f32.mrb[0].mxu0
      %5838 = vmatprep.mubr.bf16.mxu0 0
      %5839 = vmatmul.mubr.bf16.gmra.mrb[0].mxu0 %v4756
      %v5840 = vpop.f32.mrb[0].mxu0
      %v5841 = vadd.f32 0.0, %v5840
      %v5842 = vpop.f32.mrb[0].mxu0
      %v5843 = vpop.f32.mrb[0].mxu0
      %v5844 = vadd.f32 0.0, %v5843
      %v5845 = vpop.f32.mrb[0].mxu0
      %5846 = vmatprep.mubr.bf16.mxu0 0
      %5847 = vmatmul.mubr.bf16.gmra.mrb[0].mxu0 %v1581
      %v5848 = vpop.f32.mrb[0].mxu0
      %v5849 = vadd.f32 0.0, %v5848
      %v5850 = vpop.f32.mrb[0].mxu0
      %v5851 = vpop.f32.mrb[0].mxu0
      %v5852 = vadd.f32 0.0, %v5851
      %v5853 = vpop.f32.mrb[0].mxu0
      %5854 = vmatprep.mubr.bf16.mxu0 0
      %5855 = vmatmul.mubr.bf16.gmra.mrb[0].mxu0 %v1584
      %v5856 = vpop.f32.mrb[0].mxu0
      %v5857 = vadd.f32 0.0, %v5856
      %v5858 = vpop.f32.mrb[0].mxu0
      %v5859 = vpop.f32.mrb[0].mxu0
      %v5860 = vadd.f32 0.0, %v5859
      %v5861 = vpop.f32.mrb[0].mxu0
      %5862 = vmatprep.mubr.bf16.mxu0 0
      %5863 = vmatmul.mubr.bf16.gmra.mrb[0].mxu0 %v3552
      %v5864 = vpop.f32.mrb[0].mxu0
      %v5865 = vadd.f32 0.0, %v5864
      %v5866 = vpop.f32.mrb[0].mxu0
      %v5867 = vpop.f32.mrb[0].mxu0
      %v5868 = vadd.f32 0.0, %v5867
      %v5869 = vpop.f32.mrb[0].mxu0
      %5870 = vmatprep.mubr.bf16.mxu0 0
      %5871 = vmatmul.mubr.bf16.gmra.mrb[0].mxu0 %v5753
      %v5872 = vpop.f32.mrb[0].mxu0
      %v5873 = vadd.f32 0.0, %v5872
      %v5874 = vpop.f32.mrb[0].mxu0
      %v5875 = vpop.f32.mrb[0].mxu0
      %v5876 = vadd.f32 0.0, %v5875
      %v5877 = vpop.f32.mrb[0].mxu0
      %5878 = vmatprep.mubr.bf16.mxu0 0
      %5879 = vmatmul.mubr.bf16.gmra.mrb[0].mxu0 %v1592
      %v5880 = vpop.f32.mrb[0].mxu0
      %v5881 = vadd.f32 0.0, %v5880
      %v5882 = vpop.f32.mrb[0].mxu0
      %v5883 = vpop.f32.mrb[0].mxu0
      %v5884 = vadd.f32 0.0, %v5883
      %v5885 = vpop.f32.mrb[0].mxu0
      %5886 = vmatprep.mubr.bf16.mxu0 0
      %5887 = vmatmul.mubr.bf16.gmra.mrb[0].mxu0 %v1595
      %v5888 = vpop.f32.mrb[0].mxu0
      %v5889 = vadd.f32 0.0, %v5888
      %v5890 = vpop.f32.mrb[0].mxu0
      %v5891 = vpop.f32.mrb[0].mxu0
      %v5892 = vadd.f32 0.0, %v5891
      %v5893 = vpop.f32.mrb[0].mxu0
      %5894 = vmatprep.mubr.bf16.mxu0 0
      %5895 = vmatmul.mubr.bf16.gmra.mrb[0].mxu0 %v5756
      %v5896 = vpop.f32.mrb[0].mxu0
      %v5897 = vadd.f32 0.0, %v5896
      %v5898 = vpop.f32.mrb[0].mxu0
      %v5899 = vpop.f32.mrb[0].mxu0
      %v5900 = vadd.f32 0.0, %v5899
      %v5901 = vpop.f32.mrb[0].mxu0
      %5902 = vdwg.mxu0
      %v5903 = vadd.f32 %v5707, %v5793
      %v5904 = vadd.f32 %v5708, %v5796
      %v5905 = vadd.f32 %v5709, %v5801
      %v5906 = vadd.f32 %v5710, %v5804
      %v5907 = vadd.f32 %v5711, %v5809
      %v5908 = vadd.f32 %v5712, %v5812
      %v5909 = vadd.f32 %v5713, %v5817
      %v5910 = vadd.f32 %v5714, %v5820
      %v5911 = vadd.f32 %v5715, %v5825
      %v5912 = vadd.f32 %v5716, %v5828
      %v5913 = vadd.f32 %v5717, %v5833
      %v5914 = vadd.f32 %v5718, %v5836
      %v5915 = vadd.f32 %v5719, %v5841
      %v5916 = vadd.f32 %v5720, %v5844
      %v5917 = vadd.f32 %v5721, %v5849
      %v5918 = vadd.f32 %v5722, %v5852
      %v5919 = vadd.f32 %v5723, %v5857
      %v5920 = vadd.f32 %v5724, %v5860
      %v5921 = vadd.f32 %v5725, %v5865
      %v5922 = vadd.f32 %v5726, %v5868
      %v5923 = vadd.f32 %v5727, %v5873
      %v5924 = vadd.f32 %v5728, %v5876
      %v5925 = vadd.f32 %v5729, %v5881
      %v5926 = vadd.f32 %v5730, %v5884
      %v5927 = vadd.f32 %v5731, %v5889
      %v5928 = vadd.f32 %v5732, %v5892
      %v5929 = vadd.f32 %v5733, %v5897
      %v5930 = vadd.f32 %v5734, %v5900
      %v5932 = vrot.slane %v242, 5
      %v5933 = vrot.slane %v5932, 4
      %v5934 = vrot.slane %v243, 5
      %v5935 = vsel %vm1451, %v5933, %v5934
      %v5936 = vpack.c.b16 %v5741, %v5741
      %v5937 = vunpack.c.l.b16 %v5935
      %v5938 = vpack.c.b16 %v1861, %v1861
      %v5939 = vpack.c.b16 %v5937, %v3929
      %v5942 = vsel %vm366, %v5936, %v5938
      %v5945 = vunpack.c.l.b16 %v292
      %v5946 = vunpack.c.l.b16 %v293
      %v5947 = vpack.c.b16 %v5946, %v5945
      %v5949 = vsel %vm614, %v5942, 0
      %v5952 = vsel %vm614, %v5939, 0
      %5954 = vmatprep.subr.bf16.mxu0 0
      %5955 = vmatpush1.bf16.msra.mxu0 %v5947
      %5956 = vmatprep.subr.bf16.mxu0 0
      %5957 = vmatpush1.bf16.msra.mxu0 0
      %5958 = vmatprep.subr.bf16.mxu0 0
      %5959 = vmatpush1.bf16.msra.mxu0 0
      %5960 = vmatprep.subr.bf16.mxu0 0
      %5961 = vmatpush1.bf16.msra.mxu0 0
      %5962 = vmatprep.subr.bf16.mxu0 0
      %5963 = vmatpush1.bf16.msra.mxu0 0
      %5964 = vmatprep.subr.bf16.mxu0 0
      %5965 = vmatpush1.bf16.msra.mxu0 0
      %5966 = vmatprep.subr.bf16.mxu0 0
      %5967 = vmatpush1.bf16.msra.mxu0 0
      %5968 = vmatprep.subr.bf16.mxu0 0
      %5969 = vmatpush1.bf16.msra.mxu0 0
      %5970 = vmatprep.subr.bf16.mxu0 0
      %5971 = vmatpush1.bf16.msra.mxu0 0
      %5972 = vmatprep.subr.bf16.mxu0 0
      %5973 = vmatpush1.bf16.msra.mxu0 0
      %5974 = vmatprep.subr.bf16.mxu0 0
      %5975 = vmatpush1.bf16.msra.mxu0 0
      %5976 = vmatprep.subr.bf16.mxu0 0
      %5977 = vmatpush1.bf16.msra.mxu0 0
      %5978 = vmatprep.subr.bf16.mxu0 0
      %5979 = vmatpush1.bf16.msra.mxu0 0
      %5980 = vmatprep.subr.bf16.mxu0 0
      %5981 = vmatpush1.bf16.msra.mxu0 0
      %5982 = vmatprep.subr.bf16.mxu0 0
      %5983 = vmatpush1.bf16.msra.mxu0 0
      %5984 = vmatprep.subr.bf16.mxu0 0
      %5985 = vmatpush1.bf16.msra.mxu0 0
      %5986 = vmatprep.mubr.bf16.mxu0 0
      %5987 = vmatmul.mubr.bf16.gmra.mrb[0].mxu0 %v1886
      %v5988 = vpop.f32.mrb[0].mxu0
      %v5989 = vadd.f32 0.0, %v5988
      %v5990 = vpop.f32.mrb[0].mxu0
      %v5991 = vpop.f32.mrb[0].mxu0
      %v5992 = vadd.f32 0.0, %v5991
      %v5993 = vpop.f32.mrb[0].mxu0
      %5994 = vmatprep.mubr.bf16.mxu0 0
      %5995 = vmatmul.mubr.bf16.gmra.mrb[0].mxu0 %v1889
      %v5996 = vpop.f32.mrb[0].mxu0
      %v5997 = vadd.f32 0.0, %v5996
      %v5998 = vpop.f32.mrb[0].mxu0
      %v5999 = vpop.f32.mrb[0].mxu0
      %v6000 = vadd.f32 0.0, %v5999
      %v6001 = vpop.f32.mrb[0].mxu0
      %6002 = vmatprep.mubr.bf16.mxu0 0
      %6003 = vmatmul.mubr.bf16.gmra.mrb[0].mxu0 %v2732
      %v6004 = vpop.f32.mrb[0].mxu0
      %v6005 = vadd.f32 0.0, %v6004
      %v6006 = vpop.f32.mrb[0].mxu0
      %v6007 = vpop.f32.mrb[0].mxu0
      %v6008 = vadd.f32 0.0, %v6007
      %v6009 = vpop.f32.mrb[0].mxu0
      %6010 = vmatprep.mubr.bf16.mxu0 0
      %6011 = vmatmul.mubr.bf16.gmra.mrb[0].mxu0 %v4949
      %v6012 = vpop.f32.mrb[0].mxu0
      %v6013 = vadd.f32 0.0, %v6012
      %v6014 = vpop.f32.mrb[0].mxu0
      %v6015 = vpop.f32.mrb[0].mxu0
      %v6016 = vadd.f32 0.0, %v6015
      %v6017 = vpop.f32.mrb[0].mxu0
      %6018 = vmatprep.mubr.bf16.mxu0 0
      %6019 = vmatmul.mubr.bf16.gmra.mrb[0].mxu0 %v1897
      %v6020 = vpop.f32.mrb[0].mxu0
      %v6021 = vadd.f32 0.0, %v6020
      %v6022 = vpop.f32.mrb[0].mxu0
      %v6023 = vpop.f32.mrb[0].mxu0
      %v6024 = vadd.f32 0.0, %v6023
      %v6025 = vpop.f32.mrb[0].mxu0
      %6026 = vmatprep.mubr.bf16.mxu0 0
      %6027 = vmatmul.mubr.bf16.gmra.mrb[0].mxu0 %v1900
      %v6028 = vpop.f32.mrb[0].mxu0
      %v6029 = vadd.f32 0.0, %v6028
      %v6030 = vpop.f32.mrb[0].mxu0
      %v6031 = vpop.f32.mrb[0].mxu0
      %v6032 = vadd.f32 0.0, %v6031
      %v6033 = vpop.f32.mrb[0].mxu0
      %6034 = vmatprep.mubr.bf16.mxu0 0
      %6035 = vmatmul.mubr.bf16.gmra.mrb[0].mxu0 %v4952
      %v6036 = vpop.f32.mrb[0].mxu0
      %v6037 = vadd.f32 0.0, %v6036
      %v6038 = vpop.f32.mrb[0].mxu0
      %v6039 = vpop.f32.mrb[0].mxu0
      %v6040 = vadd.f32 0.0, %v6039
      %v6041 = vpop.f32.mrb[0].mxu0
      %6042 = vmatprep.mubr.bf16.mxu0 0
      %6043 = vmatmul.mubr.bf16.gmra.mrb[0].mxu0 %v1906
      %v6044 = vpop.f32.mrb[0].mxu0
      %v6045 = vadd.f32 0.0, %v6044
      %v6046 = vpop.f32.mrb[0].mxu0
      %v6047 = vpop.f32.mrb[0].mxu0
      %v6048 = vadd.f32 0.0, %v6047
      %v6049 = vpop.f32.mrb[0].mxu0
      %6050 = vmatprep.mubr.bf16.mxu0 0
      %6051 = vmatmul.mubr.bf16.gmra.mrb[0].mxu0 %v1909
      %v6052 = vpop.f32.mrb[0].mxu0
      %v6053 = vadd.f32 0.0, %v6052
      %v6054 = vpop.f32.mrb[0].mxu0
      %v6055 = vpop.f32.mrb[0].mxu0
      %v6056 = vadd.f32 0.0, %v6055
      %v6057 = vpop.f32.mrb[0].mxu0
      %6058 = vmatprep.mubr.bf16.mxu0 0
      %6059 = vmatmul.mubr.bf16.gmra.mrb[0].mxu0 %v3748
      %v6060 = vpop.f32.mrb[0].mxu0
      %v6061 = vadd.f32 0.0, %v6060
      %v6062 = vpop.f32.mrb[0].mxu0
      %v6063 = vpop.f32.mrb[0].mxu0
      %v6064 = vadd.f32 0.0, %v6063
      %v6065 = vpop.f32.mrb[0].mxu0
      %6066 = vmatprep.mubr.bf16.mxu0 0
      %6067 = vmatmul.mubr.bf16.gmra.mrb[0].mxu0 %v5949
      %v6068 = vpop.f32.mrb[0].mxu0
      %v6069 = vadd.f32 0.0, %v6068
      %v6070 = vpop.f32.mrb[0].mxu0
      %v6071 = vpop.f32.mrb[0].mxu0
      %v6072 = vadd.f32 0.0, %v6071
      %v6073 = vpop.f32.mrb[0].mxu0
      %6074 = vmatprep.mubr.bf16.mxu0 0
      %6075 = vmatmul.mubr.bf16.gmra.mrb[0].mxu0 %v1917
      %v6076 = vpop.f32.mrb[0].mxu0
      %v6077 = vadd.f32 0.0, %v6076
      %v6078 = vpop.f32.mrb[0].mxu0
      %v6079 = vpop.f32.mrb[0].mxu0
      %v6080 = vadd.f32 0.0, %v6079
      %v6081 = vpop.f32.mrb[0].mxu0
      %6082 = vmatprep.mubr.bf16.mxu0 0
      %6083 = vmatmul.mubr.bf16.gmra.mrb[0].mxu0 %v1920
      %v6084 = vpop.f32.mrb[0].mxu0
      %v6085 = vadd.f32 0.0, %v6084
      %v6086 = vpop.f32.mrb[0].mxu0
      %v6087 = vpop.f32.mrb[0].mxu0
      %v6088 = vadd.f32 0.0, %v6087
      %v6089 = vpop.f32.mrb[0].mxu0
      %6090 = vmatprep.mubr.bf16.mxu0 0
      %6091 = vmatmul.mubr.bf16.gmra.mrb[0].mxu0 %v5952
      %v6092 = vpop.f32.mrb[0].mxu0
      %v6093 = vadd.f32 0.0, %v6092
      %v6094 = vpop.f32.mrb[0].mxu0
      %v6095 = vpop.f32.mrb[0].mxu0
      %v6096 = vadd.f32 0.0, %v6095
      %v6097 = vpop.f32.mrb[0].mxu0
      %6098 = vdwg.mxu0
      %v6099 = vadd.f32 %v5903, %v5989
      %v6100 = vadd.f32 %v5904, %v5992
      %v6101 = vadd.f32 %v5905, %v5997
      %v6102 = vadd.f32 %v5906, %v6000
      %v6103 = vadd.f32 %v5907, %v6005
      %v6104 = vadd.f32 %v5908, %v6008
      %v6105 = vadd.f32 %v5909, %v6013
      %v6106 = vadd.f32 %v5910, %v6016
      %v6107 = vadd.f32 %v5911, %v6021
      %v6108 = vadd.f32 %v5912, %v6024
      %v6109 = vadd.f32 %v5913, %v6029
      %v6110 = vadd.f32 %v5914, %v6032
      %v6111 = vadd.f32 %v5915, %v6037
      %v6112 = vadd.f32 %v5916, %v6040
      %v6113 = vadd.f32 %v5917, %v6045
      %v6114 = vadd.f32 %v5918, %v6048
      %v6115 = vadd.f32 %v5919, %v6053
      %v6116 = vadd.f32 %v5920, %v6056
      %v6117 = vadd.f32 %v5921, %v6061
      %v6118 = vadd.f32 %v5922, %v6064
      %v6119 = vadd.f32 %v5923, %v6069
      %v6120 = vadd.f32 %v5924, %v6072
      %v6121 = vadd.f32 %v5925, %v6077
      %v6122 = vadd.f32 %v5926, %v6080
      %v6123 = vadd.f32 %v5927, %v6085
      %v6124 = vadd.f32 %v5928, %v6088
      %v6125 = vadd.f32 %v5929, %v6093
      %v6126 = vadd.f32 %v5930, %v6096
      %vm6127 = vcmask 261120
      %v6128 = vsel %vm6127, %v6099, -inf
      %v6129 = vsel %vm6127, %v6106, -inf
      %v6130 = vmax.f32 %v6128, %v6129
      %v6131 = vsel %vm6127, %v6113, -inf
      %v6132 = vmax.f32 %v6130, %v6131
      %v6133 = vsel %vm6127, %v6120, -inf
      %v6134 = vmax.f32 %v6132, %v6133
      %v6135 = vsel %vm6127, %v6100, -inf
      %v6136 = vsel %vm6127, %v6107, -inf
      %v6137 = vmax.f32 %v6135, %v6136
      %v6138 = vsel %vm6127, %v6114, -inf
      %v6139 = vmax.f32 %v6137, %v6138
      %v6140 = vsel %vm6127, %v6121, -inf
      %v6141 = vmax.f32 %v6139, %v6140
      %v6142 = vsel %vm6127, %v6101, -inf
      %v6143 = vsel %vm6127, %v6108, -inf
      %v6144 = vmax.f32 %v6142, %v6143
      %v6145 = vsel %vm6127, %v6115, -inf
      %v6146 = vmax.f32 %v6144, %v6145
      %v6147 = vsel %vm6127, %v6122, -inf
      %v6148 = vmax.f32 %v6146, %v6147
      %v6149 = vsel %vm6127, %v6102, -inf
      %v6150 = vsel %vm6127, %v6109, -inf
      %v6151 = vmax.f32 %v6149, %v6150
      %v6152 = vsel %vm6127, %v6116, -inf
      %v6153 = vmax.f32 %v6151, %v6152
      %v6154 = vsel %vm6127, %v6123, -inf
      %v6155 = vmax.f32 %v6153, %v6154
      %v6156 = vsel %vm6127, %v6103, -inf
      %v6157 = vsel %vm6127, %v6110, -inf
      %v6158 = vmax.f32 %v6156, %v6157
      %v6159 = vsel %vm6127, %v6117, -inf
      %v6160 = vmax.f32 %v6158, %v6159
      %v6161 = vsel %vm6127, %v6124, -inf
      %v6162 = vmax.f32 %v6160, %v6161
      %v6163 = vsel %vm6127, %v6104, -inf
      %v6164 = vsel %vm6127, %v6111, -inf
      %v6165 = vmax.f32 %v6163, %v6164
      %v6166 = vsel %vm6127, %v6118, -inf
      %v6167 = vmax.f32 %v6165, %v6166
      %v6168 = vsel %vm6127, %v6125, -inf
      %v6169 = vmax.f32 %v6167, %v6168
      %v6170 = vsel %vm6127, %v6105, -inf
      %v6171 = vsel %vm6127, %v6112, -inf
      %v6172 = vmax.f32 %v6170, %v6171
      %v6173 = vsel %vm6127, %v6119, -inf
      %v6174 = vmax.f32 %v6172, %v6173
      %v6175 = vsel %vm6127, %v6126, -inf
      %v6176 = vmax.f32 %v6174, %v6175
      %v6177 = vld [vmem:[%s2] sm:$0x1]
      %v6179 = vlaneseq
      %v6180 = vshrl.u32 %v6179, 7
      %v6181 = vsub.s32 0, %v6180
      %v6182 = vrot.slane %v6177, %v6181
      %v6184 = vadd.f32 %v6134, %v6182
      %v6185 = vadd.f32 %v6141, %v6182
      %v6186 = vadd.f32 %v6148, %v6182
      %v6187 = vadd.f32 %v6155, %v6182
      %v6188 = vadd.f32 %v6162, %v6182
      %v6189 = vadd.f32 %v6169, %v6182
      %v6190 = vadd.f32 %v6176, %v6182
      %v6191 = vmax.f32 %v6184, 0.0
      %v6192 = vmax.f32 %v6185, 0.0
      %v6193 = vmax.f32 %v6186, 0.0
      %v6194 = vmax.f32 %v6187, 0.0
      %v6195 = vmax.f32 %v6188, 0.0
      %v6196 = vmax.f32 %v6189, 0.0
      %v6197 = vmax.f32 %v6190, 0.0
      %v6198 = vpack.c.bf16 %v6191, %v6191
      %v6199 = vpack.c.bf16 %v6192, %v6192
      %v6200 = vpack.c.bf16 %v6193, %v6193
      %v6201 = vpack.c.bf16 %v6194, %v6194
      %v6202 = vpack.c.bf16 %v6195, %v6195
      %v6203 = vpack.c.bf16 %v6196, %v6196
      %v6204 = vpack.c.bf16 %v6197, %v6197
      %vm6205 = vcmask 257024
      %vm6206 = vmand %vm6205, %vm373
      %v6207 = vld [vmem:[%s170] sm:$0xf]
      %v6208 = vsel %vm6206, %v6198, %v6207
      %6209 = vst [vmem:[%s170] sm:$0xf] %v6208
      %v6210 = vld [vmem:[%s170 + $0x4] sm:$0xf]
      %v6211 = vsel %vm6206, %v6199, %v6210
      %6212 = vst [vmem:[%s170 + $0x4] sm:$0xf] %v6211
      %v6213 = vld [vmem:[%s170 + $0x8] sm:$0xf]
      %v6214 = vsel %vm6206, %v6200, %v6213
      %6215 = vst [vmem:[%s170 + $0x8] sm:$0xf] %v6214
      %v6216 = vld [vmem:[%s170 + $0xc] sm:$0xf]
      %v6217 = vsel %vm6206, %v6201, %v6216
      %6218 = vst [vmem:[%s170 + $0xc] sm:$0xf] %v6217
      %v6219 = vld [vmem:[%s170 + $0x10] sm:$0xf]
      %v6220 = vsel %vm6206, %v6202, %v6219
      %6221 = vst [vmem:[%s170 + $0x10] sm:$0xf] %v6220
      %v6222 = vld [vmem:[%s170 + $0x14] sm:$0xf]
      %v6223 = vsel %vm6206, %v6203, %v6222
      %6224 = vst [vmem:[%s170 + $0x14] sm:$0xf] %v6223
      %v6225 = vld [vmem:[%s170 + $0x18] sm:$0xf]
      %v6226 = vsel %vm6206, %v6204, %v6225
      %6227 = vst [vmem:[%s170 + $0x18] sm:$0xf] %v6226
      %p6228 = scmp.lt.s32.totalorder %s14, 1
      %s6229 = scalar_select %p6228, %s14, 1
      %s6230 = smul.addr %s6229, 7
      %s6231 = smul.addr %s6230, 4
      %s6232 = scalar_lea.vmem %s3, %s6231
      // Predicated region
      $region33: #{_lambda_.4} parent=31 // pred_check
        %p6233 = pneg %p100
      $region34: #{_lambda_.4} parent=31 // pred_check_branch
        %6235 = sbr.rel (%p6233) target = $region36
      $region35: #{_lambda_.4} parent=31 // pred_region
        _
      $region36: #{_lambda_.4} parent=31 // pred_fallthru
        _
    $region32: #{_lambda_.4} parent=5 // pred_fallthru
      _
    %p6236 = scmp.le.s32.totalorder 2, %s9
    // Predicated region
    $region37: #{_lambda_.4} parent=5 // pred_check
      %p6237 = pneg %p6236
    $region38: #{_lambda_.4} parent=5 // pred_check_branch
      %6239 = sbr.rel (%p6237) target = $region40
    $region39: #{_lambda_.4} parent=5 // pred_region
      %s6240 = ssub.s32 %s9, 2
      // Predicated region
      $region41: #{_lambda_.4} parent=39 // pred_check
        %p6241 = pneg %p106
      $region42: #{_lambda_.4} parent=39 // pred_check_branch
        %6243 = sbr.rel (%p6241) target = $region44
      $region43: #{_lambda_.4} parent=39 // pred_region
        %p6244 = scmp.lt.s32.totalorder %s15, 1
        %s6245 = scalar_select %p6244, %s15, 1
        %s6246 = smul.addr %s6245, 7
        %s6247 = smul.addr %s6246, 4
        %s6248 = scalar_lea.vmem %s3, %s6247
      $region44: #{_lambda_.4} parent=39 // pred_fallthru
        _
    $region40: #{_lambda_.4} parent=5 // pred_fallthru
      _
  $region6: #{_lambda_.4} parent=0 // loop_footer
    %s13 = sadd.s32 1, %s9
  $region7: #{_lambda_.4} parent=0 // loop_footer_branch
    %8 = sbr.rel target = $region3
  $region8: #{_lambda_.4} parent=0 // loop_exit
    _

</llo_original>
